<compile_context>
chip_gen: v6e
topology: v6e:2x2x1
jax: 0.10.0
libtpu: 0.0.40
codegen_flags: <defaults>
</compile_context>

<pallas_src>
import jax
import jax.numpy as jnp
from jax.experimental import pallas as pl
from jax.experimental.pallas import tpu as pltpu  # noqa: F401  (TPU backend assumed)

B   = 8     # batch
T   = 8     # sequence length
DIN = 16    # input_dim
H   = 32    # hidden_dim (== mlp_dim since dec_mlp_dim is None)
R   = 3     # num_output (parallel decoder / mapping heads)
L   = 2     # dec_mlp_layers
LEAKY  = 0.01   # nn.LeakyReLU default negative_slope
BN_EPS = 1e-5   # nn.BatchNorm1d default eps


def rnn_univariate_kernel(x_ref,
                          wih0_ref, whh0_ref, bih0_ref, bhh0_ref,
                          wih1_ref, whh1_ref, bih1_ref, bhh1_ref,
                          mlp_w0_ref, mlp_b0_ref, mlp_w1_ref, mlp_b1_ref,
                          out_w_ref, out_b_ref,
                          map_w_ref, map_scale_ref, map_shift_ref,
                          out_ref, hid0_ref):
    # ---- load GRU parameters once (reused T times) --------------------------
    wih0 = [wih0_ref[g] for g in range(3)]
    whh0 = [whh0_ref[g] for g in range(3)]
    bih0 = [bih0_ref[g] for g in range(3)]
    bhh0 = [bhh0_ref[g] for g in range(3)]
    wih1 = [wih1_ref[g] for g in range(3)]
    whh1 = [whh1_ref[g] for g in range(3)]
    bih1 = [bih1_ref[g] for g in range(3)]
    bhh1 = [bhh1_ref[g] for g in range(3)]

    def gru_cell(x_t, h, wih, whh, bih, bhh):
        # PyTorch GRU cell, gate order (r, z, n); one (in, H) weight per gate.
        r = jax.nn.sigmoid(
            jnp.dot(x_t, wih[0], preferred_element_type=jnp.float32) + bih[0]
            + jnp.dot(h, whh[0], preferred_element_type=jnp.float32) + bhh[0])
        z = jax.nn.sigmoid(
            jnp.dot(x_t, wih[1], preferred_element_type=jnp.float32) + bih[1]
            + jnp.dot(h, whh[1], preferred_element_type=jnp.float32) + bhh[1])
        n = jnp.tanh(
            jnp.dot(x_t, wih[2], preferred_element_type=jnp.float32) + bih[2]
            + r * (jnp.dot(h, whh[2], preferred_element_type=jnp.float32) + bhh[2]))
        return (1.0 - z) * n + z * h

    # ---- encoder: 2-layer GRU, statically unrolled over the short sequence --
    h0 = jnp.zeros((B, H), jnp.float32)
    h1 = jnp.zeros((B, H), jnp.float32)
    for t in range(T):                      # static unroll: T is small & fixed
        x_t = x_ref[t]                      # (B, DIN)
        h0 = gru_cell(x_t, h0, wih0, whh0, bih0, bhh0)   # layer 0
        h1 = gru_cell(h0, h1, wih1, whh1, bih1, bhh1)    # layer 1 (inter-layer dropout = id, eval)
    # encoder output = last timestep of top layer (enc_in=None identity, enc_att=False)

    # ---- decoder: R parallel heads fused into lane-dense (B, R*H) matmuls ---
    # MLP layer 0: every head reads the same hidden -> column-stacked (H, R*H) weight.
    hwide = jnp.dot(h1, mlp_w0_ref[...], preferred_element_type=jnp.float32) + mlp_b0_ref[...]
    hwide = jnp.where(hwide > 0, hwide, LEAKY * hwide)        # LeakyReLU (Dropout eval = id)
    # MLP layer 1: block-diagonal (R*H, R*H) weight.
    hwide = jnp.dot(hwide, mlp_w1_ref[...], preferred_element_type=jnp.float32) + mlp_b1_ref[...]
    hwide = jnp.where(hwide > 0, hwide, LEAKY * hwide)
    # Per-head output Linear (fc_hid_out), block-diagonal.
    dec = jnp.dot(hwide, out_w_ref[...], preferred_element_type=jnp.float32) + out_b_ref[...]

    hid0_ref[...] = dec[:, 0:H]             # hidden[0] (decoder 0 output) returned by forward()

    # ---- mapping: R x (Linear(H,1) + eval BatchNorm1d(1)), fused ------------
    lin = jnp.dot(dec, map_w_ref[...], preferred_element_type=jnp.float32)     # (B, R)
    out_ref[...] = lin * map_scale_ref[...] + map_shift_ref[...]


def _block_diag(ws):
    """(R, H, H) per-head weights -> (R*H, R*H) block-diagonal weight (host-side)."""
    r, h, _ = ws.shape
    out = jnp.zeros((r * h, r * h), ws.dtype)
    for i in range(r):
        out = out.at[i * h:(i + 1) * h, i * h:(i + 1) * h].set(ws[i])
    return out


def rnn_univariate_forward(x, p):
    """x: (B, T, DIN); p: per-module parameters (see __main__).
    Returns (output (B, R), hidden0 (B, H)) == rnn_univariate.forward in eval mode."""
    x_tbd = jnp.transpose(x, (1, 0, 2))                                   # (T, B, DIN) time-major

    # --- one-time host-side fusion of the R parallel decoder heads ----------
    mlp_w0 = jnp.concatenate([p["dec_mlp_w"][r, 0] for r in range(R)], axis=1)   # (H, R*H)
    mlp_b0 = p["dec_mlp_b"][:, 0].reshape(1, R * H)
    mlp_w1 = _block_diag(p["dec_mlp_w"][:, 1])                                   # (R*H, R*H)
    mlp_b1 = p["dec_mlp_b"][:, 1].reshape(1, R * H)
    out_w = _block_diag(p["dec_out_w"])                                          # (R*H, R*H)
    out_b = p["dec_out_b"].reshape(1, R * H)

    # --- fuse R mapping Linears(H,1) + eval BatchNorm1d(1) into matmul+affine ---
    map_w = jnp.zeros((R * H, R), jnp.float32)
    for r in range(R):
        map_w = map_w.at[r * H:(r + 1) * H, r].set(p["map_w"][r])
    scale = p["bn_gamma"] / jnp.sqrt(p["bn_rv"] + BN_EPS)                        # (R,)
    shift = (p["map_b"] - p["bn_rm"]) * scale + p["bn_beta"]                     # (R,)
    map_scale = scale.reshape(1, R)
    map_shift = shift.reshape(1, R)

    out_shapes = (jax.ShapeDtypeStruct((B, R), jnp.float32),   # mapping output
                  jax.ShapeDtypeStruct((B, H), jnp.float32))   # hidden[0]

    # Single pallas_call, empty grid: whole arrays live in VMEM (~70 KiB total),
    # no grid-step overhead, no accumulator scratch, no pl.when bookkeeping.
    return pl.pallas_call(
        rnn_univariate_kernel,
        out_shape=out_shapes,
    )(x_tbd,
      p["gru_w_ih0"], p["gru_w_hh0"], p["gru_b_ih0"], p["gru_b_hh0"],
      p["gru_w_ih1"], p["gru_w_hh1"], p["gru_b_ih1"], p["gru_b_hh1"],
      mlp_w0, mlp_b0, mlp_w1, mlp_b1, out_w, out_b,
      map_w, map_scale, map_shift)


def reference(x, p):
    """Pure-JAX re-implementation of rnn_univariate.forward (eval mode)."""
    hp = lambda a, b: jnp.dot(a, b, precision=jax.lax.Precision.HIGHEST)

    def gru_cell(x_t, h, wih, whh, bih, bhh):
        r = jax.nn.sigmoid(hp(x_t, wih[0]) + bih[0] + hp(h, whh[0]) + bhh[0])
        z = jax.nn.sigmoid(hp(x_t, wih[1]) + bih[1] + hp(h, whh[1]) + bhh[1])
        n = jnp.tanh(hp(x_t, wih[2]) + bih[2] + r * (hp(h, whh[2]) + bhh[2]))
        return (1.0 - z) * n + z * h

    h0 = jnp.zeros((x.shape[0], H), jnp.float32)
    h1 = jnp.zeros((x.shape[0], H), jnp.float32)
    for t in range(x.shape[1]):
        h0 = gru_cell(x[:, t], h0, p["gru_w_ih0"], p["gru_w_hh0"], p["gru_b_ih0"], p["gru_b_hh0"])
        h1 = gru_cell(h0, h1, p["gru_w_ih1"], p["gru_w_hh1"], p["gru_b_ih1"], p["gru_b_hh1"])
    hidden = h1                                            # last timestep, top GRU layer

    decs = []
    for r in range(R):
        h = hidden
        for l in range(L):
            h = hp(h, p["dec_mlp_w"][r, l]) + p["dec_mlp_b"][r, l]
            h = jnp.where(h > 0, h, LEAKY * h)             # LeakyReLU; Dropout(eval)=identity
        decs.append(hp(h, p["dec_out_w"][r]) + p["dec_out_b"][r])

    outs = []
    for r in range(R):
        lin = hp(decs[r], p["map_w"][r][:, None]) + p["map_b"][r]              # Linear(H, 1)
        y = ((lin - p["bn_rm"][r]) / jnp.sqrt(p["bn_rv"][r] + BN_EPS)
             * p["bn_gamma"][r] + p["bn_beta"][r])                             # BatchNorm1d(1), eval
        outs.append(y)
    return jnp.concatenate(outs, axis=-1), decs[0]


if __name__ == "__main__":
    key = jax.random.PRNGKey(0)
    ks = jax.random.split(key, 19)
    s = 0.1

    x = jax.random.normal(ks[0], (B, T, DIN), dtype=jnp.float32)

    p = {
        # GRU encoder (2 layers). Weights per-gate (r, z, n), transposed vs torch:
        # w_ih*: (3, in, H), w_hh*: (3, H, H), biases: (3, 1, H).
        "gru_w_ih0": s * jax.random.normal(ks[1], (3, DIN, H), jnp.float32),
        "gru_w_hh0": s * jax.random.normal(ks[2], (3, H, H), jnp.float32),
        "gru_b_ih0": s * jax.random.normal(ks[3], (3, 1, H), jnp.float32),
        "gru_b_hh0": s * jax.random.normal(ks[4], (3, 1, H), jnp.float32),
        "gru_w_ih1": s * jax.random.normal(ks[5], (3, H, H), jnp.float32),
        "gru_w_hh1": s * jax.random.normal(ks[6], (3, H, H), jnp.float32),
        "gru_b_ih1": s * jax.random.normal(ks[7], (3, 1, H), jnp.float32),
        "gru_b_hh1": s * jax.random.normal(ks[8], (3, 1, H), jnp.float32),
        # R parallel uni_rnn_decoders: 2 MLP Linears + output Linear, (in, out) layout.
        "dec_mlp_w": s * jax.random.normal(ks[9], (R, L, H, H), jnp.float32),
        "dec_mlp_b": s * jax.random.normal(ks[10], (R, L, H), jnp.float32),
        "dec_out_w": s * jax.random.normal(ks[11], (R, H, H), jnp.float32),
        "dec_out_b": s * jax.random.normal(ks[12], (R, H), jnp.float32),
        # R parallel uni_rnn_mappings: Linear(H, 1) + BatchNorm1d(1) running stats (eval).
        "map_w": s * jax.random.normal(ks[13], (R, H), jnp.float32),
        "map_b": s * jax.random.normal(ks[14], (R,), jnp.float32),
        "bn_gamma": 1.0 + s * jax.random.normal(ks[15], (R,), jnp.float32),
        "bn_beta": s * jax.random.normal(ks[16], (R,), jnp.float32),
        "bn_rm": s * jax.random.normal(ks[17], (R,), jnp.float32),
        "bn_rv": 1.0 + s * jax.random.uniform(ks[18], (R,), jnp.float32),
        # TODO(synk): multiloss_alpha is a loss-weighting Parameter, not used in forward().
    }

    out, hid0 = rnn_univariate_forward(x, p)
    out, hid0 = jax.block_until_ready((out, hid0))

    out_ref, hid0_ref = reference(x, p)
    assert out.shape == (B, R) and hid0.shape == (B, H)
    assert jnp.allclose(out, out_ref, atol=1e-3, rtol=1e-3), "output mismatch vs reference"
    assert jnp.allclose(hid0, hid0_ref, atol=1e-3, rtol=1e-3), "hidden[0] mismatch vs reference"

    print("KERNEL_OK")
</pallas_src>

<mosaic_0001>
module attributes {stable_mosaic.version = 11 : i64} {
  func.func @rnn_univariate_kernel(%arg0: memref<8x8x16xf32, #tpu.memory_space<vmem>>, %arg1: memref<3x16x32xf32, #tpu.memory_space<vmem>>, %arg2: memref<3x32x32xf32, #tpu.memory_space<vmem>>, %arg3: memref<3x1x32xf32, #tpu.memory_space<vmem>>, %arg4: memref<3x1x32xf32, #tpu.memory_space<vmem>>, %arg5: memref<3x32x32xf32, #tpu.memory_space<vmem>>, %arg6: memref<3x32x32xf32, #tpu.memory_space<vmem>>, %arg7: memref<3x1x32xf32, #tpu.memory_space<vmem>>, %arg8: memref<3x1x32xf32, #tpu.memory_space<vmem>>, %arg9: memref<32x96xf32, #tpu.memory_space<vmem>>, %arg10: memref<1x96xf32, #tpu.memory_space<vmem>>, %arg11: memref<96x96xf32, #tpu.memory_space<vmem>>, %arg12: memref<1x96xf32, #tpu.memory_space<vmem>>, %arg13: memref<96x96xf32, #tpu.memory_space<vmem>>, %arg14: memref<1x96xf32, #tpu.memory_space<vmem>>, %arg15: memref<96x3xf32, #tpu.memory_space<vmem>>, %arg16: memref<1x3xf32, #tpu.memory_space<vmem>>, %arg17: memref<1x3xf32, #tpu.memory_space<vmem>>, %arg18: memref<8x3xf32, #tpu.memory_space<vmem>>, %arg19: memref<8x32xf32, #tpu.memory_space<vmem>>) attributes {dimension_semantics = [], scalar_prefetch = 0 : i64, scratch_operands = 0 : i64, tpu.core_type = #tpu.core_type<tc>} {
    %c0 = arith.constant 0 : index
    %c0_0 = arith.constant 0 : index
    %c0_1 = arith.constant 0 : index
    %0 = vector.load %arg1[%c0, %c0_0, %c0_1] : memref<3x16x32xf32, #tpu.memory_space<vmem>>, vector<1x16x32xf32>
    %1 = vector.shape_cast %0 : vector<1x16x32xf32> to vector<16x32xf32>
    %c1 = arith.constant 1 : index
    %c0_2 = arith.constant 0 : index
    %c0_3 = arith.constant 0 : index
    %2 = vector.load %arg1[%c1, %c0_2, %c0_3] : memref<3x16x32xf32, #tpu.memory_space<vmem>>, vector<1x16x32xf32>
    %3 = vector.shape_cast %2 : vector<1x16x32xf32> to vector<16x32xf32>
    %c2 = arith.constant 2 : index
    %c0_4 = arith.constant 0 : index
    %c0_5 = arith.constant 0 : index
    %4 = vector.load %arg1[%c2, %c0_4, %c0_5] : memref<3x16x32xf32, #tpu.memory_space<vmem>>, vector<1x16x32xf32>
    %5 = vector.shape_cast %4 : vector<1x16x32xf32> to vector<16x32xf32>
    %c0_6 = arith.constant 0 : index
    %c0_7 = arith.constant 0 : index
    %c0_8 = arith.constant 0 : index
    %6 = vector.load %arg2[%c0_6, %c0_7, %c0_8] : memref<3x32x32xf32, #tpu.memory_space<vmem>>, vector<1x32x32xf32>
    %7 = vector.shape_cast %6 : vector<1x32x32xf32> to vector<32x32xf32>
    %c1_9 = arith.constant 1 : index
    %c0_10 = arith.constant 0 : index
    %c0_11 = arith.constant 0 : index
    %8 = vector.load %arg2[%c1_9, %c0_10, %c0_11] : memref<3x32x32xf32, #tpu.memory_space<vmem>>, vector<1x32x32xf32>
    %9 = vector.shape_cast %8 : vector<1x32x32xf32> to vector<32x32xf32>
    %c2_12 = arith.constant 2 : index
    %c0_13 = arith.constant 0 : index
    %c0_14 = arith.constant 0 : index
    %10 = vector.load %arg2[%c2_12, %c0_13, %c0_14] : memref<3x32x32xf32, #tpu.memory_space<vmem>>, vector<1x32x32xf32>
    %11 = vector.shape_cast %10 : vector<1x32x32xf32> to vector<32x32xf32>
    %c0_15 = arith.constant 0 : index
    %c0_16 = arith.constant 0 : index
    %c0_17 = arith.constant 0 : index
    %12 = vector.load %arg3[%c0_15, %c0_16, %c0_17] : memref<3x1x32xf32, #tpu.memory_space<vmem>>, vector<1x1x32xf32>
    %13 = vector.shape_cast %12 : vector<1x1x32xf32> to vector<1x32xf32>
    %c1_18 = arith.constant 1 : index
    %c0_19 = arith.constant 0 : index
    %c0_20 = arith.constant 0 : index
    %14 = vector.load %arg3[%c1_18, %c0_19, %c0_20] : memref<3x1x32xf32, #tpu.memory_space<vmem>>, vector<1x1x32xf32>
    %15 = vector.shape_cast %14 : vector<1x1x32xf32> to vector<1x32xf32>
    %c2_21 = arith.constant 2 : index
    %c0_22 = arith.constant 0 : index
    %c0_23 = arith.constant 0 : index
    %16 = vector.load %arg3[%c2_21, %c0_22, %c0_23] : memref<3x1x32xf32, #tpu.memory_space<vmem>>, vector<1x1x32xf32>
    %17 = vector.shape_cast %16 : vector<1x1x32xf32> to vector<1x32xf32>
    %c0_24 = arith.constant 0 : index
    %c0_25 = arith.constant 0 : index
    %c0_26 = arith.constant 0 : index
    %18 = vector.load %arg4[%c0_24, %c0_25, %c0_26] : memref<3x1x32xf32, #tpu.memory_space<vmem>>, vector<1x1x32xf32>
    %19 = vector.shape_cast %18 : vector<1x1x32xf32> to vector<1x32xf32>
    %c1_27 = arith.constant 1 : index
    %c0_28 = arith.constant 0 : index
    %c0_29 = arith.constant 0 : index
    %20 = vector.load %arg4[%c1_27, %c0_28, %c0_29] : memref<3x1x32xf32, #tpu.memory_space<vmem>>, vector<1x1x32xf32>
    %21 = vector.shape_cast %20 : vector<1x1x32xf32> to vector<1x32xf32>
    %c2_30 = arith.constant 2 : index
    %c0_31 = arith.constant 0 : index
    %c0_32 = arith.constant 0 : index
    %22 = vector.load %arg4[%c2_30, %c0_31, %c0_32] : memref<3x1x32xf32, #tpu.memory_space<vmem>>, vector<1x1x32xf32>
    %23 = vector.shape_cast %22 : vector<1x1x32xf32> to vector<1x32xf32>
    %c0_33 = arith.constant 0 : index
    %c0_34 = arith.constant 0 : index
    %c0_35 = arith.constant 0 : index
    %24 = vector.load %arg5[%c0_33, %c0_34, %c0_35] : memref<3x32x32xf32, #tpu.memory_space<vmem>>, vector<1x32x32xf32>
    %25 = vector.shape_cast %24 : vector<1x32x32xf32> to vector<32x32xf32>
    %c1_36 = arith.constant 1 : index
    %c0_37 = arith.constant 0 : index
    %c0_38 = arith.constant 0 : index
    %26 = vector.load %arg5[%c1_36, %c0_37, %c0_38] : memref<3x32x32xf32, #tpu.memory_space<vmem>>, vector<1x32x32xf32>
    %27 = vector.shape_cast %26 : vector<1x32x32xf32> to vector<32x32xf32>
    %c2_39 = arith.constant 2 : index
    %c0_40 = arith.constant 0 : index
    %c0_41 = arith.constant 0 : index
    %28 = vector.load %arg5[%c2_39, %c0_40, %c0_41] : memref<3x32x32xf32, #tpu.memory_space<vmem>>, vector<1x32x32xf32>
    %29 = vector.shape_cast %28 : vector<1x32x32xf32> to vector<32x32xf32>
    %c0_42 = arith.constant 0 : index
    %c0_43 = arith.constant 0 : index
    %c0_44 = arith.constant 0 : index
    %30 = vector.load %arg6[%c0_42, %c0_43, %c0_44] : memref<3x32x32xf32, #tpu.memory_space<vmem>>, vector<1x32x32xf32>
    %31 = vector.shape_cast %30 : vector<1x32x32xf32> to vector<32x32xf32>
    %c1_45 = arith.constant 1 : index
    %c0_46 = arith.constant 0 : index
    %c0_47 = arith.constant 0 : index
    %32 = vector.load %arg6[%c1_45, %c0_46, %c0_47] : memref<3x32x32xf32, #tpu.memory_space<vmem>>, vector<1x32x32xf32>
    %33 = vector.shape_cast %32 : vector<1x32x32xf32> to vector<32x32xf32>
    %c2_48 = arith.constant 2 : index
    %c0_49 = arith.constant 0 : index
    %c0_50 = arith.constant 0 : index
    %34 = vector.load %arg6[%c2_48, %c0_49, %c0_50] : memref<3x32x32xf32, #tpu.memory_space<vmem>>, vector<1x32x32xf32>
    %35 = vector.shape_cast %34 : vector<1x32x32xf32> to vector<32x32xf32>
    %c0_51 = arith.constant 0 : index
    %c0_52 = arith.constant 0 : index
    %c0_53 = arith.constant 0 : index
    %36 = vector.load %arg7[%c0_51, %c0_52, %c0_53] : memref<3x1x32xf32, #tpu.memory_space<vmem>>, vector<1x1x32xf32>
    %37 = vector.shape_cast %36 : vector<1x1x32xf32> to vector<1x32xf32>
    %c1_54 = arith.constant 1 : index
    %c0_55 = arith.constant 0 : index
    %c0_56 = arith.constant 0 : index
    %38 = vector.load %arg7[%c1_54, %c0_55, %c0_56] : memref<3x1x32xf32, #tpu.memory_space<vmem>>, vector<1x1x32xf32>
    %39 = vector.shape_cast %38 : vector<1x1x32xf32> to vector<1x32xf32>
    %c2_57 = arith.constant 2 : index
    %c0_58 = arith.constant 0 : index
    %c0_59 = arith.constant 0 : index
    %40 = vector.load %arg7[%c2_57, %c0_58, %c0_59] : memref<3x1x32xf32, #tpu.memory_space<vmem>>, vector<1x1x32xf32>
    %41 = vector.shape_cast %40 : vector<1x1x32xf32> to vector<1x32xf32>
    %c0_60 = arith.constant 0 : index
    %c0_61 = arith.constant 0 : index
    %c0_62 = arith.constant 0 : index
    %42 = vector.load %arg8[%c0_60, %c0_61, %c0_62] : memref<3x1x32xf32, #tpu.memory_space<vmem>>, vector<1x1x32xf32>
    %43 = vector.shape_cast %42 : vector<1x1x32xf32> to vector<1x32xf32>
    %c1_63 = arith.constant 1 : index
    %c0_64 = arith.constant 0 : index
    %c0_65 = arith.constant 0 : index
    %44 = vector.load %arg8[%c1_63, %c0_64, %c0_65] : memref<3x1x32xf32, #tpu.memory_space<vmem>>, vector<1x1x32xf32>
    %45 = vector.shape_cast %44 : vector<1x1x32xf32> to vector<1x32xf32>
    %c2_66 = arith.constant 2 : index
    %c0_67 = arith.constant 0 : index
    %c0_68 = arith.constant 0 : index
    %46 = vector.load %arg8[%c2_66, %c0_67, %c0_68] : memref<3x1x32xf32, #tpu.memory_space<vmem>>, vector<1x1x32xf32>
    %47 = vector.shape_cast %46 : vector<1x1x32xf32> to vector<1x32xf32>
    %cst = arith.constant 0.000000e+00 : f32
    %48 = vector.broadcast %cst : f32 to vector<8x32xf32>
    %cst_69 = arith.constant 0.000000e+00 : f32
    %49 = vector.broadcast %cst_69 : f32 to vector<8x32xf32>
    %c0_70 = arith.constant 0 : index
    %c0_71 = arith.constant 0 : index
    %c0_72 = arith.constant 0 : index
    %50 = vector.load %arg0[%c0_70, %c0_71, %c0_72] : memref<8x8x16xf32, #tpu.memory_space<vmem>>, vector<1x8x16xf32>
    %51 = vector.shape_cast %50 : vector<1x8x16xf32> to vector<8x16xf32>
    %cst_73 = arith.constant dense<0.000000e+00> : vector<8x32xf32>
    %52 = tpu.matmul %51, %1, %cst_73 {dimension_numbers = #tpu.dot_dimension_numbers<[1], [0], [0], [1], [0, 0, 1, 1], [], []>} : vector<8x16xf32>, vector<16x32xf32>, vector<8x32xf32> -> vector<8x32xf32>
    %53 = vector.broadcast %13 : vector<1x32xf32> to vector<8x32xf32>
    %54 = arith.addf %52, %53 : vector<8x32xf32>
    %cst_74 = arith.constant dense<0.000000e+00> : vector<8x32xf32>
    %55 = tpu.matmul %48, %7, %cst_74 {dimension_numbers = #tpu.dot_dimension_numbers<[1], [0], [0], [1], [0, 0, 1, 1], [], []>} : vector<8x32xf32>, vector<32x32xf32>, vector<8x32xf32> -> vector<8x32xf32>
    %56 = arith.addf %54, %55 : vector<8x32xf32>
    %57 = vector.broadcast %19 : vector<1x32xf32> to vector<8x32xf32>
    %58 = arith.addf %56, %57 : vector<8x32xf32>
    %59 = arith.negf %58 : vector<8x32xf32>
    %60 = math.exp %59 : vector<8x32xf32>
    %cst_75 = arith.constant 1.000000e+00 : f32
    %61 = vector.broadcast %cst_75 : f32 to vector<8x32xf32>
    %62 = arith.addf %61, %60 : vector<8x32xf32>
    %63 = arith.divf %61, %62 : vector<8x32xf32>
    %cst_76 = arith.constant dense<0.000000e+00> : vector<8x32xf32>
    %64 = tpu.matmul %51, %3, %cst_76 {dimension_numbers = #tpu.dot_dimension_numbers<[1], [0], [0], [1], [0, 0, 1, 1], [], []>} : vector<8x16xf32>, vector<16x32xf32>, vector<8x32xf32> -> vector<8x32xf32>
    %65 = vector.broadcast %15 : vector<1x32xf32> to vector<8x32xf32>
    %66 = arith.addf %64, %65 : vector<8x32xf32>
    %cst_77 = arith.constant dense<0.000000e+00> : vector<8x32xf32>
    %67 = tpu.matmul %48, %9, %cst_77 {dimension_numbers = #tpu.dot_dimension_numbers<[1], [0], [0], [1], [0, 0, 1, 1], [], []>} : vector<8x32xf32>, vector<32x32xf32>, vector<8x32xf32> -> vector<8x32xf32>
    %68 = arith.addf %66, %67 : vector<8x32xf32>
    %69 = vector.broadcast %21 : vector<1x32xf32> to vector<8x32xf32>
    %70 = arith.addf %68, %69 : vector<8x32xf32>
    %71 = arith.negf %70 : vector<8x32xf32>
    %72 = math.exp %71 : vector<8x32xf32>
    %cst_78 = arith.constant 1.000000e+00 : f32
    %73 = vector.broadcast %cst_78 : f32 to vector<8x32xf32>
    %74 = arith.addf %73, %72 : vector<8x32xf32>
    %75 = arith.divf %73, %74 : vector<8x32xf32>
    %cst_79 = arith.constant dense<0.000000e+00> : vector<8x32xf32>
    %76 = tpu.matmul %51, %5, %cst_79 {dimension_numbers = #tpu.dot_dimension_numbers<[1], [0], [0], [1], [0, 0, 1, 1], [], []>} : vector<8x16xf32>, vector<16x32xf32>, vector<8x32xf32> -> vector<8x32xf32>
    %77 = vector.broadcast %17 : vector<1x32xf32> to vector<8x32xf32>
    %78 = arith.addf %76, %77 : vector<8x32xf32>
    %cst_80 = arith.constant dense<0.000000e+00> : vector<8x32xf32>
    %79 = tpu.matmul %48, %11, %cst_80 {dimension_numbers = #tpu.dot_dimension_numbers<[1], [0], [0], [1], [0, 0, 1, 1], [], []>} : vector<8x32xf32>, vector<32x32xf32>, vector<8x32xf32> -> vector<8x32xf32>
    %80 = vector.broadcast %23 : vector<1x32xf32> to vector<8x32xf32>
    %81 = arith.addf %79, %80 : vector<8x32xf32>
    %82 = arith.mulf %63, %81 : vector<8x32xf32>
    %83 = arith.addf %78, %82 : vector<8x32xf32>
    %84 = math.tanh %83 : vector<8x32xf32>
    %cst_81 = arith.constant 1.000000e+00 : f32
    %85 = vector.broadcast %cst_81 : f32 to vector<8x32xf32>
    %86 = arith.subf %85, %75 : vector<8x32xf32>
    %87 = arith.mulf %86, %84 : vector<8x32xf32>
    %88 = arith.mulf %75, %48 : vector<8x32xf32>
    %89 = arith.addf %87, %88 : vector<8x32xf32>
    %cst_82 = arith.constant dense<0.000000e+00> : vector<8x32xf32>
    %90 = tpu.matmul %89, %25, %cst_82 {dimension_numbers = #tpu.dot_dimension_numbers<[1], [0], [0], [1], [0, 0, 1, 1], [], []>} : vector<8x32xf32>, vector<32x32xf32>, vector<8x32xf32> -> vector<8x32xf32>
    %91 = vector.broadcast %37 : vector<1x32xf32> to vector<8x32xf32>
    %92 = arith.addf %90, %91 : vector<8x32xf32>
    %cst_83 = arith.constant dense<0.000000e+00> : vector<8x32xf32>
    %93 = tpu.matmul %49, %31, %cst_83 {dimension_numbers = #tpu.dot_dimension_numbers<[1], [0], [0], [1], [0, 0, 1, 1], [], []>} : vector<8x32xf32>, vector<32x32xf32>, vector<8x32xf32> -> vector<8x32xf32>
    %94 = arith.addf %92, %93 : vector<8x32xf32>
    %95 = vector.broadcast %43 : vector<1x32xf32> to vector<8x32xf32>
    %96 = arith.addf %94, %95 : vector<8x32xf32>
    %97 = arith.negf %96 : vector<8x32xf32>
    %98 = math.exp %97 : vector<8x32xf32>
    %cst_84 = arith.constant 1.000000e+00 : f32
    %99 = vector.broadcast %cst_84 : f32 to vector<8x32xf32>
    %100 = arith.addf %99, %98 : vector<8x32xf32>
    %101 = arith.divf %99, %100 : vector<8x32xf32>
    %cst_85 = arith.constant dense<0.000000e+00> : vector<8x32xf32>
    %102 = tpu.matmul %89, %27, %cst_85 {dimension_numbers = #tpu.dot_dimension_numbers<[1], [0], [0], [1], [0, 0, 1, 1], [], []>} : vector<8x32xf32>, vector<32x32xf32>, vector<8x32xf32> -> vector<8x32xf32>
    %103 = vector.broadcast %39 : vector<1x32xf32> to vector<8x32xf32>
    %104 = arith.addf %102, %103 : vector<8x32xf32>
    %cst_86 = arith.constant dense<0.000000e+00> : vector<8x32xf32>
    %105 = tpu.matmul %49, %33, %cst_86 {dimension_numbers = #tpu.dot_dimension_numbers<[1], [0], [0], [1], [0, 0, 1, 1], [], []>} : vector<8x32xf32>, vector<32x32xf32>, vector<8x32xf32> -> vector<8x32xf32>
    %106 = arith.addf %104, %105 : vector<8x32xf32>
    %107 = vector.broadcast %45 : vector<1x32xf32> to vector<8x32xf32>
    %108 = arith.addf %106, %107 : vector<8x32xf32>
    %109 = arith.negf %108 : vector<8x32xf32>
    %110 = math.exp %109 : vector<8x32xf32>
    %cst_87 = arith.constant 1.000000e+00 : f32
    %111 = vector.broadcast %cst_87 : f32 to vector<8x32xf32>
    %112 = arith.addf %111, %110 : vector<8x32xf32>
    %113 = arith.divf %111, %112 : vector<8x32xf32>
    %cst_88 = arith.constant dense<0.000000e+00> : vector<8x32xf32>
    %114 = tpu.matmul %89, %29, %cst_88 {dimension_numbers = #tpu.dot_dimension_numbers<[1], [0], [0], [1], [0, 0, 1, 1], [], []>} : vector<8x32xf32>, vector<32x32xf32>, vector<8x32xf32> -> vector<8x32xf32>
    %115 = vector.broadcast %41 : vector<1x32xf32> to vector<8x32xf32>
    %116 = arith.addf %114, %115 : vector<8x32xf32>
    %cst_89 = arith.constant dense<0.000000e+00> : vector<8x32xf32>
    %117 = tpu.matmul %49, %35, %cst_89 {dimension_numbers = #tpu.dot_dimension_numbers<[1], [0], [0], [1], [0, 0, 1, 1], [], []>} : vector<8x32xf32>, vector<32x32xf32>, vector<8x32xf32> -> vector<8x32xf32>
    %118 = vector.broadcast %47 : vector<1x32xf32> to vector<8x32xf32>
    %119 = arith.addf %117, %118 : vector<8x32xf32>
    %120 = arith.mulf %101, %119 : vector<8x32xf32>
    %121 = arith.addf %116, %120 : vector<8x32xf32>
    %122 = math.tanh %121 : vector<8x32xf32>
    %cst_90 = arith.constant 1.000000e+00 : f32
    %123 = vector.broadcast %cst_90 : f32 to vector<8x32xf32>
    %124 = arith.subf %123, %113 : vector<8x32xf32>
    %125 = arith.mulf %124, %122 : vector<8x32xf32>
    %126 = arith.mulf %113, %49 : vector<8x32xf32>
    %127 = arith.addf %125, %126 : vector<8x32xf32>
    %c1_91 = arith.constant 1 : index
    %c0_92 = arith.constant 0 : index
    %c0_93 = arith.constant 0 : index
    %128 = vector.load %arg0[%c1_91, %c0_92, %c0_93] : memref<8x8x16xf32, #tpu.memory_space<vmem>>, vector<1x8x16xf32>
    %129 = vector.shape_cast %128 : vector<1x8x16xf32> to vector<8x16xf32>
    %cst_94 = arith.constant dense<0.000000e+00> : vector<8x32xf32>
    %130 = tpu.matmul %129, %1, %cst_94 {dimension_numbers = #tpu.dot_dimension_numbers<[1], [0], [0], [1], [0, 0, 1, 1], [], []>} : vector<8x16xf32>, vector<16x32xf32>, vector<8x32xf32> -> vector<8x32xf32>
    %131 = vector.broadcast %13 : vector<1x32xf32> to vector<8x32xf32>
    %132 = arith.addf %130, %131 : vector<8x32xf32>
    %cst_95 = arith.constant dense<0.000000e+00> : vector<8x32xf32>
    %133 = tpu.matmul %89, %7, %cst_95 {dimension_numbers = #tpu.dot_dimension_numbers<[1], [0], [0], [1], [0, 0, 1, 1], [], []>} : vector<8x32xf32>, vector<32x32xf32>, vector<8x32xf32> -> vector<8x32xf32>
    %134 = arith.addf %132, %133 : vector<8x32xf32>
    %135 = vector.broadcast %19 : vector<1x32xf32> to vector<8x32xf32>
    %136 = arith.addf %134, %135 : vector<8x32xf32>
    %137 = arith.negf %136 : vector<8x32xf32>
    %138 = math.exp %137 : vector<8x32xf32>
    %cst_96 = arith.constant 1.000000e+00 : f32
    %139 = vector.broadcast %cst_96 : f32 to vector<8x32xf32>
    %140 = arith.addf %139, %138 : vector<8x32xf32>
    %141 = arith.divf %139, %140 : vector<8x32xf32>
    %cst_97 = arith.constant dense<0.000000e+00> : vector<8x32xf32>
    %142 = tpu.matmul %129, %3, %cst_97 {dimension_numbers = #tpu.dot_dimension_numbers<[1], [0], [0], [1], [0, 0, 1, 1], [], []>} : vector<8x16xf32>, vector<16x32xf32>, vector<8x32xf32> -> vector<8x32xf32>
    %143 = vector.broadcast %15 : vector<1x32xf32> to vector<8x32xf32>
    %144 = arith.addf %142, %143 : vector<8x32xf32>
    %cst_98 = arith.constant dense<0.000000e+00> : vector<8x32xf32>
    %145 = tpu.matmul %89, %9, %cst_98 {dimension_numbers = #tpu.dot_dimension_numbers<[1], [0], [0], [1], [0, 0, 1, 1], [], []>} : vector<8x32xf32>, vector<32x32xf32>, vector<8x32xf32> -> vector<8x32xf32>
    %146 = arith.addf %144, %145 : vector<8x32xf32>
    %147 = vector.broadcast %21 : vector<1x32xf32> to vector<8x32xf32>
    %148 = arith.addf %146, %147 : vector<8x32xf32>
    %149 = arith.negf %148 : vector<8x32xf32>
    %150 = math.exp %149 : vector<8x32xf32>
    %cst_99 = arith.constant 1.000000e+00 : f32
    %151 = vector.broadcast %cst_99 : f32 to vector<8x32xf32>
    %152 = arith.addf %151, %150 : vector<8x32xf32>
    %153 = arith.divf %151, %152 : vector<8x32xf32>
    %cst_100 = arith.constant dense<0.000000e+00> : vector<8x32xf32>
    %154 = tpu.matmul %129, %5, %cst_100 {dimension_numbers = #tpu.dot_dimension_numbers<[1], [0], [0], [1], [0, 0, 1, 1], [], []>} : vector<8x16xf32>, vector<16x32xf32>, vector<8x32xf32> -> vector<8x32xf32>
    %155 = vector.broadcast %17 : vector<1x32xf32> to vector<8x32xf32>
    %156 = arith.addf %154, %155 : vector<8x32xf32>
    %cst_101 = arith.constant dense<0.000000e+00> : vector<8x32xf32>
    %157 = tpu.matmul %89, %11, %cst_101 {dimension_numbers = #tpu.dot_dimension_numbers<[1], [0], [0], [1], [0, 0, 1, 1], [], []>} : vector<8x32xf32>, vector<32x32xf32>, vector<8x32xf32> -> vector<8x32xf32>
    %158 = vector.broadcast %23 : vector<1x32xf32> to vector<8x32xf32>
    %159 = arith.addf %157, %158 : vector<8x32xf32>
    %160 = arith.mulf %141, %159 : vector<8x32xf32>
    %161 = arith.addf %156, %160 : vector<8x32xf32>
    %162 = math.tanh %161 : vector<8x32xf32>
    %cst_102 = arith.constant 1.000000e+00 : f32
    %163 = vector.broadcast %cst_102 : f32 to vector<8x32xf32>
    %164 = arith.subf %163, %153 : vector<8x32xf32>
    %165 = arith.mulf %164, %162 : vector<8x32xf32>
    %166 = arith.mulf %153, %89 : vector<8x32xf32>
    %167 = arith.addf %165, %166 : vector<8x32xf32>
    %cst_103 = arith.constant dense<0.000000e+00> : vector<8x32xf32>
    %168 = tpu.matmul %167, %25, %cst_103 {dimension_numbers = #tpu.dot_dimension_numbers<[1], [0], [0], [1], [0, 0, 1, 1], [], []>} : vector<8x32xf32>, vector<32x32xf32>, vector<8x32xf32> -> vector<8x32xf32>
    %169 = vector.broadcast %37 : vector<1x32xf32> to vector<8x32xf32>
    %170 = arith.addf %168, %169 : vector<8x32xf32>
    %cst_104 = arith.constant dense<0.000000e+00> : vector<8x32xf32>
    %171 = tpu.matmul %127, %31, %cst_104 {dimension_numbers = #tpu.dot_dimension_numbers<[1], [0], [0], [1], [0, 0, 1, 1], [], []>} : vector<8x32xf32>, vector<32x32xf32>, vector<8x32xf32> -> vector<8x32xf32>
    %172 = arith.addf %170, %171 : vector<8x32xf32>
    %173 = vector.broadcast %43 : vector<1x32xf32> to vector<8x32xf32>
    %174 = arith.addf %172, %173 : vector<8x32xf32>
    %175 = arith.negf %174 : vector<8x32xf32>
    %176 = math.exp %175 : vector<8x32xf32>
    %cst_105 = arith.constant 1.000000e+00 : f32
    %177 = vector.broadcast %cst_105 : f32 to vector<8x32xf32>
    %178 = arith.addf %177, %176 : vector<8x32xf32>
    %179 = arith.divf %177, %178 : vector<8x32xf32>
    %cst_106 = arith.constant dense<0.000000e+00> : vector<8x32xf32>
    %180 = tpu.matmul %167, %27, %cst_106 {dimension_numbers = #tpu.dot_dimension_numbers<[1], [0], [0], [1], [0, 0, 1, 1], [], []>} : vector<8x32xf32>, vector<32x32xf32>, vector<8x32xf32> -> vector<8x32xf32>
    %181 = vector.broadcast %39 : vector<1x32xf32> to vector<8x32xf32>
    %182 = arith.addf %180, %181 : vector<8x32xf32>
    %cst_107 = arith.constant dense<0.000000e+00> : vector<8x32xf32>
    %183 = tpu.matmul %127, %33, %cst_107 {dimension_numbers = #tpu.dot_dimension_numbers<[1], [0], [0], [1], [0, 0, 1, 1], [], []>} : vector<8x32xf32>, vector<32x32xf32>, vector<8x32xf32> -> vector<8x32xf32>
    %184 = arith.addf %182, %183 : vector<8x32xf32>
    %185 = vector.broadcast %45 : vector<1x32xf32> to vector<8x32xf32>
    %186 = arith.addf %184, %185 : vector<8x32xf32>
    %187 = arith.negf %186 : vector<8x32xf32>
    %188 = math.exp %187 : vector<8x32xf32>
    %cst_108 = arith.constant 1.000000e+00 : f32
    %189 = vector.broadcast %cst_108 : f32 to vector<8x32xf32>
    %190 = arith.addf %189, %188 : vector<8x32xf32>
    %191 = arith.divf %189, %190 : vector<8x32xf32>
    %cst_109 = arith.constant dense<0.000000e+00> : vector<8x32xf32>
    %192 = tpu.matmul %167, %29, %cst_109 {dimension_numbers = #tpu.dot_dimension_numbers<[1], [0], [0], [1], [0, 0, 1, 1], [], []>} : vector<8x32xf32>, vector<32x32xf32>, vector<8x32xf32> -> vector<8x32xf32>
    %193 = vector.broadcast %41 : vector<1x32xf32> to vector<8x32xf32>
    %194 = arith.addf %192, %193 : vector<8x32xf32>
    %cst_110 = arith.constant dense<0.000000e+00> : vector<8x32xf32>
    %195 = tpu.matmul %127, %35, %cst_110 {dimension_numbers = #tpu.dot_dimension_numbers<[1], [0], [0], [1], [0, 0, 1, 1], [], []>} : vector<8x32xf32>, vector<32x32xf32>, vector<8x32xf32> -> vector<8x32xf32>
    %196 = vector.broadcast %47 : vector<1x32xf32> to vector<8x32xf32>
    %197 = arith.addf %195, %196 : vector<8x32xf32>
    %198 = arith.mulf %179, %197 : vector<8x32xf32>
    %199 = arith.addf %194, %198 : vector<8x32xf32>
    %200 = math.tanh %199 : vector<8x32xf32>
    %cst_111 = arith.constant 1.000000e+00 : f32
    %201 = vector.broadcast %cst_111 : f32 to vector<8x32xf32>
    %202 = arith.subf %201, %191 : vector<8x32xf32>
    %203 = arith.mulf %202, %200 : vector<8x32xf32>
    %204 = arith.mulf %191, %127 : vector<8x32xf32>
    %205 = arith.addf %203, %204 : vector<8x32xf32>
    %c2_112 = arith.constant 2 : index
    %c0_113 = arith.constant 0 : index
    %c0_114 = arith.constant 0 : index
    %206 = vector.load %arg0[%c2_112, %c0_113, %c0_114] : memref<8x8x16xf32, #tpu.memory_space<vmem>>, vector<1x8x16xf32>
    %207 = vector.shape_cast %206 : vector<1x8x16xf32> to vector<8x16xf32>
    %cst_115 = arith.constant dense<0.000000e+00> : vector<8x32xf32>
    %208 = tpu.matmul %207, %1, %cst_115 {dimension_numbers = #tpu.dot_dimension_numbers<[1], [0], [0], [1], [0, 0, 1, 1], [], []>} : vector<8x16xf32>, vector<16x32xf32>, vector<8x32xf32> -> vector<8x32xf32>
    %209 = vector.broadcast %13 : vector<1x32xf32> to vector<8x32xf32>
    %210 = arith.addf %208, %209 : vector<8x32xf32>
    %cst_116 = arith.constant dense<0.000000e+00> : vector<8x32xf32>
    %211 = tpu.matmul %167, %7, %cst_116 {dimension_numbers = #tpu.dot_dimension_numbers<[1], [0], [0], [1], [0, 0, 1, 1], [], []>} : vector<8x32xf32>, vector<32x32xf32>, vector<8x32xf32> -> vector<8x32xf32>
    %212 = arith.addf %210, %211 : vector<8x32xf32>
    %213 = vector.broadcast %19 : vector<1x32xf32> to vector<8x32xf32>
    %214 = arith.addf %212, %213 : vector<8x32xf32>
    %215 = arith.negf %214 : vector<8x32xf32>
    %216 = math.exp %215 : vector<8x32xf32>
    %cst_117 = arith.constant 1.000000e+00 : f32
    %217 = vector.broadcast %cst_117 : f32 to vector<8x32xf32>
    %218 = arith.addf %217, %216 : vector<8x32xf32>
    %219 = arith.divf %217, %218 : vector<8x32xf32>
    %cst_118 = arith.constant dense<0.000000e+00> : vector<8x32xf32>
    %220 = tpu.matmul %207, %3, %cst_118 {dimension_numbers = #tpu.dot_dimension_numbers<[1], [0], [0], [1], [0, 0, 1, 1], [], []>} : vector<8x16xf32>, vector<16x32xf32>, vector<8x32xf32> -> vector<8x32xf32>
    %221 = vector.broadcast %15 : vector<1x32xf32> to vector<8x32xf32>
    %222 = arith.addf %220, %221 : vector<8x32xf32>
    %cst_119 = arith.constant dense<0.000000e+00> : vector<8x32xf32>
    %223 = tpu.matmul %167, %9, %cst_119 {dimension_numbers = #tpu.dot_dimension_numbers<[1], [0], [0], [1], [0, 0, 1, 1], [], []>} : vector<8x32xf32>, vector<32x32xf32>, vector<8x32xf32> -> vector<8x32xf32>
    %224 = arith.addf %222, %223 : vector<8x32xf32>
    %225 = vector.broadcast %21 : vector<1x32xf32> to vector<8x32xf32>
    %226 = arith.addf %224, %225 : vector<8x32xf32>
    %227 = arith.negf %226 : vector<8x32xf32>
    %228 = math.exp %227 : vector<8x32xf32>
    %cst_120 = arith.constant 1.000000e+00 : f32
    %229 = vector.broadcast %cst_120 : f32 to vector<8x32xf32>
    %230 = arith.addf %229, %228 : vector<8x32xf32>
    %231 = arith.divf %229, %230 : vector<8x32xf32>
    %cst_121 = arith.constant dense<0.000000e+00> : vector<8x32xf32>
    %232 = tpu.matmul %207, %5, %cst_121 {dimension_numbers = #tpu.dot_dimension_numbers<[1], [0], [0], [1], [0, 0, 1, 1], [], []>} : vector<8x16xf32>, vector<16x32xf32>, vector<8x32xf32> -> vector<8x32xf32>
    %233 = vector.broadcast %17 : vector<1x32xf32> to vector<8x32xf32>
    %234 = arith.addf %232, %233 : vector<8x32xf32>
    %cst_122 = arith.constant dense<0.000000e+00> : vector<8x32xf32>
    %235 = tpu.matmul %167, %11, %cst_122 {dimension_numbers = #tpu.dot_dimension_numbers<[1], [0], [0], [1], [0, 0, 1, 1], [], []>} : vector<8x32xf32>, vector<32x32xf32>, vector<8x32xf32> -> vector<8x32xf32>
    %236 = vector.broadcast %23 : vector<1x32xf32> to vector<8x32xf32>
    %237 = arith.addf %235, %236 : vector<8x32xf32>
    %238 = arith.mulf %219, %237 : vector<8x32xf32>
    %239 = arith.addf %234, %238 : vector<8x32xf32>
    %240 = math.tanh %239 : vector<8x32xf32>
    %cst_123 = arith.constant 1.000000e+00 : f32
    %241 = vector.broadcast %cst_123 : f32 to vector<8x32xf32>
    %242 = arith.subf %241, %231 : vector<8x32xf32>
    %243 = arith.mulf %242, %240 : vector<8x32xf32>
    %244 = arith.mulf %231, %167 : vector<8x32xf32>
    %245 = arith.addf %243, %244 : vector<8x32xf32>
    %cst_124 = arith.constant dense<0.000000e+00> : vector<8x32xf32>
    %246 = tpu.matmul %245, %25, %cst_124 {dimension_numbers = #tpu.dot_dimension_numbers<[1], [0], [0], [1], [0, 0, 1, 1], [], []>} : vector<8x32xf32>, vector<32x32xf32>, vector<8x32xf32> -> vector<8x32xf32>
    %247 = vector.broadcast %37 : vector<1x32xf32> to vector<8x32xf32>
    %248 = arith.addf %246, %247 : vector<8x32xf32>
    %cst_125 = arith.constant dense<0.000000e+00> : vector<8x32xf32>
    %249 = tpu.matmul %205, %31, %cst_125 {dimension_numbers = #tpu.dot_dimension_numbers<[1], [0], [0], [1], [0, 0, 1, 1], [], []>} : vector<8x32xf32>, vector<32x32xf32>, vector<8x32xf32> -> vector<8x32xf32>
    %250 = arith.addf %248, %249 : vector<8x32xf32>
    %251 = vector.broadcast %43 : vector<1x32xf32> to vector<8x32xf32>
    %252 = arith.addf %250, %251 : vector<8x32xf32>
    %253 = arith.negf %252 : vector<8x32xf32>
    %254 = math.exp %253 : vector<8x32xf32>
    %cst_126 = arith.constant 1.000000e+00 : f32
    %255 = vector.broadcast %cst_126 : f32 to vector<8x32xf32>
    %256 = arith.addf %255, %254 : vector<8x32xf32>
    %257 = arith.divf %255, %256 : vector<8x32xf32>
    %cst_127 = arith.constant dense<0.000000e+00> : vector<8x32xf32>
    %258 = tpu.matmul %245, %27, %cst_127 {dimension_numbers = #tpu.dot_dimension_numbers<[1], [0], [0], [1], [0, 0, 1, 1], [], []>} : vector<8x32xf32>, vector<32x32xf32>, vector<8x32xf32> -> vector<8x32xf32>
    %259 = vector.broadcast %39 : vector<1x32xf32> to vector<8x32xf32>
    %260 = arith.addf %258, %259 : vector<8x32xf32>
    %cst_128 = arith.constant dense<0.000000e+00> : vector<8x32xf32>
    %261 = tpu.matmul %205, %33, %cst_128 {dimension_numbers = #tpu.dot_dimension_numbers<[1], [0], [0], [1], [0, 0, 1, 1], [], []>} : vector<8x32xf32>, vector<32x32xf32>, vector<8x32xf32> -> vector<8x32xf32>
    %262 = arith.addf %260, %261 : vector<8x32xf32>
    %263 = vector.broadcast %45 : vector<1x32xf32> to vector<8x32xf32>
    %264 = arith.addf %262, %263 : vector<8x32xf32>
    %265 = arith.negf %264 : vector<8x32xf32>
    %266 = math.exp %265 : vector<8x32xf32>
    %cst_129 = arith.constant 1.000000e+00 : f32
    %267 = vector.broadcast %cst_129 : f32 to vector<8x32xf32>
    %268 = arith.addf %267, %266 : vector<8x32xf32>
    %269 = arith.divf %267, %268 : vector<8x32xf32>
    %cst_130 = arith.constant dense<0.000000e+00> : vector<8x32xf32>
    %270 = tpu.matmul %245, %29, %cst_130 {dimension_numbers = #tpu.dot_dimension_numbers<[1], [0], [0], [1], [0, 0, 1, 1], [], []>} : vector<8x32xf32>, vector<32x32xf32>, vector<8x32xf32> -> vector<8x32xf32>
    %271 = vector.broadcast %41 : vector<1x32xf32> to vector<8x32xf32>
    %272 = arith.addf %270, %271 : vector<8x32xf32>
    %cst_131 = arith.constant dense<0.000000e+00> : vector<8x32xf32>
    %273 = tpu.matmul %205, %35, %cst_131 {dimension_numbers = #tpu.dot_dimension_numbers<[1], [0], [0], [1], [0, 0, 1, 1], [], []>} : vector<8x32xf32>, vector<32x32xf32>, vector<8x32xf32> -> vector<8x32xf32>
    %274 = vector.broadcast %47 : vector<1x32xf32> to vector<8x32xf32>
    %275 = arith.addf %273, %274 : vector<8x32xf32>
    %276 = arith.mulf %257, %275 : vector<8x32xf32>
    %277 = arith.addf %272, %276 : vector<8x32xf32>
    %278 = math.tanh %277 : vector<8x32xf32>
    %cst_132 = arith.constant 1.000000e+00 : f32
    %279 = vector.broadcast %cst_132 : f32 to vector<8x32xf32>
    %280 = arith.subf %279, %269 : vector<8x32xf32>
    %281 = arith.mulf %280, %278 : vector<8x32xf32>
    %282 = arith.mulf %269, %205 : vector<8x32xf32>
    %283 = arith.addf %281, %282 : vector<8x32xf32>
    %c3 = arith.constant 3 : index
    %c0_133 = arith.constant 0 : index
    %c0_134 = arith.constant 0 : index
    %284 = vector.load %arg0[%c3, %c0_133, %c0_134] : memref<8x8x16xf32, #tpu.memory_space<vmem>>, vector<1x8x16xf32>
    %285 = vector.shape_cast %284 : vector<1x8x16xf32> to vector<8x16xf32>
    %cst_135 = arith.constant dense<0.000000e+00> : vector<8x32xf32>
    %286 = tpu.matmul %285, %1, %cst_135 {dimension_numbers = #tpu.dot_dimension_numbers<[1], [0], [0], [1], [0, 0, 1, 1], [], []>} : vector<8x16xf32>, vector<16x32xf32>, vector<8x32xf32> -> vector<8x32xf32>
    %287 = vector.broadcast %13 : vector<1x32xf32> to vector<8x32xf32>
    %288 = arith.addf %286, %287 : vector<8x32xf32>
    %cst_136 = arith.constant dense<0.000000e+00> : vector<8x32xf32>
    %289 = tpu.matmul %245, %7, %cst_136 {dimension_numbers = #tpu.dot_dimension_numbers<[1], [0], [0], [1], [0, 0, 1, 1], [], []>} : vector<8x32xf32>, vector<32x32xf32>, vector<8x32xf32> -> vector<8x32xf32>
    %290 = arith.addf %288, %289 : vector<8x32xf32>
    %291 = vector.broadcast %19 : vector<1x32xf32> to vector<8x32xf32>
    %292 = arith.addf %290, %291 : vector<8x32xf32>
    %293 = arith.negf %292 : vector<8x32xf32>
    %294 = math.exp %293 : vector<8x32xf32>
    %cst_137 = arith.constant 1.000000e+00 : f32
    %295 = vector.broadcast %cst_137 : f32 to vector<8x32xf32>
    %296 = arith.addf %295, %294 : vector<8x32xf32>
    %297 = arith.divf %295, %296 : vector<8x32xf32>
    %cst_138 = arith.constant dense<0.000000e+00> : vector<8x32xf32>
    %298 = tpu.matmul %285, %3, %cst_138 {dimension_numbers = #tpu.dot_dimension_numbers<[1], [0], [0], [1], [0, 0, 1, 1], [], []>} : vector<8x16xf32>, vector<16x32xf32>, vector<8x32xf32> -> vector<8x32xf32>
    %299 = vector.broadcast %15 : vector<1x32xf32> to vector<8x32xf32>
    %300 = arith.addf %298, %299 : vector<8x32xf32>
    %cst_139 = arith.constant dense<0.000000e+00> : vector<8x32xf32>
    %301 = tpu.matmul %245, %9, %cst_139 {dimension_numbers = #tpu.dot_dimension_numbers<[1], [0], [0], [1], [0, 0, 1, 1], [], []>} : vector<8x32xf32>, vector<32x32xf32>, vector<8x32xf32> -> vector<8x32xf32>
    %302 = arith.addf %300, %301 : vector<8x32xf32>
    %303 = vector.broadcast %21 : vector<1x32xf32> to vector<8x32xf32>
    %304 = arith.addf %302, %303 : vector<8x32xf32>
    %305 = arith.negf %304 : vector<8x32xf32>
    %306 = math.exp %305 : vector<8x32xf32>
    %cst_140 = arith.constant 1.000000e+00 : f32
    %307 = vector.broadcast %cst_140 : f32 to vector<8x32xf32>
    %308 = arith.addf %307, %306 : vector<8x32xf32>
    %309 = arith.divf %307, %308 : vector<8x32xf32>
    %cst_141 = arith.constant dense<0.000000e+00> : vector<8x32xf32>
    %310 = tpu.matmul %285, %5, %cst_141 {dimension_numbers = #tpu.dot_dimension_numbers<[1], [0], [0], [1], [0, 0, 1, 1], [], []>} : vector<8x16xf32>, vector<16x32xf32>, vector<8x32xf32> -> vector<8x32xf32>
    %311 = vector.broadcast %17 : vector<1x32xf32> to vector<8x32xf32>
    %312 = arith.addf %310, %311 : vector<8x32xf32>
    %cst_142 = arith.constant dense<0.000000e+00> : vector<8x32xf32>
    %313 = tpu.matmul %245, %11, %cst_142 {dimension_numbers = #tpu.dot_dimension_numbers<[1], [0], [0], [1], [0, 0, 1, 1], [], []>} : vector<8x32xf32>, vector<32x32xf32>, vector<8x32xf32> -> vector<8x32xf32>
    %314 = vector.broadcast %23 : vector<1x32xf32> to vector<8x32xf32>
    %315 = arith.addf %313, %314 : vector<8x32xf32>
    %316 = arith.mulf %297, %315 : vector<8x32xf32>
    %317 = arith.addf %312, %316 : vector<8x32xf32>
    %318 = math.tanh %317 : vector<8x32xf32>
    %cst_143 = arith.constant 1.000000e+00 : f32
    %319 = vector.broadcast %cst_143 : f32 to vector<8x32xf32>
    %320 = arith.subf %319, %309 : vector<8x32xf32>
    %321 = arith.mulf %320, %318 : vector<8x32xf32>
    %322 = arith.mulf %309, %245 : vector<8x32xf32>
    %323 = arith.addf %321, %322 : vector<8x32xf32>
    %cst_144 = arith.constant dense<0.000000e+00> : vector<8x32xf32>
    %324 = tpu.matmul %323, %25, %cst_144 {dimension_numbers = #tpu.dot_dimension_numbers<[1], [0], [0], [1], [0, 0, 1, 1], [], []>} : vector<8x32xf32>, vector<32x32xf32>, vector<8x32xf32> -> vector<8x32xf32>
    %325 = vector.broadcast %37 : vector<1x32xf32> to vector<8x32xf32>
    %326 = arith.addf %324, %325 : vector<8x32xf32>
    %cst_145 = arith.constant dense<0.000000e+00> : vector<8x32xf32>
    %327 = tpu.matmul %283, %31, %cst_145 {dimension_numbers = #tpu.dot_dimension_numbers<[1], [0], [0], [1], [0, 0, 1, 1], [], []>} : vector<8x32xf32>, vector<32x32xf32>, vector<8x32xf32> -> vector<8x32xf32>
    %328 = arith.addf %326, %327 : vector<8x32xf32>
    %329 = vector.broadcast %43 : vector<1x32xf32> to vector<8x32xf32>
    %330 = arith.addf %328, %329 : vector<8x32xf32>
    %331 = arith.negf %330 : vector<8x32xf32>
    %332 = math.exp %331 : vector<8x32xf32>
    %cst_146 = arith.constant 1.000000e+00 : f32
    %333 = vector.broadcast %cst_146 : f32 to vector<8x32xf32>
    %334 = arith.addf %333, %332 : vector<8x32xf32>
    %335 = arith.divf %333, %334 : vector<8x32xf32>
    %cst_147 = arith.constant dense<0.000000e+00> : vector<8x32xf32>
    %336 = tpu.matmul %323, %27, %cst_147 {dimension_numbers = #tpu.dot_dimension_numbers<[1], [0], [0], [1], [0, 0, 1, 1], [], []>} : vector<8x32xf32>, vector<32x32xf32>, vector<8x32xf32> -> vector<8x32xf32>
    %337 = vector.broadcast %39 : vector<1x32xf32> to vector<8x32xf32>
    %338 = arith.addf %336, %337 : vector<8x32xf32>
    %cst_148 = arith.constant dense<0.000000e+00> : vector<8x32xf32>
    %339 = tpu.matmul %283, %33, %cst_148 {dimension_numbers = #tpu.dot_dimension_numbers<[1], [0], [0], [1], [0, 0, 1, 1], [], []>} : vector<8x32xf32>, vector<32x32xf32>, vector<8x32xf32> -> vector<8x32xf32>
    %340 = arith.addf %338, %339 : vector<8x32xf32>
    %341 = vector.broadcast %45 : vector<1x32xf32> to vector<8x32xf32>
    %342 = arith.addf %340, %341 : vector<8x32xf32>
    %343 = arith.negf %342 : vector<8x32xf32>
    %344 = math.exp %343 : vector<8x32xf32>
    %cst_149 = arith.constant 1.000000e+00 : f32
    %345 = vector.broadcast %cst_149 : f32 to vector<8x32xf32>
    %346 = arith.addf %345, %344 : vector<8x32xf32>
    %347 = arith.divf %345, %346 : vector<8x32xf32>
    %cst_150 = arith.constant dense<0.000000e+00> : vector<8x32xf32>
    %348 = tpu.matmul %323, %29, %cst_150 {dimension_numbers = #tpu.dot_dimension_numbers<[1], [0], [0], [1], [0, 0, 1, 1], [], []>} : vector<8x32xf32>, vector<32x32xf32>, vector<8x32xf32> -> vector<8x32xf32>
    %349 = vector.broadcast %41 : vector<1x32xf32> to vector<8x32xf32>
    %350 = arith.addf %348, %349 : vector<8x32xf32>
    %cst_151 = arith.constant dense<0.000000e+00> : vector<8x32xf32>
    %351 = tpu.matmul %283, %35, %cst_151 {dimension_numbers = #tpu.dot_dimension_numbers<[1], [0], [0], [1], [0, 0, 1, 1], [], []>} : vector<8x32xf32>, vector<32x32xf32>, vector<8x32xf32> -> vector<8x32xf32>
    %352 = vector.broadcast %47 : vector<1x32xf32> to vector<8x32xf32>
    %353 = arith.addf %351, %352 : vector<8x32xf32>
    %354 = arith.mulf %335, %353 : vector<8x32xf32>
    %355 = arith.addf %350, %354 : vector<8x32xf32>
    %356 = math.tanh %355 : vector<8x32xf32>
    %cst_152 = arith.constant 1.000000e+00 : f32
    %357 = vector.broadcast %cst_152 : f32 to vector<8x32xf32>
    %358 = arith.subf %357, %347 : vector<8x32xf32>
    %359 = arith.mulf %358, %356 : vector<8x32xf32>
    %360 = arith.mulf %347, %283 : vector<8x32xf32>
    %361 = arith.addf %359, %360 : vector<8x32xf32>
    %c4 = arith.constant 4 : index
    %c0_153 = arith.constant 0 : index
    %c0_154 = arith.constant 0 : index
    %362 = vector.load %arg0[%c4, %c0_153, %c0_154] : memref<8x8x16xf32, #tpu.memory_space<vmem>>, vector<1x8x16xf32>
    %363 = vector.shape_cast %362 : vector<1x8x16xf32> to vector<8x16xf32>
    %cst_155 = arith.constant dense<0.000000e+00> : vector<8x32xf32>
    %364 = tpu.matmul %363, %1, %cst_155 {dimension_numbers = #tpu.dot_dimension_numbers<[1], [0], [0], [1], [0, 0, 1, 1], [], []>} : vector<8x16xf32>, vector<16x32xf32>, vector<8x32xf32> -> vector<8x32xf32>
    %365 = vector.broadcast %13 : vector<1x32xf32> to vector<8x32xf32>
    %366 = arith.addf %364, %365 : vector<8x32xf32>
    %cst_156 = arith.constant dense<0.000000e+00> : vector<8x32xf32>
    %367 = tpu.matmul %323, %7, %cst_156 {dimension_numbers = #tpu.dot_dimension_numbers<[1], [0], [0], [1], [0, 0, 1, 1], [], []>} : vector<8x32xf32>, vector<32x32xf32>, vector<8x32xf32> -> vector<8x32xf32>
    %368 = arith.addf %366, %367 : vector<8x32xf32>
    %369 = vector.broadcast %19 : vector<1x32xf32> to vector<8x32xf32>
    %370 = arith.addf %368, %369 : vector<8x32xf32>
    %371 = arith.negf %370 : vector<8x32xf32>
    %372 = math.exp %371 : vector<8x32xf32>
    %cst_157 = arith.constant 1.000000e+00 : f32
    %373 = vector.broadcast %cst_157 : f32 to vector<8x32xf32>
    %374 = arith.addf %373, %372 : vector<8x32xf32>
    %375 = arith.divf %373, %374 : vector<8x32xf32>
    %cst_158 = arith.constant dense<0.000000e+00> : vector<8x32xf32>
    %376 = tpu.matmul %363, %3, %cst_158 {dimension_numbers = #tpu.dot_dimension_numbers<[1], [0], [0], [1], [0, 0, 1, 1], [], []>} : vector<8x16xf32>, vector<16x32xf32>, vector<8x32xf32> -> vector<8x32xf32>
    %377 = vector.broadcast %15 : vector<1x32xf32> to vector<8x32xf32>
    %378 = arith.addf %376, %377 : vector<8x32xf32>
    %cst_159 = arith.constant dense<0.000000e+00> : vector<8x32xf32>
    %379 = tpu.matmul %323, %9, %cst_159 {dimension_numbers = #tpu.dot_dimension_numbers<[1], [0], [0], [1], [0, 0, 1, 1], [], []>} : vector<8x32xf32>, vector<32x32xf32>, vector<8x32xf32> -> vector<8x32xf32>
    %380 = arith.addf %378, %379 : vector<8x32xf32>
    %381 = vector.broadcast %21 : vector<1x32xf32> to vector<8x32xf32>
    %382 = arith.addf %380, %381 : vector<8x32xf32>
    %383 = arith.negf %382 : vector<8x32xf32>
    %384 = math.exp %383 : vector<8x32xf32>
    %cst_160 = arith.constant 1.000000e+00 : f32
    %385 = vector.broadcast %cst_160 : f32 to vector<8x32xf32>
    %386 = arith.addf %385, %384 : vector<8x32xf32>
    %387 = arith.divf %385, %386 : vector<8x32xf32>
    %cst_161 = arith.constant dense<0.000000e+00> : vector<8x32xf32>
    %388 = tpu.matmul %363, %5, %cst_161 {dimension_numbers = #tpu.dot_dimension_numbers<[1], [0], [0], [1], [0, 0, 1, 1], [], []>} : vector<8x16xf32>, vector<16x32xf32>, vector<8x32xf32> -> vector<8x32xf32>
    %389 = vector.broadcast %17 : vector<1x32xf32> to vector<8x32xf32>
    %390 = arith.addf %388, %389 : vector<8x32xf32>
    %cst_162 = arith.constant dense<0.000000e+00> : vector<8x32xf32>
    %391 = tpu.matmul %323, %11, %cst_162 {dimension_numbers = #tpu.dot_dimension_numbers<[1], [0], [0], [1], [0, 0, 1, 1], [], []>} : vector<8x32xf32>, vector<32x32xf32>, vector<8x32xf32> -> vector<8x32xf32>
    %392 = vector.broadcast %23 : vector<1x32xf32> to vector<8x32xf32>
    %393 = arith.addf %391, %392 : vector<8x32xf32>
    %394 = arith.mulf %375, %393 : vector<8x32xf32>
    %395 = arith.addf %390, %394 : vector<8x32xf32>
    %396 = math.tanh %395 : vector<8x32xf32>
    %cst_163 = arith.constant 1.000000e+00 : f32
    %397 = vector.broadcast %cst_163 : f32 to vector<8x32xf32>
    %398 = arith.subf %397, %387 : vector<8x32xf32>
    %399 = arith.mulf %398, %396 : vector<8x32xf32>
    %400 = arith.mulf %387, %323 : vector<8x32xf32>
    %401 = arith.addf %399, %400 : vector<8x32xf32>
    %cst_164 = arith.constant dense<0.000000e+00> : vector<8x32xf32>
    %402 = tpu.matmul %401, %25, %cst_164 {dimension_numbers = #tpu.dot_dimension_numbers<[1], [0], [0], [1], [0, 0, 1, 1], [], []>} : vector<8x32xf32>, vector<32x32xf32>, vector<8x32xf32> -> vector<8x32xf32>
    %403 = vector.broadcast %37 : vector<1x32xf32> to vector<8x32xf32>
    %404 = arith.addf %402, %403 : vector<8x32xf32>
    %cst_165 = arith.constant dense<0.000000e+00> : vector<8x32xf32>
    %405 = tpu.matmul %361, %31, %cst_165 {dimension_numbers = #tpu.dot_dimension_numbers<[1], [0], [0], [1], [0, 0, 1, 1], [], []>} : vector<8x32xf32>, vector<32x32xf32>, vector<8x32xf32> -> vector<8x32xf32>
    %406 = arith.addf %404, %405 : vector<8x32xf32>
    %407 = vector.broadcast %43 : vector<1x32xf32> to vector<8x32xf32>
    %408 = arith.addf %406, %407 : vector<8x32xf32>
    %409 = arith.negf %408 : vector<8x32xf32>
    %410 = math.exp %409 : vector<8x32xf32>
    %cst_166 = arith.constant 1.000000e+00 : f32
    %411 = vector.broadcast %cst_166 : f32 to vector<8x32xf32>
    %412 = arith.addf %411, %410 : vector<8x32xf32>
    %413 = arith.divf %411, %412 : vector<8x32xf32>
    %cst_167 = arith.constant dense<0.000000e+00> : vector<8x32xf32>
    %414 = tpu.matmul %401, %27, %cst_167 {dimension_numbers = #tpu.dot_dimension_numbers<[1], [0], [0], [1], [0, 0, 1, 1], [], []>} : vector<8x32xf32>, vector<32x32xf32>, vector<8x32xf32> -> vector<8x32xf32>
    %415 = vector.broadcast %39 : vector<1x32xf32> to vector<8x32xf32>
    %416 = arith.addf %414, %415 : vector<8x32xf32>
    %cst_168 = arith.constant dense<0.000000e+00> : vector<8x32xf32>
    %417 = tpu.matmul %361, %33, %cst_168 {dimension_numbers = #tpu.dot_dimension_numbers<[1], [0], [0], [1], [0, 0, 1, 1], [], []>} : vector<8x32xf32>, vector<32x32xf32>, vector<8x32xf32> -> vector<8x32xf32>
    %418 = arith.addf %416, %417 : vector<8x32xf32>
    %419 = vector.broadcast %45 : vector<1x32xf32> to vector<8x32xf32>
    %420 = arith.addf %418, %419 : vector<8x32xf32>
    %421 = arith.negf %420 : vector<8x32xf32>
    %422 = math.exp %421 : vector<8x32xf32>
    %cst_169 = arith.constant 1.000000e+00 : f32
    %423 = vector.broadcast %cst_169 : f32 to vector<8x32xf32>
    %424 = arith.addf %423, %422 : vector<8x32xf32>
    %425 = arith.divf %423, %424 : vector<8x32xf32>
    %cst_170 = arith.constant dense<0.000000e+00> : vector<8x32xf32>
    %426 = tpu.matmul %401, %29, %cst_170 {dimension_numbers = #tpu.dot_dimension_numbers<[1], [0], [0], [1], [0, 0, 1, 1], [], []>} : vector<8x32xf32>, vector<32x32xf32>, vector<8x32xf32> -> vector<8x32xf32>
    %427 = vector.broadcast %41 : vector<1x32xf32> to vector<8x32xf32>
    %428 = arith.addf %426, %427 : vector<8x32xf32>
    %cst_171 = arith.constant dense<0.000000e+00> : vector<8x32xf32>
    %429 = tpu.matmul %361, %35, %cst_171 {dimension_numbers = #tpu.dot_dimension_numbers<[1], [0], [0], [1], [0, 0, 1, 1], [], []>} : vector<8x32xf32>, vector<32x32xf32>, vector<8x32xf32> -> vector<8x32xf32>
    %430 = vector.broadcast %47 : vector<1x32xf32> to vector<8x32xf32>
    %431 = arith.addf %429, %430 : vector<8x32xf32>
    %432 = arith.mulf %413, %431 : vector<8x32xf32>
    %433 = arith.addf %428, %432 : vector<8x32xf32>
    %434 = math.tanh %433 : vector<8x32xf32>
    %cst_172 = arith.constant 1.000000e+00 : f32
    %435 = vector.broadcast %cst_172 : f32 to vector<8x32xf32>
    %436 = arith.subf %435, %425 : vector<8x32xf32>
    %437 = arith.mulf %436, %434 : vector<8x32xf32>
    %438 = arith.mulf %425, %361 : vector<8x32xf32>
    %439 = arith.addf %437, %438 : vector<8x32xf32>
    %c5 = arith.constant 5 : index
    %c0_173 = arith.constant 0 : index
    %c0_174 = arith.constant 0 : index
    %440 = vector.load %arg0[%c5, %c0_173, %c0_174] : memref<8x8x16xf32, #tpu.memory_space<vmem>>, vector<1x8x16xf32>
    %441 = vector.shape_cast %440 : vector<1x8x16xf32> to vector<8x16xf32>
    %cst_175 = arith.constant dense<0.000000e+00> : vector<8x32xf32>
    %442 = tpu.matmul %441, %1, %cst_175 {dimension_numbers = #tpu.dot_dimension_numbers<[1], [0], [0], [1], [0, 0, 1, 1], [], []>} : vector<8x16xf32>, vector<16x32xf32>, vector<8x32xf32> -> vector<8x32xf32>
    %443 = vector.broadcast %13 : vector<1x32xf32> to vector<8x32xf32>
    %444 = arith.addf %442, %443 : vector<8x32xf32>
    %cst_176 = arith.constant dense<0.000000e+00> : vector<8x32xf32>
    %445 = tpu.matmul %401, %7, %cst_176 {dimension_numbers = #tpu.dot_dimension_numbers<[1], [0], [0], [1], [0, 0, 1, 1], [], []>} : vector<8x32xf32>, vector<32x32xf32>, vector<8x32xf32> -> vector<8x32xf32>
    %446 = arith.addf %444, %445 : vector<8x32xf32>
    %447 = vector.broadcast %19 : vector<1x32xf32> to vector<8x32xf32>
    %448 = arith.addf %446, %447 : vector<8x32xf32>
    %449 = arith.negf %448 : vector<8x32xf32>
    %450 = math.exp %449 : vector<8x32xf32>
    %cst_177 = arith.constant 1.000000e+00 : f32
    %451 = vector.broadcast %cst_177 : f32 to vector<8x32xf32>
    %452 = arith.addf %451, %450 : vector<8x32xf32>
    %453 = arith.divf %451, %452 : vector<8x32xf32>
    %cst_178 = arith.constant dense<0.000000e+00> : vector<8x32xf32>
    %454 = tpu.matmul %441, %3, %cst_178 {dimension_numbers = #tpu.dot_dimension_numbers<[1], [0], [0], [1], [0, 0, 1, 1], [], []>} : vector<8x16xf32>, vector<16x32xf32>, vector<8x32xf32> -> vector<8x32xf32>
    %455 = vector.broadcast %15 : vector<1x32xf32> to vector<8x32xf32>
    %456 = arith.addf %454, %455 : vector<8x32xf32>
    %cst_179 = arith.constant dense<0.000000e+00> : vector<8x32xf32>
    %457 = tpu.matmul %401, %9, %cst_179 {dimension_numbers = #tpu.dot_dimension_numbers<[1], [0], [0], [1], [0, 0, 1, 1], [], []>} : vector<8x32xf32>, vector<32x32xf32>, vector<8x32xf32> -> vector<8x32xf32>
    %458 = arith.addf %456, %457 : vector<8x32xf32>
    %459 = vector.broadcast %21 : vector<1x32xf32> to vector<8x32xf32>
    %460 = arith.addf %458, %459 : vector<8x32xf32>
    %461 = arith.negf %460 : vector<8x32xf32>
    %462 = math.exp %461 : vector<8x32xf32>
    %cst_180 = arith.constant 1.000000e+00 : f32
    %463 = vector.broadcast %cst_180 : f32 to vector<8x32xf32>
    %464 = arith.addf %463, %462 : vector<8x32xf32>
    %465 = arith.divf %463, %464 : vector<8x32xf32>
    %cst_181 = arith.constant dense<0.000000e+00> : vector<8x32xf32>
    %466 = tpu.matmul %441, %5, %cst_181 {dimension_numbers = #tpu.dot_dimension_numbers<[1], [0], [0], [1], [0, 0, 1, 1], [], []>} : vector<8x16xf32>, vector<16x32xf32>, vector<8x32xf32> -> vector<8x32xf32>
    %467 = vector.broadcast %17 : vector<1x32xf32> to vector<8x32xf32>
    %468 = arith.addf %466, %467 : vector<8x32xf32>
    %cst_182 = arith.constant dense<0.000000e+00> : vector<8x32xf32>
    %469 = tpu.matmul %401, %11, %cst_182 {dimension_numbers = #tpu.dot_dimension_numbers<[1], [0], [0], [1], [0, 0, 1, 1], [], []>} : vector<8x32xf32>, vector<32x32xf32>, vector<8x32xf32> -> vector<8x32xf32>
    %470 = vector.broadcast %23 : vector<1x32xf32> to vector<8x32xf32>
    %471 = arith.addf %469, %470 : vector<8x32xf32>
    %472 = arith.mulf %453, %471 : vector<8x32xf32>
    %473 = arith.addf %468, %472 : vector<8x32xf32>
    %474 = math.tanh %473 : vector<8x32xf32>
    %cst_183 = arith.constant 1.000000e+00 : f32
    %475 = vector.broadcast %cst_183 : f32 to vector<8x32xf32>
    %476 = arith.subf %475, %465 : vector<8x32xf32>
    %477 = arith.mulf %476, %474 : vector<8x32xf32>
    %478 = arith.mulf %465, %401 : vector<8x32xf32>
    %479 = arith.addf %477, %478 : vector<8x32xf32>
    %cst_184 = arith.constant dense<0.000000e+00> : vector<8x32xf32>
    %480 = tpu.matmul %479, %25, %cst_184 {dimension_numbers = #tpu.dot_dimension_numbers<[1], [0], [0], [1], [0, 0, 1, 1], [], []>} : vector<8x32xf32>, vector<32x32xf32>, vector<8x32xf32> -> vector<8x32xf32>
    %481 = vector.broadcast %37 : vector<1x32xf32> to vector<8x32xf32>
    %482 = arith.addf %480, %481 : vector<8x32xf32>
    %cst_185 = arith.constant dense<0.000000e+00> : vector<8x32xf32>
    %483 = tpu.matmul %439, %31, %cst_185 {dimension_numbers = #tpu.dot_dimension_numbers<[1], [0], [0], [1], [0, 0, 1, 1], [], []>} : vector<8x32xf32>, vector<32x32xf32>, vector<8x32xf32> -> vector<8x32xf32>
    %484 = arith.addf %482, %483 : vector<8x32xf32>
    %485 = vector.broadcast %43 : vector<1x32xf32> to vector<8x32xf32>
    %486 = arith.addf %484, %485 : vector<8x32xf32>
    %487 = arith.negf %486 : vector<8x32xf32>
    %488 = math.exp %487 : vector<8x32xf32>
    %cst_186 = arith.constant 1.000000e+00 : f32
    %489 = vector.broadcast %cst_186 : f32 to vector<8x32xf32>
    %490 = arith.addf %489, %488 : vector<8x32xf32>
    %491 = arith.divf %489, %490 : vector<8x32xf32>
    %cst_187 = arith.constant dense<0.000000e+00> : vector<8x32xf32>
    %492 = tpu.matmul %479, %27, %cst_187 {dimension_numbers = #tpu.dot_dimension_numbers<[1], [0], [0], [1], [0, 0, 1, 1], [], []>} : vector<8x32xf32>, vector<32x32xf32>, vector<8x32xf32> -> vector<8x32xf32>
    %493 = vector.broadcast %39 : vector<1x32xf32> to vector<8x32xf32>
    %494 = arith.addf %492, %493 : vector<8x32xf32>
    %cst_188 = arith.constant dense<0.000000e+00> : vector<8x32xf32>
    %495 = tpu.matmul %439, %33, %cst_188 {dimension_numbers = #tpu.dot_dimension_numbers<[1], [0], [0], [1], [0, 0, 1, 1], [], []>} : vector<8x32xf32>, vector<32x32xf32>, vector<8x32xf32> -> vector<8x32xf32>
    %496 = arith.addf %494, %495 : vector<8x32xf32>
    %497 = vector.broadcast %45 : vector<1x32xf32> to vector<8x32xf32>
    %498 = arith.addf %496, %497 : vector<8x32xf32>
    %499 = arith.negf %498 : vector<8x32xf32>
    %500 = math.exp %499 : vector<8x32xf32>
    %cst_189 = arith.constant 1.000000e+00 : f32
    %501 = vector.broadcast %cst_189 : f32 to vector<8x32xf32>
    %502 = arith.addf %501, %500 : vector<8x32xf32>
    %503 = arith.divf %501, %502 : vector<8x32xf32>
    %cst_190 = arith.constant dense<0.000000e+00> : vector<8x32xf32>
    %504 = tpu.matmul %479, %29, %cst_190 {dimension_numbers = #tpu.dot_dimension_numbers<[1], [0], [0], [1], [0, 0, 1, 1], [], []>} : vector<8x32xf32>, vector<32x32xf32>, vector<8x32xf32> -> vector<8x32xf32>
    %505 = vector.broadcast %41 : vector<1x32xf32> to vector<8x32xf32>
    %506 = arith.addf %504, %505 : vector<8x32xf32>
    %cst_191 = arith.constant dense<0.000000e+00> : vector<8x32xf32>
    %507 = tpu.matmul %439, %35, %cst_191 {dimension_numbers = #tpu.dot_dimension_numbers<[1], [0], [0], [1], [0, 0, 1, 1], [], []>} : vector<8x32xf32>, vector<32x32xf32>, vector<8x32xf32> -> vector<8x32xf32>
    %508 = vector.broadcast %47 : vector<1x32xf32> to vector<8x32xf32>
    %509 = arith.addf %507, %508 : vector<8x32xf32>
    %510 = arith.mulf %491, %509 : vector<8x32xf32>
    %511 = arith.addf %506, %510 : vector<8x32xf32>
    %512 = math.tanh %511 : vector<8x32xf32>
    %cst_192 = arith.constant 1.000000e+00 : f32
    %513 = vector.broadcast %cst_192 : f32 to vector<8x32xf32>
    %514 = arith.subf %513, %503 : vector<8x32xf32>
    %515 = arith.mulf %514, %512 : vector<8x32xf32>
    %516 = arith.mulf %503, %439 : vector<8x32xf32>
    %517 = arith.addf %515, %516 : vector<8x32xf32>
    %c6 = arith.constant 6 : index
    %c0_193 = arith.constant 0 : index
    %c0_194 = arith.constant 0 : index
    %518 = vector.load %arg0[%c6, %c0_193, %c0_194] : memref<8x8x16xf32, #tpu.memory_space<vmem>>, vector<1x8x16xf32>
    %519 = vector.shape_cast %518 : vector<1x8x16xf32> to vector<8x16xf32>
    %cst_195 = arith.constant dense<0.000000e+00> : vector<8x32xf32>
    %520 = tpu.matmul %519, %1, %cst_195 {dimension_numbers = #tpu.dot_dimension_numbers<[1], [0], [0], [1], [0, 0, 1, 1], [], []>} : vector<8x16xf32>, vector<16x32xf32>, vector<8x32xf32> -> vector<8x32xf32>
    %521 = vector.broadcast %13 : vector<1x32xf32> to vector<8x32xf32>
    %522 = arith.addf %520, %521 : vector<8x32xf32>
    %cst_196 = arith.constant dense<0.000000e+00> : vector<8x32xf32>
    %523 = tpu.matmul %479, %7, %cst_196 {dimension_numbers = #tpu.dot_dimension_numbers<[1], [0], [0], [1], [0, 0, 1, 1], [], []>} : vector<8x32xf32>, vector<32x32xf32>, vector<8x32xf32> -> vector<8x32xf32>
    %524 = arith.addf %522, %523 : vector<8x32xf32>
    %525 = vector.broadcast %19 : vector<1x32xf32> to vector<8x32xf32>
    %526 = arith.addf %524, %525 : vector<8x32xf32>
    %527 = arith.negf %526 : vector<8x32xf32>
    %528 = math.exp %527 : vector<8x32xf32>
    %cst_197 = arith.constant 1.000000e+00 : f32
    %529 = vector.broadcast %cst_197 : f32 to vector<8x32xf32>
    %530 = arith.addf %529, %528 : vector<8x32xf32>
    %531 = arith.divf %529, %530 : vector<8x32xf32>
    %cst_198 = arith.constant dense<0.000000e+00> : vector<8x32xf32>
    %532 = tpu.matmul %519, %3, %cst_198 {dimension_numbers = #tpu.dot_dimension_numbers<[1], [0], [0], [1], [0, 0, 1, 1], [], []>} : vector<8x16xf32>, vector<16x32xf32>, vector<8x32xf32> -> vector<8x32xf32>
    %533 = vector.broadcast %15 : vector<1x32xf32> to vector<8x32xf32>
    %534 = arith.addf %532, %533 : vector<8x32xf32>
    %cst_199 = arith.constant dense<0.000000e+00> : vector<8x32xf32>
    %535 = tpu.matmul %479, %9, %cst_199 {dimension_numbers = #tpu.dot_dimension_numbers<[1], [0], [0], [1], [0, 0, 1, 1], [], []>} : vector<8x32xf32>, vector<32x32xf32>, vector<8x32xf32> -> vector<8x32xf32>
    %536 = arith.addf %534, %535 : vector<8x32xf32>
    %537 = vector.broadcast %21 : vector<1x32xf32> to vector<8x32xf32>
    %538 = arith.addf %536, %537 : vector<8x32xf32>
    %539 = arith.negf %538 : vector<8x32xf32>
    %540 = math.exp %539 : vector<8x32xf32>
    %cst_200 = arith.constant 1.000000e+00 : f32
    %541 = vector.broadcast %cst_200 : f32 to vector<8x32xf32>
    %542 = arith.addf %541, %540 : vector<8x32xf32>
    %543 = arith.divf %541, %542 : vector<8x32xf32>
    %cst_201 = arith.constant dense<0.000000e+00> : vector<8x32xf32>
    %544 = tpu.matmul %519, %5, %cst_201 {dimension_numbers = #tpu.dot_dimension_numbers<[1], [0], [0], [1], [0, 0, 1, 1], [], []>} : vector<8x16xf32>, vector<16x32xf32>, vector<8x32xf32> -> vector<8x32xf32>
    %545 = vector.broadcast %17 : vector<1x32xf32> to vector<8x32xf32>
    %546 = arith.addf %544, %545 : vector<8x32xf32>
    %cst_202 = arith.constant dense<0.000000e+00> : vector<8x32xf32>
    %547 = tpu.matmul %479, %11, %cst_202 {dimension_numbers = #tpu.dot_dimension_numbers<[1], [0], [0], [1], [0, 0, 1, 1], [], []>} : vector<8x32xf32>, vector<32x32xf32>, vector<8x32xf32> -> vector<8x32xf32>
    %548 = vector.broadcast %23 : vector<1x32xf32> to vector<8x32xf32>
    %549 = arith.addf %547, %548 : vector<8x32xf32>
    %550 = arith.mulf %531, %549 : vector<8x32xf32>
    %551 = arith.addf %546, %550 : vector<8x32xf32>
    %552 = math.tanh %551 : vector<8x32xf32>
    %cst_203 = arith.constant 1.000000e+00 : f32
    %553 = vector.broadcast %cst_203 : f32 to vector<8x32xf32>
    %554 = arith.subf %553, %543 : vector<8x32xf32>
    %555 = arith.mulf %554, %552 : vector<8x32xf32>
    %556 = arith.mulf %543, %479 : vector<8x32xf32>
    %557 = arith.addf %555, %556 : vector<8x32xf32>
    %cst_204 = arith.constant dense<0.000000e+00> : vector<8x32xf32>
    %558 = tpu.matmul %557, %25, %cst_204 {dimension_numbers = #tpu.dot_dimension_numbers<[1], [0], [0], [1], [0, 0, 1, 1], [], []>} : vector<8x32xf32>, vector<32x32xf32>, vector<8x32xf32> -> vector<8x32xf32>
    %559 = vector.broadcast %37 : vector<1x32xf32> to vector<8x32xf32>
    %560 = arith.addf %558, %559 : vector<8x32xf32>
    %cst_205 = arith.constant dense<0.000000e+00> : vector<8x32xf32>
    %561 = tpu.matmul %517, %31, %cst_205 {dimension_numbers = #tpu.dot_dimension_numbers<[1], [0], [0], [1], [0, 0, 1, 1], [], []>} : vector<8x32xf32>, vector<32x32xf32>, vector<8x32xf32> -> vector<8x32xf32>
    %562 = arith.addf %560, %561 : vector<8x32xf32>
    %563 = vector.broadcast %43 : vector<1x32xf32> to vector<8x32xf32>
    %564 = arith.addf %562, %563 : vector<8x32xf32>
    %565 = arith.negf %564 : vector<8x32xf32>
    %566 = math.exp %565 : vector<8x32xf32>
    %cst_206 = arith.constant 1.000000e+00 : f32
    %567 = vector.broadcast %cst_206 : f32 to vector<8x32xf32>
    %568 = arith.addf %567, %566 : vector<8x32xf32>
    %569 = arith.divf %567, %568 : vector<8x32xf32>
    %cst_207 = arith.constant dense<0.000000e+00> : vector<8x32xf32>
    %570 = tpu.matmul %557, %27, %cst_207 {dimension_numbers = #tpu.dot_dimension_numbers<[1], [0], [0], [1], [0, 0, 1, 1], [], []>} : vector<8x32xf32>, vector<32x32xf32>, vector<8x32xf32> -> vector<8x32xf32>
    %571 = vector.broadcast %39 : vector<1x32xf32> to vector<8x32xf32>
    %572 = arith.addf %570, %571 : vector<8x32xf32>
    %cst_208 = arith.constant dense<0.000000e+00> : vector<8x32xf32>
    %573 = tpu.matmul %517, %33, %cst_208 {dimension_numbers = #tpu.dot_dimension_numbers<[1], [0], [0], [1], [0, 0, 1, 1], [], []>} : vector<8x32xf32>, vector<32x32xf32>, vector<8x32xf32> -> vector<8x32xf32>
    %574 = arith.addf %572, %573 : vector<8x32xf32>
    %575 = vector.broadcast %45 : vector<1x32xf32> to vector<8x32xf32>
    %576 = arith.addf %574, %575 : vector<8x32xf32>
    %577 = arith.negf %576 : vector<8x32xf32>
    %578 = math.exp %577 : vector<8x32xf32>
    %cst_209 = arith.constant 1.000000e+00 : f32
    %579 = vector.broadcast %cst_209 : f32 to vector<8x32xf32>
    %580 = arith.addf %579, %578 : vector<8x32xf32>
    %581 = arith.divf %579, %580 : vector<8x32xf32>
    %cst_210 = arith.constant dense<0.000000e+00> : vector<8x32xf32>
    %582 = tpu.matmul %557, %29, %cst_210 {dimension_numbers = #tpu.dot_dimension_numbers<[1], [0], [0], [1], [0, 0, 1, 1], [], []>} : vector<8x32xf32>, vector<32x32xf32>, vector<8x32xf32> -> vector<8x32xf32>
    %583 = vector.broadcast %41 : vector<1x32xf32> to vector<8x32xf32>
    %584 = arith.addf %582, %583 : vector<8x32xf32>
    %cst_211 = arith.constant dense<0.000000e+00> : vector<8x32xf32>
    %585 = tpu.matmul %517, %35, %cst_211 {dimension_numbers = #tpu.dot_dimension_numbers<[1], [0], [0], [1], [0, 0, 1, 1], [], []>} : vector<8x32xf32>, vector<32x32xf32>, vector<8x32xf32> -> vector<8x32xf32>
    %586 = vector.broadcast %47 : vector<1x32xf32> to vector<8x32xf32>
    %587 = arith.addf %585, %586 : vector<8x32xf32>
    %588 = arith.mulf %569, %587 : vector<8x32xf32>
    %589 = arith.addf %584, %588 : vector<8x32xf32>
    %590 = math.tanh %589 : vector<8x32xf32>
    %cst_212 = arith.constant 1.000000e+00 : f32
    %591 = vector.broadcast %cst_212 : f32 to vector<8x32xf32>
    %592 = arith.subf %591, %581 : vector<8x32xf32>
    %593 = arith.mulf %592, %590 : vector<8x32xf32>
    %594 = arith.mulf %581, %517 : vector<8x32xf32>
    %595 = arith.addf %593, %594 : vector<8x32xf32>
    %c7 = arith.constant 7 : index
    %c0_213 = arith.constant 0 : index
    %c0_214 = arith.constant 0 : index
    %596 = vector.load %arg0[%c7, %c0_213, %c0_214] : memref<8x8x16xf32, #tpu.memory_space<vmem>>, vector<1x8x16xf32>
    %597 = vector.shape_cast %596 : vector<1x8x16xf32> to vector<8x16xf32>
    %cst_215 = arith.constant dense<0.000000e+00> : vector<8x32xf32>
    %598 = tpu.matmul %597, %1, %cst_215 {dimension_numbers = #tpu.dot_dimension_numbers<[1], [0], [0], [1], [0, 0, 1, 1], [], []>} : vector<8x16xf32>, vector<16x32xf32>, vector<8x32xf32> -> vector<8x32xf32>
    %599 = vector.broadcast %13 : vector<1x32xf32> to vector<8x32xf32>
    %600 = arith.addf %598, %599 : vector<8x32xf32>
    %cst_216 = arith.constant dense<0.000000e+00> : vector<8x32xf32>
    %601 = tpu.matmul %557, %7, %cst_216 {dimension_numbers = #tpu.dot_dimension_numbers<[1], [0], [0], [1], [0, 0, 1, 1], [], []>} : vector<8x32xf32>, vector<32x32xf32>, vector<8x32xf32> -> vector<8x32xf32>
    %602 = arith.addf %600, %601 : vector<8x32xf32>
    %603 = vector.broadcast %19 : vector<1x32xf32> to vector<8x32xf32>
    %604 = arith.addf %602, %603 : vector<8x32xf32>
    %605 = arith.negf %604 : vector<8x32xf32>
    %606 = math.exp %605 : vector<8x32xf32>
    %cst_217 = arith.constant 1.000000e+00 : f32
    %607 = vector.broadcast %cst_217 : f32 to vector<8x32xf32>
    %608 = arith.addf %607, %606 : vector<8x32xf32>
    %609 = arith.divf %607, %608 : vector<8x32xf32>
    %cst_218 = arith.constant dense<0.000000e+00> : vector<8x32xf32>
    %610 = tpu.matmul %597, %3, %cst_218 {dimension_numbers = #tpu.dot_dimension_numbers<[1], [0], [0], [1], [0, 0, 1, 1], [], []>} : vector<8x16xf32>, vector<16x32xf32>, vector<8x32xf32> -> vector<8x32xf32>
    %611 = vector.broadcast %15 : vector<1x32xf32> to vector<8x32xf32>
    %612 = arith.addf %610, %611 : vector<8x32xf32>
    %cst_219 = arith.constant dense<0.000000e+00> : vector<8x32xf32>
    %613 = tpu.matmul %557, %9, %cst_219 {dimension_numbers = #tpu.dot_dimension_numbers<[1], [0], [0], [1], [0, 0, 1, 1], [], []>} : vector<8x32xf32>, vector<32x32xf32>, vector<8x32xf32> -> vector<8x32xf32>
    %614 = arith.addf %612, %613 : vector<8x32xf32>
    %615 = vector.broadcast %21 : vector<1x32xf32> to vector<8x32xf32>
    %616 = arith.addf %614, %615 : vector<8x32xf32>
    %617 = arith.negf %616 : vector<8x32xf32>
    %618 = math.exp %617 : vector<8x32xf32>
    %cst_220 = arith.constant 1.000000e+00 : f32
    %619 = vector.broadcast %cst_220 : f32 to vector<8x32xf32>
    %620 = arith.addf %619, %618 : vector<8x32xf32>
    %621 = arith.divf %619, %620 : vector<8x32xf32>
    %cst_221 = arith.constant dense<0.000000e+00> : vector<8x32xf32>
    %622 = tpu.matmul %597, %5, %cst_221 {dimension_numbers = #tpu.dot_dimension_numbers<[1], [0], [0], [1], [0, 0, 1, 1], [], []>} : vector<8x16xf32>, vector<16x32xf32>, vector<8x32xf32> -> vector<8x32xf32>
    %623 = vector.broadcast %17 : vector<1x32xf32> to vector<8x32xf32>
    %624 = arith.addf %622, %623 : vector<8x32xf32>
    %cst_222 = arith.constant dense<0.000000e+00> : vector<8x32xf32>
    %625 = tpu.matmul %557, %11, %cst_222 {dimension_numbers = #tpu.dot_dimension_numbers<[1], [0], [0], [1], [0, 0, 1, 1], [], []>} : vector<8x32xf32>, vector<32x32xf32>, vector<8x32xf32> -> vector<8x32xf32>
    %626 = vector.broadcast %23 : vector<1x32xf32> to vector<8x32xf32>
    %627 = arith.addf %625, %626 : vector<8x32xf32>
    %628 = arith.mulf %609, %627 : vector<8x32xf32>
    %629 = arith.addf %624, %628 : vector<8x32xf32>
    %630 = math.tanh %629 : vector<8x32xf32>
    %cst_223 = arith.constant 1.000000e+00 : f32
    %631 = vector.broadcast %cst_223 : f32 to vector<8x32xf32>
    %632 = arith.subf %631, %621 : vector<8x32xf32>
    %633 = arith.mulf %632, %630 : vector<8x32xf32>
    %634 = arith.mulf %621, %557 : vector<8x32xf32>
    %635 = arith.addf %633, %634 : vector<8x32xf32>
    %cst_224 = arith.constant dense<0.000000e+00> : vector<8x32xf32>
    %636 = tpu.matmul %635, %25, %cst_224 {dimension_numbers = #tpu.dot_dimension_numbers<[1], [0], [0], [1], [0, 0, 1, 1], [], []>} : vector<8x32xf32>, vector<32x32xf32>, vector<8x32xf32> -> vector<8x32xf32>
    %637 = vector.broadcast %37 : vector<1x32xf32> to vector<8x32xf32>
    %638 = arith.addf %636, %637 : vector<8x32xf32>
    %cst_225 = arith.constant dense<0.000000e+00> : vector<8x32xf32>
    %639 = tpu.matmul %595, %31, %cst_225 {dimension_numbers = #tpu.dot_dimension_numbers<[1], [0], [0], [1], [0, 0, 1, 1], [], []>} : vector<8x32xf32>, vector<32x32xf32>, vector<8x32xf32> -> vector<8x32xf32>
    %640 = arith.addf %638, %639 : vector<8x32xf32>
    %641 = vector.broadcast %43 : vector<1x32xf32> to vector<8x32xf32>
    %642 = arith.addf %640, %641 : vector<8x32xf32>
    %643 = arith.negf %642 : vector<8x32xf32>
    %644 = math.exp %643 : vector<8x32xf32>
    %cst_226 = arith.constant 1.000000e+00 : f32
    %645 = vector.broadcast %cst_226 : f32 to vector<8x32xf32>
    %646 = arith.addf %645, %644 : vector<8x32xf32>
    %647 = arith.divf %645, %646 : vector<8x32xf32>
    %cst_227 = arith.constant dense<0.000000e+00> : vector<8x32xf32>
    %648 = tpu.matmul %635, %27, %cst_227 {dimension_numbers = #tpu.dot_dimension_numbers<[1], [0], [0], [1], [0, 0, 1, 1], [], []>} : vector<8x32xf32>, vector<32x32xf32>, vector<8x32xf32> -> vector<8x32xf32>
    %649 = vector.broadcast %39 : vector<1x32xf32> to vector<8x32xf32>
    %650 = arith.addf %648, %649 : vector<8x32xf32>
    %cst_228 = arith.constant dense<0.000000e+00> : vector<8x32xf32>
    %651 = tpu.matmul %595, %33, %cst_228 {dimension_numbers = #tpu.dot_dimension_numbers<[1], [0], [0], [1], [0, 0, 1, 1], [], []>} : vector<8x32xf32>, vector<32x32xf32>, vector<8x32xf32> -> vector<8x32xf32>
    %652 = arith.addf %650, %651 : vector<8x32xf32>
    %653 = vector.broadcast %45 : vector<1x32xf32> to vector<8x32xf32>
    %654 = arith.addf %652, %653 : vector<8x32xf32>
    %655 = arith.negf %654 : vector<8x32xf32>
    %656 = math.exp %655 : vector<8x32xf32>
    %cst_229 = arith.constant 1.000000e+00 : f32
    %657 = vector.broadcast %cst_229 : f32 to vector<8x32xf32>
    %658 = arith.addf %657, %656 : vector<8x32xf32>
    %659 = arith.divf %657, %658 : vector<8x32xf32>
    %cst_230 = arith.constant dense<0.000000e+00> : vector<8x32xf32>
    %660 = tpu.matmul %635, %29, %cst_230 {dimension_numbers = #tpu.dot_dimension_numbers<[1], [0], [0], [1], [0, 0, 1, 1], [], []>} : vector<8x32xf32>, vector<32x32xf32>, vector<8x32xf32> -> vector<8x32xf32>
    %661 = vector.broadcast %41 : vector<1x32xf32> to vector<8x32xf32>
    %662 = arith.addf %660, %661 : vector<8x32xf32>
    %cst_231 = arith.constant dense<0.000000e+00> : vector<8x32xf32>
    %663 = tpu.matmul %595, %35, %cst_231 {dimension_numbers = #tpu.dot_dimension_numbers<[1], [0], [0], [1], [0, 0, 1, 1], [], []>} : vector<8x32xf32>, vector<32x32xf32>, vector<8x32xf32> -> vector<8x32xf32>
    %664 = vector.broadcast %47 : vector<1x32xf32> to vector<8x32xf32>
    %665 = arith.addf %663, %664 : vector<8x32xf32>
    %666 = arith.mulf %647, %665 : vector<8x32xf32>
    %667 = arith.addf %662, %666 : vector<8x32xf32>
    %668 = math.tanh %667 : vector<8x32xf32>
    %cst_232 = arith.constant 1.000000e+00 : f32
    %669 = vector.broadcast %cst_232 : f32 to vector<8x32xf32>
    %670 = arith.subf %669, %659 : vector<8x32xf32>
    %671 = arith.mulf %670, %668 : vector<8x32xf32>
    %672 = arith.mulf %659, %595 : vector<8x32xf32>
    %673 = arith.addf %671, %672 : vector<8x32xf32>
    %c0_233 = arith.constant 0 : index
    %c0_234 = arith.constant 0 : index
    %674 = vector.load %arg9[%c0_233, %c0_234] : memref<32x96xf32, #tpu.memory_space<vmem>>, vector<32x96xf32>
    %cst_235 = arith.constant dense<0.000000e+00> : vector<8x96xf32>
    %675 = tpu.matmul %673, %674, %cst_235 {dimension_numbers = #tpu.dot_dimension_numbers<[1], [0], [0], [1], [0, 0, 1, 1], [], []>} : vector<8x32xf32>, vector<32x96xf32>, vector<8x96xf32> -> vector<8x96xf32>
    %c0_236 = arith.constant 0 : index
    %c0_237 = arith.constant 0 : index
    %676 = vector.load %arg10[%c0_236, %c0_237] : memref<1x96xf32, #tpu.memory_space<vmem>>, vector<1x96xf32>
    %677 = vector.broadcast %676 : vector<1x96xf32> to vector<8x96xf32>
    %678 = arith.addf %675, %677 : vector<8x96xf32>
    %cst_238 = arith.constant 0.000000e+00 : f32
    %679 = vector.broadcast %cst_238 : f32 to vector<8x96xf32>
    %680 = arith.cmpf ogt, %678, %679 : vector<8x96xf32>
    %cst_239 = arith.constant 0.00999999977 : f32
    %681 = vector.broadcast %cst_239 : f32 to vector<8x96xf32>
    %682 = arith.mulf %681, %678 : vector<8x96xf32>
    %683 = arith.select %680, %678, %682 : vector<8x96xi1>, vector<8x96xf32>
    %c0_240 = arith.constant 0 : index
    %c0_241 = arith.constant 0 : index
    %684 = vector.load %arg11[%c0_240, %c0_241] : memref<96x96xf32, #tpu.memory_space<vmem>>, vector<96x96xf32>
    %cst_242 = arith.constant dense<0.000000e+00> : vector<8x96xf32>
    %685 = tpu.matmul %683, %684, %cst_242 {dimension_numbers = #tpu.dot_dimension_numbers<[1], [0], [0], [1], [0, 0, 1, 1], [], []>} : vector<8x96xf32>, vector<96x96xf32>, vector<8x96xf32> -> vector<8x96xf32>
    %c0_243 = arith.constant 0 : index
    %c0_244 = arith.constant 0 : index
    %686 = vector.load %arg12[%c0_243, %c0_244] : memref<1x96xf32, #tpu.memory_space<vmem>>, vector<1x96xf32>
    %687 = vector.broadcast %686 : vector<1x96xf32> to vector<8x96xf32>
    %688 = arith.addf %685, %687 : vector<8x96xf32>
    %cst_245 = arith.constant 0.000000e+00 : f32
    %689 = vector.broadcast %cst_245 : f32 to vector<8x96xf32>
    %690 = arith.cmpf ogt, %688, %689 : vector<8x96xf32>
    %cst_246 = arith.constant 0.00999999977 : f32
    %691 = vector.broadcast %cst_246 : f32 to vector<8x96xf32>
    %692 = arith.mulf %691, %688 : vector<8x96xf32>
    %693 = arith.select %690, %688, %692 : vector<8x96xi1>, vector<8x96xf32>
    %c0_247 = arith.constant 0 : index
    %c0_248 = arith.constant 0 : index
    %694 = vector.load %arg13[%c0_247, %c0_248] : memref<96x96xf32, #tpu.memory_space<vmem>>, vector<96x96xf32>
    %cst_249 = arith.constant dense<0.000000e+00> : vector<8x96xf32>
    %695 = tpu.matmul %693, %694, %cst_249 {dimension_numbers = #tpu.dot_dimension_numbers<[1], [0], [0], [1], [0, 0, 1, 1], [], []>} : vector<8x96xf32>, vector<96x96xf32>, vector<8x96xf32> -> vector<8x96xf32>
    %c0_250 = arith.constant 0 : index
    %c0_251 = arith.constant 0 : index
    %696 = vector.load %arg14[%c0_250, %c0_251] : memref<1x96xf32, #tpu.memory_space<vmem>>, vector<1x96xf32>
    %697 = vector.broadcast %696 : vector<1x96xf32> to vector<8x96xf32>
    %698 = arith.addf %695, %697 : vector<8x96xf32>
    %699 = vector.extract_strided_slice %698 {offsets = [0, 0], sizes = [8, 32], strides = [1, 1]} : vector<8x96xf32> to vector<8x32xf32>
    %c0_252 = arith.constant 0 : index
    %c0_253 = arith.constant 0 : index
    %700 = vector.load %arg19[%c0_252, %c0_253] : memref<8x32xf32, #tpu.memory_space<vmem>>, vector<8x32xf32>
    tpu.vector_store %arg19[%c0_252, %c0_253], %699 {strides = array<i32>} : memref<8x32xf32, #tpu.memory_space<vmem>>, vector<8x32xf32>,
    %c0_254 = arith.constant 0 : index
    %c0_255 = arith.constant 0 : index
    %701 = vector.load %arg15[%c0_254, %c0_255] : memref<96x3xf32, #tpu.memory_space<vmem>>, vector<96x3xf32>
    %cst_256 = arith.constant dense<0.000000e+00> : vector<8x3xf32>
    %702 = tpu.matmul %698, %701, %cst_256 {dimension_numbers = #tpu.dot_dimension_numbers<[1], [0], [0], [1], [0, 0, 1, 1], [], []>} : vector<8x96xf32>, vector<96x3xf32>, vector<8x3xf32> -> vector<8x3xf32>
    %c0_257 = arith.constant 0 : index
    %c0_258 = arith.constant 0 : index
    %703 = vector.load %arg16[%c0_257, %c0_258] : memref<1x3xf32, #tpu.memory_space<vmem>>, vector<1x3xf32>
    %704 = vector.broadcast %703 : vector<1x3xf32> to vector<8x3xf32>
    %705 = arith.mulf %702, %704 : vector<8x3xf32>
    %c0_259 = arith.constant 0 : index
    %c0_260 = arith.constant 0 : index
    %706 = vector.load %arg17[%c0_259, %c0_260] : memref<1x3xf32, #tpu.memory_space<vmem>>, vector<1x3xf32>
    %707 = vector.broadcast %706 : vector<1x3xf32> to vector<8x3xf32>
    %708 = arith.addf %705, %707 : vector<8x3xf32>
    %c0_261 = arith.constant 0 : index
    %c0_262 = arith.constant 0 : index
    %709 = vector.load %arg18[%c0_261, %c0_262] : memref<8x3xf32, #tpu.memory_space<vmem>>, vector<8x3xf32>
    tpu.vector_store %arg18[%c0_261, %c0_262], %708 {strides = array<i32>} : memref<8x3xf32, #tpu.memory_space<vmem>>, vector<8x3xf32>,
    return
  }
}

</mosaic_0001>

<llo_original>
// kernel: tpu_custom_call.1
$region0: #{tpu_custom_call.1}
  #allocation0 [shape = 'u32[]', space=smem, size = 0x4, offset = 0x4, fixed_abs, tag = 'smem constant byte address 0x4 - core index']
  #allocation1 [shape = 'u32[144,128]{1,0:T(1,128)}', space=vmem, size = 0x12000, scoped, tag = 'internal scratch']
  %s0 = inlined_call_operand.hbm [shape: f32[8,8,16], index: 0, kind: input, shape index: {}]
  %s1 = inlined_call_operand.hbm [shape: f32[3,16,32], index: 1, kind: input, shape index: {}]
  %s2 = inlined_call_operand.vmem [shape: f32[3,32,32], index: 2, kind: input, shape index: {}]
  %s3 = inlined_call_operand.vmem [shape: f32[3,1,32], index: 3, kind: input, shape index: {}]
  %s4 = inlined_call_operand.vmem [shape: f32[3,1,32], index: 4, kind: input, shape index: {}]
  %s5 = inlined_call_operand.hbm [shape: f32[3,32,32], index: 5, kind: input, shape index: {}]
  %s6 = inlined_call_operand.hbm [shape: f32[3,32,32], index: 6, kind: input, shape index: {}]
  %s7 = inlined_call_operand.vmem [shape: f32[3,1,32], index: 7, kind: input, shape index: {}]
  %s8 = inlined_call_operand.vmem [shape: f32[3,1,32], index: 8, kind: input, shape index: {}]
  %s9 = inlined_call_operand.hbm [shape: f32[32,96], index: 9, kind: input, shape index: {}]
  %s10 = inlined_call_operand.vmem [shape: f32[1,96], index: 10, kind: input, shape index: {}]
  %s11 = inlined_call_operand.hbm [shape: f32[96,96], index: 11, kind: input, shape index: {}]
  %s12 = inlined_call_operand.vmem [shape: f32[1,96], index: 12, kind: input, shape index: {}]
  %s13 = inlined_call_operand.hbm [shape: f32[96,96], index: 13, kind: input, shape index: {}]
  %s14 = inlined_call_operand.vmem [shape: f32[1,96], index: 14, kind: input, shape index: {}]
  %s15 = inlined_call_operand.vmem [shape: f32[96,3], index: 15, kind: input, shape index: {}]
  %s16 = inlined_call_operand.vmem [shape: f32[1,3], index: 16, kind: input, shape index: {}]
  %s17 = inlined_call_operand.vmem [shape: f32[1,3], index: 17, kind: input, shape index: {}]
  %s18 = inlined_call_operand.vmem [shape: f32[8,3], index: 18, kind: output, shape index: {0}]
  %s19 = inlined_call_operand.hbm [shape: f32[8,32], index: 19, kind: output, shape index: {1}]
  %20 = xla_tuple %s18, %s19
  %s21 = sld [smem:[#allocation0]]
  $region118: #{tpu_custom_call.1} parent=0
    _
  %s23 = ssub.s32 1, %s21
  %s24 = scalar_select 0, %s23, %s21
  $region1: #{tpu_custom_call.1} parent=0
    #allocation2 [shape = 'u8[32768]{0}', space=vmem, size = 0x8000, scoped, tag = 'input window, operand 0, single buffered']
    #allocation3 [shape = 's32[1]{0}', space=sflag, size = 0x4, scoped, tag = 'scoped memory for tpu_custom_call.1']
    #allocation4 [shape = 's32[1]{0}', space=sflag, size = 0x4, scoped, tag = 'scoped memory for tpu_custom_call.1']
    #allocation5 [shape = 'u8[24576]{0}', space=vmem, size = 0x6000, scoped, tag = 'input window, operand 1, single buffered']
    #allocation6 [shape = 's32[1]{0}', space=sflag, size = 0x4, scoped, tag = 'scoped memory for tpu_custom_call.1']
    #allocation7 [shape = 'u8[49152]{0}', space=vmem, size = 0xc000, scoped, tag = 'input window, operand 5, single buffered']
    #allocation8 [shape = 'u8[49152]{0}', space=vmem, size = 0xc000, scoped, tag = 'input window, operand 6, single buffered']
    #allocation9 [shape = 's32[1]{0}', space=sflag, size = 0x4, scoped, tag = 'scoped memory for tpu_custom_call.1']
    #allocation10 [shape = 'u8[16384]{0}', space=vmem, size = 0x4000, scoped, tag = 'input window, operand 9, single buffered']
    #allocation11 [shape = 'u8[49152]{0}', space=vmem, size = 0xc000, scoped, tag = 'input window, operand 11, single buffered']
    #allocation12 [shape = 's32[1]{0}', space=sflag, size = 0x4, scoped, tag = 'scoped memory for tpu_custom_call.1']
    #allocation13 [shape = 'u8[49152]{0}', space=vmem, size = 0xc000, scoped, tag = 'input window, operand 13, single buffered']
    #allocation14 [shape = 'u8[4096]{0}', space=vmem, size = 0x1000, scoped, tag = 'output window, operand 1, single buffered']
    %25 = vsyncpa [#allocation3], 0
    %26 = vsyncpa [#allocation6], 0
    %27 = vsyncpa [#allocation9], 0
    %28 = vsyncpa [#allocation12], 0
    %29 = vsyncpa [#allocation4], 0
    // Predicated region
    $region2: #{tpu_custom_call.1} parent=1 // pred_check
      _
    $region3: #{tpu_custom_call.1} parent=1 // pred_check_branch
      %31 = sbr.rel (0) target = $region5
    $region4: #{tpu_custom_call.1} parent=1 // pred_region
      %s33 = ssub.s32 1024, 1024
      %34 = vsyncadd [#allocation3], %s33
      %s35 = sshll.u32 [#allocation2], 4
      %s36 = int_to_ptr.vmem [resolvable:$true] %s35
      %41 = dma.hbm_to_vmem [thread:$0]  %s0, 1024, %s36, [#allocation3], 128, 128, 8
    $region5: #{tpu_custom_call.1} parent=1 // pred_fallthru
      _
    // Predicated region
    $region6: #{tpu_custom_call.1} parent=1 // pred_check
      _
    $region7: #{tpu_custom_call.1} parent=1 // pred_check_branch
      %43 = sbr.rel (0) target = $region9
    $region8: #{tpu_custom_call.1} parent=1 // pred_region
      %s45 = ssub.s32 768, 768
      %46 = vsyncadd [#allocation6], %s45
      %s47 = sshll.u32 [#allocation5], 4
      %s48 = int_to_ptr.vmem [resolvable:$true] %s47
      %53 = dma.hbm_to_vmem [thread:$0]  %s1, 768, %s48, [#allocation6], 128, 128, 8
    $region9: #{tpu_custom_call.1} parent=1 // pred_fallthru
      _
    // Predicated region
    $region10: #{tpu_custom_call.1} parent=1 // pred_check
      _
    $region11: #{tpu_custom_call.1} parent=1 // pred_check_branch
      %55 = sbr.rel (0) target = $region13
    $region12: #{tpu_custom_call.1} parent=1 // pred_region
      _
    $region13: #{tpu_custom_call.1} parent=1 // pred_fallthru
      _
    // Predicated region
    $region14: #{tpu_custom_call.1} parent=1 // pred_check
      _
    $region15: #{tpu_custom_call.1} parent=1 // pred_check_branch
      %57 = sbr.rel (0) target = $region17
    $region16: #{tpu_custom_call.1} parent=1 // pred_region
      _
    $region17: #{tpu_custom_call.1} parent=1 // pred_fallthru
      _
    // Predicated region
    $region18: #{tpu_custom_call.1} parent=1 // pred_check
      _
    $region19: #{tpu_custom_call.1} parent=1 // pred_check_branch
      %59 = sbr.rel (0) target = $region21
    $region20: #{tpu_custom_call.1} parent=1 // pred_region
      _
    $region21: #{tpu_custom_call.1} parent=1 // pred_fallthru
      _
    // Predicated region
    $region22: #{tpu_custom_call.1} parent=1 // pred_check
      _
    $region23: #{tpu_custom_call.1} parent=1 // pred_check_branch
      %61 = sbr.rel (0) target = $region25
    $region24: #{tpu_custom_call.1} parent=1 // pred_region
      %s63 = ssub.s32 1536, 1536
      %64 = vsyncadd [#allocation6], %s63
      %s65 = sshll.u32 [#allocation7], 4
      %s66 = int_to_ptr.vmem [resolvable:$true] %s65
      %71 = dma.hbm_to_vmem [thread:$0]  %s5, 1536, %s66, [#allocation6], 128, 128, 8
    $region25: #{tpu_custom_call.1} parent=1 // pred_fallthru
      _
    // Predicated region
    $region26: #{tpu_custom_call.1} parent=1 // pred_check
      _
    $region27: #{tpu_custom_call.1} parent=1 // pred_check_branch
      %73 = sbr.rel (0) target = $region29
    $region28: #{tpu_custom_call.1} parent=1 // pred_region
      %s75 = ssub.s32 1536, 1536
      %76 = vsyncadd [#allocation9], %s75
      %s77 = sshll.u32 [#allocation8], 4
      %s78 = int_to_ptr.vmem [resolvable:$true] %s77
      %83 = dma.hbm_to_vmem [thread:$0]  %s6, 1536, %s78, [#allocation9], 128, 128, 8
    $region29: #{tpu_custom_call.1} parent=1 // pred_fallthru
      _
    // Predicated region
    $region30: #{tpu_custom_call.1} parent=1 // pred_check
      _
    $region31: #{tpu_custom_call.1} parent=1 // pred_check_branch
      %85 = sbr.rel (0) target = $region33
    $region32: #{tpu_custom_call.1} parent=1 // pred_region
      _
    $region33: #{tpu_custom_call.1} parent=1 // pred_fallthru
      _
    // Predicated region
    $region34: #{tpu_custom_call.1} parent=1 // pred_check
      _
    $region35: #{tpu_custom_call.1} parent=1 // pred_check_branch
      %87 = sbr.rel (0) target = $region37
    $region36: #{tpu_custom_call.1} parent=1 // pred_region
      _
    $region37: #{tpu_custom_call.1} parent=1 // pred_fallthru
      _
    // Predicated region
    $region38: #{tpu_custom_call.1} parent=1 // pred_check
      _
    $region39: #{tpu_custom_call.1} parent=1 // pred_check_branch
      %89 = sbr.rel (0) target = $region41
    $region40: #{tpu_custom_call.1} parent=1 // pred_region
      %s91 = ssub.s32 512, 512
      %92 = vsyncadd [#allocation9], %s91
      %s93 = sshll.u32 [#allocation10], 4
      %s94 = int_to_ptr.vmem [resolvable:$true] %s93
      %99 = dma.hbm_to_vmem [thread:$0]  %s9, 512, %s94, [#allocation9], 128, 128, 8
    $region41: #{tpu_custom_call.1} parent=1 // pred_fallthru
      _
    // Predicated region
    $region42: #{tpu_custom_call.1} parent=1 // pred_check
      _
    $region43: #{tpu_custom_call.1} parent=1 // pred_check_branch
      %101 = sbr.rel (0) target = $region45
    $region44: #{tpu_custom_call.1} parent=1 // pred_region
      _
    $region45: #{tpu_custom_call.1} parent=1 // pred_fallthru
      _
    // Predicated region
    $region46: #{tpu_custom_call.1} parent=1 // pred_check
      _
    $region47: #{tpu_custom_call.1} parent=1 // pred_check_branch
      %103 = sbr.rel (0) target = $region49
    $region48: #{tpu_custom_call.1} parent=1 // pred_region
      %s105 = ssub.s32 1536, 1536
      %106 = vsyncadd [#allocation12], %s105
      %s107 = sshll.u32 [#allocation11], 4
      %s108 = int_to_ptr.vmem [resolvable:$true] %s107
      %113 = dma.hbm_to_vmem [thread:$0]  %s11, 1536, %s108, [#allocation12], 128, 128, 8
    $region49: #{tpu_custom_call.1} parent=1 // pred_fallthru
      _
    // Predicated region
    $region50: #{tpu_custom_call.1} parent=1 // pred_check
      _
    $region51: #{tpu_custom_call.1} parent=1 // pred_check_branch
      %115 = sbr.rel (0) target = $region53
    $region52: #{tpu_custom_call.1} parent=1 // pred_region
      _
    $region53: #{tpu_custom_call.1} parent=1 // pred_fallthru
      _
    // Predicated region
    $region54: #{tpu_custom_call.1} parent=1 // pred_check
      _
    $region55: #{tpu_custom_call.1} parent=1 // pred_check_branch
      %117 = sbr.rel (0) target = $region57
    $region56: #{tpu_custom_call.1} parent=1 // pred_region
      %s119 = ssub.s32 1536, 1536
      %120 = vsyncadd [#allocation12], %s119
      %s121 = sshll.u32 [#allocation13], 4
      %s122 = int_to_ptr.vmem [resolvable:$true] %s121
      %127 = dma.hbm_to_vmem [thread:$0]  %s13, 1536, %s122, [#allocation12], 128, 128, 8
    $region57: #{tpu_custom_call.1} parent=1 // pred_fallthru
      _
    // Predicated region
    $region58: #{tpu_custom_call.1} parent=1 // pred_check
      _
    $region59: #{tpu_custom_call.1} parent=1 // pred_check_branch
      %129 = sbr.rel (0) target = $region61
    $region60: #{tpu_custom_call.1} parent=1 // pred_region
      _
    $region61: #{tpu_custom_call.1} parent=1 // pred_fallthru
      _
    // Predicated region
    $region62: #{tpu_custom_call.1} parent=1 // pred_check
      _
    $region63: #{tpu_custom_call.1} parent=1 // pred_check_branch
      %131 = sbr.rel (0) target = $region65
    $region64: #{tpu_custom_call.1} parent=1 // pred_region
      _
    $region65: #{tpu_custom_call.1} parent=1 // pred_fallthru
      _
    // Predicated region
    $region66: #{tpu_custom_call.1} parent=1 // pred_check
      _
    $region67: #{tpu_custom_call.1} parent=1 // pred_check_branch
      %133 = sbr.rel (0) target = $region69
    $region68: #{tpu_custom_call.1} parent=1 // pred_region
      _
    $region69: #{tpu_custom_call.1} parent=1 // pred_fallthru
      _
    // Predicated region
    $region70: #{tpu_custom_call.1} parent=1 // pred_check
      _
    $region71: #{tpu_custom_call.1} parent=1 // pred_check_branch
      %135 = sbr.rel (0) target = $region73
    $region72: #{tpu_custom_call.1} parent=1 // pred_region
      _
    $region73: #{tpu_custom_call.1} parent=1 // pred_fallthru
      _
    // Predicated region
    $region74: #{tpu_custom_call.1} parent=1 // pred_check
      _
    $region75: #{tpu_custom_call.1} parent=1 // pred_check_branch
      %137 = sbr.rel (0) target = $region77
    $region76: #{tpu_custom_call.1} parent=1 // pred_region
      %138 = dma.done [#allocation3], 1024
    $region77: #{tpu_custom_call.1} parent=1 // pred_fallthru
      _
    // Predicated region
    $region78: #{tpu_custom_call.1} parent=1 // pred_check
      _
    $region79: #{tpu_custom_call.1} parent=1 // pred_check_branch
      %140 = sbr.rel (0) target = $region81
    $region80: #{tpu_custom_call.1} parent=1 // pred_region
      %141 = dma.done [#allocation6], 768
    $region81: #{tpu_custom_call.1} parent=1 // pred_fallthru
      _
    // Predicated region
    $region82: #{tpu_custom_call.1} parent=1 // pred_check
      _
    $region83: #{tpu_custom_call.1} parent=1 // pred_check_branch
      %143 = sbr.rel (0) target = $region85
    $region84: #{tpu_custom_call.1} parent=1 // pred_region
      %144 = dma.done [#allocation6], 1536
    $region85: #{tpu_custom_call.1} parent=1 // pred_fallthru
      _
    // Predicated region
    $region86: #{tpu_custom_call.1} parent=1 // pred_check
      _
    $region87: #{tpu_custom_call.1} parent=1 // pred_check_branch
      %146 = sbr.rel (0) target = $region89
    $region88: #{tpu_custom_call.1} parent=1 // pred_region
      %147 = dma.done [#allocation9], 1536
    $region89: #{tpu_custom_call.1} parent=1 // pred_fallthru
      _
    // Predicated region
    $region90: #{tpu_custom_call.1} parent=1 // pred_check
      _
    $region91: #{tpu_custom_call.1} parent=1 // pred_check_branch
      %149 = sbr.rel (0) target = $region93
    $region92: #{tpu_custom_call.1} parent=1 // pred_region
      %150 = dma.done [#allocation9], 512
    $region93: #{tpu_custom_call.1} parent=1 // pred_fallthru
      _
    // Predicated region
    $region94: #{tpu_custom_call.1} parent=1 // pred_check
      _
    $region95: #{tpu_custom_call.1} parent=1 // pred_check_branch
      %152 = sbr.rel (0) target = $region97
    $region96: #{tpu_custom_call.1} parent=1 // pred_region
      %153 = dma.done [#allocation12], 1536
    $region97: #{tpu_custom_call.1} parent=1 // pred_fallthru
      _
    // Predicated region
    $region98: #{tpu_custom_call.1} parent=1 // pred_check
      _
    $region99: #{tpu_custom_call.1} parent=1 // pred_check_branch
      %155 = sbr.rel (0) target = $region101
    $region100: #{tpu_custom_call.1} parent=1 // pred_region
      %156 = dma.done [#allocation12], 1536
    $region101: #{tpu_custom_call.1} parent=1 // pred_fallthru
      _
    %v157 = vld [vmem:[#allocation5] sm:$0xff]
    %v158 = vld [vmem:[#allocation5 + $0x8] sm:$0xff]
    %s159 = scalar_lea.vmem [#allocation5], 16
    %v160 = vld [vmem:[%s159] sm:$0xff]
    %v161 = vld [vmem:[%s159 + $0x8] sm:$0xff]
    %s162 = scalar_lea.vmem [#allocation5], 32
    %v163 = vld [vmem:[%s162] sm:$0xff]
    %v164 = vld [vmem:[%s162 + $0x8] sm:$0xff]
    %v165 = vld [vmem:[%s2] sm:$0xff]
    %v166 = vld [vmem:[%s2 + $0x8] sm:$0xff]
    %v167 = vld [vmem:[%s2 + $0x10] sm:$0xff]
    %v168 = vld [vmem:[%s2 + $0x18] sm:$0xff]
    %s169 = scalar_lea.vmem %s2, 32
    %v170 = vld [vmem:[%s169] sm:$0xff]
    %v171 = vld [vmem:[%s169 + $0x8] sm:$0xff]
    %v172 = vld [vmem:[%s169 + $0x10] sm:$0xff]
    %v173 = vld [vmem:[%s169 + $0x18] sm:$0xff]
    %s174 = scalar_lea.vmem %s2, 64
    %v175 = vld [vmem:[%s174] sm:$0xff]
    %v176 = vld [vmem:[%s174 + $0x8] sm:$0xff]
    %v177 = vld [vmem:[%s174 + $0x10] sm:$0xff]
    %v178 = vld [vmem:[%s174 + $0x18] sm:$0xff]
    %v179 = vld [vmem:[%s3] sm:$0x1]
    %s180 = scalar_lea.vmem %s3, 1
    %v181 = vld [vmem:[%s180] sm:$0x1]
    %s182 = scalar_lea.vmem %s3, 2
    %v183 = vld [vmem:[%s182] sm:$0x1]
    %v184 = vld [vmem:[%s4] sm:$0x1]
    %s185 = scalar_lea.vmem %s4, 1
    %v186 = vld [vmem:[%s185] sm:$0x1]
    %s187 = scalar_lea.vmem %s4, 2
    %v188 = vld [vmem:[%s187] sm:$0x1]
    %v189 = vld [vmem:[#allocation7] sm:$0xff]
    %v190 = vld [vmem:[#allocation7 + $0x8] sm:$0xff]
    %v191 = vld [vmem:[#allocation7 + $0x10] sm:$0xff]
    %v192 = vld [vmem:[#allocation7 + $0x18] sm:$0xff]
    %s193 = scalar_lea.vmem [#allocation7], 32
    %v194 = vld [vmem:[%s193] sm:$0xff]
    %v195 = vld [vmem:[%s193 + $0x8] sm:$0xff]
    %v196 = vld [vmem:[%s193 + $0x10] sm:$0xff]
    %v197 = vld [vmem:[%s193 + $0x18] sm:$0xff]
    %s198 = scalar_lea.vmem [#allocation7], 64
    %v199 = vld [vmem:[%s198] sm:$0xff]
    %v200 = vld [vmem:[%s198 + $0x8] sm:$0xff]
    %v201 = vld [vmem:[%s198 + $0x10] sm:$0xff]
    %v202 = vld [vmem:[%s198 + $0x18] sm:$0xff]
    %v203 = vld [vmem:[#allocation8] sm:$0xff]
    %v204 = vld [vmem:[#allocation8 + $0x8] sm:$0xff]
    %v205 = vld [vmem:[#allocation8 + $0x10] sm:$0xff]
    %v206 = vld [vmem:[#allocation8 + $0x18] sm:$0xff]
    %s207 = scalar_lea.vmem [#allocation8], 32
    %v208 = vld [vmem:[%s207] sm:$0xff]
    %v209 = vld [vmem:[%s207 + $0x8] sm:$0xff]
    %v210 = vld [vmem:[%s207 + $0x10] sm:$0xff]
    %v211 = vld [vmem:[%s207 + $0x18] sm:$0xff]
    %s212 = scalar_lea.vmem [#allocation8], 64
    %v213 = vld [vmem:[%s212] sm:$0xff]
    %v214 = vld [vmem:[%s212 + $0x8] sm:$0xff]
    %v215 = vld [vmem:[%s212 + $0x10] sm:$0xff]
    %v216 = vld [vmem:[%s212 + $0x18] sm:$0xff]
    %v217 = vld [vmem:[%s7] sm:$0x1]
    %s218 = scalar_lea.vmem %s7, 1
    %v219 = vld [vmem:[%s218] sm:$0x1]
    %s220 = scalar_lea.vmem %s7, 2
    %v221 = vld [vmem:[%s220] sm:$0x1]
    %v222 = vld [vmem:[%s8] sm:$0x1]
    %s223 = scalar_lea.vmem %s8, 1
    %v224 = vld [vmem:[%s223] sm:$0x1]
    %s225 = scalar_lea.vmem %s8, 2
    %v226 = vld [vmem:[%s225] sm:$0x1]
    %v227 = vld [vmem:[#allocation2] sm:$0xff]
    %v229 = vlaneseq
    %v230 = vshrl.u32 %v229, 7
    %v231 = vsub.s32 0, %v230
    %v232 = vrot.slane %v179, %v231
    %vm234 = vcmask 130048
    %v236 = vsel %vm234, %v227, 0
    %238 = vmatprep.subr.mxu0 0.0
    %239 = vmatpush1.msra.mxu0 0.0
    %240 = vmatprep.subr.mxu0 0.0
    %241 = vmatpush1.msra.mxu0 0.0
    %242 = vmatprep.subr.mxu0 0.0
    %243 = vmatpush1.msra.mxu0 0.0
    %244 = vmatprep.subr.mxu0 0.0
    %245 = vmatpush1.msra.mxu0 0.0
    %246 = vmatprep.subr.mxu0 0.0
    %247 = vmatpush1.msra.mxu0 0.0
    %248 = vmatprep.subr.mxu0 0.0
    %249 = vmatpush1.msra.mxu0 0.0
    %250 = vmatprep.subr.mxu0 0.0
    %251 = vmatpush1.msra.mxu0 0.0
    %252 = vmatprep.subr.mxu0 0.0
    %253 = vmatpush1.msra.mxu0 0.0
    %254 = vmatprep.subr.mxu0 0.0
    %255 = vmatpush1.msra.mxu0 0.0
    %256 = vmatprep.subr.mxu0 0.0
    %257 = vmatpush1.msra.mxu0 0.0
    %258 = vmatprep.subr.mxu0 0.0
    %259 = vmatpush1.msra.mxu0 0.0
    %260 = vmatprep.subr.mxu0 0.0
    %261 = vmatpush1.msra.mxu0 0.0
    %262 = vmatprep.subr.mxu0 0.0
    %263 = vmatpush1.msra.mxu0 0.0
    %264 = vmatprep.subr.mxu0 0.0
    %265 = vmatpush1.msra.mxu0 0.0
    %266 = vmatprep.subr.mxu0 0.0
    %267 = vmatpush1.msra.mxu0 %v158
    %268 = vmatprep.subr.mxu0 0.0
    %269 = vmatpush1.msra.mxu0 %v157
    %270 = vmatprep.subr.mxu0 0.0
    %271 = vmatpush2.msra.mxu0 0.0
    %272 = vmatprep.subr.mxu0 0.0
    %273 = vmatpush2.msra.mxu0 0.0
    %274 = vmatprep.subr.mxu0 0.0
    %275 = vmatpush2.msra.mxu0 0.0
    %276 = vmatprep.subr.mxu0 0.0
    %277 = vmatpush2.msra.mxu0 0.0
    %278 = vmatprep.subr.mxu0 0.0
    %279 = vmatpush2.msra.mxu0 0.0
    %280 = vmatprep.subr.mxu0 0.0
    %281 = vmatpush2.msra.mxu0 0.0
    %282 = vmatprep.subr.mxu0 0.0
    %283 = vmatpush2.msra.mxu0 0.0
    %284 = vmatprep.subr.mxu0 0.0
    %285 = vmatpush2.msra.mxu0 0.0
    %286 = vmatprep.subr.mxu0 0.0
    %287 = vmatpush2.msra.mxu0 0.0
    %288 = vmatprep.subr.mxu0 0.0
    %289 = vmatpush2.msra.mxu0 0.0
    %290 = vmatprep.subr.mxu0 0.0
    %291 = vmatpush2.msra.mxu0 0.0
    %292 = vmatprep.subr.mxu0 0.0
    %293 = vmatpush2.msra.mxu0 0.0
    %294 = vmatprep.subr.mxu0 0.0
    %295 = vmatpush2.msra.mxu0 0.0
    %296 = vmatprep.subr.mxu0 0.0
    %297 = vmatpush2.msra.mxu0 0.0
    %298 = vmatprep.subr.mxu0 0.0
    %299 = vmatpush2.msra.mxu0 0.0
    %300 = vmatprep.subr.mxu0 0.0
    %301 = vmatpush2.msra.mxu0 0.0
    %302 = vmatprep.mubr.f32.mxu0 0.0
    %303 = vmatmul.mubr.f32.gmra.mxu0 %v236
    %v304 = vpop.f32.mrf.mxu0
    %v305 = vadd.f32 %v232, %v304
    %v306 = vpop.f32.mrf.mxu0
    %307 = vdwg.mxu0
    %vm308 = vcmask 261120
    %v310 = vsel %vm308, 0.0, 0
    %312 = vmatprep.subr.mxu0 0.0
    %313 = vmatpush1.msra.mxu0 0.0
    %314 = vmatprep.subr.mxu0 0.0
    %315 = vmatpush1.msra.mxu0 0.0
    %316 = vmatprep.subr.mxu0 0.0
    %317 = vmatpush1.msra.mxu0 0.0
    %318 = vmatprep.subr.mxu0 0.0
    %319 = vmatpush1.msra.mxu0 0.0
    %320 = vmatprep.subr.mxu0 0.0
    %321 = vmatpush1.msra.mxu0 0.0
    %322 = vmatprep.subr.mxu0 0.0
    %323 = vmatpush1.msra.mxu0 0.0
    %324 = vmatprep.subr.mxu0 0.0
    %325 = vmatpush1.msra.mxu0 0.0
    %326 = vmatprep.subr.mxu0 0.0
    %327 = vmatpush1.msra.mxu0 0.0
    %328 = vmatprep.subr.mxu0 0.0
    %329 = vmatpush1.msra.mxu0 0.0
    %330 = vmatprep.subr.mxu0 0.0
    %331 = vmatpush1.msra.mxu0 0.0
    %332 = vmatprep.subr.mxu0 0.0
    %333 = vmatpush1.msra.mxu0 0.0
    %334 = vmatprep.subr.mxu0 0.0
    %335 = vmatpush1.msra.mxu0 0.0
    %336 = vmatprep.subr.mxu0 0.0
    %337 = vmatpush1.msra.mxu0 %v168
    %338 = vmatprep.subr.mxu0 0.0
    %339 = vmatpush1.msra.mxu0 %v167
    %340 = vmatprep.subr.mxu0 0.0
    %341 = vmatpush1.msra.mxu0 %v166
    %342 = vmatprep.subr.mxu0 0.0
    %343 = vmatpush1.msra.mxu0 %v165
    %344 = vmatprep.subr.mxu0 0.0
    %345 = vmatpush2.msra.mxu0 0.0
    %346 = vmatprep.subr.mxu0 0.0
    %347 = vmatpush2.msra.mxu0 0.0
    %348 = vmatprep.subr.mxu0 0.0
    %349 = vmatpush2.msra.mxu0 0.0
    %350 = vmatprep.subr.mxu0 0.0
    %351 = vmatpush2.msra.mxu0 0.0
    %352 = vmatprep.subr.mxu0 0.0
    %353 = vmatpush2.msra.mxu0 0.0
    %354 = vmatprep.subr.mxu0 0.0
    %355 = vmatpush2.msra.mxu0 0.0
    %356 = vmatprep.subr.mxu0 0.0
    %357 = vmatpush2.msra.mxu0 0.0
    %358 = vmatprep.subr.mxu0 0.0
    %359 = vmatpush2.msra.mxu0 0.0
    %360 = vmatprep.subr.mxu0 0.0
    %361 = vmatpush2.msra.mxu0 0.0
    %362 = vmatprep.subr.mxu0 0.0
    %363 = vmatpush2.msra.mxu0 0.0
    %364 = vmatprep.subr.mxu0 0.0
    %365 = vmatpush2.msra.mxu0 0.0
    %366 = vmatprep.subr.mxu0 0.0
    %367 = vmatpush2.msra.mxu0 0.0
    %368 = vmatprep.subr.mxu0 0.0
    %369 = vmatpush2.msra.mxu0 0.0
    %370 = vmatprep.subr.mxu0 0.0
    %371 = vmatpush2.msra.mxu0 0.0
    %372 = vmatprep.subr.mxu0 0.0
    %373 = vmatpush2.msra.mxu0 0.0
    %374 = vmatprep.subr.mxu0 0.0
    %375 = vmatpush2.msra.mxu0 0.0
    %376 = vmatprep.mubr.f32.mxu0 0.0
    %377 = vmatmul.mubr.f32.gmra.mxu0 %v310
    %v378 = vpop.f32.mrf.mxu0
    %v379 = vadd.f32 0.0, %v378
    %v380 = vpop.f32.mrf.mxu0
    %381 = vdwg.mxu0
    %v382 = vadd.f32 %v305, %v379
    %v384 = vlaneseq
    %v385 = vshrl.u32 %v384, 7
    %v386 = vsub.s32 0, %v385
    %v387 = vrot.slane %v184, %v386
    %v389 = vadd.f32 %v382, %v387
    %v390 = vxor.u32 %v389, 2147483648
    %v391 = vmul.f32 %v390, 1.442695
    %v392 = vpow.pop %v391
    %v393 = vadd.f32 %v392, 1.0
    %v394 = vrcp.pop %v393
    %v395 = vmul.f32 1.0, %v394
    %v397 = vlaneseq
    %v398 = vshrl.u32 %v397, 7
    %v399 = vsub.s32 0, %v398
    %v400 = vrot.slane %v181, %v399
    %402 = vmatprep.subr.mxu0 0.0
    %403 = vmatpush1.msra.mxu0 0.0
    %404 = vmatprep.subr.mxu0 0.0
    %405 = vmatpush1.msra.mxu0 0.0
    %406 = vmatprep.subr.mxu0 0.0
    %407 = vmatpush1.msra.mxu0 0.0
    %408 = vmatprep.subr.mxu0 0.0
    %409 = vmatpush1.msra.mxu0 0.0
    %410 = vmatprep.subr.mxu0 0.0
    %411 = vmatpush1.msra.mxu0 0.0
    %412 = vmatprep.subr.mxu0 0.0
    %413 = vmatpush1.msra.mxu0 0.0
    %414 = vmatprep.subr.mxu0 0.0
    %415 = vmatpush1.msra.mxu0 0.0
    %416 = vmatprep.subr.mxu0 0.0
    %417 = vmatpush1.msra.mxu0 0.0
    %418 = vmatprep.subr.mxu0 0.0
    %419 = vmatpush1.msra.mxu0 0.0
    %420 = vmatprep.subr.mxu0 0.0
    %421 = vmatpush1.msra.mxu0 0.0
    %422 = vmatprep.subr.mxu0 0.0
    %423 = vmatpush1.msra.mxu0 0.0
    %424 = vmatprep.subr.mxu0 0.0
    %425 = vmatpush1.msra.mxu0 0.0
    %426 = vmatprep.subr.mxu0 0.0
    %427 = vmatpush1.msra.mxu0 0.0
    %428 = vmatprep.subr.mxu0 0.0
    %429 = vmatpush1.msra.mxu0 0.0
    %430 = vmatprep.subr.mxu0 0.0
    %431 = vmatpush1.msra.mxu0 %v161
    %432 = vmatprep.subr.mxu0 0.0
    %433 = vmatpush1.msra.mxu0 %v160
    %434 = vmatprep.subr.mxu0 0.0
    %435 = vmatpush2.msra.mxu0 0.0
    %436 = vmatprep.subr.mxu0 0.0
    %437 = vmatpush2.msra.mxu0 0.0
    %438 = vmatprep.subr.mxu0 0.0
    %439 = vmatpush2.msra.mxu0 0.0
    %440 = vmatprep.subr.mxu0 0.0
    %441 = vmatpush2.msra.mxu0 0.0
    %442 = vmatprep.subr.mxu0 0.0
    %443 = vmatpush2.msra.mxu0 0.0
    %444 = vmatprep.subr.mxu0 0.0
    %445 = vmatpush2.msra.mxu0 0.0
    %446 = vmatprep.subr.mxu0 0.0
    %447 = vmatpush2.msra.mxu0 0.0
    %448 = vmatprep.subr.mxu0 0.0
    %449 = vmatpush2.msra.mxu0 0.0
    %450 = vmatprep.subr.mxu0 0.0
    %451 = vmatpush2.msra.mxu0 0.0
    %452 = vmatprep.subr.mxu0 0.0
    %453 = vmatpush2.msra.mxu0 0.0
    %454 = vmatprep.subr.mxu0 0.0
    %455 = vmatpush2.msra.mxu0 0.0
    %456 = vmatprep.subr.mxu0 0.0
    %457 = vmatpush2.msra.mxu0 0.0
    %458 = vmatprep.subr.mxu0 0.0
    %459 = vmatpush2.msra.mxu0 0.0
    %460 = vmatprep.subr.mxu0 0.0
    %461 = vmatpush2.msra.mxu0 0.0
    %462 = vmatprep.subr.mxu0 0.0
    %463 = vmatpush2.msra.mxu0 0.0
    %464 = vmatprep.subr.mxu0 0.0
    %465 = vmatpush2.msra.mxu0 0.0
    %466 = vmatprep.mubr.f32.mxu0 0.0
    %467 = vmatmul.mubr.f32.gmra.mxu0 %v236
    %v468 = vpop.f32.mrf.mxu0
    %v469 = vadd.f32 %v400, %v468
    %v470 = vpop.f32.mrf.mxu0
    %471 = vdwg.mxu0
    %472 = vmatprep.subr.mxu0 0.0
    %473 = vmatpush1.msra.mxu0 0.0
    %474 = vmatprep.subr.mxu0 0.0
    %475 = vmatpush1.msra.mxu0 0.0
    %476 = vmatprep.subr.mxu0 0.0
    %477 = vmatpush1.msra.mxu0 0.0
    %478 = vmatprep.subr.mxu0 0.0
    %479 = vmatpush1.msra.mxu0 0.0
    %480 = vmatprep.subr.mxu0 0.0
    %481 = vmatpush1.msra.mxu0 0.0
    %482 = vmatprep.subr.mxu0 0.0
    %483 = vmatpush1.msra.mxu0 0.0
    %484 = vmatprep.subr.mxu0 0.0
    %485 = vmatpush1.msra.mxu0 0.0
    %486 = vmatprep.subr.mxu0 0.0
    %487 = vmatpush1.msra.mxu0 0.0
    %488 = vmatprep.subr.mxu0 0.0
    %489 = vmatpush1.msra.mxu0 0.0
    %490 = vmatprep.subr.mxu0 0.0
    %491 = vmatpush1.msra.mxu0 0.0
    %492 = vmatprep.subr.mxu0 0.0
    %493 = vmatpush1.msra.mxu0 0.0
    %494 = vmatprep.subr.mxu0 0.0
    %495 = vmatpush1.msra.mxu0 0.0
    %496 = vmatprep.subr.mxu0 0.0
    %497 = vmatpush1.msra.mxu0 %v173
    %498 = vmatprep.subr.mxu0 0.0
    %499 = vmatpush1.msra.mxu0 %v172
    %500 = vmatprep.subr.mxu0 0.0
    %501 = vmatpush1.msra.mxu0 %v171
    %502 = vmatprep.subr.mxu0 0.0
    %503 = vmatpush1.msra.mxu0 %v170
    %504 = vmatprep.subr.mxu0 0.0
    %505 = vmatpush2.msra.mxu0 0.0
    %506 = vmatprep.subr.mxu0 0.0
    %507 = vmatpush2.msra.mxu0 0.0
    %508 = vmatprep.subr.mxu0 0.0
    %509 = vmatpush2.msra.mxu0 0.0
    %510 = vmatprep.subr.mxu0 0.0
    %511 = vmatpush2.msra.mxu0 0.0
    %512 = vmatprep.subr.mxu0 0.0
    %513 = vmatpush2.msra.mxu0 0.0
    %514 = vmatprep.subr.mxu0 0.0
    %515 = vmatpush2.msra.mxu0 0.0
    %516 = vmatprep.subr.mxu0 0.0
    %517 = vmatpush2.msra.mxu0 0.0
    %518 = vmatprep.subr.mxu0 0.0
    %519 = vmatpush2.msra.mxu0 0.0
    %520 = vmatprep.subr.mxu0 0.0
    %521 = vmatpush2.msra.mxu0 0.0
    %522 = vmatprep.subr.mxu0 0.0
    %523 = vmatpush2.msra.mxu0 0.0
    %524 = vmatprep.subr.mxu0 0.0
    %525 = vmatpush2.msra.mxu0 0.0
    %526 = vmatprep.subr.mxu0 0.0
    %527 = vmatpush2.msra.mxu0 0.0
    %528 = vmatprep.subr.mxu0 0.0
    %529 = vmatpush2.msra.mxu0 0.0
    %530 = vmatprep.subr.mxu0 0.0
    %531 = vmatpush2.msra.mxu0 0.0
    %532 = vmatprep.subr.mxu0 0.0
    %533 = vmatpush2.msra.mxu0 0.0
    %534 = vmatprep.subr.mxu0 0.0
    %535 = vmatpush2.msra.mxu0 0.0
    %536 = vmatprep.mubr.f32.mxu0 0.0
    %537 = vmatmul.mubr.f32.gmra.mxu0 %v310
    %v538 = vpop.f32.mrf.mxu0
    %v539 = vadd.f32 0.0, %v538
    %v540 = vpop.f32.mrf.mxu0
    %541 = vdwg.mxu0
    %v542 = vadd.f32 %v469, %v539
    %v544 = vlaneseq
    %v545 = vshrl.u32 %v544, 7
    %v546 = vsub.s32 0, %v545
    %v547 = vrot.slane %v186, %v546
    %v549 = vadd.f32 %v542, %v547
    %v550 = vxor.u32 %v549, 2147483648
    %v551 = vmul.f32 %v550, 1.442695
    %v552 = vpow.pop %v551
    %v553 = vadd.f32 %v552, 1.0
    %v554 = vrcp.pop %v553
    %v555 = vmul.f32 1.0, %v554
    %v557 = vlaneseq
    %v558 = vshrl.u32 %v557, 7
    %v559 = vsub.s32 0, %v558
    %v560 = vrot.slane %v183, %v559
    %562 = vmatprep.subr.mxu0 0.0
    %563 = vmatpush1.msra.mxu0 0.0
    %564 = vmatprep.subr.mxu0 0.0
    %565 = vmatpush1.msra.mxu0 0.0
    %566 = vmatprep.subr.mxu0 0.0
    %567 = vmatpush1.msra.mxu0 0.0
    %568 = vmatprep.subr.mxu0 0.0
    %569 = vmatpush1.msra.mxu0 0.0
    %570 = vmatprep.subr.mxu0 0.0
    %571 = vmatpush1.msra.mxu0 0.0
    %572 = vmatprep.subr.mxu0 0.0
    %573 = vmatpush1.msra.mxu0 0.0
    %574 = vmatprep.subr.mxu0 0.0
    %575 = vmatpush1.msra.mxu0 0.0
    %576 = vmatprep.subr.mxu0 0.0
    %577 = vmatpush1.msra.mxu0 0.0
    %578 = vmatprep.subr.mxu0 0.0
    %579 = vmatpush1.msra.mxu0 0.0
    %580 = vmatprep.subr.mxu0 0.0
    %581 = vmatpush1.msra.mxu0 0.0
    %582 = vmatprep.subr.mxu0 0.0
    %583 = vmatpush1.msra.mxu0 0.0
    %584 = vmatprep.subr.mxu0 0.0
    %585 = vmatpush1.msra.mxu0 0.0
    %586 = vmatprep.subr.mxu0 0.0
    %587 = vmatpush1.msra.mxu0 0.0
    %588 = vmatprep.subr.mxu0 0.0
    %589 = vmatpush1.msra.mxu0 0.0
    %590 = vmatprep.subr.mxu0 0.0
    %591 = vmatpush1.msra.mxu0 %v164
    %592 = vmatprep.subr.mxu0 0.0
    %593 = vmatpush1.msra.mxu0 %v163
    %594 = vmatprep.subr.mxu0 0.0
    %595 = vmatpush2.msra.mxu0 0.0
    %596 = vmatprep.subr.mxu0 0.0
    %597 = vmatpush2.msra.mxu0 0.0
    %598 = vmatprep.subr.mxu0 0.0
    %599 = vmatpush2.msra.mxu0 0.0
    %600 = vmatprep.subr.mxu0 0.0
    %601 = vmatpush2.msra.mxu0 0.0
    %602 = vmatprep.subr.mxu0 0.0
    %603 = vmatpush2.msra.mxu0 0.0
    %604 = vmatprep.subr.mxu0 0.0
    %605 = vmatpush2.msra.mxu0 0.0
    %606 = vmatprep.subr.mxu0 0.0
    %607 = vmatpush2.msra.mxu0 0.0
    %608 = vmatprep.subr.mxu0 0.0
    %609 = vmatpush2.msra.mxu0 0.0
    %610 = vmatprep.subr.mxu0 0.0
    %611 = vmatpush2.msra.mxu0 0.0
    %612 = vmatprep.subr.mxu0 0.0
    %613 = vmatpush2.msra.mxu0 0.0
    %614 = vmatprep.subr.mxu0 0.0
    %615 = vmatpush2.msra.mxu0 0.0
    %616 = vmatprep.subr.mxu0 0.0
    %617 = vmatpush2.msra.mxu0 0.0
    %618 = vmatprep.subr.mxu0 0.0
    %619 = vmatpush2.msra.mxu0 0.0
    %620 = vmatprep.subr.mxu0 0.0
    %621 = vmatpush2.msra.mxu0 0.0
    %622 = vmatprep.subr.mxu0 0.0
    %623 = vmatpush2.msra.mxu0 0.0
    %624 = vmatprep.subr.mxu0 0.0
    %625 = vmatpush2.msra.mxu0 0.0
    %626 = vmatprep.mubr.f32.mxu0 0.0
    %627 = vmatmul.mubr.f32.gmra.mxu0 %v236
    %v628 = vpop.f32.mrf.mxu0
    %v629 = vadd.f32 %v560, %v628
    %v630 = vpop.f32.mrf.mxu0
    %631 = vdwg.mxu0
    %v633 = vlaneseq
    %v634 = vshrl.u32 %v633, 7
    %v635 = vsub.s32 0, %v634
    %v636 = vrot.slane %v188, %v635
    %638 = vmatprep.subr.mxu0 0.0
    %639 = vmatpush1.msra.mxu0 0.0
    %640 = vmatprep.subr.mxu0 0.0
    %641 = vmatpush1.msra.mxu0 0.0
    %642 = vmatprep.subr.mxu0 0.0
    %643 = vmatpush1.msra.mxu0 0.0
    %644 = vmatprep.subr.mxu0 0.0
    %645 = vmatpush1.msra.mxu0 0.0
    %646 = vmatprep.subr.mxu0 0.0
    %647 = vmatpush1.msra.mxu0 0.0
    %648 = vmatprep.subr.mxu0 0.0
    %649 = vmatpush1.msra.mxu0 0.0
    %650 = vmatprep.subr.mxu0 0.0
    %651 = vmatpush1.msra.mxu0 0.0
    %652 = vmatprep.subr.mxu0 0.0
    %653 = vmatpush1.msra.mxu0 0.0
    %654 = vmatprep.subr.mxu0 0.0
    %655 = vmatpush1.msra.mxu0 0.0
    %656 = vmatprep.subr.mxu0 0.0
    %657 = vmatpush1.msra.mxu0 0.0
    %658 = vmatprep.subr.mxu0 0.0
    %659 = vmatpush1.msra.mxu0 0.0
    %660 = vmatprep.subr.mxu0 0.0
    %661 = vmatpush1.msra.mxu0 0.0
    %662 = vmatprep.subr.mxu0 0.0
    %663 = vmatpush1.msra.mxu0 %v178
    %664 = vmatprep.subr.mxu0 0.0
    %665 = vmatpush1.msra.mxu0 %v177
    %666 = vmatprep.subr.mxu0 0.0
    %667 = vmatpush1.msra.mxu0 %v176
    %668 = vmatprep.subr.mxu0 0.0
    %669 = vmatpush1.msra.mxu0 %v175
    %670 = vmatprep.subr.mxu0 0.0
    %671 = vmatpush2.msra.mxu0 0.0
    %672 = vmatprep.subr.mxu0 0.0
    %673 = vmatpush2.msra.mxu0 0.0
    %674 = vmatprep.subr.mxu0 0.0
    %675 = vmatpush2.msra.mxu0 0.0
    %676 = vmatprep.subr.mxu0 0.0
    %677 = vmatpush2.msra.mxu0 0.0
    %678 = vmatprep.subr.mxu0 0.0
    %679 = vmatpush2.msra.mxu0 0.0
    %680 = vmatprep.subr.mxu0 0.0
    %681 = vmatpush2.msra.mxu0 0.0
    %682 = vmatprep.subr.mxu0 0.0
    %683 = vmatpush2.msra.mxu0 0.0
    %684 = vmatprep.subr.mxu0 0.0
    %685 = vmatpush2.msra.mxu0 0.0
    %686 = vmatprep.subr.mxu0 0.0
    %687 = vmatpush2.msra.mxu0 0.0
    %688 = vmatprep.subr.mxu0 0.0
    %689 = vmatpush2.msra.mxu0 0.0
    %690 = vmatprep.subr.mxu0 0.0
    %691 = vmatpush2.msra.mxu0 0.0
    %692 = vmatprep.subr.mxu0 0.0
    %693 = vmatpush2.msra.mxu0 0.0
    %694 = vmatprep.subr.mxu0 0.0
    %695 = vmatpush2.msra.mxu0 0.0
    %696 = vmatprep.subr.mxu0 0.0
    %697 = vmatpush2.msra.mxu0 0.0
    %698 = vmatprep.subr.mxu0 0.0
    %699 = vmatpush2.msra.mxu0 0.0
    %700 = vmatprep.subr.mxu0 0.0
    %701 = vmatpush2.msra.mxu0 0.0
    %702 = vmatprep.mubr.f32.mxu0 0.0
    %703 = vmatmul.mubr.f32.gmra.mxu0 %v310
    %v704 = vpop.f32.mrf.mxu0
    %v705 = vadd.f32 %v636, %v704
    %v706 = vpop.f32.mrf.mxu0
    %707 = vdwg.mxu0
    %v708 = vmul.f32 %v395, %v705
    %v709 = vadd.f32 %v629, %v708
    %v710 = vtanh.pop %v709
    %v711 = vsub.f32 1.0, %v555
    %v712 = vmul.f32 %v711, %v710
    %v713 = vmul.f32 %v555, 0.0
    %v714 = vadd.f32 %v712, %v713
    %v716 = vlaneseq
    %v717 = vshrl.u32 %v716, 7
    %v718 = vsub.s32 0, %v717
    %v719 = vrot.slane %v217, %v718
    %v722 = vsel %vm308, %v714, 0
    %724 = vmatprep.subr.mxu0 0.0
    %725 = vmatpush1.msra.mxu0 0.0
    %726 = vmatprep.subr.mxu0 0.0
    %727 = vmatpush1.msra.mxu0 0.0
    %728 = vmatprep.subr.mxu0 0.0
    %729 = vmatpush1.msra.mxu0 0.0
    %730 = vmatprep.subr.mxu0 0.0
    %731 = vmatpush1.msra.mxu0 0.0
    %732 = vmatprep.subr.mxu0 0.0
    %733 = vmatpush1.msra.mxu0 0.0
    %734 = vmatprep.subr.mxu0 0.0
    %735 = vmatpush1.msra.mxu0 0.0
    %736 = vmatprep.subr.mxu0 0.0
    %737 = vmatpush1.msra.mxu0 0.0
    %738 = vmatprep.subr.mxu0 0.0
    %739 = vmatpush1.msra.mxu0 0.0
    %740 = vmatprep.subr.mxu0 0.0
    %741 = vmatpush1.msra.mxu0 0.0
    %742 = vmatprep.subr.mxu0 0.0
    %743 = vmatpush1.msra.mxu0 0.0
    %744 = vmatprep.subr.mxu0 0.0
    %745 = vmatpush1.msra.mxu0 0.0
    %746 = vmatprep.subr.mxu0 0.0
    %747 = vmatpush1.msra.mxu0 0.0
    %748 = vmatprep.subr.mxu0 0.0
    %749 = vmatpush1.msra.mxu0 %v192
    %750 = vmatprep.subr.mxu0 0.0
    %751 = vmatpush1.msra.mxu0 %v191
    %752 = vmatprep.subr.mxu0 0.0
    %753 = vmatpush1.msra.mxu0 %v190
    %754 = vmatprep.subr.mxu0 0.0
    %755 = vmatpush1.msra.mxu0 %v189
    %756 = vmatprep.subr.mxu0 0.0
    %757 = vmatpush2.msra.mxu0 0.0
    %758 = vmatprep.subr.mxu0 0.0
    %759 = vmatpush2.msra.mxu0 0.0
    %760 = vmatprep.subr.mxu0 0.0
    %761 = vmatpush2.msra.mxu0 0.0
    %762 = vmatprep.subr.mxu0 0.0
    %763 = vmatpush2.msra.mxu0 0.0
    %764 = vmatprep.subr.mxu0 0.0
    %765 = vmatpush2.msra.mxu0 0.0
    %766 = vmatprep.subr.mxu0 0.0
    %767 = vmatpush2.msra.mxu0 0.0
    %768 = vmatprep.subr.mxu0 0.0
    %769 = vmatpush2.msra.mxu0 0.0
    %770 = vmatprep.subr.mxu0 0.0
    %771 = vmatpush2.msra.mxu0 0.0
    %772 = vmatprep.subr.mxu0 0.0
    %773 = vmatpush2.msra.mxu0 0.0
    %774 = vmatprep.subr.mxu0 0.0
    %775 = vmatpush2.msra.mxu0 0.0
    %776 = vmatprep.subr.mxu0 0.0
    %777 = vmatpush2.msra.mxu0 0.0
    %778 = vmatprep.subr.mxu0 0.0
    %779 = vmatpush2.msra.mxu0 0.0
    %780 = vmatprep.subr.mxu0 0.0
    %781 = vmatpush2.msra.mxu0 0.0
    %782 = vmatprep.subr.mxu0 0.0
    %783 = vmatpush2.msra.mxu0 0.0
    %784 = vmatprep.subr.mxu0 0.0
    %785 = vmatpush2.msra.mxu0 0.0
    %786 = vmatprep.subr.mxu0 0.0
    %787 = vmatpush2.msra.mxu0 0.0
    %788 = vmatprep.mubr.f32.mxu0 0.0
    %789 = vmatmul.mubr.f32.gmra.mxu0 %v722
    %v790 = vpop.f32.mrf.mxu0
    %v791 = vadd.f32 %v719, %v790
    %v792 = vpop.f32.mrf.mxu0
    %793 = vdwg.mxu0
    %794 = vmatprep.subr.mxu0 0.0
    %795 = vmatpush1.msra.mxu0 0.0
    %796 = vmatprep.subr.mxu0 0.0
    %797 = vmatpush1.msra.mxu0 0.0
    %798 = vmatprep.subr.mxu0 0.0
    %799 = vmatpush1.msra.mxu0 0.0
    %800 = vmatprep.subr.mxu0 0.0
    %801 = vmatpush1.msra.mxu0 0.0
    %802 = vmatprep.subr.mxu0 0.0
    %803 = vmatpush1.msra.mxu0 0.0
    %804 = vmatprep.subr.mxu0 0.0
    %805 = vmatpush1.msra.mxu0 0.0
    %806 = vmatprep.subr.mxu0 0.0
    %807 = vmatpush1.msra.mxu0 0.0
    %808 = vmatprep.subr.mxu0 0.0
    %809 = vmatpush1.msra.mxu0 0.0
    %810 = vmatprep.subr.mxu0 0.0
    %811 = vmatpush1.msra.mxu0 0.0
    %812 = vmatprep.subr.mxu0 0.0
    %813 = vmatpush1.msra.mxu0 0.0
    %814 = vmatprep.subr.mxu0 0.0
    %815 = vmatpush1.msra.mxu0 0.0
    %816 = vmatprep.subr.mxu0 0.0
    %817 = vmatpush1.msra.mxu0 0.0
    %818 = vmatprep.subr.mxu0 0.0
    %819 = vmatpush1.msra.mxu0 %v206
    %820 = vmatprep.subr.mxu0 0.0
    %821 = vmatpush1.msra.mxu0 %v205
    %822 = vmatprep.subr.mxu0 0.0
    %823 = vmatpush1.msra.mxu0 %v204
    %824 = vmatprep.subr.mxu0 0.0
    %825 = vmatpush1.msra.mxu0 %v203
    %826 = vmatprep.subr.mxu0 0.0
    %827 = vmatpush2.msra.mxu0 0.0
    %828 = vmatprep.subr.mxu0 0.0
    %829 = vmatpush2.msra.mxu0 0.0
    %830 = vmatprep.subr.mxu0 0.0
    %831 = vmatpush2.msra.mxu0 0.0
    %832 = vmatprep.subr.mxu0 0.0
    %833 = vmatpush2.msra.mxu0 0.0
    %834 = vmatprep.subr.mxu0 0.0
    %835 = vmatpush2.msra.mxu0 0.0
    %836 = vmatprep.subr.mxu0 0.0
    %837 = vmatpush2.msra.mxu0 0.0
    %838 = vmatprep.subr.mxu0 0.0
    %839 = vmatpush2.msra.mxu0 0.0
    %840 = vmatprep.subr.mxu0 0.0
    %841 = vmatpush2.msra.mxu0 0.0
    %842 = vmatprep.subr.mxu0 0.0
    %843 = vmatpush2.msra.mxu0 0.0
    %844 = vmatprep.subr.mxu0 0.0
    %845 = vmatpush2.msra.mxu0 0.0
    %846 = vmatprep.subr.mxu0 0.0
    %847 = vmatpush2.msra.mxu0 0.0
    %848 = vmatprep.subr.mxu0 0.0
    %849 = vmatpush2.msra.mxu0 0.0
    %850 = vmatprep.subr.mxu0 0.0
    %851 = vmatpush2.msra.mxu0 0.0
    %852 = vmatprep.subr.mxu0 0.0
    %853 = vmatpush2.msra.mxu0 0.0
    %854 = vmatprep.subr.mxu0 0.0
    %855 = vmatpush2.msra.mxu0 0.0
    %856 = vmatprep.subr.mxu0 0.0
    %857 = vmatpush2.msra.mxu0 0.0
    %858 = vmatprep.mubr.f32.mxu0 0.0
    %859 = vmatmul.mubr.f32.gmra.mxu0 %v310
    %v860 = vpop.f32.mrf.mxu0
    %v861 = vadd.f32 0.0, %v860
    %v862 = vpop.f32.mrf.mxu0
    %863 = vdwg.mxu0
    %v864 = vadd.f32 %v791, %v861
    %v866 = vlaneseq
    %v867 = vshrl.u32 %v866, 7
    %v868 = vsub.s32 0, %v867
    %v869 = vrot.slane %v222, %v868
    %v871 = vadd.f32 %v864, %v869
    %v872 = vxor.u32 %v871, 2147483648
    %v873 = vmul.f32 %v872, 1.442695
    %v874 = vpow.pop %v873
    %v875 = vadd.f32 %v874, 1.0
    %v876 = vrcp.pop %v875
    %v877 = vmul.f32 1.0, %v876
    %v879 = vlaneseq
    %v880 = vshrl.u32 %v879, 7
    %v881 = vsub.s32 0, %v880
    %v882 = vrot.slane %v219, %v881
    %884 = vmatprep.subr.mxu0 0.0
    %885 = vmatpush1.msra.mxu0 0.0
    %886 = vmatprep.subr.mxu0 0.0
    %887 = vmatpush1.msra.mxu0 0.0
    %888 = vmatprep.subr.mxu0 0.0
    %889 = vmatpush1.msra.mxu0 0.0
    %890 = vmatprep.subr.mxu0 0.0
    %891 = vmatpush1.msra.mxu0 0.0
    %892 = vmatprep.subr.mxu0 0.0
    %893 = vmatpush1.msra.mxu0 0.0
    %894 = vmatprep.subr.mxu0 0.0
    %895 = vmatpush1.msra.mxu0 0.0
    %896 = vmatprep.subr.mxu0 0.0
    %897 = vmatpush1.msra.mxu0 0.0
    %898 = vmatprep.subr.mxu0 0.0
    %899 = vmatpush1.msra.mxu0 0.0
    %900 = vmatprep.subr.mxu0 0.0
    %901 = vmatpush1.msra.mxu0 0.0
    %902 = vmatprep.subr.mxu0 0.0
    %903 = vmatpush1.msra.mxu0 0.0
    %904 = vmatprep.subr.mxu0 0.0
    %905 = vmatpush1.msra.mxu0 0.0
    %906 = vmatprep.subr.mxu0 0.0
    %907 = vmatpush1.msra.mxu0 0.0
    %908 = vmatprep.subr.mxu0 0.0
    %909 = vmatpush1.msra.mxu0 %v197
    %910 = vmatprep.subr.mxu0 0.0
    %911 = vmatpush1.msra.mxu0 %v196
    %912 = vmatprep.subr.mxu0 0.0
    %913 = vmatpush1.msra.mxu0 %v195
    %914 = vmatprep.subr.mxu0 0.0
    %915 = vmatpush1.msra.mxu0 %v194
    %916 = vmatprep.subr.mxu0 0.0
    %917 = vmatpush2.msra.mxu0 0.0
    %918 = vmatprep.subr.mxu0 0.0
    %919 = vmatpush2.msra.mxu0 0.0
    %920 = vmatprep.subr.mxu0 0.0
    %921 = vmatpush2.msra.mxu0 0.0
    %922 = vmatprep.subr.mxu0 0.0
    %923 = vmatpush2.msra.mxu0 0.0
    %924 = vmatprep.subr.mxu0 0.0
    %925 = vmatpush2.msra.mxu0 0.0
    %926 = vmatprep.subr.mxu0 0.0
    %927 = vmatpush2.msra.mxu0 0.0
    %928 = vmatprep.subr.mxu0 0.0
    %929 = vmatpush2.msra.mxu0 0.0
    %930 = vmatprep.subr.mxu0 0.0
    %931 = vmatpush2.msra.mxu0 0.0
    %932 = vmatprep.subr.mxu0 0.0
    %933 = vmatpush2.msra.mxu0 0.0
    %934 = vmatprep.subr.mxu0 0.0
    %935 = vmatpush2.msra.mxu0 0.0
    %936 = vmatprep.subr.mxu0 0.0
    %937 = vmatpush2.msra.mxu0 0.0
    %938 = vmatprep.subr.mxu0 0.0
    %939 = vmatpush2.msra.mxu0 0.0
    %940 = vmatprep.subr.mxu0 0.0
    %941 = vmatpush2.msra.mxu0 0.0
    %942 = vmatprep.subr.mxu0 0.0
    %943 = vmatpush2.msra.mxu0 0.0
    %944 = vmatprep.subr.mxu0 0.0
    %945 = vmatpush2.msra.mxu0 0.0
    %946 = vmatprep.subr.mxu0 0.0
    %947 = vmatpush2.msra.mxu0 0.0
    %948 = vmatprep.mubr.f32.mxu0 0.0
    %949 = vmatmul.mubr.f32.gmra.mxu0 %v722
    %v950 = vpop.f32.mrf.mxu0
    %v951 = vadd.f32 %v882, %v950
    %v952 = vpop.f32.mrf.mxu0
    %953 = vdwg.mxu0
    %954 = vmatprep.subr.mxu0 0.0
    %955 = vmatpush1.msra.mxu0 0.0
    %956 = vmatprep.subr.mxu0 0.0
    %957 = vmatpush1.msra.mxu0 0.0
    %958 = vmatprep.subr.mxu0 0.0
    %959 = vmatpush1.msra.mxu0 0.0
    %960 = vmatprep.subr.mxu0 0.0
    %961 = vmatpush1.msra.mxu0 0.0
    %962 = vmatprep.subr.mxu0 0.0
    %963 = vmatpush1.msra.mxu0 0.0
    %964 = vmatprep.subr.mxu0 0.0
    %965 = vmatpush1.msra.mxu0 0.0
    %966 = vmatprep.subr.mxu0 0.0
    %967 = vmatpush1.msra.mxu0 0.0
    %968 = vmatprep.subr.mxu0 0.0
    %969 = vmatpush1.msra.mxu0 0.0
    %970 = vmatprep.subr.mxu0 0.0
    %971 = vmatpush1.msra.mxu0 0.0
    %972 = vmatprep.subr.mxu0 0.0
    %973 = vmatpush1.msra.mxu0 0.0
    %974 = vmatprep.subr.mxu0 0.0
    %975 = vmatpush1.msra.mxu0 0.0
    %976 = vmatprep.subr.mxu0 0.0
    %977 = vmatpush1.msra.mxu0 0.0
    %978 = vmatprep.subr.mxu0 0.0
    %979 = vmatpush1.msra.mxu0 %v211
    %980 = vmatprep.subr.mxu0 0.0
    %981 = vmatpush1.msra.mxu0 %v210
    %982 = vmatprep.subr.mxu0 0.0
    %983 = vmatpush1.msra.mxu0 %v209
    %984 = vmatprep.subr.mxu0 0.0
    %985 = vmatpush1.msra.mxu0 %v208
    %986 = vmatprep.subr.mxu0 0.0
    %987 = vmatpush2.msra.mxu0 0.0
    %988 = vmatprep.subr.mxu0 0.0
    %989 = vmatpush2.msra.mxu0 0.0
    %990 = vmatprep.subr.mxu0 0.0
    %991 = vmatpush2.msra.mxu0 0.0
    %992 = vmatprep.subr.mxu0 0.0
    %993 = vmatpush2.msra.mxu0 0.0
    %994 = vmatprep.subr.mxu0 0.0
    %995 = vmatpush2.msra.mxu0 0.0
    %996 = vmatprep.subr.mxu0 0.0
    %997 = vmatpush2.msra.mxu0 0.0
    %998 = vmatprep.subr.mxu0 0.0
    %999 = vmatpush2.msra.mxu0 0.0
    %1000 = vmatprep.subr.mxu0 0.0
    %1001 = vmatpush2.msra.mxu0 0.0
    %1002 = vmatprep.subr.mxu0 0.0
    %1003 = vmatpush2.msra.mxu0 0.0
    %1004 = vmatprep.subr.mxu0 0.0
    %1005 = vmatpush2.msra.mxu0 0.0
    %1006 = vmatprep.subr.mxu0 0.0
    %1007 = vmatpush2.msra.mxu0 0.0
    %1008 = vmatprep.subr.mxu0 0.0
    %1009 = vmatpush2.msra.mxu0 0.0
    %1010 = vmatprep.subr.mxu0 0.0
    %1011 = vmatpush2.msra.mxu0 0.0
    %1012 = vmatprep.subr.mxu0 0.0
    %1013 = vmatpush2.msra.mxu0 0.0
    %1014 = vmatprep.subr.mxu0 0.0
    %1015 = vmatpush2.msra.mxu0 0.0
    %1016 = vmatprep.subr.mxu0 0.0
    %1017 = vmatpush2.msra.mxu0 0.0
    %1018 = vmatprep.mubr.f32.mxu0 0.0
    %1019 = vmatmul.mubr.f32.gmra.mxu0 %v310
    %v1020 = vpop.f32.mrf.mxu0
    %v1021 = vadd.f32 0.0, %v1020
    %v1022 = vpop.f32.mrf.mxu0
    %1023 = vdwg.mxu0
    %v1024 = vadd.f32 %v951, %v1021
    %v1026 = vlaneseq
    %v1027 = vshrl.u32 %v1026, 7
    %v1028 = vsub.s32 0, %v1027
    %v1029 = vrot.slane %v224, %v1028
    %v1031 = vadd.f32 %v1024, %v1029
    %v1032 = vxor.u32 %v1031, 2147483648
    %v1033 = vmul.f32 %v1032, 1.442695
    %v1034 = vpow.pop %v1033
    %v1035 = vadd.f32 %v1034, 1.0
    %v1036 = vrcp.pop %v1035
    %v1037 = vmul.f32 1.0, %v1036
    %v1039 = vlaneseq
    %v1040 = vshrl.u32 %v1039, 7
    %v1041 = vsub.s32 0, %v1040
    %v1042 = vrot.slane %v221, %v1041
    %1044 = vmatprep.subr.mxu0 0.0
    %1045 = vmatpush1.msra.mxu0 0.0
    %1046 = vmatprep.subr.mxu0 0.0
    %1047 = vmatpush1.msra.mxu0 0.0
    %1048 = vmatprep.subr.mxu0 0.0
    %1049 = vmatpush1.msra.mxu0 0.0
    %1050 = vmatprep.subr.mxu0 0.0
    %1051 = vmatpush1.msra.mxu0 0.0
    %1052 = vmatprep.subr.mxu0 0.0
    %1053 = vmatpush1.msra.mxu0 0.0
    %1054 = vmatprep.subr.mxu0 0.0
    %1055 = vmatpush1.msra.mxu0 0.0
    %1056 = vmatprep.subr.mxu0 0.0
    %1057 = vmatpush1.msra.mxu0 0.0
    %1058 = vmatprep.subr.mxu0 0.0
    %1059 = vmatpush1.msra.mxu0 0.0
    %1060 = vmatprep.subr.mxu0 0.0
    %1061 = vmatpush1.msra.mxu0 0.0
    %1062 = vmatprep.subr.mxu0 0.0
    %1063 = vmatpush1.msra.mxu0 0.0
    %1064 = vmatprep.subr.mxu0 0.0
    %1065 = vmatpush1.msra.mxu0 0.0
    %1066 = vmatprep.subr.mxu0 0.0
    %1067 = vmatpush1.msra.mxu0 0.0
    %1068 = vmatprep.subr.mxu0 0.0
    %1069 = vmatpush1.msra.mxu0 %v202
    %1070 = vmatprep.subr.mxu0 0.0
    %1071 = vmatpush1.msra.mxu0 %v201
    %1072 = vmatprep.subr.mxu0 0.0
    %1073 = vmatpush1.msra.mxu0 %v200
    %1074 = vmatprep.subr.mxu0 0.0
    %1075 = vmatpush1.msra.mxu0 %v199
    %1076 = vmatprep.subr.mxu0 0.0
    %1077 = vmatpush2.msra.mxu0 0.0
    %1078 = vmatprep.subr.mxu0 0.0
    %1079 = vmatpush2.msra.mxu0 0.0
    %1080 = vmatprep.subr.mxu0 0.0
    %1081 = vmatpush2.msra.mxu0 0.0
    %1082 = vmatprep.subr.mxu0 0.0
    %1083 = vmatpush2.msra.mxu0 0.0
    %1084 = vmatprep.subr.mxu0 0.0
    %1085 = vmatpush2.msra.mxu0 0.0
    %1086 = vmatprep.subr.mxu0 0.0
    %1087 = vmatpush2.msra.mxu0 0.0
    %1088 = vmatprep.subr.mxu0 0.0
    %1089 = vmatpush2.msra.mxu0 0.0
    %1090 = vmatprep.subr.mxu0 0.0
    %1091 = vmatpush2.msra.mxu0 0.0
    %1092 = vmatprep.subr.mxu0 0.0
    %1093 = vmatpush2.msra.mxu0 0.0
    %1094 = vmatprep.subr.mxu0 0.0
    %1095 = vmatpush2.msra.mxu0 0.0
    %1096 = vmatprep.subr.mxu0 0.0
    %1097 = vmatpush2.msra.mxu0 0.0
    %1098 = vmatprep.subr.mxu0 0.0
    %1099 = vmatpush2.msra.mxu0 0.0
    %1100 = vmatprep.subr.mxu0 0.0
    %1101 = vmatpush2.msra.mxu0 0.0
    %1102 = vmatprep.subr.mxu0 0.0
    %1103 = vmatpush2.msra.mxu0 0.0
    %1104 = vmatprep.subr.mxu0 0.0
    %1105 = vmatpush2.msra.mxu0 0.0
    %1106 = vmatprep.subr.mxu0 0.0
    %1107 = vmatpush2.msra.mxu0 0.0
    %1108 = vmatprep.mubr.f32.mxu0 0.0
    %1109 = vmatmul.mubr.f32.gmra.mxu0 %v722
    %v1110 = vpop.f32.mrf.mxu0
    %v1111 = vadd.f32 %v1042, %v1110
    %v1112 = vpop.f32.mrf.mxu0
    %1113 = vdwg.mxu0
    %v1115 = vlaneseq
    %v1116 = vshrl.u32 %v1115, 7
    %v1117 = vsub.s32 0, %v1116
    %v1118 = vrot.slane %v226, %v1117
    %1120 = vmatprep.subr.mxu0 0.0
    %1121 = vmatpush1.msra.mxu0 0.0
    %1122 = vmatprep.subr.mxu0 0.0
    %1123 = vmatpush1.msra.mxu0 0.0
    %1124 = vmatprep.subr.mxu0 0.0
    %1125 = vmatpush1.msra.mxu0 0.0
    %1126 = vmatprep.subr.mxu0 0.0
    %1127 = vmatpush1.msra.mxu0 0.0
    %1128 = vmatprep.subr.mxu0 0.0
    %1129 = vmatpush1.msra.mxu0 0.0
    %1130 = vmatprep.subr.mxu0 0.0
    %1131 = vmatpush1.msra.mxu0 0.0
    %1132 = vmatprep.subr.mxu0 0.0
    %1133 = vmatpush1.msra.mxu0 0.0
    %1134 = vmatprep.subr.mxu0 0.0
    %1135 = vmatpush1.msra.mxu0 0.0
    %1136 = vmatprep.subr.mxu0 0.0
    %1137 = vmatpush1.msra.mxu0 0.0
    %1138 = vmatprep.subr.mxu0 0.0
    %1139 = vmatpush1.msra.mxu0 0.0
    %1140 = vmatprep.subr.mxu0 0.0
    %1141 = vmatpush1.msra.mxu0 0.0
    %1142 = vmatprep.subr.mxu0 0.0
    %1143 = vmatpush1.msra.mxu0 0.0
    %1144 = vmatprep.subr.mxu0 0.0
    %1145 = vmatpush1.msra.mxu0 %v216
    %1146 = vmatprep.subr.mxu0 0.0
    %1147 = vmatpush1.msra.mxu0 %v215
    %1148 = vmatprep.subr.mxu0 0.0
    %1149 = vmatpush1.msra.mxu0 %v214
    %1150 = vmatprep.subr.mxu0 0.0
    %1151 = vmatpush1.msra.mxu0 %v213
    %1152 = vmatprep.subr.mxu0 0.0
    %1153 = vmatpush2.msra.mxu0 0.0
    %1154 = vmatprep.subr.mxu0 0.0
    %1155 = vmatpush2.msra.mxu0 0.0
    %1156 = vmatprep.subr.mxu0 0.0
    %1157 = vmatpush2.msra.mxu0 0.0
    %1158 = vmatprep.subr.mxu0 0.0
    %1159 = vmatpush2.msra.mxu0 0.0
    %1160 = vmatprep.subr.mxu0 0.0
    %1161 = vmatpush2.msra.mxu0 0.0
    %1162 = vmatprep.subr.mxu0 0.0
    %1163 = vmatpush2.msra.mxu0 0.0
    %1164 = vmatprep.subr.mxu0 0.0
    %1165 = vmatpush2.msra.mxu0 0.0
    %1166 = vmatprep.subr.mxu0 0.0
    %1167 = vmatpush2.msra.mxu0 0.0
    %1168 = vmatprep.subr.mxu0 0.0
    %1169 = vmatpush2.msra.mxu0 0.0
    %1170 = vmatprep.subr.mxu0 0.0
    %1171 = vmatpush2.msra.mxu0 0.0
    %1172 = vmatprep.subr.mxu0 0.0
    %1173 = vmatpush2.msra.mxu0 0.0
    %1174 = vmatprep.subr.mxu0 0.0
    %1175 = vmatpush2.msra.mxu0 0.0
    %1176 = vmatprep.subr.mxu0 0.0
    %1177 = vmatpush2.msra.mxu0 0.0
    %1178 = vmatprep.subr.mxu0 0.0
    %1179 = vmatpush2.msra.mxu0 0.0
    %1180 = vmatprep.subr.mxu0 0.0
    %1181 = vmatpush2.msra.mxu0 0.0
    %1182 = vmatprep.subr.mxu0 0.0
    %1183 = vmatpush2.msra.mxu0 0.0
    %1184 = vmatprep.mubr.f32.mxu0 0.0
    %1185 = vmatmul.mubr.f32.gmra.mxu0 %v310
    %v1186 = vpop.f32.mrf.mxu0
    %v1187 = vadd.f32 %v1118, %v1186
    %v1188 = vpop.f32.mrf.mxu0
    %1189 = vdwg.mxu0
    %v1190 = vmul.f32 %v877, %v1187
    %v1191 = vadd.f32 %v1111, %v1190
    %v1192 = vtanh.pop %v1191
    %v1193 = vsub.f32 1.0, %v1037
    %v1194 = vmul.f32 %v1193, %v1192
    %v1195 = vmul.f32 %v1037, 0.0
    %v1196 = vadd.f32 %v1194, %v1195
    %s1197 = scalar_lea.vmem [#allocation2], 8
    %v1198 = vld [vmem:[%s1197] sm:$0xff]
    %v1200 = vsel %vm234, %v1198, 0
    %1202 = vmatprep.subr.mxu0 0.0
    %1203 = vmatpush1.msra.mxu0 0.0
    %1204 = vmatprep.subr.mxu0 0.0
    %1205 = vmatpush1.msra.mxu0 0.0
    %1206 = vmatprep.subr.mxu0 0.0
    %1207 = vmatpush1.msra.mxu0 0.0
    %1208 = vmatprep.subr.mxu0 0.0
    %1209 = vmatpush1.msra.mxu0 0.0
    %1210 = vmatprep.subr.mxu0 0.0
    %1211 = vmatpush1.msra.mxu0 0.0
    %1212 = vmatprep.subr.mxu0 0.0
    %1213 = vmatpush1.msra.mxu0 0.0
    %1214 = vmatprep.subr.mxu0 0.0
    %1215 = vmatpush1.msra.mxu0 0.0
    %1216 = vmatprep.subr.mxu0 0.0
    %1217 = vmatpush1.msra.mxu0 0.0
    %1218 = vmatprep.subr.mxu0 0.0
    %1219 = vmatpush1.msra.mxu0 0.0
    %1220 = vmatprep.subr.mxu0 0.0
    %1221 = vmatpush1.msra.mxu0 0.0
    %1222 = vmatprep.subr.mxu0 0.0
    %1223 = vmatpush1.msra.mxu0 0.0
    %1224 = vmatprep.subr.mxu0 0.0
    %1225 = vmatpush1.msra.mxu0 0.0
    %1226 = vmatprep.subr.mxu0 0.0
    %1227 = vmatpush1.msra.mxu0 0.0
    %1228 = vmatprep.subr.mxu0 0.0
    %1229 = vmatpush1.msra.mxu0 0.0
    %1230 = vmatprep.subr.mxu0 0.0
    %1231 = vmatpush1.msra.mxu0 %v158
    %1232 = vmatprep.subr.mxu0 0.0
    %1233 = vmatpush1.msra.mxu0 %v157
    %1234 = vmatprep.subr.mxu0 0.0
    %1235 = vmatpush2.msra.mxu0 0.0
    %1236 = vmatprep.subr.mxu0 0.0
    %1237 = vmatpush2.msra.mxu0 0.0
    %1238 = vmatprep.subr.mxu0 0.0
    %1239 = vmatpush2.msra.mxu0 0.0
    %1240 = vmatprep.subr.mxu0 0.0
    %1241 = vmatpush2.msra.mxu0 0.0
    %1242 = vmatprep.subr.mxu0 0.0
    %1243 = vmatpush2.msra.mxu0 0.0
    %1244 = vmatprep.subr.mxu0 0.0
    %1245 = vmatpush2.msra.mxu0 0.0
    %1246 = vmatprep.subr.mxu0 0.0
    %1247 = vmatpush2.msra.mxu0 0.0
    %1248 = vmatprep.subr.mxu0 0.0
    %1249 = vmatpush2.msra.mxu0 0.0
    %1250 = vmatprep.subr.mxu0 0.0
    %1251 = vmatpush2.msra.mxu0 0.0
    %1252 = vmatprep.subr.mxu0 0.0
    %1253 = vmatpush2.msra.mxu0 0.0
    %1254 = vmatprep.subr.mxu0 0.0
    %1255 = vmatpush2.msra.mxu0 0.0
    %1256 = vmatprep.subr.mxu0 0.0
    %1257 = vmatpush2.msra.mxu0 0.0
    %1258 = vmatprep.subr.mxu0 0.0
    %1259 = vmatpush2.msra.mxu0 0.0
    %1260 = vmatprep.subr.mxu0 0.0
    %1261 = vmatpush2.msra.mxu0 0.0
    %1262 = vmatprep.subr.mxu0 0.0
    %1263 = vmatpush2.msra.mxu0 0.0
    %1264 = vmatprep.subr.mxu0 0.0
    %1265 = vmatpush2.msra.mxu0 0.0
    %1266 = vmatprep.mubr.f32.mxu0 0.0
    %1267 = vmatmul.mubr.f32.gmra.mxu0 %v1200
    %v1268 = vpop.f32.mrf.mxu0
    %v1269 = vadd.f32 %v232, %v1268
    %v1270 = vpop.f32.mrf.mxu0
    %1271 = vdwg.mxu0
    %1272 = vmatprep.subr.mxu0 0.0
    %1273 = vmatpush1.msra.mxu0 0.0
    %1274 = vmatprep.subr.mxu0 0.0
    %1275 = vmatpush1.msra.mxu0 0.0
    %1276 = vmatprep.subr.mxu0 0.0
    %1277 = vmatpush1.msra.mxu0 0.0
    %1278 = vmatprep.subr.mxu0 0.0
    %1279 = vmatpush1.msra.mxu0 0.0
    %1280 = vmatprep.subr.mxu0 0.0
    %1281 = vmatpush1.msra.mxu0 0.0
    %1282 = vmatprep.subr.mxu0 0.0
    %1283 = vmatpush1.msra.mxu0 0.0
    %1284 = vmatprep.subr.mxu0 0.0
    %1285 = vmatpush1.msra.mxu0 0.0
    %1286 = vmatprep.subr.mxu0 0.0
    %1287 = vmatpush1.msra.mxu0 0.0
    %1288 = vmatprep.subr.mxu0 0.0
    %1289 = vmatpush1.msra.mxu0 0.0
    %1290 = vmatprep.subr.mxu0 0.0
    %1291 = vmatpush1.msra.mxu0 0.0
    %1292 = vmatprep.subr.mxu0 0.0
    %1293 = vmatpush1.msra.mxu0 0.0
    %1294 = vmatprep.subr.mxu0 0.0
    %1295 = vmatpush1.msra.mxu0 0.0
    %1296 = vmatprep.subr.mxu0 0.0
    %1297 = vmatpush1.msra.mxu0 %v168
    %1298 = vmatprep.subr.mxu0 0.0
    %1299 = vmatpush1.msra.mxu0 %v167
    %1300 = vmatprep.subr.mxu0 0.0
    %1301 = vmatpush1.msra.mxu0 %v166
    %1302 = vmatprep.subr.mxu0 0.0
    %1303 = vmatpush1.msra.mxu0 %v165
    %1304 = vmatprep.subr.mxu0 0.0
    %1305 = vmatpush2.msra.mxu0 0.0
    %1306 = vmatprep.subr.mxu0 0.0
    %1307 = vmatpush2.msra.mxu0 0.0
    %1308 = vmatprep.subr.mxu0 0.0
    %1309 = vmatpush2.msra.mxu0 0.0
    %1310 = vmatprep.subr.mxu0 0.0
    %1311 = vmatpush2.msra.mxu0 0.0
    %1312 = vmatprep.subr.mxu0 0.0
    %1313 = vmatpush2.msra.mxu0 0.0
    %1314 = vmatprep.subr.mxu0 0.0
    %1315 = vmatpush2.msra.mxu0 0.0
    %1316 = vmatprep.subr.mxu0 0.0
    %1317 = vmatpush2.msra.mxu0 0.0
    %1318 = vmatprep.subr.mxu0 0.0
    %1319 = vmatpush2.msra.mxu0 0.0
    %1320 = vmatprep.subr.mxu0 0.0
    %1321 = vmatpush2.msra.mxu0 0.0
    %1322 = vmatprep.subr.mxu0 0.0
    %1323 = vmatpush2.msra.mxu0 0.0
    %1324 = vmatprep.subr.mxu0 0.0
    %1325 = vmatpush2.msra.mxu0 0.0
    %1326 = vmatprep.subr.mxu0 0.0
    %1327 = vmatpush2.msra.mxu0 0.0
    %1328 = vmatprep.subr.mxu0 0.0
    %1329 = vmatpush2.msra.mxu0 0.0
    %1330 = vmatprep.subr.mxu0 0.0
    %1331 = vmatpush2.msra.mxu0 0.0
    %1332 = vmatprep.subr.mxu0 0.0
    %1333 = vmatpush2.msra.mxu0 0.0
    %1334 = vmatprep.subr.mxu0 0.0
    %1335 = vmatpush2.msra.mxu0 0.0
    %1336 = vmatprep.mubr.f32.mxu0 0.0
    %1337 = vmatmul.mubr.f32.gmra.mxu0 %v722
    %v1338 = vpop.f32.mrf.mxu0
    %v1339 = vadd.f32 0.0, %v1338
    %v1340 = vpop.f32.mrf.mxu0
    %1341 = vdwg.mxu0
    %v1342 = vadd.f32 %v1269, %v1339
    %v1343 = vadd.f32 %v1342, %v387
    %v1344 = vxor.u32 %v1343, 2147483648
    %v1345 = vmul.f32 %v1344, 1.442695
    %v1346 = vpow.pop %v1345
    %v1347 = vadd.f32 %v1346, 1.0
    %v1348 = vrcp.pop %v1347
    %v1349 = vmul.f32 1.0, %v1348
    %1350 = vmatprep.subr.mxu0 0.0
    %1351 = vmatpush1.msra.mxu0 0.0
    %1352 = vmatprep.subr.mxu0 0.0
    %1353 = vmatpush1.msra.mxu0 0.0
    %1354 = vmatprep.subr.mxu0 0.0
    %1355 = vmatpush1.msra.mxu0 0.0
    %1356 = vmatprep.subr.mxu0 0.0
    %1357 = vmatpush1.msra.mxu0 0.0
    %1358 = vmatprep.subr.mxu0 0.0
    %1359 = vmatpush1.msra.mxu0 0.0
    %1360 = vmatprep.subr.mxu0 0.0
    %1361 = vmatpush1.msra.mxu0 0.0
    %1362 = vmatprep.subr.mxu0 0.0
    %1363 = vmatpush1.msra.mxu0 0.0
    %1364 = vmatprep.subr.mxu0 0.0
    %1365 = vmatpush1.msra.mxu0 0.0
    %1366 = vmatprep.subr.mxu0 0.0
    %1367 = vmatpush1.msra.mxu0 0.0
    %1368 = vmatprep.subr.mxu0 0.0
    %1369 = vmatpush1.msra.mxu0 0.0
    %1370 = vmatprep.subr.mxu0 0.0
    %1371 = vmatpush1.msra.mxu0 0.0
    %1372 = vmatprep.subr.mxu0 0.0
    %1373 = vmatpush1.msra.mxu0 0.0
    %1374 = vmatprep.subr.mxu0 0.0
    %1375 = vmatpush1.msra.mxu0 0.0
    %1376 = vmatprep.subr.mxu0 0.0
    %1377 = vmatpush1.msra.mxu0 0.0
    %1378 = vmatprep.subr.mxu0 0.0
    %1379 = vmatpush1.msra.mxu0 %v161
    %1380 = vmatprep.subr.mxu0 0.0
    %1381 = vmatpush1.msra.mxu0 %v160
    %1382 = vmatprep.subr.mxu0 0.0
    %1383 = vmatpush2.msra.mxu0 0.0
    %1384 = vmatprep.subr.mxu0 0.0
    %1385 = vmatpush2.msra.mxu0 0.0
    %1386 = vmatprep.subr.mxu0 0.0
    %1387 = vmatpush2.msra.mxu0 0.0
    %1388 = vmatprep.subr.mxu0 0.0
    %1389 = vmatpush2.msra.mxu0 0.0
    %1390 = vmatprep.subr.mxu0 0.0
    %1391 = vmatpush2.msra.mxu0 0.0
    %1392 = vmatprep.subr.mxu0 0.0
    %1393 = vmatpush2.msra.mxu0 0.0
    %1394 = vmatprep.subr.mxu0 0.0
    %1395 = vmatpush2.msra.mxu0 0.0
    %1396 = vmatprep.subr.mxu0 0.0
    %1397 = vmatpush2.msra.mxu0 0.0
    %1398 = vmatprep.subr.mxu0 0.0
    %1399 = vmatpush2.msra.mxu0 0.0
    %1400 = vmatprep.subr.mxu0 0.0
    %1401 = vmatpush2.msra.mxu0 0.0
    %1402 = vmatprep.subr.mxu0 0.0
    %1403 = vmatpush2.msra.mxu0 0.0
    %1404 = vmatprep.subr.mxu0 0.0
    %1405 = vmatpush2.msra.mxu0 0.0
    %1406 = vmatprep.subr.mxu0 0.0
    %1407 = vmatpush2.msra.mxu0 0.0
    %1408 = vmatprep.subr.mxu0 0.0
    %1409 = vmatpush2.msra.mxu0 0.0
    %1410 = vmatprep.subr.mxu0 0.0
    %1411 = vmatpush2.msra.mxu0 0.0
    %1412 = vmatprep.subr.mxu0 0.0
    %1413 = vmatpush2.msra.mxu0 0.0
    %1414 = vmatprep.mubr.f32.mxu0 0.0
    %1415 = vmatmul.mubr.f32.gmra.mxu0 %v1200
    %v1416 = vpop.f32.mrf.mxu0
    %v1417 = vadd.f32 %v400, %v1416
    %v1418 = vpop.f32.mrf.mxu0
    %1419 = vdwg.mxu0
    %1420 = vmatprep.subr.mxu0 0.0
    %1421 = vmatpush1.msra.mxu0 0.0
    %1422 = vmatprep.subr.mxu0 0.0
    %1423 = vmatpush1.msra.mxu0 0.0
    %1424 = vmatprep.subr.mxu0 0.0
    %1425 = vmatpush1.msra.mxu0 0.0
    %1426 = vmatprep.subr.mxu0 0.0
    %1427 = vmatpush1.msra.mxu0 0.0
    %1428 = vmatprep.subr.mxu0 0.0
    %1429 = vmatpush1.msra.mxu0 0.0
    %1430 = vmatprep.subr.mxu0 0.0
    %1431 = vmatpush1.msra.mxu0 0.0
    %1432 = vmatprep.subr.mxu0 0.0
    %1433 = vmatpush1.msra.mxu0 0.0
    %1434 = vmatprep.subr.mxu0 0.0
    %1435 = vmatpush1.msra.mxu0 0.0
    %1436 = vmatprep.subr.mxu0 0.0
    %1437 = vmatpush1.msra.mxu0 0.0
    %1438 = vmatprep.subr.mxu0 0.0
    %1439 = vmatpush1.msra.mxu0 0.0
    %1440 = vmatprep.subr.mxu0 0.0
    %1441 = vmatpush1.msra.mxu0 0.0
    %1442 = vmatprep.subr.mxu0 0.0
    %1443 = vmatpush1.msra.mxu0 0.0
    %1444 = vmatprep.subr.mxu0 0.0
    %1445 = vmatpush1.msra.mxu0 %v173
    %1446 = vmatprep.subr.mxu0 0.0
    %1447 = vmatpush1.msra.mxu0 %v172
    %1448 = vmatprep.subr.mxu0 0.0
    %1449 = vmatpush1.msra.mxu0 %v171
    %1450 = vmatprep.subr.mxu0 0.0
    %1451 = vmatpush1.msra.mxu0 %v170
    %1452 = vmatprep.subr.mxu0 0.0
    %1453 = vmatpush2.msra.mxu0 0.0
    %1454 = vmatprep.subr.mxu0 0.0
    %1455 = vmatpush2.msra.mxu0 0.0
    %1456 = vmatprep.subr.mxu0 0.0
    %1457 = vmatpush2.msra.mxu0 0.0
    %1458 = vmatprep.subr.mxu0 0.0
    %1459 = vmatpush2.msra.mxu0 0.0
    %1460 = vmatprep.subr.mxu0 0.0
    %1461 = vmatpush2.msra.mxu0 0.0
    %1462 = vmatprep.subr.mxu0 0.0
    %1463 = vmatpush2.msra.mxu0 0.0
    %1464 = vmatprep.subr.mxu0 0.0
    %1465 = vmatpush2.msra.mxu0 0.0
    %1466 = vmatprep.subr.mxu0 0.0
    %1467 = vmatpush2.msra.mxu0 0.0
    %1468 = vmatprep.subr.mxu0 0.0
    %1469 = vmatpush2.msra.mxu0 0.0
    %1470 = vmatprep.subr.mxu0 0.0
    %1471 = vmatpush2.msra.mxu0 0.0
    %1472 = vmatprep.subr.mxu0 0.0
    %1473 = vmatpush2.msra.mxu0 0.0
    %1474 = vmatprep.subr.mxu0 0.0
    %1475 = vmatpush2.msra.mxu0 0.0
    %1476 = vmatprep.subr.mxu0 0.0
    %1477 = vmatpush2.msra.mxu0 0.0
    %1478 = vmatprep.subr.mxu0 0.0
    %1479 = vmatpush2.msra.mxu0 0.0
    %1480 = vmatprep.subr.mxu0 0.0
    %1481 = vmatpush2.msra.mxu0 0.0
    %1482 = vmatprep.subr.mxu0 0.0
    %1483 = vmatpush2.msra.mxu0 0.0
    %1484 = vmatprep.mubr.f32.mxu0 0.0
    %1485 = vmatmul.mubr.f32.gmra.mxu0 %v722
    %v1486 = vpop.f32.mrf.mxu0
    %v1487 = vadd.f32 0.0, %v1486
    %v1488 = vpop.f32.mrf.mxu0
    %1489 = vdwg.mxu0
    %v1490 = vadd.f32 %v1417, %v1487
    %v1491 = vadd.f32 %v1490, %v547
    %v1492 = vxor.u32 %v1491, 2147483648
    %v1493 = vmul.f32 %v1492, 1.442695
    %v1494 = vpow.pop %v1493
    %v1495 = vadd.f32 %v1494, 1.0
    %v1496 = vrcp.pop %v1495
    %v1497 = vmul.f32 1.0, %v1496
    %1498 = vmatprep.subr.mxu0 0.0
    %1499 = vmatpush1.msra.mxu0 0.0
    %1500 = vmatprep.subr.mxu0 0.0
    %1501 = vmatpush1.msra.mxu0 0.0
    %1502 = vmatprep.subr.mxu0 0.0
    %1503 = vmatpush1.msra.mxu0 0.0
    %1504 = vmatprep.subr.mxu0 0.0
    %1505 = vmatpush1.msra.mxu0 0.0
    %1506 = vmatprep.subr.mxu0 0.0
    %1507 = vmatpush1.msra.mxu0 0.0
    %1508 = vmatprep.subr.mxu0 0.0
    %1509 = vmatpush1.msra.mxu0 0.0
    %1510 = vmatprep.subr.mxu0 0.0
    %1511 = vmatpush1.msra.mxu0 0.0
    %1512 = vmatprep.subr.mxu0 0.0
    %1513 = vmatpush1.msra.mxu0 0.0
    %1514 = vmatprep.subr.mxu0 0.0
    %1515 = vmatpush1.msra.mxu0 0.0
    %1516 = vmatprep.subr.mxu0 0.0
    %1517 = vmatpush1.msra.mxu0 0.0
    %1518 = vmatprep.subr.mxu0 0.0
    %1519 = vmatpush1.msra.mxu0 0.0
    %1520 = vmatprep.subr.mxu0 0.0
    %1521 = vmatpush1.msra.mxu0 0.0
    %1522 = vmatprep.subr.mxu0 0.0
    %1523 = vmatpush1.msra.mxu0 0.0
    %1524 = vmatprep.subr.mxu0 0.0
    %1525 = vmatpush1.msra.mxu0 0.0
    %1526 = vmatprep.subr.mxu0 0.0
    %1527 = vmatpush1.msra.mxu0 %v164
    %1528 = vmatprep.subr.mxu0 0.0
    %1529 = vmatpush1.msra.mxu0 %v163
    %1530 = vmatprep.subr.mxu0 0.0
    %1531 = vmatpush2.msra.mxu0 0.0
    %1532 = vmatprep.subr.mxu0 0.0
    %1533 = vmatpush2.msra.mxu0 0.0
    %1534 = vmatprep.subr.mxu0 0.0
    %1535 = vmatpush2.msra.mxu0 0.0
    %1536 = vmatprep.subr.mxu0 0.0
    %1537 = vmatpush2.msra.mxu0 0.0
    %1538 = vmatprep.subr.mxu0 0.0
    %1539 = vmatpush2.msra.mxu0 0.0
    %1540 = vmatprep.subr.mxu0 0.0
    %1541 = vmatpush2.msra.mxu0 0.0
    %1542 = vmatprep.subr.mxu0 0.0
    %1543 = vmatpush2.msra.mxu0 0.0
    %1544 = vmatprep.subr.mxu0 0.0
    %1545 = vmatpush2.msra.mxu0 0.0
    %1546 = vmatprep.subr.mxu0 0.0
    %1547 = vmatpush2.msra.mxu0 0.0
    %1548 = vmatprep.subr.mxu0 0.0
    %1549 = vmatpush2.msra.mxu0 0.0
    %1550 = vmatprep.subr.mxu0 0.0
    %1551 = vmatpush2.msra.mxu0 0.0
    %1552 = vmatprep.subr.mxu0 0.0
    %1553 = vmatpush2.msra.mxu0 0.0
    %1554 = vmatprep.subr.mxu0 0.0
    %1555 = vmatpush2.msra.mxu0 0.0
    %1556 = vmatprep.subr.mxu0 0.0
    %1557 = vmatpush2.msra.mxu0 0.0
    %1558 = vmatprep.subr.mxu0 0.0
    %1559 = vmatpush2.msra.mxu0 0.0
    %1560 = vmatprep.subr.mxu0 0.0
    %1561 = vmatpush2.msra.mxu0 0.0
    %1562 = vmatprep.mubr.f32.mxu0 0.0
    %1563 = vmatmul.mubr.f32.gmra.mxu0 %v1200
    %v1564 = vpop.f32.mrf.mxu0
    %v1565 = vadd.f32 %v560, %v1564
    %v1566 = vpop.f32.mrf.mxu0
    %1567 = vdwg.mxu0
    %1568 = vmatprep.subr.mxu0 0.0
    %1569 = vmatpush1.msra.mxu0 0.0
    %1570 = vmatprep.subr.mxu0 0.0
    %1571 = vmatpush1.msra.mxu0 0.0
    %1572 = vmatprep.subr.mxu0 0.0
    %1573 = vmatpush1.msra.mxu0 0.0
    %1574 = vmatprep.subr.mxu0 0.0
    %1575 = vmatpush1.msra.mxu0 0.0
    %1576 = vmatprep.subr.mxu0 0.0
    %1577 = vmatpush1.msra.mxu0 0.0
    %1578 = vmatprep.subr.mxu0 0.0
    %1579 = vmatpush1.msra.mxu0 0.0
    %1580 = vmatprep.subr.mxu0 0.0
    %1581 = vmatpush1.msra.mxu0 0.0
    %1582 = vmatprep.subr.mxu0 0.0
    %1583 = vmatpush1.msra.mxu0 0.0
    %1584 = vmatprep.subr.mxu0 0.0
    %1585 = vmatpush1.msra.mxu0 0.0
    %1586 = vmatprep.subr.mxu0 0.0
    %1587 = vmatpush1.msra.mxu0 0.0
    %1588 = vmatprep.subr.mxu0 0.0
    %1589 = vmatpush1.msra.mxu0 0.0
    %1590 = vmatprep.subr.mxu0 0.0
    %1591 = vmatpush1.msra.mxu0 0.0
    %1592 = vmatprep.subr.mxu0 0.0
    %1593 = vmatpush1.msra.mxu0 %v178
    %1594 = vmatprep.subr.mxu0 0.0
    %1595 = vmatpush1.msra.mxu0 %v177
    %1596 = vmatprep.subr.mxu0 0.0
    %1597 = vmatpush1.msra.mxu0 %v176
    %1598 = vmatprep.subr.mxu0 0.0
    %1599 = vmatpush1.msra.mxu0 %v175
    %1600 = vmatprep.subr.mxu0 0.0
    %1601 = vmatpush2.msra.mxu0 0.0
    %1602 = vmatprep.subr.mxu0 0.0
    %1603 = vmatpush2.msra.mxu0 0.0
    %1604 = vmatprep.subr.mxu0 0.0
    %1605 = vmatpush2.msra.mxu0 0.0
    %1606 = vmatprep.subr.mxu0 0.0
    %1607 = vmatpush2.msra.mxu0 0.0
    %1608 = vmatprep.subr.mxu0 0.0
    %1609 = vmatpush2.msra.mxu0 0.0
    %1610 = vmatprep.subr.mxu0 0.0
    %1611 = vmatpush2.msra.mxu0 0.0
    %1612 = vmatprep.subr.mxu0 0.0
    %1613 = vmatpush2.msra.mxu0 0.0
    %1614 = vmatprep.subr.mxu0 0.0
    %1615 = vmatpush2.msra.mxu0 0.0
    %1616 = vmatprep.subr.mxu0 0.0
    %1617 = vmatpush2.msra.mxu0 0.0
    %1618 = vmatprep.subr.mxu0 0.0
    %1619 = vmatpush2.msra.mxu0 0.0
    %1620 = vmatprep.subr.mxu0 0.0
    %1621 = vmatpush2.msra.mxu0 0.0
    %1622 = vmatprep.subr.mxu0 0.0
    %1623 = vmatpush2.msra.mxu0 0.0
    %1624 = vmatprep.subr.mxu0 0.0
    %1625 = vmatpush2.msra.mxu0 0.0
    %1626 = vmatprep.subr.mxu0 0.0
    %1627 = vmatpush2.msra.mxu0 0.0
    %1628 = vmatprep.subr.mxu0 0.0
    %1629 = vmatpush2.msra.mxu0 0.0
    %1630 = vmatprep.subr.mxu0 0.0
    %1631 = vmatpush2.msra.mxu0 0.0
    %1632 = vmatprep.mubr.f32.mxu0 0.0
    %1633 = vmatmul.mubr.f32.gmra.mxu0 %v722
    %v1634 = vpop.f32.mrf.mxu0
    %v1635 = vadd.f32 %v636, %v1634
    %v1636 = vpop.f32.mrf.mxu0
    %1637 = vdwg.mxu0
    %v1638 = vmul.f32 %v1349, %v1635
    %v1639 = vadd.f32 %v1565, %v1638
    %v1640 = vtanh.pop %v1639
    %v1641 = vsub.f32 1.0, %v1497
    %v1642 = vmul.f32 %v1641, %v1640
    %v1643 = vmul.f32 %v1497, %v714
    %v1644 = vadd.f32 %v1642, %v1643
    %v1646 = vsel %vm308, %v1644, 0
    %1648 = vmatprep.subr.mxu0 0.0
    %1649 = vmatpush1.msra.mxu0 0.0
    %1650 = vmatprep.subr.mxu0 0.0
    %1651 = vmatpush1.msra.mxu0 0.0
    %1652 = vmatprep.subr.mxu0 0.0
    %1653 = vmatpush1.msra.mxu0 0.0
    %1654 = vmatprep.subr.mxu0 0.0
    %1655 = vmatpush1.msra.mxu0 0.0
    %1656 = vmatprep.subr.mxu0 0.0
    %1657 = vmatpush1.msra.mxu0 0.0
    %1658 = vmatprep.subr.mxu0 0.0
    %1659 = vmatpush1.msra.mxu0 0.0
    %1660 = vmatprep.subr.mxu0 0.0
    %1661 = vmatpush1.msra.mxu0 0.0
    %1662 = vmatprep.subr.mxu0 0.0
    %1663 = vmatpush1.msra.mxu0 0.0
    %1664 = vmatprep.subr.mxu0 0.0
    %1665 = vmatpush1.msra.mxu0 0.0
    %1666 = vmatprep.subr.mxu0 0.0
    %1667 = vmatpush1.msra.mxu0 0.0
    %1668 = vmatprep.subr.mxu0 0.0
    %1669 = vmatpush1.msra.mxu0 0.0
    %1670 = vmatprep.subr.mxu0 0.0
    %1671 = vmatpush1.msra.mxu0 0.0
    %1672 = vmatprep.subr.mxu0 0.0
    %1673 = vmatpush1.msra.mxu0 %v192
    %1674 = vmatprep.subr.mxu0 0.0
    %1675 = vmatpush1.msra.mxu0 %v191
    %1676 = vmatprep.subr.mxu0 0.0
    %1677 = vmatpush1.msra.mxu0 %v190
    %1678 = vmatprep.subr.mxu0 0.0
    %1679 = vmatpush1.msra.mxu0 %v189
    %1680 = vmatprep.subr.mxu0 0.0
    %1681 = vmatpush2.msra.mxu0 0.0
    %1682 = vmatprep.subr.mxu0 0.0
    %1683 = vmatpush2.msra.mxu0 0.0
    %1684 = vmatprep.subr.mxu0 0.0
    %1685 = vmatpush2.msra.mxu0 0.0
    %1686 = vmatprep.subr.mxu0 0.0
    %1687 = vmatpush2.msra.mxu0 0.0
    %1688 = vmatprep.subr.mxu0 0.0
    %1689 = vmatpush2.msra.mxu0 0.0
    %1690 = vmatprep.subr.mxu0 0.0
    %1691 = vmatpush2.msra.mxu0 0.0
    %1692 = vmatprep.subr.mxu0 0.0
    %1693 = vmatpush2.msra.mxu0 0.0
    %1694 = vmatprep.subr.mxu0 0.0
    %1695 = vmatpush2.msra.mxu0 0.0
    %1696 = vmatprep.subr.mxu0 0.0
    %1697 = vmatpush2.msra.mxu0 0.0
    %1698 = vmatprep.subr.mxu0 0.0
    %1699 = vmatpush2.msra.mxu0 0.0
    %1700 = vmatprep.subr.mxu0 0.0
    %1701 = vmatpush2.msra.mxu0 0.0
    %1702 = vmatprep.subr.mxu0 0.0
    %1703 = vmatpush2.msra.mxu0 0.0
    %1704 = vmatprep.subr.mxu0 0.0
    %1705 = vmatpush2.msra.mxu0 0.0
    %1706 = vmatprep.subr.mxu0 0.0
    %1707 = vmatpush2.msra.mxu0 0.0
    %1708 = vmatprep.subr.mxu0 0.0
    %1709 = vmatpush2.msra.mxu0 0.0
    %1710 = vmatprep.subr.mxu0 0.0
    %1711 = vmatpush2.msra.mxu0 0.0
    %1712 = vmatprep.mubr.f32.mxu0 0.0
    %1713 = vmatmul.mubr.f32.gmra.mxu0 %v1646
    %v1714 = vpop.f32.mrf.mxu0
    %v1715 = vadd.f32 %v719, %v1714
    %v1716 = vpop.f32.mrf.mxu0
    %1717 = vdwg.mxu0
    %v1719 = vsel %vm308, %v1196, 0
    %1721 = vmatprep.subr.mxu0 0.0
    %1722 = vmatpush1.msra.mxu0 0.0
    %1723 = vmatprep.subr.mxu0 0.0
    %1724 = vmatpush1.msra.mxu0 0.0
    %1725 = vmatprep.subr.mxu0 0.0
    %1726 = vmatpush1.msra.mxu0 0.0
    %1727 = vmatprep.subr.mxu0 0.0
    %1728 = vmatpush1.msra.mxu0 0.0
    %1729 = vmatprep.subr.mxu0 0.0
    %1730 = vmatpush1.msra.mxu0 0.0
    %1731 = vmatprep.subr.mxu0 0.0
    %1732 = vmatpush1.msra.mxu0 0.0
    %1733 = vmatprep.subr.mxu0 0.0
    %1734 = vmatpush1.msra.mxu0 0.0
    %1735 = vmatprep.subr.mxu0 0.0
    %1736 = vmatpush1.msra.mxu0 0.0
    %1737 = vmatprep.subr.mxu0 0.0
    %1738 = vmatpush1.msra.mxu0 0.0
    %1739 = vmatprep.subr.mxu0 0.0
    %1740 = vmatpush1.msra.mxu0 0.0
    %1741 = vmatprep.subr.mxu0 0.0
    %1742 = vmatpush1.msra.mxu0 0.0
    %1743 = vmatprep.subr.mxu0 0.0
    %1744 = vmatpush1.msra.mxu0 0.0
    %1745 = vmatprep.subr.mxu0 0.0
    %1746 = vmatpush1.msra.mxu0 %v206
    %1747 = vmatprep.subr.mxu0 0.0
    %1748 = vmatpush1.msra.mxu0 %v205
    %1749 = vmatprep.subr.mxu0 0.0
    %1750 = vmatpush1.msra.mxu0 %v204
    %1751 = vmatprep.subr.mxu0 0.0
    %1752 = vmatpush1.msra.mxu0 %v203
    %1753 = vmatprep.subr.mxu0 0.0
    %1754 = vmatpush2.msra.mxu0 0.0
    %1755 = vmatprep.subr.mxu0 0.0
    %1756 = vmatpush2.msra.mxu0 0.0
    %1757 = vmatprep.subr.mxu0 0.0
    %1758 = vmatpush2.msra.mxu0 0.0
    %1759 = vmatprep.subr.mxu0 0.0
    %1760 = vmatpush2.msra.mxu0 0.0
    %1761 = vmatprep.subr.mxu0 0.0
    %1762 = vmatpush2.msra.mxu0 0.0
    %1763 = vmatprep.subr.mxu0 0.0
    %1764 = vmatpush2.msra.mxu0 0.0
    %1765 = vmatprep.subr.mxu0 0.0
    %1766 = vmatpush2.msra.mxu0 0.0
    %1767 = vmatprep.subr.mxu0 0.0
    %1768 = vmatpush2.msra.mxu0 0.0
    %1769 = vmatprep.subr.mxu0 0.0
    %1770 = vmatpush2.msra.mxu0 0.0
    %1771 = vmatprep.subr.mxu0 0.0
    %1772 = vmatpush2.msra.mxu0 0.0
    %1773 = vmatprep.subr.mxu0 0.0
    %1774 = vmatpush2.msra.mxu0 0.0
    %1775 = vmatprep.subr.mxu0 0.0
    %1776 = vmatpush2.msra.mxu0 0.0
    %1777 = vmatprep.subr.mxu0 0.0
    %1778 = vmatpush2.msra.mxu0 0.0
    %1779 = vmatprep.subr.mxu0 0.0
    %1780 = vmatpush2.msra.mxu0 0.0
    %1781 = vmatprep.subr.mxu0 0.0
    %1782 = vmatpush2.msra.mxu0 0.0
    %1783 = vmatprep.subr.mxu0 0.0
    %1784 = vmatpush2.msra.mxu0 0.0
    %1785 = vmatprep.mubr.f32.mxu0 0.0
    %1786 = vmatmul.mubr.f32.gmra.mxu0 %v1719
    %v1787 = vpop.f32.mrf.mxu0
    %v1788 = vadd.f32 0.0, %v1787
    %v1789 = vpop.f32.mrf.mxu0
    %1790 = vdwg.mxu0
    %v1791 = vadd.f32 %v1715, %v1788
    %v1792 = vadd.f32 %v1791, %v869
    %v1793 = vxor.u32 %v1792, 2147483648
    %v1794 = vmul.f32 %v1793, 1.442695
    %v1795 = vpow.pop %v1794
    %v1796 = vadd.f32 %v1795, 1.0
    %v1797 = vrcp.pop %v1796
    %v1798 = vmul.f32 1.0, %v1797
    %1799 = vmatprep.subr.mxu0 0.0
    %1800 = vmatpush1.msra.mxu0 0.0
    %1801 = vmatprep.subr.mxu0 0.0
    %1802 = vmatpush1.msra.mxu0 0.0
    %1803 = vmatprep.subr.mxu0 0.0
    %1804 = vmatpush1.msra.mxu0 0.0
    %1805 = vmatprep.subr.mxu0 0.0
    %1806 = vmatpush1.msra.mxu0 0.0
    %1807 = vmatprep.subr.mxu0 0.0
    %1808 = vmatpush1.msra.mxu0 0.0
    %1809 = vmatprep.subr.mxu0 0.0
    %1810 = vmatpush1.msra.mxu0 0.0
    %1811 = vmatprep.subr.mxu0 0.0
    %1812 = vmatpush1.msra.mxu0 0.0
    %1813 = vmatprep.subr.mxu0 0.0
    %1814 = vmatpush1.msra.mxu0 0.0
    %1815 = vmatprep.subr.mxu0 0.0
    %1816 = vmatpush1.msra.mxu0 0.0
    %1817 = vmatprep.subr.mxu0 0.0
    %1818 = vmatpush1.msra.mxu0 0.0
    %1819 = vmatprep.subr.mxu0 0.0
    %1820 = vmatpush1.msra.mxu0 0.0
    %1821 = vmatprep.subr.mxu0 0.0
    %1822 = vmatpush1.msra.mxu0 0.0
    %1823 = vmatprep.subr.mxu0 0.0
    %1824 = vmatpush1.msra.mxu0 %v197
    %1825 = vmatprep.subr.mxu0 0.0
    %1826 = vmatpush1.msra.mxu0 %v196
    %1827 = vmatprep.subr.mxu0 0.0
    %1828 = vmatpush1.msra.mxu0 %v195
    %1829 = vmatprep.subr.mxu0 0.0
    %1830 = vmatpush1.msra.mxu0 %v194
    %1831 = vmatprep.subr.mxu0 0.0
    %1832 = vmatpush2.msra.mxu0 0.0
    %1833 = vmatprep.subr.mxu0 0.0
    %1834 = vmatpush2.msra.mxu0 0.0
    %1835 = vmatprep.subr.mxu0 0.0
    %1836 = vmatpush2.msra.mxu0 0.0
    %1837 = vmatprep.subr.mxu0 0.0
    %1838 = vmatpush2.msra.mxu0 0.0
    %1839 = vmatprep.subr.mxu0 0.0
    %1840 = vmatpush2.msra.mxu0 0.0
    %1841 = vmatprep.subr.mxu0 0.0
    %1842 = vmatpush2.msra.mxu0 0.0
    %1843 = vmatprep.subr.mxu0 0.0
    %1844 = vmatpush2.msra.mxu0 0.0
    %1845 = vmatprep.subr.mxu0 0.0
    %1846 = vmatpush2.msra.mxu0 0.0
    %1847 = vmatprep.subr.mxu0 0.0
    %1848 = vmatpush2.msra.mxu0 0.0
    %1849 = vmatprep.subr.mxu0 0.0
    %1850 = vmatpush2.msra.mxu0 0.0
    %1851 = vmatprep.subr.mxu0 0.0
    %1852 = vmatpush2.msra.mxu0 0.0
    %1853 = vmatprep.subr.mxu0 0.0
    %1854 = vmatpush2.msra.mxu0 0.0
    %1855 = vmatprep.subr.mxu0 0.0
    %1856 = vmatpush2.msra.mxu0 0.0
    %1857 = vmatprep.subr.mxu0 0.0
    %1858 = vmatpush2.msra.mxu0 0.0
    %1859 = vmatprep.subr.mxu0 0.0
    %1860 = vmatpush2.msra.mxu0 0.0
    %1861 = vmatprep.subr.mxu0 0.0
    %1862 = vmatpush2.msra.mxu0 0.0
    %1863 = vmatprep.mubr.f32.mxu0 0.0
    %1864 = vmatmul.mubr.f32.gmra.mxu0 %v1646
    %v1865 = vpop.f32.mrf.mxu0
    %v1866 = vadd.f32 %v882, %v1865
    %v1867 = vpop.f32.mrf.mxu0
    %1868 = vdwg.mxu0
    %1869 = vmatprep.subr.mxu0 0.0
    %1870 = vmatpush1.msra.mxu0 0.0
    %1871 = vmatprep.subr.mxu0 0.0
    %1872 = vmatpush1.msra.mxu0 0.0
    %1873 = vmatprep.subr.mxu0 0.0
    %1874 = vmatpush1.msra.mxu0 0.0
    %1875 = vmatprep.subr.mxu0 0.0
    %1876 = vmatpush1.msra.mxu0 0.0
    %1877 = vmatprep.subr.mxu0 0.0
    %1878 = vmatpush1.msra.mxu0 0.0
    %1879 = vmatprep.subr.mxu0 0.0
    %1880 = vmatpush1.msra.mxu0 0.0
    %1881 = vmatprep.subr.mxu0 0.0
    %1882 = vmatpush1.msra.mxu0 0.0
    %1883 = vmatprep.subr.mxu0 0.0
    %1884 = vmatpush1.msra.mxu0 0.0
    %1885 = vmatprep.subr.mxu0 0.0
    %1886 = vmatpush1.msra.mxu0 0.0
    %1887 = vmatprep.subr.mxu0 0.0
    %1888 = vmatpush1.msra.mxu0 0.0
    %1889 = vmatprep.subr.mxu0 0.0
    %1890 = vmatpush1.msra.mxu0 0.0
    %1891 = vmatprep.subr.mxu0 0.0
    %1892 = vmatpush1.msra.mxu0 0.0
    %1893 = vmatprep.subr.mxu0 0.0
    %1894 = vmatpush1.msra.mxu0 %v211
    %1895 = vmatprep.subr.mxu0 0.0
    %1896 = vmatpush1.msra.mxu0 %v210
    %1897 = vmatprep.subr.mxu0 0.0
    %1898 = vmatpush1.msra.mxu0 %v209
    %1899 = vmatprep.subr.mxu0 0.0
    %1900 = vmatpush1.msra.mxu0 %v208
    %1901 = vmatprep.subr.mxu0 0.0
    %1902 = vmatpush2.msra.mxu0 0.0
    %1903 = vmatprep.subr.mxu0 0.0
    %1904 = vmatpush2.msra.mxu0 0.0
    %1905 = vmatprep.subr.mxu0 0.0
    %1906 = vmatpush2.msra.mxu0 0.0
    %1907 = vmatprep.subr.mxu0 0.0
    %1908 = vmatpush2.msra.mxu0 0.0
    %1909 = vmatprep.subr.mxu0 0.0
    %1910 = vmatpush2.msra.mxu0 0.0
    %1911 = vmatprep.subr.mxu0 0.0
    %1912 = vmatpush2.msra.mxu0 0.0
    %1913 = vmatprep.subr.mxu0 0.0
    %1914 = vmatpush2.msra.mxu0 0.0
    %1915 = vmatprep.subr.mxu0 0.0
    %1916 = vmatpush2.msra.mxu0 0.0
    %1917 = vmatprep.subr.mxu0 0.0
    %1918 = vmatpush2.msra.mxu0 0.0
    %1919 = vmatprep.subr.mxu0 0.0
    %1920 = vmatpush2.msra.mxu0 0.0
    %1921 = vmatprep.subr.mxu0 0.0
    %1922 = vmatpush2.msra.mxu0 0.0
    %1923 = vmatprep.subr.mxu0 0.0
    %1924 = vmatpush2.msra.mxu0 0.0
    %1925 = vmatprep.subr.mxu0 0.0
    %1926 = vmatpush2.msra.mxu0 0.0
    %1927 = vmatprep.subr.mxu0 0.0
    %1928 = vmatpush2.msra.mxu0 0.0
    %1929 = vmatprep.subr.mxu0 0.0
    %1930 = vmatpush2.msra.mxu0 0.0
    %1931 = vmatprep.subr.mxu0 0.0
    %1932 = vmatpush2.msra.mxu0 0.0
    %1933 = vmatprep.mubr.f32.mxu0 0.0
    %1934 = vmatmul.mubr.f32.gmra.mxu0 %v1719
    %v1935 = vpop.f32.mrf.mxu0
    %v1936 = vadd.f32 0.0, %v1935
    %v1937 = vpop.f32.mrf.mxu0
    %1938 = vdwg.mxu0
    %v1939 = vadd.f32 %v1866, %v1936
    %v1940 = vadd.f32 %v1939, %v1029
    %v1941 = vxor.u32 %v1940, 2147483648
    %v1942 = vmul.f32 %v1941, 1.442695
    %v1943 = vpow.pop %v1942
    %v1944 = vadd.f32 %v1943, 1.0
    %v1945 = vrcp.pop %v1944
    %v1946 = vmul.f32 1.0, %v1945
    %1947 = vmatprep.subr.mxu0 0.0
    %1948 = vmatpush1.msra.mxu0 0.0
    %1949 = vmatprep.subr.mxu0 0.0
    %1950 = vmatpush1.msra.mxu0 0.0
    %1951 = vmatprep.subr.mxu0 0.0
    %1952 = vmatpush1.msra.mxu0 0.0
    %1953 = vmatprep.subr.mxu0 0.0
    %1954 = vmatpush1.msra.mxu0 0.0
    %1955 = vmatprep.subr.mxu0 0.0
    %1956 = vmatpush1.msra.mxu0 0.0
    %1957 = vmatprep.subr.mxu0 0.0
    %1958 = vmatpush1.msra.mxu0 0.0
    %1959 = vmatprep.subr.mxu0 0.0
    %1960 = vmatpush1.msra.mxu0 0.0
    %1961 = vmatprep.subr.mxu0 0.0
    %1962 = vmatpush1.msra.mxu0 0.0
    %1963 = vmatprep.subr.mxu0 0.0
    %1964 = vmatpush1.msra.mxu0 0.0
    %1965 = vmatprep.subr.mxu0 0.0
    %1966 = vmatpush1.msra.mxu0 0.0
    %1967 = vmatprep.subr.mxu0 0.0
    %1968 = vmatpush1.msra.mxu0 0.0
    %1969 = vmatprep.subr.mxu0 0.0
    %1970 = vmatpush1.msra.mxu0 0.0
    %1971 = vmatprep.subr.mxu0 0.0
    %1972 = vmatpush1.msra.mxu0 %v202
    %1973 = vmatprep.subr.mxu0 0.0
    %1974 = vmatpush1.msra.mxu0 %v201
    %1975 = vmatprep.subr.mxu0 0.0
    %1976 = vmatpush1.msra.mxu0 %v200
    %1977 = vmatprep.subr.mxu0 0.0
    %1978 = vmatpush1.msra.mxu0 %v199
    %1979 = vmatprep.subr.mxu0 0.0
    %1980 = vmatpush2.msra.mxu0 0.0
    %1981 = vmatprep.subr.mxu0 0.0
    %1982 = vmatpush2.msra.mxu0 0.0
    %1983 = vmatprep.subr.mxu0 0.0
    %1984 = vmatpush2.msra.mxu0 0.0
    %1985 = vmatprep.subr.mxu0 0.0
    %1986 = vmatpush2.msra.mxu0 0.0
    %1987 = vmatprep.subr.mxu0 0.0
    %1988 = vmatpush2.msra.mxu0 0.0
    %1989 = vmatprep.subr.mxu0 0.0
    %1990 = vmatpush2.msra.mxu0 0.0
    %1991 = vmatprep.subr.mxu0 0.0
    %1992 = vmatpush2.msra.mxu0 0.0
    %1993 = vmatprep.subr.mxu0 0.0
    %1994 = vmatpush2.msra.mxu0 0.0
    %1995 = vmatprep.subr.mxu0 0.0
    %1996 = vmatpush2.msra.mxu0 0.0
    %1997 = vmatprep.subr.mxu0 0.0
    %1998 = vmatpush2.msra.mxu0 0.0
    %1999 = vmatprep.subr.mxu0 0.0
    %2000 = vmatpush2.msra.mxu0 0.0
    %2001 = vmatprep.subr.mxu0 0.0
    %2002 = vmatpush2.msra.mxu0 0.0
    %2003 = vmatprep.subr.mxu0 0.0
    %2004 = vmatpush2.msra.mxu0 0.0
    %2005 = vmatprep.subr.mxu0 0.0
    %2006 = vmatpush2.msra.mxu0 0.0
    %2007 = vmatprep.subr.mxu0 0.0
    %2008 = vmatpush2.msra.mxu0 0.0
    %2009 = vmatprep.subr.mxu0 0.0
    %2010 = vmatpush2.msra.mxu0 0.0
    %2011 = vmatprep.mubr.f32.mxu0 0.0
    %2012 = vmatmul.mubr.f32.gmra.mxu0 %v1646
    %v2013 = vpop.f32.mrf.mxu0
    %v2014 = vadd.f32 %v1042, %v2013
    %v2015 = vpop.f32.mrf.mxu0
    %2016 = vdwg.mxu0
    %2017 = vmatprep.subr.mxu0 0.0
    %2018 = vmatpush1.msra.mxu0 0.0
    %2019 = vmatprep.subr.mxu0 0.0
    %2020 = vmatpush1.msra.mxu0 0.0
    %2021 = vmatprep.subr.mxu0 0.0
    %2022 = vmatpush1.msra.mxu0 0.0
    %2023 = vmatprep.subr.mxu0 0.0
    %2024 = vmatpush1.msra.mxu0 0.0
    %2025 = vmatprep.subr.mxu0 0.0
    %2026 = vmatpush1.msra.mxu0 0.0
    %2027 = vmatprep.subr.mxu0 0.0
    %2028 = vmatpush1.msra.mxu0 0.0
    %2029 = vmatprep.subr.mxu0 0.0
    %2030 = vmatpush1.msra.mxu0 0.0
    %2031 = vmatprep.subr.mxu0 0.0
    %2032 = vmatpush1.msra.mxu0 0.0
    %2033 = vmatprep.subr.mxu0 0.0
    %2034 = vmatpush1.msra.mxu0 0.0
    %2035 = vmatprep.subr.mxu0 0.0
    %2036 = vmatpush1.msra.mxu0 0.0
    %2037 = vmatprep.subr.mxu0 0.0
    %2038 = vmatpush1.msra.mxu0 0.0
    %2039 = vmatprep.subr.mxu0 0.0
    %2040 = vmatpush1.msra.mxu0 0.0
    %2041 = vmatprep.subr.mxu0 0.0
    %2042 = vmatpush1.msra.mxu0 %v216
    %2043 = vmatprep.subr.mxu0 0.0
    %2044 = vmatpush1.msra.mxu0 %v215
    %2045 = vmatprep.subr.mxu0 0.0
    %2046 = vmatpush1.msra.mxu0 %v214
    %2047 = vmatprep.subr.mxu0 0.0
    %2048 = vmatpush1.msra.mxu0 %v213
    %2049 = vmatprep.subr.mxu0 0.0
    %2050 = vmatpush2.msra.mxu0 0.0
    %2051 = vmatprep.subr.mxu0 0.0
    %2052 = vmatpush2.msra.mxu0 0.0
    %2053 = vmatprep.subr.mxu0 0.0
    %2054 = vmatpush2.msra.mxu0 0.0
    %2055 = vmatprep.subr.mxu0 0.0
    %2056 = vmatpush2.msra.mxu0 0.0
    %2057 = vmatprep.subr.mxu0 0.0
    %2058 = vmatpush2.msra.mxu0 0.0
    %2059 = vmatprep.subr.mxu0 0.0
    %2060 = vmatpush2.msra.mxu0 0.0
    %2061 = vmatprep.subr.mxu0 0.0
    %2062 = vmatpush2.msra.mxu0 0.0
    %2063 = vmatprep.subr.mxu0 0.0
    %2064 = vmatpush2.msra.mxu0 0.0
    %2065 = vmatprep.subr.mxu0 0.0
    %2066 = vmatpush2.msra.mxu0 0.0
    %2067 = vmatprep.subr.mxu0 0.0
    %2068 = vmatpush2.msra.mxu0 0.0
    %2069 = vmatprep.subr.mxu0 0.0
    %2070 = vmatpush2.msra.mxu0 0.0
    %2071 = vmatprep.subr.mxu0 0.0
    %2072 = vmatpush2.msra.mxu0 0.0
    %2073 = vmatprep.subr.mxu0 0.0
    %2074 = vmatpush2.msra.mxu0 0.0
    %2075 = vmatprep.subr.mxu0 0.0
    %2076 = vmatpush2.msra.mxu0 0.0
    %2077 = vmatprep.subr.mxu0 0.0
    %2078 = vmatpush2.msra.mxu0 0.0
    %2079 = vmatprep.subr.mxu0 0.0
    %2080 = vmatpush2.msra.mxu0 0.0
    %2081 = vmatprep.mubr.f32.mxu0 0.0
    %2082 = vmatmul.mubr.f32.gmra.mxu0 %v1719
    %v2083 = vpop.f32.mrf.mxu0
    %v2084 = vadd.f32 %v1118, %v2083
    %v2085 = vpop.f32.mrf.mxu0
    %2086 = vdwg.mxu0
    %v2087 = vmul.f32 %v1798, %v2084
    %v2088 = vadd.f32 %v2014, %v2087
    %v2089 = vtanh.pop %v2088
    %v2090 = vsub.f32 1.0, %v1946
    %v2091 = vmul.f32 %v2090, %v2089
    %v2092 = vmul.f32 %v1946, %v1196
    %v2093 = vadd.f32 %v2091, %v2092
    %s2094 = scalar_lea.vmem [#allocation2], 16
    %v2095 = vld [vmem:[%s2094] sm:$0xff]
    %v2097 = vsel %vm234, %v2095, 0
    %2099 = vmatprep.subr.mxu0 0.0
    %2100 = vmatpush1.msra.mxu0 0.0
    %2101 = vmatprep.subr.mxu0 0.0
    %2102 = vmatpush1.msra.mxu0 0.0
    %2103 = vmatprep.subr.mxu0 0.0
    %2104 = vmatpush1.msra.mxu0 0.0
    %2105 = vmatprep.subr.mxu0 0.0
    %2106 = vmatpush1.msra.mxu0 0.0
    %2107 = vmatprep.subr.mxu0 0.0
    %2108 = vmatpush1.msra.mxu0 0.0
    %2109 = vmatprep.subr.mxu0 0.0
    %2110 = vmatpush1.msra.mxu0 0.0
    %2111 = vmatprep.subr.mxu0 0.0
    %2112 = vmatpush1.msra.mxu0 0.0
    %2113 = vmatprep.subr.mxu0 0.0
    %2114 = vmatpush1.msra.mxu0 0.0
    %2115 = vmatprep.subr.mxu0 0.0
    %2116 = vmatpush1.msra.mxu0 0.0
    %2117 = vmatprep.subr.mxu0 0.0
    %2118 = vmatpush1.msra.mxu0 0.0
    %2119 = vmatprep.subr.mxu0 0.0
    %2120 = vmatpush1.msra.mxu0 0.0
    %2121 = vmatprep.subr.mxu0 0.0
    %2122 = vmatpush1.msra.mxu0 0.0
    %2123 = vmatprep.subr.mxu0 0.0
    %2124 = vmatpush1.msra.mxu0 0.0
    %2125 = vmatprep.subr.mxu0 0.0
    %2126 = vmatpush1.msra.mxu0 0.0
    %2127 = vmatprep.subr.mxu0 0.0
    %2128 = vmatpush1.msra.mxu0 %v158
    %2129 = vmatprep.subr.mxu0 0.0
    %2130 = vmatpush1.msra.mxu0 %v157
    %2131 = vmatprep.subr.mxu0 0.0
    %2132 = vmatpush2.msra.mxu0 0.0
    %2133 = vmatprep.subr.mxu0 0.0
    %2134 = vmatpush2.msra.mxu0 0.0
    %2135 = vmatprep.subr.mxu0 0.0
    %2136 = vmatpush2.msra.mxu0 0.0
    %2137 = vmatprep.subr.mxu0 0.0
    %2138 = vmatpush2.msra.mxu0 0.0
    %2139 = vmatprep.subr.mxu0 0.0
    %2140 = vmatpush2.msra.mxu0 0.0
    %2141 = vmatprep.subr.mxu0 0.0
    %2142 = vmatpush2.msra.mxu0 0.0
    %2143 = vmatprep.subr.mxu0 0.0
    %2144 = vmatpush2.msra.mxu0 0.0
    %2145 = vmatprep.subr.mxu0 0.0
    %2146 = vmatpush2.msra.mxu0 0.0
    %2147 = vmatprep.subr.mxu0 0.0
    %2148 = vmatpush2.msra.mxu0 0.0
    %2149 = vmatprep.subr.mxu0 0.0
    %2150 = vmatpush2.msra.mxu0 0.0
    %2151 = vmatprep.subr.mxu0 0.0
    %2152 = vmatpush2.msra.mxu0 0.0
    %2153 = vmatprep.subr.mxu0 0.0
    %2154 = vmatpush2.msra.mxu0 0.0
    %2155 = vmatprep.subr.mxu0 0.0
    %2156 = vmatpush2.msra.mxu0 0.0
    %2157 = vmatprep.subr.mxu0 0.0
    %2158 = vmatpush2.msra.mxu0 0.0
    %2159 = vmatprep.subr.mxu0 0.0
    %2160 = vmatpush2.msra.mxu0 0.0
    %2161 = vmatprep.subr.mxu0 0.0
    %2162 = vmatpush2.msra.mxu0 0.0
    %2163 = vmatprep.mubr.f32.mxu0 0.0
    %2164 = vmatmul.mubr.f32.gmra.mxu0 %v2097
    %v2165 = vpop.f32.mrf.mxu0
    %v2166 = vadd.f32 %v232, %v2165
    %v2167 = vpop.f32.mrf.mxu0
    %2168 = vdwg.mxu0
    %2169 = vmatprep.subr.mxu0 0.0
    %2170 = vmatpush1.msra.mxu0 0.0
    %2171 = vmatprep.subr.mxu0 0.0
    %2172 = vmatpush1.msra.mxu0 0.0
    %2173 = vmatprep.subr.mxu0 0.0
    %2174 = vmatpush1.msra.mxu0 0.0
    %2175 = vmatprep.subr.mxu0 0.0
    %2176 = vmatpush1.msra.mxu0 0.0
    %2177 = vmatprep.subr.mxu0 0.0
    %2178 = vmatpush1.msra.mxu0 0.0
    %2179 = vmatprep.subr.mxu0 0.0
    %2180 = vmatpush1.msra.mxu0 0.0
    %2181 = vmatprep.subr.mxu0 0.0
    %2182 = vmatpush1.msra.mxu0 0.0
    %2183 = vmatprep.subr.mxu0 0.0
    %2184 = vmatpush1.msra.mxu0 0.0
    %2185 = vmatprep.subr.mxu0 0.0
    %2186 = vmatpush1.msra.mxu0 0.0
    %2187 = vmatprep.subr.mxu0 0.0
    %2188 = vmatpush1.msra.mxu0 0.0
    %2189 = vmatprep.subr.mxu0 0.0
    %2190 = vmatpush1.msra.mxu0 0.0
    %2191 = vmatprep.subr.mxu0 0.0
    %2192 = vmatpush1.msra.mxu0 0.0
    %2193 = vmatprep.subr.mxu0 0.0
    %2194 = vmatpush1.msra.mxu0 %v168
    %2195 = vmatprep.subr.mxu0 0.0
    %2196 = vmatpush1.msra.mxu0 %v167
    %2197 = vmatprep.subr.mxu0 0.0
    %2198 = vmatpush1.msra.mxu0 %v166
    %2199 = vmatprep.subr.mxu0 0.0
    %2200 = vmatpush1.msra.mxu0 %v165
    %2201 = vmatprep.subr.mxu0 0.0
    %2202 = vmatpush2.msra.mxu0 0.0
    %2203 = vmatprep.subr.mxu0 0.0
    %2204 = vmatpush2.msra.mxu0 0.0
    %2205 = vmatprep.subr.mxu0 0.0
    %2206 = vmatpush2.msra.mxu0 0.0
    %2207 = vmatprep.subr.mxu0 0.0
    %2208 = vmatpush2.msra.mxu0 0.0
    %2209 = vmatprep.subr.mxu0 0.0
    %2210 = vmatpush2.msra.mxu0 0.0
    %2211 = vmatprep.subr.mxu0 0.0
    %2212 = vmatpush2.msra.mxu0 0.0
    %2213 = vmatprep.subr.mxu0 0.0
    %2214 = vmatpush2.msra.mxu0 0.0
    %2215 = vmatprep.subr.mxu0 0.0
    %2216 = vmatpush2.msra.mxu0 0.0
    %2217 = vmatprep.subr.mxu0 0.0
    %2218 = vmatpush2.msra.mxu0 0.0
    %2219 = vmatprep.subr.mxu0 0.0
    %2220 = vmatpush2.msra.mxu0 0.0
    %2221 = vmatprep.subr.mxu0 0.0
    %2222 = vmatpush2.msra.mxu0 0.0
    %2223 = vmatprep.subr.mxu0 0.0
    %2224 = vmatpush2.msra.mxu0 0.0
    %2225 = vmatprep.subr.mxu0 0.0
    %2226 = vmatpush2.msra.mxu0 0.0
    %2227 = vmatprep.subr.mxu0 0.0
    %2228 = vmatpush2.msra.mxu0 0.0
    %2229 = vmatprep.subr.mxu0 0.0
    %2230 = vmatpush2.msra.mxu0 0.0
    %2231 = vmatprep.subr.mxu0 0.0
    %2232 = vmatpush2.msra.mxu0 0.0
    %2233 = vmatprep.mubr.f32.mxu0 0.0
    %2234 = vmatmul.mubr.f32.gmra.mxu0 %v1646
    %v2235 = vpop.f32.mrf.mxu0
    %v2236 = vadd.f32 0.0, %v2235
    %v2237 = vpop.f32.mrf.mxu0
    %2238 = vdwg.mxu0
    %v2239 = vadd.f32 %v2166, %v2236
    %v2240 = vadd.f32 %v2239, %v387
    %v2241 = vxor.u32 %v2240, 2147483648
    %v2242 = vmul.f32 %v2241, 1.442695
    %v2243 = vpow.pop %v2242
    %v2244 = vadd.f32 %v2243, 1.0
    %v2245 = vrcp.pop %v2244
    %v2246 = vmul.f32 1.0, %v2245
    %2247 = vmatprep.subr.mxu0 0.0
    %2248 = vmatpush1.msra.mxu0 0.0
    %2249 = vmatprep.subr.mxu0 0.0
    %2250 = vmatpush1.msra.mxu0 0.0
    %2251 = vmatprep.subr.mxu0 0.0
    %2252 = vmatpush1.msra.mxu0 0.0
    %2253 = vmatprep.subr.mxu0 0.0
    %2254 = vmatpush1.msra.mxu0 0.0
    %2255 = vmatprep.subr.mxu0 0.0
    %2256 = vmatpush1.msra.mxu0 0.0
    %2257 = vmatprep.subr.mxu0 0.0
    %2258 = vmatpush1.msra.mxu0 0.0
    %2259 = vmatprep.subr.mxu0 0.0
    %2260 = vmatpush1.msra.mxu0 0.0
    %2261 = vmatprep.subr.mxu0 0.0
    %2262 = vmatpush1.msra.mxu0 0.0
    %2263 = vmatprep.subr.mxu0 0.0
    %2264 = vmatpush1.msra.mxu0 0.0
    %2265 = vmatprep.subr.mxu0 0.0
    %2266 = vmatpush1.msra.mxu0 0.0
    %2267 = vmatprep.subr.mxu0 0.0
    %2268 = vmatpush1.msra.mxu0 0.0
    %2269 = vmatprep.subr.mxu0 0.0
    %2270 = vmatpush1.msra.mxu0 0.0
    %2271 = vmatprep.subr.mxu0 0.0
    %2272 = vmatpush1.msra.mxu0 0.0
    %2273 = vmatprep.subr.mxu0 0.0
    %2274 = vmatpush1.msra.mxu0 0.0
    %2275 = vmatprep.subr.mxu0 0.0
    %2276 = vmatpush1.msra.mxu0 %v161
    %2277 = vmatprep.subr.mxu0 0.0
    %2278 = vmatpush1.msra.mxu0 %v160
    %2279 = vmatprep.subr.mxu0 0.0
    %2280 = vmatpush2.msra.mxu0 0.0
    %2281 = vmatprep.subr.mxu0 0.0
    %2282 = vmatpush2.msra.mxu0 0.0
    %2283 = vmatprep.subr.mxu0 0.0
    %2284 = vmatpush2.msra.mxu0 0.0
    %2285 = vmatprep.subr.mxu0 0.0
    %2286 = vmatpush2.msra.mxu0 0.0
    %2287 = vmatprep.subr.mxu0 0.0
    %2288 = vmatpush2.msra.mxu0 0.0
    %2289 = vmatprep.subr.mxu0 0.0
    %2290 = vmatpush2.msra.mxu0 0.0
    %2291 = vmatprep.subr.mxu0 0.0
    %2292 = vmatpush2.msra.mxu0 0.0
    %2293 = vmatprep.subr.mxu0 0.0
    %2294 = vmatpush2.msra.mxu0 0.0
    %2295 = vmatprep.subr.mxu0 0.0
    %2296 = vmatpush2.msra.mxu0 0.0
    %2297 = vmatprep.subr.mxu0 0.0
    %2298 = vmatpush2.msra.mxu0 0.0
    %2299 = vmatprep.subr.mxu0 0.0
    %2300 = vmatpush2.msra.mxu0 0.0
    %2301 = vmatprep.subr.mxu0 0.0
    %2302 = vmatpush2.msra.mxu0 0.0
    %2303 = vmatprep.subr.mxu0 0.0
    %2304 = vmatpush2.msra.mxu0 0.0
    %2305 = vmatprep.subr.mxu0 0.0
    %2306 = vmatpush2.msra.mxu0 0.0
    %2307 = vmatprep.subr.mxu0 0.0
    %2308 = vmatpush2.msra.mxu0 0.0
    %2309 = vmatprep.subr.mxu0 0.0
    %2310 = vmatpush2.msra.mxu0 0.0
    %2311 = vmatprep.mubr.f32.mxu0 0.0
    %2312 = vmatmul.mubr.f32.gmra.mxu0 %v2097
    %v2313 = vpop.f32.mrf.mxu0
    %v2314 = vadd.f32 %v400, %v2313
    %v2315 = vpop.f32.mrf.mxu0
    %2316 = vdwg.mxu0
    %2317 = vmatprep.subr.mxu0 0.0
    %2318 = vmatpush1.msra.mxu0 0.0
    %2319 = vmatprep.subr.mxu0 0.0
    %2320 = vmatpush1.msra.mxu0 0.0
    %2321 = vmatprep.subr.mxu0 0.0
    %2322 = vmatpush1.msra.mxu0 0.0
    %2323 = vmatprep.subr.mxu0 0.0
    %2324 = vmatpush1.msra.mxu0 0.0
    %2325 = vmatprep.subr.mxu0 0.0
    %2326 = vmatpush1.msra.mxu0 0.0
    %2327 = vmatprep.subr.mxu0 0.0
    %2328 = vmatpush1.msra.mxu0 0.0
    %2329 = vmatprep.subr.mxu0 0.0
    %2330 = vmatpush1.msra.mxu0 0.0
    %2331 = vmatprep.subr.mxu0 0.0
    %2332 = vmatpush1.msra.mxu0 0.0
    %2333 = vmatprep.subr.mxu0 0.0
    %2334 = vmatpush1.msra.mxu0 0.0
    %2335 = vmatprep.subr.mxu0 0.0
    %2336 = vmatpush1.msra.mxu0 0.0
    %2337 = vmatprep.subr.mxu0 0.0
    %2338 = vmatpush1.msra.mxu0 0.0
    %2339 = vmatprep.subr.mxu0 0.0
    %2340 = vmatpush1.msra.mxu0 0.0
    %2341 = vmatprep.subr.mxu0 0.0
    %2342 = vmatpush1.msra.mxu0 %v173
    %2343 = vmatprep.subr.mxu0 0.0
    %2344 = vmatpush1.msra.mxu0 %v172
    %2345 = vmatprep.subr.mxu0 0.0
    %2346 = vmatpush1.msra.mxu0 %v171
    %2347 = vmatprep.subr.mxu0 0.0
    %2348 = vmatpush1.msra.mxu0 %v170
    %2349 = vmatprep.subr.mxu0 0.0
    %2350 = vmatpush2.msra.mxu0 0.0
    %2351 = vmatprep.subr.mxu0 0.0
    %2352 = vmatpush2.msra.mxu0 0.0
    %2353 = vmatprep.subr.mxu0 0.0
    %2354 = vmatpush2.msra.mxu0 0.0
    %2355 = vmatprep.subr.mxu0 0.0
    %2356 = vmatpush2.msra.mxu0 0.0
    %2357 = vmatprep.subr.mxu0 0.0
    %2358 = vmatpush2.msra.mxu0 0.0
    %2359 = vmatprep.subr.mxu0 0.0
    %2360 = vmatpush2.msra.mxu0 0.0
    %2361 = vmatprep.subr.mxu0 0.0
    %2362 = vmatpush2.msra.mxu0 0.0
    %2363 = vmatprep.subr.mxu0 0.0
    %2364 = vmatpush2.msra.mxu0 0.0
    %2365 = vmatprep.subr.mxu0 0.0
    %2366 = vmatpush2.msra.mxu0 0.0
    %2367 = vmatprep.subr.mxu0 0.0
    %2368 = vmatpush2.msra.mxu0 0.0
    %2369 = vmatprep.subr.mxu0 0.0
    %2370 = vmatpush2.msra.mxu0 0.0
    %2371 = vmatprep.subr.mxu0 0.0
    %2372 = vmatpush2.msra.mxu0 0.0
    %2373 = vmatprep.subr.mxu0 0.0
    %2374 = vmatpush2.msra.mxu0 0.0
    %2375 = vmatprep.subr.mxu0 0.0
    %2376 = vmatpush2.msra.mxu0 0.0
    %2377 = vmatprep.subr.mxu0 0.0
    %2378 = vmatpush2.msra.mxu0 0.0
    %2379 = vmatprep.subr.mxu0 0.0
    %2380 = vmatpush2.msra.mxu0 0.0
    %2381 = vmatprep.mubr.f32.mxu0 0.0
    %2382 = vmatmul.mubr.f32.gmra.mxu0 %v1646
    %v2383 = vpop.f32.mrf.mxu0
    %v2384 = vadd.f32 0.0, %v2383
    %v2385 = vpop.f32.mrf.mxu0
    %2386 = vdwg.mxu0
    %v2387 = vadd.f32 %v2314, %v2384
    %v2388 = vadd.f32 %v2387, %v547
    %v2389 = vxor.u32 %v2388, 2147483648
    %v2390 = vmul.f32 %v2389, 1.442695
    %v2391 = vpow.pop %v2390
    %v2392 = vadd.f32 %v2391, 1.0
    %v2393 = vrcp.pop %v2392
    %v2394 = vmul.f32 1.0, %v2393
    %2395 = vmatprep.subr.mxu0 0.0
    %2396 = vmatpush1.msra.mxu0 0.0
    %2397 = vmatprep.subr.mxu0 0.0
    %2398 = vmatpush1.msra.mxu0 0.0
    %2399 = vmatprep.subr.mxu0 0.0
    %2400 = vmatpush1.msra.mxu0 0.0
    %2401 = vmatprep.subr.mxu0 0.0
    %2402 = vmatpush1.msra.mxu0 0.0
    %2403 = vmatprep.subr.mxu0 0.0
    %2404 = vmatpush1.msra.mxu0 0.0
    %2405 = vmatprep.subr.mxu0 0.0
    %2406 = vmatpush1.msra.mxu0 0.0
    %2407 = vmatprep.subr.mxu0 0.0
    %2408 = vmatpush1.msra.mxu0 0.0
    %2409 = vmatprep.subr.mxu0 0.0
    %2410 = vmatpush1.msra.mxu0 0.0
    %2411 = vmatprep.subr.mxu0 0.0
    %2412 = vmatpush1.msra.mxu0 0.0
    %2413 = vmatprep.subr.mxu0 0.0
    %2414 = vmatpush1.msra.mxu0 0.0
    %2415 = vmatprep.subr.mxu0 0.0
    %2416 = vmatpush1.msra.mxu0 0.0
    %2417 = vmatprep.subr.mxu0 0.0
    %2418 = vmatpush1.msra.mxu0 0.0
    %2419 = vmatprep.subr.mxu0 0.0
    %2420 = vmatpush1.msra.mxu0 0.0
    %2421 = vmatprep.subr.mxu0 0.0
    %2422 = vmatpush1.msra.mxu0 0.0
    %2423 = vmatprep.subr.mxu0 0.0
    %2424 = vmatpush1.msra.mxu0 %v164
    %2425 = vmatprep.subr.mxu0 0.0
    %2426 = vmatpush1.msra.mxu0 %v163
    %2427 = vmatprep.subr.mxu0 0.0
    %2428 = vmatpush2.msra.mxu0 0.0
    %2429 = vmatprep.subr.mxu0 0.0
    %2430 = vmatpush2.msra.mxu0 0.0
    %2431 = vmatprep.subr.mxu0 0.0
    %2432 = vmatpush2.msra.mxu0 0.0
    %2433 = vmatprep.subr.mxu0 0.0
    %2434 = vmatpush2.msra.mxu0 0.0
    %2435 = vmatprep.subr.mxu0 0.0
    %2436 = vmatpush2.msra.mxu0 0.0
    %2437 = vmatprep.subr.mxu0 0.0
    %2438 = vmatpush2.msra.mxu0 0.0
    %2439 = vmatprep.subr.mxu0 0.0
    %2440 = vmatpush2.msra.mxu0 0.0
    %2441 = vmatprep.subr.mxu0 0.0
    %2442 = vmatpush2.msra.mxu0 0.0
    %2443 = vmatprep.subr.mxu0 0.0
    %2444 = vmatpush2.msra.mxu0 0.0
    %2445 = vmatprep.subr.mxu0 0.0
    %2446 = vmatpush2.msra.mxu0 0.0
    %2447 = vmatprep.subr.mxu0 0.0
    %2448 = vmatpush2.msra.mxu0 0.0
    %2449 = vmatprep.subr.mxu0 0.0
    %2450 = vmatpush2.msra.mxu0 0.0
    %2451 = vmatprep.subr.mxu0 0.0
    %2452 = vmatpush2.msra.mxu0 0.0
    %2453 = vmatprep.subr.mxu0 0.0
    %2454 = vmatpush2.msra.mxu0 0.0
    %2455 = vmatprep.subr.mxu0 0.0
    %2456 = vmatpush2.msra.mxu0 0.0
    %2457 = vmatprep.subr.mxu0 0.0
    %2458 = vmatpush2.msra.mxu0 0.0
    %2459 = vmatprep.mubr.f32.mxu0 0.0
    %2460 = vmatmul.mubr.f32.gmra.mxu0 %v2097
    %v2461 = vpop.f32.mrf.mxu0
    %v2462 = vadd.f32 %v560, %v2461
    %v2463 = vpop.f32.mrf.mxu0
    %2464 = vdwg.mxu0
    %2465 = vmatprep.subr.mxu0 0.0
    %2466 = vmatpush1.msra.mxu0 0.0
    %2467 = vmatprep.subr.mxu0 0.0
    %2468 = vmatpush1.msra.mxu0 0.0
    %2469 = vmatprep.subr.mxu0 0.0
    %2470 = vmatpush1.msra.mxu0 0.0
    %2471 = vmatprep.subr.mxu0 0.0
    %2472 = vmatpush1.msra.mxu0 0.0
    %2473 = vmatprep.subr.mxu0 0.0
    %2474 = vmatpush1.msra.mxu0 0.0
    %2475 = vmatprep.subr.mxu0 0.0
    %2476 = vmatpush1.msra.mxu0 0.0
    %2477 = vmatprep.subr.mxu0 0.0
    %2478 = vmatpush1.msra.mxu0 0.0
    %2479 = vmatprep.subr.mxu0 0.0
    %2480 = vmatpush1.msra.mxu0 0.0
    %2481 = vmatprep.subr.mxu0 0.0
    %2482 = vmatpush1.msra.mxu0 0.0
    %2483 = vmatprep.subr.mxu0 0.0
    %2484 = vmatpush1.msra.mxu0 0.0
    %2485 = vmatprep.subr.mxu0 0.0
    %2486 = vmatpush1.msra.mxu0 0.0
    %2487 = vmatprep.subr.mxu0 0.0
    %2488 = vmatpush1.msra.mxu0 0.0
    %2489 = vmatprep.subr.mxu0 0.0
    %2490 = vmatpush1.msra.mxu0 %v178
    %2491 = vmatprep.subr.mxu0 0.0
    %2492 = vmatpush1.msra.mxu0 %v177
    %2493 = vmatprep.subr.mxu0 0.0
    %2494 = vmatpush1.msra.mxu0 %v176
    %2495 = vmatprep.subr.mxu0 0.0
    %2496 = vmatpush1.msra.mxu0 %v175
    %2497 = vmatprep.subr.mxu0 0.0
    %2498 = vmatpush2.msra.mxu0 0.0
    %2499 = vmatprep.subr.mxu0 0.0
    %2500 = vmatpush2.msra.mxu0 0.0
    %2501 = vmatprep.subr.mxu0 0.0
    %2502 = vmatpush2.msra.mxu0 0.0
    %2503 = vmatprep.subr.mxu0 0.0
    %2504 = vmatpush2.msra.mxu0 0.0
    %2505 = vmatprep.subr.mxu0 0.0
    %2506 = vmatpush2.msra.mxu0 0.0
    %2507 = vmatprep.subr.mxu0 0.0
    %2508 = vmatpush2.msra.mxu0 0.0
    %2509 = vmatprep.subr.mxu0 0.0
    %2510 = vmatpush2.msra.mxu0 0.0
    %2511 = vmatprep.subr.mxu0 0.0
    %2512 = vmatpush2.msra.mxu0 0.0
    %2513 = vmatprep.subr.mxu0 0.0
    %2514 = vmatpush2.msra.mxu0 0.0
    %2515 = vmatprep.subr.mxu0 0.0
    %2516 = vmatpush2.msra.mxu0 0.0
    %2517 = vmatprep.subr.mxu0 0.0
    %2518 = vmatpush2.msra.mxu0 0.0
    %2519 = vmatprep.subr.mxu0 0.0
    %2520 = vmatpush2.msra.mxu0 0.0
    %2521 = vmatprep.subr.mxu0 0.0
    %2522 = vmatpush2.msra.mxu0 0.0
    %2523 = vmatprep.subr.mxu0 0.0
    %2524 = vmatpush2.msra.mxu0 0.0
    %2525 = vmatprep.subr.mxu0 0.0
    %2526 = vmatpush2.msra.mxu0 0.0
    %2527 = vmatprep.subr.mxu0 0.0
    %2528 = vmatpush2.msra.mxu0 0.0
    %2529 = vmatprep.mubr.f32.mxu0 0.0
    %2530 = vmatmul.mubr.f32.gmra.mxu0 %v1646
    %v2531 = vpop.f32.mrf.mxu0
    %v2532 = vadd.f32 %v636, %v2531
    %v2533 = vpop.f32.mrf.mxu0
    %2534 = vdwg.mxu0
    %v2535 = vmul.f32 %v2246, %v2532
    %v2536 = vadd.f32 %v2462, %v2535
    %v2537 = vtanh.pop %v2536
    %v2538 = vsub.f32 1.0, %v2394
    %v2539 = vmul.f32 %v2538, %v2537
    %v2540 = vmul.f32 %v2394, %v1644
    %v2541 = vadd.f32 %v2539, %v2540
    %v2543 = vsel %vm308, %v2541, 0
    %2545 = vmatprep.subr.mxu0 0.0
    %2546 = vmatpush1.msra.mxu0 0.0
    %2547 = vmatprep.subr.mxu0 0.0
    %2548 = vmatpush1.msra.mxu0 0.0
    %2549 = vmatprep.subr.mxu0 0.0
    %2550 = vmatpush1.msra.mxu0 0.0
    %2551 = vmatprep.subr.mxu0 0.0
    %2552 = vmatpush1.msra.mxu0 0.0
    %2553 = vmatprep.subr.mxu0 0.0
    %2554 = vmatpush1.msra.mxu0 0.0
    %2555 = vmatprep.subr.mxu0 0.0
    %2556 = vmatpush1.msra.mxu0 0.0
    %2557 = vmatprep.subr.mxu0 0.0
    %2558 = vmatpush1.msra.mxu0 0.0
    %2559 = vmatprep.subr.mxu0 0.0
    %2560 = vmatpush1.msra.mxu0 0.0
    %2561 = vmatprep.subr.mxu0 0.0
    %2562 = vmatpush1.msra.mxu0 0.0
    %2563 = vmatprep.subr.mxu0 0.0
    %2564 = vmatpush1.msra.mxu0 0.0
    %2565 = vmatprep.subr.mxu0 0.0
    %2566 = vmatpush1.msra.mxu0 0.0
    %2567 = vmatprep.subr.mxu0 0.0
    %2568 = vmatpush1.msra.mxu0 0.0
    %2569 = vmatprep.subr.mxu0 0.0
    %2570 = vmatpush1.msra.mxu0 %v192
    %2571 = vmatprep.subr.mxu0 0.0
    %2572 = vmatpush1.msra.mxu0 %v191
    %2573 = vmatprep.subr.mxu0 0.0
    %2574 = vmatpush1.msra.mxu0 %v190
    %2575 = vmatprep.subr.mxu0 0.0
    %2576 = vmatpush1.msra.mxu0 %v189
    %2577 = vmatprep.subr.mxu0 0.0
    %2578 = vmatpush2.msra.mxu0 0.0
    %2579 = vmatprep.subr.mxu0 0.0
    %2580 = vmatpush2.msra.mxu0 0.0
    %2581 = vmatprep.subr.mxu0 0.0
    %2582 = vmatpush2.msra.mxu0 0.0
    %2583 = vmatprep.subr.mxu0 0.0
    %2584 = vmatpush2.msra.mxu0 0.0
    %2585 = vmatprep.subr.mxu0 0.0
    %2586 = vmatpush2.msra.mxu0 0.0
    %2587 = vmatprep.subr.mxu0 0.0
    %2588 = vmatpush2.msra.mxu0 0.0
    %2589 = vmatprep.subr.mxu0 0.0
    %2590 = vmatpush2.msra.mxu0 0.0
    %2591 = vmatprep.subr.mxu0 0.0
    %2592 = vmatpush2.msra.mxu0 0.0
    %2593 = vmatprep.subr.mxu0 0.0
    %2594 = vmatpush2.msra.mxu0 0.0
    %2595 = vmatprep.subr.mxu0 0.0
    %2596 = vmatpush2.msra.mxu0 0.0
    %2597 = vmatprep.subr.mxu0 0.0
    %2598 = vmatpush2.msra.mxu0 0.0
    %2599 = vmatprep.subr.mxu0 0.0
    %2600 = vmatpush2.msra.mxu0 0.0
    %2601 = vmatprep.subr.mxu0 0.0
    %2602 = vmatpush2.msra.mxu0 0.0
    %2603 = vmatprep.subr.mxu0 0.0
    %2604 = vmatpush2.msra.mxu0 0.0
    %2605 = vmatprep.subr.mxu0 0.0
    %2606 = vmatpush2.msra.mxu0 0.0
    %2607 = vmatprep.subr.mxu0 0.0
    %2608 = vmatpush2.msra.mxu0 0.0
    %2609 = vmatprep.mubr.f32.mxu0 0.0
    %2610 = vmatmul.mubr.f32.gmra.mxu0 %v2543
    %v2611 = vpop.f32.mrf.mxu0
    %v2612 = vadd.f32 %v719, %v2611
    %v2613 = vpop.f32.mrf.mxu0
    %2614 = vdwg.mxu0
    %v2616 = vsel %vm308, %v2093, 0
    %2618 = vmatprep.subr.mxu0 0.0
    %2619 = vmatpush1.msra.mxu0 0.0
    %2620 = vmatprep.subr.mxu0 0.0
    %2621 = vmatpush1.msra.mxu0 0.0
    %2622 = vmatprep.subr.mxu0 0.0
    %2623 = vmatpush1.msra.mxu0 0.0
    %2624 = vmatprep.subr.mxu0 0.0
    %2625 = vmatpush1.msra.mxu0 0.0
    %2626 = vmatprep.subr.mxu0 0.0
    %2627 = vmatpush1.msra.mxu0 0.0
    %2628 = vmatprep.subr.mxu0 0.0
    %2629 = vmatpush1.msra.mxu0 0.0
    %2630 = vmatprep.subr.mxu0 0.0
    %2631 = vmatpush1.msra.mxu0 0.0
    %2632 = vmatprep.subr.mxu0 0.0
    %2633 = vmatpush1.msra.mxu0 0.0
    %2634 = vmatprep.subr.mxu0 0.0
    %2635 = vmatpush1.msra.mxu0 0.0
    %2636 = vmatprep.subr.mxu0 0.0
    %2637 = vmatpush1.msra.mxu0 0.0
    %2638 = vmatprep.subr.mxu0 0.0
    %2639 = vmatpush1.msra.mxu0 0.0
    %2640 = vmatprep.subr.mxu0 0.0
    %2641 = vmatpush1.msra.mxu0 0.0
    %2642 = vmatprep.subr.mxu0 0.0
    %2643 = vmatpush1.msra.mxu0 %v206
    %2644 = vmatprep.subr.mxu0 0.0
    %2645 = vmatpush1.msra.mxu0 %v205
    %2646 = vmatprep.subr.mxu0 0.0
    %2647 = vmatpush1.msra.mxu0 %v204
    %2648 = vmatprep.subr.mxu0 0.0
    %2649 = vmatpush1.msra.mxu0 %v203
    %2650 = vmatprep.subr.mxu0 0.0
    %2651 = vmatpush2.msra.mxu0 0.0
    %2652 = vmatprep.subr.mxu0 0.0
    %2653 = vmatpush2.msra.mxu0 0.0
    %2654 = vmatprep.subr.mxu0 0.0
    %2655 = vmatpush2.msra.mxu0 0.0
    %2656 = vmatprep.subr.mxu0 0.0
    %2657 = vmatpush2.msra.mxu0 0.0
    %2658 = vmatprep.subr.mxu0 0.0
    %2659 = vmatpush2.msra.mxu0 0.0
    %2660 = vmatprep.subr.mxu0 0.0
    %2661 = vmatpush2.msra.mxu0 0.0
    %2662 = vmatprep.subr.mxu0 0.0
    %2663 = vmatpush2.msra.mxu0 0.0
    %2664 = vmatprep.subr.mxu0 0.0
    %2665 = vmatpush2.msra.mxu0 0.0
    %2666 = vmatprep.subr.mxu0 0.0
    %2667 = vmatpush2.msra.mxu0 0.0
    %2668 = vmatprep.subr.mxu0 0.0
    %2669 = vmatpush2.msra.mxu0 0.0
    %2670 = vmatprep.subr.mxu0 0.0
    %2671 = vmatpush2.msra.mxu0 0.0
    %2672 = vmatprep.subr.mxu0 0.0
    %2673 = vmatpush2.msra.mxu0 0.0
    %2674 = vmatprep.subr.mxu0 0.0
    %2675 = vmatpush2.msra.mxu0 0.0
    %2676 = vmatprep.subr.mxu0 0.0
    %2677 = vmatpush2.msra.mxu0 0.0
    %2678 = vmatprep.subr.mxu0 0.0
    %2679 = vmatpush2.msra.mxu0 0.0
    %2680 = vmatprep.subr.mxu0 0.0
    %2681 = vmatpush2.msra.mxu0 0.0
    %2682 = vmatprep.mubr.f32.mxu0 0.0
    %2683 = vmatmul.mubr.f32.gmra.mxu0 %v2616
    %v2684 = vpop.f32.mrf.mxu0
    %v2685 = vadd.f32 0.0, %v2684
    %v2686 = vpop.f32.mrf.mxu0
    %2687 = vdwg.mxu0
    %v2688 = vadd.f32 %v2612, %v2685
    %v2689 = vadd.f32 %v2688, %v869
    %v2690 = vxor.u32 %v2689, 2147483648
    %v2691 = vmul.f32 %v2690, 1.442695
    %v2692 = vpow.pop %v2691
    %v2693 = vadd.f32 %v2692, 1.0
    %v2694 = vrcp.pop %v2693
    %v2695 = vmul.f32 1.0, %v2694
    %2696 = vmatprep.subr.mxu0 0.0
    %2697 = vmatpush1.msra.mxu0 0.0
    %2698 = vmatprep.subr.mxu0 0.0
    %2699 = vmatpush1.msra.mxu0 0.0
    %2700 = vmatprep.subr.mxu0 0.0
    %2701 = vmatpush1.msra.mxu0 0.0
    %2702 = vmatprep.subr.mxu0 0.0
    %2703 = vmatpush1.msra.mxu0 0.0
    %2704 = vmatprep.subr.mxu0 0.0
    %2705 = vmatpush1.msra.mxu0 0.0
    %2706 = vmatprep.subr.mxu0 0.0
    %2707 = vmatpush1.msra.mxu0 0.0
    %2708 = vmatprep.subr.mxu0 0.0
    %2709 = vmatpush1.msra.mxu0 0.0
    %2710 = vmatprep.subr.mxu0 0.0
    %2711 = vmatpush1.msra.mxu0 0.0
    %2712 = vmatprep.subr.mxu0 0.0
    %2713 = vmatpush1.msra.mxu0 0.0
    %2714 = vmatprep.subr.mxu0 0.0
    %2715 = vmatpush1.msra.mxu0 0.0
    %2716 = vmatprep.subr.mxu0 0.0
    %2717 = vmatpush1.msra.mxu0 0.0
    %2718 = vmatprep.subr.mxu0 0.0
    %2719 = vmatpush1.msra.mxu0 0.0
    %2720 = vmatprep.subr.mxu0 0.0
    %2721 = vmatpush1.msra.mxu0 %v197
    %2722 = vmatprep.subr.mxu0 0.0
    %2723 = vmatpush1.msra.mxu0 %v196
    %2724 = vmatprep.subr.mxu0 0.0
    %2725 = vmatpush1.msra.mxu0 %v195
    %2726 = vmatprep.subr.mxu0 0.0
    %2727 = vmatpush1.msra.mxu0 %v194
    %2728 = vmatprep.subr.mxu0 0.0
    %2729 = vmatpush2.msra.mxu0 0.0
    %2730 = vmatprep.subr.mxu0 0.0
    %2731 = vmatpush2.msra.mxu0 0.0
    %2732 = vmatprep.subr.mxu0 0.0
    %2733 = vmatpush2.msra.mxu0 0.0
    %2734 = vmatprep.subr.mxu0 0.0
    %2735 = vmatpush2.msra.mxu0 0.0
    %2736 = vmatprep.subr.mxu0 0.0
    %2737 = vmatpush2.msra.mxu0 0.0
    %2738 = vmatprep.subr.mxu0 0.0
    %2739 = vmatpush2.msra.mxu0 0.0
    %2740 = vmatprep.subr.mxu0 0.0
    %2741 = vmatpush2.msra.mxu0 0.0
    %2742 = vmatprep.subr.mxu0 0.0
    %2743 = vmatpush2.msra.mxu0 0.0
    %2744 = vmatprep.subr.mxu0 0.0
    %2745 = vmatpush2.msra.mxu0 0.0
    %2746 = vmatprep.subr.mxu0 0.0
    %2747 = vmatpush2.msra.mxu0 0.0
    %2748 = vmatprep.subr.mxu0 0.0
    %2749 = vmatpush2.msra.mxu0 0.0
    %2750 = vmatprep.subr.mxu0 0.0
    %2751 = vmatpush2.msra.mxu0 0.0
    %2752 = vmatprep.subr.mxu0 0.0
    %2753 = vmatpush2.msra.mxu0 0.0
    %2754 = vmatprep.subr.mxu0 0.0
    %2755 = vmatpush2.msra.mxu0 0.0
    %2756 = vmatprep.subr.mxu0 0.0
    %2757 = vmatpush2.msra.mxu0 0.0
    %2758 = vmatprep.subr.mxu0 0.0
    %2759 = vmatpush2.msra.mxu0 0.0
    %2760 = vmatprep.mubr.f32.mxu0 0.0
    %2761 = vmatmul.mubr.f32.gmra.mxu0 %v2543
    %v2762 = vpop.f32.mrf.mxu0
    %v2763 = vadd.f32 %v882, %v2762
    %v2764 = vpop.f32.mrf.mxu0
    %2765 = vdwg.mxu0
    %2766 = vmatprep.subr.mxu0 0.0
    %2767 = vmatpush1.msra.mxu0 0.0
    %2768 = vmatprep.subr.mxu0 0.0
    %2769 = vmatpush1.msra.mxu0 0.0
    %2770 = vmatprep.subr.mxu0 0.0
    %2771 = vmatpush1.msra.mxu0 0.0
    %2772 = vmatprep.subr.mxu0 0.0
    %2773 = vmatpush1.msra.mxu0 0.0
    %2774 = vmatprep.subr.mxu0 0.0
    %2775 = vmatpush1.msra.mxu0 0.0
    %2776 = vmatprep.subr.mxu0 0.0
    %2777 = vmatpush1.msra.mxu0 0.0
    %2778 = vmatprep.subr.mxu0 0.0
    %2779 = vmatpush1.msra.mxu0 0.0
    %2780 = vmatprep.subr.mxu0 0.0
    %2781 = vmatpush1.msra.mxu0 0.0
    %2782 = vmatprep.subr.mxu0 0.0
    %2783 = vmatpush1.msra.mxu0 0.0
    %2784 = vmatprep.subr.mxu0 0.0
    %2785 = vmatpush1.msra.mxu0 0.0
    %2786 = vmatprep.subr.mxu0 0.0
    %2787 = vmatpush1.msra.mxu0 0.0
    %2788 = vmatprep.subr.mxu0 0.0
    %2789 = vmatpush1.msra.mxu0 0.0
    %2790 = vmatprep.subr.mxu0 0.0
    %2791 = vmatpush1.msra.mxu0 %v211
    %2792 = vmatprep.subr.mxu0 0.0
    %2793 = vmatpush1.msra.mxu0 %v210
    %2794 = vmatprep.subr.mxu0 0.0
    %2795 = vmatpush1.msra.mxu0 %v209
    %2796 = vmatprep.subr.mxu0 0.0
    %2797 = vmatpush1.msra.mxu0 %v208
    %2798 = vmatprep.subr.mxu0 0.0
    %2799 = vmatpush2.msra.mxu0 0.0
    %2800 = vmatprep.subr.mxu0 0.0
    %2801 = vmatpush2.msra.mxu0 0.0
    %2802 = vmatprep.subr.mxu0 0.0
    %2803 = vmatpush2.msra.mxu0 0.0
    %2804 = vmatprep.subr.mxu0 0.0
    %2805 = vmatpush2.msra.mxu0 0.0
    %2806 = vmatprep.subr.mxu0 0.0
    %2807 = vmatpush2.msra.mxu0 0.0
    %2808 = vmatprep.subr.mxu0 0.0
    %2809 = vmatpush2.msra.mxu0 0.0
    %2810 = vmatprep.subr.mxu0 0.0
    %2811 = vmatpush2.msra.mxu0 0.0
    %2812 = vmatprep.subr.mxu0 0.0
    %2813 = vmatpush2.msra.mxu0 0.0
    %2814 = vmatprep.subr.mxu0 0.0
    %2815 = vmatpush2.msra.mxu0 0.0
    %2816 = vmatprep.subr.mxu0 0.0
    %2817 = vmatpush2.msra.mxu0 0.0
    %2818 = vmatprep.subr.mxu0 0.0
    %2819 = vmatpush2.msra.mxu0 0.0
    %2820 = vmatprep.subr.mxu0 0.0
    %2821 = vmatpush2.msra.mxu0 0.0
    %2822 = vmatprep.subr.mxu0 0.0
    %2823 = vmatpush2.msra.mxu0 0.0
    %2824 = vmatprep.subr.mxu0 0.0
    %2825 = vmatpush2.msra.mxu0 0.0
    %2826 = vmatprep.subr.mxu0 0.0
    %2827 = vmatpush2.msra.mxu0 0.0
    %2828 = vmatprep.subr.mxu0 0.0
    %2829 = vmatpush2.msra.mxu0 0.0
    %2830 = vmatprep.mubr.f32.mxu0 0.0
    %2831 = vmatmul.mubr.f32.gmra.mxu0 %v2616
    %v2832 = vpop.f32.mrf.mxu0
    %v2833 = vadd.f32 0.0, %v2832
    %v2834 = vpop.f32.mrf.mxu0
    %2835 = vdwg.mxu0
    %v2836 = vadd.f32 %v2763, %v2833
    %v2837 = vadd.f32 %v2836, %v1029
    %v2838 = vxor.u32 %v2837, 2147483648
    %v2839 = vmul.f32 %v2838, 1.442695
    %v2840 = vpow.pop %v2839
    %v2841 = vadd.f32 %v2840, 1.0
    %v2842 = vrcp.pop %v2841
    %v2843 = vmul.f32 1.0, %v2842
    %2844 = vmatprep.subr.mxu0 0.0
    %2845 = vmatpush1.msra.mxu0 0.0
    %2846 = vmatprep.subr.mxu0 0.0
    %2847 = vmatpush1.msra.mxu0 0.0
    %2848 = vmatprep.subr.mxu0 0.0
    %2849 = vmatpush1.msra.mxu0 0.0
    %2850 = vmatprep.subr.mxu0 0.0
    %2851 = vmatpush1.msra.mxu0 0.0
    %2852 = vmatprep.subr.mxu0 0.0
    %2853 = vmatpush1.msra.mxu0 0.0
    %2854 = vmatprep.subr.mxu0 0.0
    %2855 = vmatpush1.msra.mxu0 0.0
    %2856 = vmatprep.subr.mxu0 0.0
    %2857 = vmatpush1.msra.mxu0 0.0
    %2858 = vmatprep.subr.mxu0 0.0
    %2859 = vmatpush1.msra.mxu0 0.0
    %2860 = vmatprep.subr.mxu0 0.0
    %2861 = vmatpush1.msra.mxu0 0.0
    %2862 = vmatprep.subr.mxu0 0.0
    %2863 = vmatpush1.msra.mxu0 0.0
    %2864 = vmatprep.subr.mxu0 0.0
    %2865 = vmatpush1.msra.mxu0 0.0
    %2866 = vmatprep.subr.mxu0 0.0
    %2867 = vmatpush1.msra.mxu0 0.0
    %2868 = vmatprep.subr.mxu0 0.0
    %2869 = vmatpush1.msra.mxu0 %v202
    %2870 = vmatprep.subr.mxu0 0.0
    %2871 = vmatpush1.msra.mxu0 %v201
    %2872 = vmatprep.subr.mxu0 0.0
    %2873 = vmatpush1.msra.mxu0 %v200
    %2874 = vmatprep.subr.mxu0 0.0
    %2875 = vmatpush1.msra.mxu0 %v199
    %2876 = vmatprep.subr.mxu0 0.0
    %2877 = vmatpush2.msra.mxu0 0.0
    %2878 = vmatprep.subr.mxu0 0.0
    %2879 = vmatpush2.msra.mxu0 0.0
    %2880 = vmatprep.subr.mxu0 0.0
    %2881 = vmatpush2.msra.mxu0 0.0
    %2882 = vmatprep.subr.mxu0 0.0
    %2883 = vmatpush2.msra.mxu0 0.0
    %2884 = vmatprep.subr.mxu0 0.0
    %2885 = vmatpush2.msra.mxu0 0.0
    %2886 = vmatprep.subr.mxu0 0.0
    %2887 = vmatpush2.msra.mxu0 0.0
    %2888 = vmatprep.subr.mxu0 0.0
    %2889 = vmatpush2.msra.mxu0 0.0
    %2890 = vmatprep.subr.mxu0 0.0
    %2891 = vmatpush2.msra.mxu0 0.0
    %2892 = vmatprep.subr.mxu0 0.0
    %2893 = vmatpush2.msra.mxu0 0.0
    %2894 = vmatprep.subr.mxu0 0.0
    %2895 = vmatpush2.msra.mxu0 0.0
    %2896 = vmatprep.subr.mxu0 0.0
    %2897 = vmatpush2.msra.mxu0 0.0
    %2898 = vmatprep.subr.mxu0 0.0
    %2899 = vmatpush2.msra.mxu0 0.0
    %2900 = vmatprep.subr.mxu0 0.0
    %2901 = vmatpush2.msra.mxu0 0.0
    %2902 = vmatprep.subr.mxu0 0.0
    %2903 = vmatpush2.msra.mxu0 0.0
    %2904 = vmatprep.subr.mxu0 0.0
    %2905 = vmatpush2.msra.mxu0 0.0
    %2906 = vmatprep.subr.mxu0 0.0
    %2907 = vmatpush2.msra.mxu0 0.0
    %2908 = vmatprep.mubr.f32.mxu0 0.0
    %2909 = vmatmul.mubr.f32.gmra.mxu0 %v2543
    %v2910 = vpop.f32.mrf.mxu0
    %v2911 = vadd.f32 %v1042, %v2910
    %v2912 = vpop.f32.mrf.mxu0
    %2913 = vdwg.mxu0
    %2914 = vmatprep.subr.mxu0 0.0
    %2915 = vmatpush1.msra.mxu0 0.0
    %2916 = vmatprep.subr.mxu0 0.0
    %2917 = vmatpush1.msra.mxu0 0.0
    %2918 = vmatprep.subr.mxu0 0.0
    %2919 = vmatpush1.msra.mxu0 0.0
    %2920 = vmatprep.subr.mxu0 0.0
    %2921 = vmatpush1.msra.mxu0 0.0
    %2922 = vmatprep.subr.mxu0 0.0
    %2923 = vmatpush1.msra.mxu0 0.0
    %2924 = vmatprep.subr.mxu0 0.0
    %2925 = vmatpush1.msra.mxu0 0.0
    %2926 = vmatprep.subr.mxu0 0.0
    %2927 = vmatpush1.msra.mxu0 0.0
    %2928 = vmatprep.subr.mxu0 0.0
    %2929 = vmatpush1.msra.mxu0 0.0
    %2930 = vmatprep.subr.mxu0 0.0
    %2931 = vmatpush1.msra.mxu0 0.0
    %2932 = vmatprep.subr.mxu0 0.0
    %2933 = vmatpush1.msra.mxu0 0.0
    %2934 = vmatprep.subr.mxu0 0.0
    %2935 = vmatpush1.msra.mxu0 0.0
    %2936 = vmatprep.subr.mxu0 0.0
    %2937 = vmatpush1.msra.mxu0 0.0
    %2938 = vmatprep.subr.mxu0 0.0
    %2939 = vmatpush1.msra.mxu0 %v216
    %2940 = vmatprep.subr.mxu0 0.0
    %2941 = vmatpush1.msra.mxu0 %v215
    %2942 = vmatprep.subr.mxu0 0.0
    %2943 = vmatpush1.msra.mxu0 %v214
    %2944 = vmatprep.subr.mxu0 0.0
    %2945 = vmatpush1.msra.mxu0 %v213
    %2946 = vmatprep.subr.mxu0 0.0
    %2947 = vmatpush2.msra.mxu0 0.0
    %2948 = vmatprep.subr.mxu0 0.0
    %2949 = vmatpush2.msra.mxu0 0.0
    %2950 = vmatprep.subr.mxu0 0.0
    %2951 = vmatpush2.msra.mxu0 0.0
    %2952 = vmatprep.subr.mxu0 0.0
    %2953 = vmatpush2.msra.mxu0 0.0
    %2954 = vmatprep.subr.mxu0 0.0
    %2955 = vmatpush2.msra.mxu0 0.0
    %2956 = vmatprep.subr.mxu0 0.0
    %2957 = vmatpush2.msra.mxu0 0.0
    %2958 = vmatprep.subr.mxu0 0.0
    %2959 = vmatpush2.msra.mxu0 0.0
    %2960 = vmatprep.subr.mxu0 0.0
    %2961 = vmatpush2.msra.mxu0 0.0
    %2962 = vmatprep.subr.mxu0 0.0
    %2963 = vmatpush2.msra.mxu0 0.0
    %2964 = vmatprep.subr.mxu0 0.0
    %2965 = vmatpush2.msra.mxu0 0.0
    %2966 = vmatprep.subr.mxu0 0.0
    %2967 = vmatpush2.msra.mxu0 0.0
    %2968 = vmatprep.subr.mxu0 0.0
    %2969 = vmatpush2.msra.mxu0 0.0
    %2970 = vmatprep.subr.mxu0 0.0
    %2971 = vmatpush2.msra.mxu0 0.0
    %2972 = vmatprep.subr.mxu0 0.0
    %2973 = vmatpush2.msra.mxu0 0.0
    %2974 = vmatprep.subr.mxu0 0.0
    %2975 = vmatpush2.msra.mxu0 0.0
    %2976 = vmatprep.subr.mxu0 0.0
    %2977 = vmatpush2.msra.mxu0 0.0
    %2978 = vmatprep.mubr.f32.mxu0 0.0
    %2979 = vmatmul.mubr.f32.gmra.mxu0 %v2616
    %v2980 = vpop.f32.mrf.mxu0
    %v2981 = vadd.f32 %v1118, %v2980
    %v2982 = vpop.f32.mrf.mxu0
    %2983 = vdwg.mxu0
    %v2984 = vmul.f32 %v2695, %v2981
    %v2985 = vadd.f32 %v2911, %v2984
    %v2986 = vtanh.pop %v2985
    %v2987 = vsub.f32 1.0, %v2843
    %v2988 = vmul.f32 %v2987, %v2986
    %v2989 = vmul.f32 %v2843, %v2093
    %v2990 = vadd.f32 %v2988, %v2989
    %s2991 = scalar_lea.vmem [#allocation2], 24
    %v2992 = vld [vmem:[%s2991] sm:$0xff]
    %v2994 = vsel %vm234, %v2992, 0
    %2996 = vmatprep.subr.mxu0 0.0
    %2997 = vmatpush1.msra.mxu0 0.0
    %2998 = vmatprep.subr.mxu0 0.0
    %2999 = vmatpush1.msra.mxu0 0.0
    %3000 = vmatprep.subr.mxu0 0.0
    %3001 = vmatpush1.msra.mxu0 0.0
    %3002 = vmatprep.subr.mxu0 0.0
    %3003 = vmatpush1.msra.mxu0 0.0
    %3004 = vmatprep.subr.mxu0 0.0
    %3005 = vmatpush1.msra.mxu0 0.0
    %3006 = vmatprep.subr.mxu0 0.0
    %3007 = vmatpush1.msra.mxu0 0.0
    %3008 = vmatprep.subr.mxu0 0.0
    %3009 = vmatpush1.msra.mxu0 0.0
    %3010 = vmatprep.subr.mxu0 0.0
    %3011 = vmatpush1.msra.mxu0 0.0
    %3012 = vmatprep.subr.mxu0 0.0
    %3013 = vmatpush1.msra.mxu0 0.0
    %3014 = vmatprep.subr.mxu0 0.0
    %3015 = vmatpush1.msra.mxu0 0.0
    %3016 = vmatprep.subr.mxu0 0.0
    %3017 = vmatpush1.msra.mxu0 0.0
    %3018 = vmatprep.subr.mxu0 0.0
    %3019 = vmatpush1.msra.mxu0 0.0
    %3020 = vmatprep.subr.mxu0 0.0
    %3021 = vmatpush1.msra.mxu0 0.0
    %3022 = vmatprep.subr.mxu0 0.0
    %3023 = vmatpush1.msra.mxu0 0.0
    %3024 = vmatprep.subr.mxu0 0.0
    %3025 = vmatpush1.msra.mxu0 %v158
    %3026 = vmatprep.subr.mxu0 0.0
    %3027 = vmatpush1.msra.mxu0 %v157
    %3028 = vmatprep.subr.mxu0 0.0
    %3029 = vmatpush2.msra.mxu0 0.0
    %3030 = vmatprep.subr.mxu0 0.0
    %3031 = vmatpush2.msra.mxu0 0.0
    %3032 = vmatprep.subr.mxu0 0.0
    %3033 = vmatpush2.msra.mxu0 0.0
    %3034 = vmatprep.subr.mxu0 0.0
    %3035 = vmatpush2.msra.mxu0 0.0
    %3036 = vmatprep.subr.mxu0 0.0
    %3037 = vmatpush2.msra.mxu0 0.0
    %3038 = vmatprep.subr.mxu0 0.0
    %3039 = vmatpush2.msra.mxu0 0.0
    %3040 = vmatprep.subr.mxu0 0.0
    %3041 = vmatpush2.msra.mxu0 0.0
    %3042 = vmatprep.subr.mxu0 0.0
    %3043 = vmatpush2.msra.mxu0 0.0
    %3044 = vmatprep.subr.mxu0 0.0
    %3045 = vmatpush2.msra.mxu0 0.0
    %3046 = vmatprep.subr.mxu0 0.0
    %3047 = vmatpush2.msra.mxu0 0.0
    %3048 = vmatprep.subr.mxu0 0.0
    %3049 = vmatpush2.msra.mxu0 0.0
    %3050 = vmatprep.subr.mxu0 0.0
    %3051 = vmatpush2.msra.mxu0 0.0
    %3052 = vmatprep.subr.mxu0 0.0
    %3053 = vmatpush2.msra.mxu0 0.0
    %3054 = vmatprep.subr.mxu0 0.0
    %3055 = vmatpush2.msra.mxu0 0.0
    %3056 = vmatprep.subr.mxu0 0.0
    %3057 = vmatpush2.msra.mxu0 0.0
    %3058 = vmatprep.subr.mxu0 0.0
    %3059 = vmatpush2.msra.mxu0 0.0
    %3060 = vmatprep.mubr.f32.mxu0 0.0
    %3061 = vmatmul.mubr.f32.gmra.mxu0 %v2994
    %v3062 = vpop.f32.mrf.mxu0
    %v3063 = vadd.f32 %v232, %v3062
    %v3064 = vpop.f32.mrf.mxu0
    %3065 = vdwg.mxu0
    %3066 = vmatprep.subr.mxu0 0.0
    %3067 = vmatpush1.msra.mxu0 0.0
    %3068 = vmatprep.subr.mxu0 0.0
    %3069 = vmatpush1.msra.mxu0 0.0
    %3070 = vmatprep.subr.mxu0 0.0
    %3071 = vmatpush1.msra.mxu0 0.0
    %3072 = vmatprep.subr.mxu0 0.0
    %3073 = vmatpush1.msra.mxu0 0.0
    %3074 = vmatprep.subr.mxu0 0.0
    %3075 = vmatpush1.msra.mxu0 0.0
    %3076 = vmatprep.subr.mxu0 0.0
    %3077 = vmatpush1.msra.mxu0 0.0
    %3078 = vmatprep.subr.mxu0 0.0
    %3079 = vmatpush1.msra.mxu0 0.0
    %3080 = vmatprep.subr.mxu0 0.0
    %3081 = vmatpush1.msra.mxu0 0.0
    %3082 = vmatprep.subr.mxu0 0.0
    %3083 = vmatpush1.msra.mxu0 0.0
    %3084 = vmatprep.subr.mxu0 0.0
    %3085 = vmatpush1.msra.mxu0 0.0
    %3086 = vmatprep.subr.mxu0 0.0
    %3087 = vmatpush1.msra.mxu0 0.0
    %3088 = vmatprep.subr.mxu0 0.0
    %3089 = vmatpush1.msra.mxu0 0.0
    %3090 = vmatprep.subr.mxu0 0.0
    %3091 = vmatpush1.msra.mxu0 %v168
    %3092 = vmatprep.subr.mxu0 0.0
    %3093 = vmatpush1.msra.mxu0 %v167
    %3094 = vmatprep.subr.mxu0 0.0
    %3095 = vmatpush1.msra.mxu0 %v166
    %3096 = vmatprep.subr.mxu0 0.0
    %3097 = vmatpush1.msra.mxu0 %v165
    %3098 = vmatprep.subr.mxu0 0.0
    %3099 = vmatpush2.msra.mxu0 0.0
    %3100 = vmatprep.subr.mxu0 0.0
    %3101 = vmatpush2.msra.mxu0 0.0
    %3102 = vmatprep.subr.mxu0 0.0
    %3103 = vmatpush2.msra.mxu0 0.0
    %3104 = vmatprep.subr.mxu0 0.0
    %3105 = vmatpush2.msra.mxu0 0.0
    %3106 = vmatprep.subr.mxu0 0.0
    %3107 = vmatpush2.msra.mxu0 0.0
    %3108 = vmatprep.subr.mxu0 0.0
    %3109 = vmatpush2.msra.mxu0 0.0
    %3110 = vmatprep.subr.mxu0 0.0
    %3111 = vmatpush2.msra.mxu0 0.0
    %3112 = vmatprep.subr.mxu0 0.0
    %3113 = vmatpush2.msra.mxu0 0.0
    %3114 = vmatprep.subr.mxu0 0.0
    %3115 = vmatpush2.msra.mxu0 0.0
    %3116 = vmatprep.subr.mxu0 0.0
    %3117 = vmatpush2.msra.mxu0 0.0
    %3118 = vmatprep.subr.mxu0 0.0
    %3119 = vmatpush2.msra.mxu0 0.0
    %3120 = vmatprep.subr.mxu0 0.0
    %3121 = vmatpush2.msra.mxu0 0.0
    %3122 = vmatprep.subr.mxu0 0.0
    %3123 = vmatpush2.msra.mxu0 0.0
    %3124 = vmatprep.subr.mxu0 0.0
    %3125 = vmatpush2.msra.mxu0 0.0
    %3126 = vmatprep.subr.mxu0 0.0
    %3127 = vmatpush2.msra.mxu0 0.0
    %3128 = vmatprep.subr.mxu0 0.0
    %3129 = vmatpush2.msra.mxu0 0.0
    %3130 = vmatprep.mubr.f32.mxu0 0.0
    %3131 = vmatmul.mubr.f32.gmra.mxu0 %v2543
    %v3132 = vpop.f32.mrf.mxu0
    %v3133 = vadd.f32 0.0, %v3132
    %v3134 = vpop.f32.mrf.mxu0
    %3135 = vdwg.mxu0
    %v3136 = vadd.f32 %v3063, %v3133
    %v3137 = vadd.f32 %v3136, %v387
    %v3138 = vxor.u32 %v3137, 2147483648
    %v3139 = vmul.f32 %v3138, 1.442695
    %v3140 = vpow.pop %v3139
    %v3141 = vadd.f32 %v3140, 1.0
    %v3142 = vrcp.pop %v3141
    %v3143 = vmul.f32 1.0, %v3142
    %3144 = vmatprep.subr.mxu0 0.0
    %3145 = vmatpush1.msra.mxu0 0.0
    %3146 = vmatprep.subr.mxu0 0.0
    %3147 = vmatpush1.msra.mxu0 0.0
    %3148 = vmatprep.subr.mxu0 0.0
    %3149 = vmatpush1.msra.mxu0 0.0
    %3150 = vmatprep.subr.mxu0 0.0
    %3151 = vmatpush1.msra.mxu0 0.0
    %3152 = vmatprep.subr.mxu0 0.0
    %3153 = vmatpush1.msra.mxu0 0.0
    %3154 = vmatprep.subr.mxu0 0.0
    %3155 = vmatpush1.msra.mxu0 0.0
    %3156 = vmatprep.subr.mxu0 0.0
    %3157 = vmatpush1.msra.mxu0 0.0
    %3158 = vmatprep.subr.mxu0 0.0
    %3159 = vmatpush1.msra.mxu0 0.0
    %3160 = vmatprep.subr.mxu0 0.0
    %3161 = vmatpush1.msra.mxu0 0.0
    %3162 = vmatprep.subr.mxu0 0.0
    %3163 = vmatpush1.msra.mxu0 0.0
    %3164 = vmatprep.subr.mxu0 0.0
    %3165 = vmatpush1.msra.mxu0 0.0
    %3166 = vmatprep.subr.mxu0 0.0
    %3167 = vmatpush1.msra.mxu0 0.0
    %3168 = vmatprep.subr.mxu0 0.0
    %3169 = vmatpush1.msra.mxu0 0.0
    %3170 = vmatprep.subr.mxu0 0.0
    %3171 = vmatpush1.msra.mxu0 0.0
    %3172 = vmatprep.subr.mxu0 0.0
    %3173 = vmatpush1.msra.mxu0 %v161
    %3174 = vmatprep.subr.mxu0 0.0
    %3175 = vmatpush1.msra.mxu0 %v160
    %3176 = vmatprep.subr.mxu0 0.0
    %3177 = vmatpush2.msra.mxu0 0.0
    %3178 = vmatprep.subr.mxu0 0.0
    %3179 = vmatpush2.msra.mxu0 0.0
    %3180 = vmatprep.subr.mxu0 0.0
    %3181 = vmatpush2.msra.mxu0 0.0
    %3182 = vmatprep.subr.mxu0 0.0
    %3183 = vmatpush2.msra.mxu0 0.0
    %3184 = vmatprep.subr.mxu0 0.0
    %3185 = vmatpush2.msra.mxu0 0.0
    %3186 = vmatprep.subr.mxu0 0.0
    %3187 = vmatpush2.msra.mxu0 0.0
    %3188 = vmatprep.subr.mxu0 0.0
    %3189 = vmatpush2.msra.mxu0 0.0
    %3190 = vmatprep.subr.mxu0 0.0
    %3191 = vmatpush2.msra.mxu0 0.0
    %3192 = vmatprep.subr.mxu0 0.0
    %3193 = vmatpush2.msra.mxu0 0.0
    %3194 = vmatprep.subr.mxu0 0.0
    %3195 = vmatpush2.msra.mxu0 0.0
    %3196 = vmatprep.subr.mxu0 0.0
    %3197 = vmatpush2.msra.mxu0 0.0
    %3198 = vmatprep.subr.mxu0 0.0
    %3199 = vmatpush2.msra.mxu0 0.0
    %3200 = vmatprep.subr.mxu0 0.0
    %3201 = vmatpush2.msra.mxu0 0.0
    %3202 = vmatprep.subr.mxu0 0.0
    %3203 = vmatpush2.msra.mxu0 0.0
    %3204 = vmatprep.subr.mxu0 0.0
    %3205 = vmatpush2.msra.mxu0 0.0
    %3206 = vmatprep.subr.mxu0 0.0
    %3207 = vmatpush2.msra.mxu0 0.0
    %3208 = vmatprep.mubr.f32.mxu0 0.0
    %3209 = vmatmul.mubr.f32.gmra.mxu0 %v2994
    %v3210 = vpop.f32.mrf.mxu0
    %v3211 = vadd.f32 %v400, %v3210
    %v3212 = vpop.f32.mrf.mxu0
    %3213 = vdwg.mxu0
    %3214 = vmatprep.subr.mxu0 0.0
    %3215 = vmatpush1.msra.mxu0 0.0
    %3216 = vmatprep.subr.mxu0 0.0
    %3217 = vmatpush1.msra.mxu0 0.0
    %3218 = vmatprep.subr.mxu0 0.0
    %3219 = vmatpush1.msra.mxu0 0.0
    %3220 = vmatprep.subr.mxu0 0.0
    %3221 = vmatpush1.msra.mxu0 0.0
    %3222 = vmatprep.subr.mxu0 0.0
    %3223 = vmatpush1.msra.mxu0 0.0
    %3224 = vmatprep.subr.mxu0 0.0
    %3225 = vmatpush1.msra.mxu0 0.0
    %3226 = vmatprep.subr.mxu0 0.0
    %3227 = vmatpush1.msra.mxu0 0.0
    %3228 = vmatprep.subr.mxu0 0.0
    %3229 = vmatpush1.msra.mxu0 0.0
    %3230 = vmatprep.subr.mxu0 0.0
    %3231 = vmatpush1.msra.mxu0 0.0
    %3232 = vmatprep.subr.mxu0 0.0
    %3233 = vmatpush1.msra.mxu0 0.0
    %3234 = vmatprep.subr.mxu0 0.0
    %3235 = vmatpush1.msra.mxu0 0.0
    %3236 = vmatprep.subr.mxu0 0.0
    %3237 = vmatpush1.msra.mxu0 0.0
    %3238 = vmatprep.subr.mxu0 0.0
    %3239 = vmatpush1.msra.mxu0 %v173
    %3240 = vmatprep.subr.mxu0 0.0
    %3241 = vmatpush1.msra.mxu0 %v172
    %3242 = vmatprep.subr.mxu0 0.0
    %3243 = vmatpush1.msra.mxu0 %v171
    %3244 = vmatprep.subr.mxu0 0.0
    %3245 = vmatpush1.msra.mxu0 %v170
    %3246 = vmatprep.subr.mxu0 0.0
    %3247 = vmatpush2.msra.mxu0 0.0
    %3248 = vmatprep.subr.mxu0 0.0
    %3249 = vmatpush2.msra.mxu0 0.0
    %3250 = vmatprep.subr.mxu0 0.0
    %3251 = vmatpush2.msra.mxu0 0.0
    %3252 = vmatprep.subr.mxu0 0.0
    %3253 = vmatpush2.msra.mxu0 0.0
    %3254 = vmatprep.subr.mxu0 0.0
    %3255 = vmatpush2.msra.mxu0 0.0
    %3256 = vmatprep.subr.mxu0 0.0
    %3257 = vmatpush2.msra.mxu0 0.0
    %3258 = vmatprep.subr.mxu0 0.0
    %3259 = vmatpush2.msra.mxu0 0.0
    %3260 = vmatprep.subr.mxu0 0.0
    %3261 = vmatpush2.msra.mxu0 0.0
    %3262 = vmatprep.subr.mxu0 0.0
    %3263 = vmatpush2.msra.mxu0 0.0
    %3264 = vmatprep.subr.mxu0 0.0
    %3265 = vmatpush2.msra.mxu0 0.0
    %3266 = vmatprep.subr.mxu0 0.0
    %3267 = vmatpush2.msra.mxu0 0.0
    %3268 = vmatprep.subr.mxu0 0.0
    %3269 = vmatpush2.msra.mxu0 0.0
    %3270 = vmatprep.subr.mxu0 0.0
    %3271 = vmatpush2.msra.mxu0 0.0
    %3272 = vmatprep.subr.mxu0 0.0
    %3273 = vmatpush2.msra.mxu0 0.0
    %3274 = vmatprep.subr.mxu0 0.0
    %3275 = vmatpush2.msra.mxu0 0.0
    %3276 = vmatprep.subr.mxu0 0.0
    %3277 = vmatpush2.msra.mxu0 0.0
    %3278 = vmatprep.mubr.f32.mxu0 0.0
    %3279 = vmatmul.mubr.f32.gmra.mxu0 %v2543
    %v3280 = vpop.f32.mrf.mxu0
    %v3281 = vadd.f32 0.0, %v3280
    %v3282 = vpop.f32.mrf.mxu0
    %3283 = vdwg.mxu0
    %v3284 = vadd.f32 %v3211, %v3281
    %v3285 = vadd.f32 %v3284, %v547
    %v3286 = vxor.u32 %v3285, 2147483648
    %v3287 = vmul.f32 %v3286, 1.442695
    %v3288 = vpow.pop %v3287
    %v3289 = vadd.f32 %v3288, 1.0
    %v3290 = vrcp.pop %v3289
    %v3291 = vmul.f32 1.0, %v3290
    %3292 = vmatprep.subr.mxu0 0.0
    %3293 = vmatpush1.msra.mxu0 0.0
    %3294 = vmatprep.subr.mxu0 0.0
    %3295 = vmatpush1.msra.mxu0 0.0
    %3296 = vmatprep.subr.mxu0 0.0
    %3297 = vmatpush1.msra.mxu0 0.0
    %3298 = vmatprep.subr.mxu0 0.0
    %3299 = vmatpush1.msra.mxu0 0.0
    %3300 = vmatprep.subr.mxu0 0.0
    %3301 = vmatpush1.msra.mxu0 0.0
    %3302 = vmatprep.subr.mxu0 0.0
    %3303 = vmatpush1.msra.mxu0 0.0
    %3304 = vmatprep.subr.mxu0 0.0
    %3305 = vmatpush1.msra.mxu0 0.0
    %3306 = vmatprep.subr.mxu0 0.0
    %3307 = vmatpush1.msra.mxu0 0.0
    %3308 = vmatprep.subr.mxu0 0.0
    %3309 = vmatpush1.msra.mxu0 0.0
    %3310 = vmatprep.subr.mxu0 0.0
    %3311 = vmatpush1.msra.mxu0 0.0
    %3312 = vmatprep.subr.mxu0 0.0
    %3313 = vmatpush1.msra.mxu0 0.0
    %3314 = vmatprep.subr.mxu0 0.0
    %3315 = vmatpush1.msra.mxu0 0.0
    %3316 = vmatprep.subr.mxu0 0.0
    %3317 = vmatpush1.msra.mxu0 0.0
    %3318 = vmatprep.subr.mxu0 0.0
    %3319 = vmatpush1.msra.mxu0 0.0
    %3320 = vmatprep.subr.mxu0 0.0
    %3321 = vmatpush1.msra.mxu0 %v164
    %3322 = vmatprep.subr.mxu0 0.0
    %3323 = vmatpush1.msra.mxu0 %v163
    %3324 = vmatprep.subr.mxu0 0.0
    %3325 = vmatpush2.msra.mxu0 0.0
    %3326 = vmatprep.subr.mxu0 0.0
    %3327 = vmatpush2.msra.mxu0 0.0
    %3328 = vmatprep.subr.mxu0 0.0
    %3329 = vmatpush2.msra.mxu0 0.0
    %3330 = vmatprep.subr.mxu0 0.0
    %3331 = vmatpush2.msra.mxu0 0.0
    %3332 = vmatprep.subr.mxu0 0.0
    %3333 = vmatpush2.msra.mxu0 0.0
    %3334 = vmatprep.subr.mxu0 0.0
    %3335 = vmatpush2.msra.mxu0 0.0
    %3336 = vmatprep.subr.mxu0 0.0
    %3337 = vmatpush2.msra.mxu0 0.0
    %3338 = vmatprep.subr.mxu0 0.0
    %3339 = vmatpush2.msra.mxu0 0.0
    %3340 = vmatprep.subr.mxu0 0.0
    %3341 = vmatpush2.msra.mxu0 0.0
    %3342 = vmatprep.subr.mxu0 0.0
    %3343 = vmatpush2.msra.mxu0 0.0
    %3344 = vmatprep.subr.mxu0 0.0
    %3345 = vmatpush2.msra.mxu0 0.0
    %3346 = vmatprep.subr.mxu0 0.0
    %3347 = vmatpush2.msra.mxu0 0.0
    %3348 = vmatprep.subr.mxu0 0.0
    %3349 = vmatpush2.msra.mxu0 0.0
    %3350 = vmatprep.subr.mxu0 0.0
    %3351 = vmatpush2.msra.mxu0 0.0
    %3352 = vmatprep.subr.mxu0 0.0
    %3353 = vmatpush2.msra.mxu0 0.0
    %3354 = vmatprep.subr.mxu0 0.0
    %3355 = vmatpush2.msra.mxu0 0.0
    %3356 = vmatprep.mubr.f32.mxu0 0.0
    %3357 = vmatmul.mubr.f32.gmra.mxu0 %v2994
    %v3358 = vpop.f32.mrf.mxu0
    %v3359 = vadd.f32 %v560, %v3358
    %v3360 = vpop.f32.mrf.mxu0
    %3361 = vdwg.mxu0
    %3362 = vmatprep.subr.mxu0 0.0
    %3363 = vmatpush1.msra.mxu0 0.0
    %3364 = vmatprep.subr.mxu0 0.0
    %3365 = vmatpush1.msra.mxu0 0.0
    %3366 = vmatprep.subr.mxu0 0.0
    %3367 = vmatpush1.msra.mxu0 0.0
    %3368 = vmatprep.subr.mxu0 0.0
    %3369 = vmatpush1.msra.mxu0 0.0
    %3370 = vmatprep.subr.mxu0 0.0
    %3371 = vmatpush1.msra.mxu0 0.0
    %3372 = vmatprep.subr.mxu0 0.0
    %3373 = vmatpush1.msra.mxu0 0.0
    %3374 = vmatprep.subr.mxu0 0.0
    %3375 = vmatpush1.msra.mxu0 0.0
    %3376 = vmatprep.subr.mxu0 0.0
    %3377 = vmatpush1.msra.mxu0 0.0
    %3378 = vmatprep.subr.mxu0 0.0
    %3379 = vmatpush1.msra.mxu0 0.0
    %3380 = vmatprep.subr.mxu0 0.0
    %3381 = vmatpush1.msra.mxu0 0.0
    %3382 = vmatprep.subr.mxu0 0.0
    %3383 = vmatpush1.msra.mxu0 0.0
    %3384 = vmatprep.subr.mxu0 0.0
    %3385 = vmatpush1.msra.mxu0 0.0
    %3386 = vmatprep.subr.mxu0 0.0
    %3387 = vmatpush1.msra.mxu0 %v178
    %3388 = vmatprep.subr.mxu0 0.0
    %3389 = vmatpush1.msra.mxu0 %v177
    %3390 = vmatprep.subr.mxu0 0.0
    %3391 = vmatpush1.msra.mxu0 %v176
    %3392 = vmatprep.subr.mxu0 0.0
    %3393 = vmatpush1.msra.mxu0 %v175
    %3394 = vmatprep.subr.mxu0 0.0
    %3395 = vmatpush2.msra.mxu0 0.0
    %3396 = vmatprep.subr.mxu0 0.0
    %3397 = vmatpush2.msra.mxu0 0.0
    %3398 = vmatprep.subr.mxu0 0.0
    %3399 = vmatpush2.msra.mxu0 0.0
    %3400 = vmatprep.subr.mxu0 0.0
    %3401 = vmatpush2.msra.mxu0 0.0
    %3402 = vmatprep.subr.mxu0 0.0
    %3403 = vmatpush2.msra.mxu0 0.0
    %3404 = vmatprep.subr.mxu0 0.0
    %3405 = vmatpush2.msra.mxu0 0.0
    %3406 = vmatprep.subr.mxu0 0.0
    %3407 = vmatpush2.msra.mxu0 0.0
    %3408 = vmatprep.subr.mxu0 0.0
    %3409 = vmatpush2.msra.mxu0 0.0
    %3410 = vmatprep.subr.mxu0 0.0
    %3411 = vmatpush2.msra.mxu0 0.0
    %3412 = vmatprep.subr.mxu0 0.0
    %3413 = vmatpush2.msra.mxu0 0.0
    %3414 = vmatprep.subr.mxu0 0.0
    %3415 = vmatpush2.msra.mxu0 0.0
    %3416 = vmatprep.subr.mxu0 0.0
    %3417 = vmatpush2.msra.mxu0 0.0
    %3418 = vmatprep.subr.mxu0 0.0
    %3419 = vmatpush2.msra.mxu0 0.0
    %3420 = vmatprep.subr.mxu0 0.0
    %3421 = vmatpush2.msra.mxu0 0.0
    %3422 = vmatprep.subr.mxu0 0.0
    %3423 = vmatpush2.msra.mxu0 0.0
    %3424 = vmatprep.subr.mxu0 0.0
    %3425 = vmatpush2.msra.mxu0 0.0
    %3426 = vmatprep.mubr.f32.mxu0 0.0
    %3427 = vmatmul.mubr.f32.gmra.mxu0 %v2543
    %v3428 = vpop.f32.mrf.mxu0
    %v3429 = vadd.f32 %v636, %v3428
    %v3430 = vpop.f32.mrf.mxu0
    %3431 = vdwg.mxu0
    %v3432 = vmul.f32 %v3143, %v3429
    %v3433 = vadd.f32 %v3359, %v3432
    %v3434 = vtanh.pop %v3433
    %v3435 = vsub.f32 1.0, %v3291
    %v3436 = vmul.f32 %v3435, %v3434
    %v3437 = vmul.f32 %v3291, %v2541
    %v3438 = vadd.f32 %v3436, %v3437
    %v3440 = vsel %vm308, %v3438, 0
    %3442 = vmatprep.subr.mxu0 0.0
    %3443 = vmatpush1.msra.mxu0 0.0
    %3444 = vmatprep.subr.mxu0 0.0
    %3445 = vmatpush1.msra.mxu0 0.0
    %3446 = vmatprep.subr.mxu0 0.0
    %3447 = vmatpush1.msra.mxu0 0.0
    %3448 = vmatprep.subr.mxu0 0.0
    %3449 = vmatpush1.msra.mxu0 0.0
    %3450 = vmatprep.subr.mxu0 0.0
    %3451 = vmatpush1.msra.mxu0 0.0
    %3452 = vmatprep.subr.mxu0 0.0
    %3453 = vmatpush1.msra.mxu0 0.0
    %3454 = vmatprep.subr.mxu0 0.0
    %3455 = vmatpush1.msra.mxu0 0.0
    %3456 = vmatprep.subr.mxu0 0.0
    %3457 = vmatpush1.msra.mxu0 0.0
    %3458 = vmatprep.subr.mxu0 0.0
    %3459 = vmatpush1.msra.mxu0 0.0
    %3460 = vmatprep.subr.mxu0 0.0
    %3461 = vmatpush1.msra.mxu0 0.0
    %3462 = vmatprep.subr.mxu0 0.0
    %3463 = vmatpush1.msra.mxu0 0.0
    %3464 = vmatprep.subr.mxu0 0.0
    %3465 = vmatpush1.msra.mxu0 0.0
    %3466 = vmatprep.subr.mxu0 0.0
    %3467 = vmatpush1.msra.mxu0 %v192
    %3468 = vmatprep.subr.mxu0 0.0
    %3469 = vmatpush1.msra.mxu0 %v191
    %3470 = vmatprep.subr.mxu0 0.0
    %3471 = vmatpush1.msra.mxu0 %v190
    %3472 = vmatprep.subr.mxu0 0.0
    %3473 = vmatpush1.msra.mxu0 %v189
    %3474 = vmatprep.subr.mxu0 0.0
    %3475 = vmatpush2.msra.mxu0 0.0
    %3476 = vmatprep.subr.mxu0 0.0
    %3477 = vmatpush2.msra.mxu0 0.0
    %3478 = vmatprep.subr.mxu0 0.0
    %3479 = vmatpush2.msra.mxu0 0.0
    %3480 = vmatprep.subr.mxu0 0.0
    %3481 = vmatpush2.msra.mxu0 0.0
    %3482 = vmatprep.subr.mxu0 0.0
    %3483 = vmatpush2.msra.mxu0 0.0
    %3484 = vmatprep.subr.mxu0 0.0
    %3485 = vmatpush2.msra.mxu0 0.0
    %3486 = vmatprep.subr.mxu0 0.0
    %3487 = vmatpush2.msra.mxu0 0.0
    %3488 = vmatprep.subr.mxu0 0.0
    %3489 = vmatpush2.msra.mxu0 0.0
    %3490 = vmatprep.subr.mxu0 0.0
    %3491 = vmatpush2.msra.mxu0 0.0
    %3492 = vmatprep.subr.mxu0 0.0
    %3493 = vmatpush2.msra.mxu0 0.0
    %3494 = vmatprep.subr.mxu0 0.0
    %3495 = vmatpush2.msra.mxu0 0.0
    %3496 = vmatprep.subr.mxu0 0.0
    %3497 = vmatpush2.msra.mxu0 0.0
    %3498 = vmatprep.subr.mxu0 0.0
    %3499 = vmatpush2.msra.mxu0 0.0
    %3500 = vmatprep.subr.mxu0 0.0
    %3501 = vmatpush2.msra.mxu0 0.0
    %3502 = vmatprep.subr.mxu0 0.0
    %3503 = vmatpush2.msra.mxu0 0.0
    %3504 = vmatprep.subr.mxu0 0.0
    %3505 = vmatpush2.msra.mxu0 0.0
    %3506 = vmatprep.mubr.f32.mxu0 0.0
    %3507 = vmatmul.mubr.f32.gmra.mxu0 %v3440
    %v3508 = vpop.f32.mrf.mxu0
    %v3509 = vadd.f32 %v719, %v3508
    %v3510 = vpop.f32.mrf.mxu0
    %3511 = vdwg.mxu0
    %v3513 = vsel %vm308, %v2990, 0
    %3515 = vmatprep.subr.mxu0 0.0
    %3516 = vmatpush1.msra.mxu0 0.0
    %3517 = vmatprep.subr.mxu0 0.0
    %3518 = vmatpush1.msra.mxu0 0.0
    %3519 = vmatprep.subr.mxu0 0.0
    %3520 = vmatpush1.msra.mxu0 0.0
    %3521 = vmatprep.subr.mxu0 0.0
    %3522 = vmatpush1.msra.mxu0 0.0
    %3523 = vmatprep.subr.mxu0 0.0
    %3524 = vmatpush1.msra.mxu0 0.0
    %3525 = vmatprep.subr.mxu0 0.0
    %3526 = vmatpush1.msra.mxu0 0.0
    %3527 = vmatprep.subr.mxu0 0.0
    %3528 = vmatpush1.msra.mxu0 0.0
    %3529 = vmatprep.subr.mxu0 0.0
    %3530 = vmatpush1.msra.mxu0 0.0
    %3531 = vmatprep.subr.mxu0 0.0
    %3532 = vmatpush1.msra.mxu0 0.0
    %3533 = vmatprep.subr.mxu0 0.0
    %3534 = vmatpush1.msra.mxu0 0.0
    %3535 = vmatprep.subr.mxu0 0.0
    %3536 = vmatpush1.msra.mxu0 0.0
    %3537 = vmatprep.subr.mxu0 0.0
    %3538 = vmatpush1.msra.mxu0 0.0
    %3539 = vmatprep.subr.mxu0 0.0
    %3540 = vmatpush1.msra.mxu0 %v206
    %3541 = vmatprep.subr.mxu0 0.0
    %3542 = vmatpush1.msra.mxu0 %v205
    %3543 = vmatprep.subr.mxu0 0.0
    %3544 = vmatpush1.msra.mxu0 %v204
    %3545 = vmatprep.subr.mxu0 0.0
    %3546 = vmatpush1.msra.mxu0 %v203
    %3547 = vmatprep.subr.mxu0 0.0
    %3548 = vmatpush2.msra.mxu0 0.0
    %3549 = vmatprep.subr.mxu0 0.0
    %3550 = vmatpush2.msra.mxu0 0.0
    %3551 = vmatprep.subr.mxu0 0.0
    %3552 = vmatpush2.msra.mxu0 0.0
    %3553 = vmatprep.subr.mxu0 0.0
    %3554 = vmatpush2.msra.mxu0 0.0
    %3555 = vmatprep.subr.mxu0 0.0
    %3556 = vmatpush2.msra.mxu0 0.0
    %3557 = vmatprep.subr.mxu0 0.0
    %3558 = vmatpush2.msra.mxu0 0.0
    %3559 = vmatprep.subr.mxu0 0.0
    %3560 = vmatpush2.msra.mxu0 0.0
    %3561 = vmatprep.subr.mxu0 0.0
    %3562 = vmatpush2.msra.mxu0 0.0
    %3563 = vmatprep.subr.mxu0 0.0
    %3564 = vmatpush2.msra.mxu0 0.0
    %3565 = vmatprep.subr.mxu0 0.0
    %3566 = vmatpush2.msra.mxu0 0.0
    %3567 = vmatprep.subr.mxu0 0.0
    %3568 = vmatpush2.msra.mxu0 0.0
    %3569 = vmatprep.subr.mxu0 0.0
    %3570 = vmatpush2.msra.mxu0 0.0
    %3571 = vmatprep.subr.mxu0 0.0
    %3572 = vmatpush2.msra.mxu0 0.0
    %3573 = vmatprep.subr.mxu0 0.0
    %3574 = vmatpush2.msra.mxu0 0.0
    %3575 = vmatprep.subr.mxu0 0.0
    %3576 = vmatpush2.msra.mxu0 0.0
    %3577 = vmatprep.subr.mxu0 0.0
    %3578 = vmatpush2.msra.mxu0 0.0
    %3579 = vmatprep.mubr.f32.mxu0 0.0
    %3580 = vmatmul.mubr.f32.gmra.mxu0 %v3513
    %v3581 = vpop.f32.mrf.mxu0
    %v3582 = vadd.f32 0.0, %v3581
    %v3583 = vpop.f32.mrf.mxu0
    %3584 = vdwg.mxu0
    %v3585 = vadd.f32 %v3509, %v3582
    %v3586 = vadd.f32 %v3585, %v869
    %v3587 = vxor.u32 %v3586, 2147483648
    %v3588 = vmul.f32 %v3587, 1.442695
    %v3589 = vpow.pop %v3588
    %v3590 = vadd.f32 %v3589, 1.0
    %v3591 = vrcp.pop %v3590
    %v3592 = vmul.f32 1.0, %v3591
    %3593 = vmatprep.subr.mxu0 0.0
    %3594 = vmatpush1.msra.mxu0 0.0
    %3595 = vmatprep.subr.mxu0 0.0
    %3596 = vmatpush1.msra.mxu0 0.0
    %3597 = vmatprep.subr.mxu0 0.0
    %3598 = vmatpush1.msra.mxu0 0.0
    %3599 = vmatprep.subr.mxu0 0.0
    %3600 = vmatpush1.msra.mxu0 0.0
    %3601 = vmatprep.subr.mxu0 0.0
    %3602 = vmatpush1.msra.mxu0 0.0
    %3603 = vmatprep.subr.mxu0 0.0
    %3604 = vmatpush1.msra.mxu0 0.0
    %3605 = vmatprep.subr.mxu0 0.0
    %3606 = vmatpush1.msra.mxu0 0.0
    %3607 = vmatprep.subr.mxu0 0.0
    %3608 = vmatpush1.msra.mxu0 0.0
    %3609 = vmatprep.subr.mxu0 0.0
    %3610 = vmatpush1.msra.mxu0 0.0
    %3611 = vmatprep.subr.mxu0 0.0
    %3612 = vmatpush1.msra.mxu0 0.0
    %3613 = vmatprep.subr.mxu0 0.0
    %3614 = vmatpush1.msra.mxu0 0.0
    %3615 = vmatprep.subr.mxu0 0.0
    %3616 = vmatpush1.msra.mxu0 0.0
    %3617 = vmatprep.subr.mxu0 0.0
    %3618 = vmatpush1.msra.mxu0 %v197
    %3619 = vmatprep.subr.mxu0 0.0
    %3620 = vmatpush1.msra.mxu0 %v196
    %3621 = vmatprep.subr.mxu0 0.0
    %3622 = vmatpush1.msra.mxu0 %v195
    %3623 = vmatprep.subr.mxu0 0.0
    %3624 = vmatpush1.msra.mxu0 %v194
    %3625 = vmatprep.subr.mxu0 0.0
    %3626 = vmatpush2.msra.mxu0 0.0
    %3627 = vmatprep.subr.mxu0 0.0
    %3628 = vmatpush2.msra.mxu0 0.0
    %3629 = vmatprep.subr.mxu0 0.0
    %3630 = vmatpush2.msra.mxu0 0.0
    %3631 = vmatprep.subr.mxu0 0.0
    %3632 = vmatpush2.msra.mxu0 0.0
    %3633 = vmatprep.subr.mxu0 0.0
    %3634 = vmatpush2.msra.mxu0 0.0
    %3635 = vmatprep.subr.mxu0 0.0
    %3636 = vmatpush2.msra.mxu0 0.0
    %3637 = vmatprep.subr.mxu0 0.0
    %3638 = vmatpush2.msra.mxu0 0.0
    %3639 = vmatprep.subr.mxu0 0.0
    %3640 = vmatpush2.msra.mxu0 0.0
    %3641 = vmatprep.subr.mxu0 0.0
    %3642 = vmatpush2.msra.mxu0 0.0
    %3643 = vmatprep.subr.mxu0 0.0
    %3644 = vmatpush2.msra.mxu0 0.0
    %3645 = vmatprep.subr.mxu0 0.0
    %3646 = vmatpush2.msra.mxu0 0.0
    %3647 = vmatprep.subr.mxu0 0.0
    %3648 = vmatpush2.msra.mxu0 0.0
    %3649 = vmatprep.subr.mxu0 0.0
    %3650 = vmatpush2.msra.mxu0 0.0
    %3651 = vmatprep.subr.mxu0 0.0
    %3652 = vmatpush2.msra.mxu0 0.0
    %3653 = vmatprep.subr.mxu0 0.0
    %3654 = vmatpush2.msra.mxu0 0.0
    %3655 = vmatprep.subr.mxu0 0.0
    %3656 = vmatpush2.msra.mxu0 0.0
    %3657 = vmatprep.mubr.f32.mxu0 0.0
    %3658 = vmatmul.mubr.f32.gmra.mxu0 %v3440
    %v3659 = vpop.f32.mrf.mxu0
    %v3660 = vadd.f32 %v882, %v3659
    %v3661 = vpop.f32.mrf.mxu0
    %3662 = vdwg.mxu0
    %3663 = vmatprep.subr.mxu0 0.0
    %3664 = vmatpush1.msra.mxu0 0.0
    %3665 = vmatprep.subr.mxu0 0.0
    %3666 = vmatpush1.msra.mxu0 0.0
    %3667 = vmatprep.subr.mxu0 0.0
    %3668 = vmatpush1.msra.mxu0 0.0
    %3669 = vmatprep.subr.mxu0 0.0
    %3670 = vmatpush1.msra.mxu0 0.0
    %3671 = vmatprep.subr.mxu0 0.0
    %3672 = vmatpush1.msra.mxu0 0.0
    %3673 = vmatprep.subr.mxu0 0.0
    %3674 = vmatpush1.msra.mxu0 0.0
    %3675 = vmatprep.subr.mxu0 0.0
    %3676 = vmatpush1.msra.mxu0 0.0
    %3677 = vmatprep.subr.mxu0 0.0
    %3678 = vmatpush1.msra.mxu0 0.0
    %3679 = vmatprep.subr.mxu0 0.0
    %3680 = vmatpush1.msra.mxu0 0.0
    %3681 = vmatprep.subr.mxu0 0.0
    %3682 = vmatpush1.msra.mxu0 0.0
    %3683 = vmatprep.subr.mxu0 0.0
    %3684 = vmatpush1.msra.mxu0 0.0
    %3685 = vmatprep.subr.mxu0 0.0
    %3686 = vmatpush1.msra.mxu0 0.0
    %3687 = vmatprep.subr.mxu0 0.0
    %3688 = vmatpush1.msra.mxu0 %v211
    %3689 = vmatprep.subr.mxu0 0.0
    %3690 = vmatpush1.msra.mxu0 %v210
    %3691 = vmatprep.subr.mxu0 0.0
    %3692 = vmatpush1.msra.mxu0 %v209
    %3693 = vmatprep.subr.mxu0 0.0
    %3694 = vmatpush1.msra.mxu0 %v208
    %3695 = vmatprep.subr.mxu0 0.0
    %3696 = vmatpush2.msra.mxu0 0.0
    %3697 = vmatprep.subr.mxu0 0.0
    %3698 = vmatpush2.msra.mxu0 0.0
    %3699 = vmatprep.subr.mxu0 0.0
    %3700 = vmatpush2.msra.mxu0 0.0
    %3701 = vmatprep.subr.mxu0 0.0
    %3702 = vmatpush2.msra.mxu0 0.0
    %3703 = vmatprep.subr.mxu0 0.0
    %3704 = vmatpush2.msra.mxu0 0.0
    %3705 = vmatprep.subr.mxu0 0.0
    %3706 = vmatpush2.msra.mxu0 0.0
    %3707 = vmatprep.subr.mxu0 0.0
    %3708 = vmatpush2.msra.mxu0 0.0
    %3709 = vmatprep.subr.mxu0 0.0
    %3710 = vmatpush2.msra.mxu0 0.0
    %3711 = vmatprep.subr.mxu0 0.0
    %3712 = vmatpush2.msra.mxu0 0.0
    %3713 = vmatprep.subr.mxu0 0.0
    %3714 = vmatpush2.msra.mxu0 0.0
    %3715 = vmatprep.subr.mxu0 0.0
    %3716 = vmatpush2.msra.mxu0 0.0
    %3717 = vmatprep.subr.mxu0 0.0
    %3718 = vmatpush2.msra.mxu0 0.0
    %3719 = vmatprep.subr.mxu0 0.0
    %3720 = vmatpush2.msra.mxu0 0.0
    %3721 = vmatprep.subr.mxu0 0.0
    %3722 = vmatpush2.msra.mxu0 0.0
    %3723 = vmatprep.subr.mxu0 0.0
    %3724 = vmatpush2.msra.mxu0 0.0
    %3725 = vmatprep.subr.mxu0 0.0
    %3726 = vmatpush2.msra.mxu0 0.0
    %3727 = vmatprep.mubr.f32.mxu0 0.0
    %3728 = vmatmul.mubr.f32.gmra.mxu0 %v3513
    %v3729 = vpop.f32.mrf.mxu0
    %v3730 = vadd.f32 0.0, %v3729
    %v3731 = vpop.f32.mrf.mxu0
    %3732 = vdwg.mxu0
    %v3733 = vadd.f32 %v3660, %v3730
    %v3734 = vadd.f32 %v3733, %v1029
    %v3735 = vxor.u32 %v3734, 2147483648
    %v3736 = vmul.f32 %v3735, 1.442695
    %v3737 = vpow.pop %v3736
    %v3738 = vadd.f32 %v3737, 1.0
    %v3739 = vrcp.pop %v3738
    %v3740 = vmul.f32 1.0, %v3739
    %3741 = vmatprep.subr.mxu0 0.0
    %3742 = vmatpush1.msra.mxu0 0.0
    %3743 = vmatprep.subr.mxu0 0.0
    %3744 = vmatpush1.msra.mxu0 0.0
    %3745 = vmatprep.subr.mxu0 0.0
    %3746 = vmatpush1.msra.mxu0 0.0
    %3747 = vmatprep.subr.mxu0 0.0
    %3748 = vmatpush1.msra.mxu0 0.0
    %3749 = vmatprep.subr.mxu0 0.0
    %3750 = vmatpush1.msra.mxu0 0.0
    %3751 = vmatprep.subr.mxu0 0.0
    %3752 = vmatpush1.msra.mxu0 0.0
    %3753 = vmatprep.subr.mxu0 0.0
    %3754 = vmatpush1.msra.mxu0 0.0
    %3755 = vmatprep.subr.mxu0 0.0
    %3756 = vmatpush1.msra.mxu0 0.0
    %3757 = vmatprep.subr.mxu0 0.0
    %3758 = vmatpush1.msra.mxu0 0.0
    %3759 = vmatprep.subr.mxu0 0.0
    %3760 = vmatpush1.msra.mxu0 0.0
    %3761 = vmatprep.subr.mxu0 0.0
    %3762 = vmatpush1.msra.mxu0 0.0
    %3763 = vmatprep.subr.mxu0 0.0
    %3764 = vmatpush1.msra.mxu0 0.0
    %3765 = vmatprep.subr.mxu0 0.0
    %3766 = vmatpush1.msra.mxu0 %v202
    %3767 = vmatprep.subr.mxu0 0.0
    %3768 = vmatpush1.msra.mxu0 %v201
    %3769 = vmatprep.subr.mxu0 0.0
    %3770 = vmatpush1.msra.mxu0 %v200
    %3771 = vmatprep.subr.mxu0 0.0
    %3772 = vmatpush1.msra.mxu0 %v199
    %3773 = vmatprep.subr.mxu0 0.0
    %3774 = vmatpush2.msra.mxu0 0.0
    %3775 = vmatprep.subr.mxu0 0.0
    %3776 = vmatpush2.msra.mxu0 0.0
    %3777 = vmatprep.subr.mxu0 0.0
    %3778 = vmatpush2.msra.mxu0 0.0
    %3779 = vmatprep.subr.mxu0 0.0
    %3780 = vmatpush2.msra.mxu0 0.0
    %3781 = vmatprep.subr.mxu0 0.0
    %3782 = vmatpush2.msra.mxu0 0.0
    %3783 = vmatprep.subr.mxu0 0.0
    %3784 = vmatpush2.msra.mxu0 0.0
    %3785 = vmatprep.subr.mxu0 0.0
    %3786 = vmatpush2.msra.mxu0 0.0
    %3787 = vmatprep.subr.mxu0 0.0
    %3788 = vmatpush2.msra.mxu0 0.0
    %3789 = vmatprep.subr.mxu0 0.0
    %3790 = vmatpush2.msra.mxu0 0.0
    %3791 = vmatprep.subr.mxu0 0.0
    %3792 = vmatpush2.msra.mxu0 0.0
    %3793 = vmatprep.subr.mxu0 0.0
    %3794 = vmatpush2.msra.mxu0 0.0
    %3795 = vmatprep.subr.mxu0 0.0
    %3796 = vmatpush2.msra.mxu0 0.0
    %3797 = vmatprep.subr.mxu0 0.0
    %3798 = vmatpush2.msra.mxu0 0.0
    %3799 = vmatprep.subr.mxu0 0.0
    %3800 = vmatpush2.msra.mxu0 0.0
    %3801 = vmatprep.subr.mxu0 0.0
    %3802 = vmatpush2.msra.mxu0 0.0
    %3803 = vmatprep.subr.mxu0 0.0
    %3804 = vmatpush2.msra.mxu0 0.0
    %3805 = vmatprep.mubr.f32.mxu0 0.0
    %3806 = vmatmul.mubr.f32.gmra.mxu0 %v3440
    %v3807 = vpop.f32.mrf.mxu0
    %v3808 = vadd.f32 %v1042, %v3807
    %v3809 = vpop.f32.mrf.mxu0
    %3810 = vdwg.mxu0
    %3811 = vmatprep.subr.mxu0 0.0
    %3812 = vmatpush1.msra.mxu0 0.0
    %3813 = vmatprep.subr.mxu0 0.0
    %3814 = vmatpush1.msra.mxu0 0.0
    %3815 = vmatprep.subr.mxu0 0.0
    %3816 = vmatpush1.msra.mxu0 0.0
    %3817 = vmatprep.subr.mxu0 0.0
    %3818 = vmatpush1.msra.mxu0 0.0
    %3819 = vmatprep.subr.mxu0 0.0
    %3820 = vmatpush1.msra.mxu0 0.0
    %3821 = vmatprep.subr.mxu0 0.0
    %3822 = vmatpush1.msra.mxu0 0.0
    %3823 = vmatprep.subr.mxu0 0.0
    %3824 = vmatpush1.msra.mxu0 0.0
    %3825 = vmatprep.subr.mxu0 0.0
    %3826 = vmatpush1.msra.mxu0 0.0
    %3827 = vmatprep.subr.mxu0 0.0
    %3828 = vmatpush1.msra.mxu0 0.0
    %3829 = vmatprep.subr.mxu0 0.0
    %3830 = vmatpush1.msra.mxu0 0.0
    %3831 = vmatprep.subr.mxu0 0.0
    %3832 = vmatpush1.msra.mxu0 0.0
    %3833 = vmatprep.subr.mxu0 0.0
    %3834 = vmatpush1.msra.mxu0 0.0
    %3835 = vmatprep.subr.mxu0 0.0
    %3836 = vmatpush1.msra.mxu0 %v216
    %3837 = vmatprep.subr.mxu0 0.0
    %3838 = vmatpush1.msra.mxu0 %v215
    %3839 = vmatprep.subr.mxu0 0.0
    %3840 = vmatpush1.msra.mxu0 %v214
    %3841 = vmatprep.subr.mxu0 0.0
    %3842 = vmatpush1.msra.mxu0 %v213
    %3843 = vmatprep.subr.mxu0 0.0
    %3844 = vmatpush2.msra.mxu0 0.0
    %3845 = vmatprep.subr.mxu0 0.0
    %3846 = vmatpush2.msra.mxu0 0.0
    %3847 = vmatprep.subr.mxu0 0.0
    %3848 = vmatpush2.msra.mxu0 0.0
    %3849 = vmatprep.subr.mxu0 0.0
    %3850 = vmatpush2.msra.mxu0 0.0
    %3851 = vmatprep.subr.mxu0 0.0
    %3852 = vmatpush2.msra.mxu0 0.0
    %3853 = vmatprep.subr.mxu0 0.0
    %3854 = vmatpush2.msra.mxu0 0.0
    %3855 = vmatprep.subr.mxu0 0.0
    %3856 = vmatpush2.msra.mxu0 0.0
    %3857 = vmatprep.subr.mxu0 0.0
    %3858 = vmatpush2.msra.mxu0 0.0
    %3859 = vmatprep.subr.mxu0 0.0
    %3860 = vmatpush2.msra.mxu0 0.0
    %3861 = vmatprep.subr.mxu0 0.0
    %3862 = vmatpush2.msra.mxu0 0.0
    %3863 = vmatprep.subr.mxu0 0.0
    %3864 = vmatpush2.msra.mxu0 0.0
    %3865 = vmatprep.subr.mxu0 0.0
    %3866 = vmatpush2.msra.mxu0 0.0
    %3867 = vmatprep.subr.mxu0 0.0
    %3868 = vmatpush2.msra.mxu0 0.0
    %3869 = vmatprep.subr.mxu0 0.0
    %3870 = vmatpush2.msra.mxu0 0.0
    %3871 = vmatprep.subr.mxu0 0.0
    %3872 = vmatpush2.msra.mxu0 0.0
    %3873 = vmatprep.subr.mxu0 0.0
    %3874 = vmatpush2.msra.mxu0 0.0
    %3875 = vmatprep.mubr.f32.mxu0 0.0
    %3876 = vmatmul.mubr.f32.gmra.mxu0 %v3513
    %v3877 = vpop.f32.mrf.mxu0
    %v3878 = vadd.f32 %v1118, %v3877
    %v3879 = vpop.f32.mrf.mxu0
    %3880 = vdwg.mxu0
    %v3881 = vmul.f32 %v3592, %v3878
    %v3882 = vadd.f32 %v3808, %v3881
    %v3883 = vtanh.pop %v3882
    %v3884 = vsub.f32 1.0, %v3740
    %v3885 = vmul.f32 %v3884, %v3883
    %v3886 = vmul.f32 %v3740, %v2990
    %v3887 = vadd.f32 %v3885, %v3886
    %s3888 = scalar_lea.vmem [#allocation2], 32
    %v3889 = vld [vmem:[%s3888] sm:$0xff]
    %v3891 = vsel %vm234, %v3889, 0
    %3893 = vmatprep.subr.mxu0 0.0
    %3894 = vmatpush1.msra.mxu0 0.0
    %3895 = vmatprep.subr.mxu0 0.0
    %3896 = vmatpush1.msra.mxu0 0.0
    %3897 = vmatprep.subr.mxu0 0.0
    %3898 = vmatpush1.msra.mxu0 0.0
    %3899 = vmatprep.subr.mxu0 0.0
    %3900 = vmatpush1.msra.mxu0 0.0
    %3901 = vmatprep.subr.mxu0 0.0
    %3902 = vmatpush1.msra.mxu0 0.0
    %3903 = vmatprep.subr.mxu0 0.0
    %3904 = vmatpush1.msra.mxu0 0.0
    %3905 = vmatprep.subr.mxu0 0.0
    %3906 = vmatpush1.msra.mxu0 0.0
    %3907 = vmatprep.subr.mxu0 0.0
    %3908 = vmatpush1.msra.mxu0 0.0
    %3909 = vmatprep.subr.mxu0 0.0
    %3910 = vmatpush1.msra.mxu0 0.0
    %3911 = vmatprep.subr.mxu0 0.0
    %3912 = vmatpush1.msra.mxu0 0.0
    %3913 = vmatprep.subr.mxu0 0.0
    %3914 = vmatpush1.msra.mxu0 0.0
    %3915 = vmatprep.subr.mxu0 0.0
    %3916 = vmatpush1.msra.mxu0 0.0
    %3917 = vmatprep.subr.mxu0 0.0
    %3918 = vmatpush1.msra.mxu0 0.0
    %3919 = vmatprep.subr.mxu0 0.0
    %3920 = vmatpush1.msra.mxu0 0.0
    %3921 = vmatprep.subr.mxu0 0.0
    %3922 = vmatpush1.msra.mxu0 %v158
    %3923 = vmatprep.subr.mxu0 0.0
    %3924 = vmatpush1.msra.mxu0 %v157
    %3925 = vmatprep.subr.mxu0 0.0
    %3926 = vmatpush2.msra.mxu0 0.0
    %3927 = vmatprep.subr.mxu0 0.0
    %3928 = vmatpush2.msra.mxu0 0.0
    %3929 = vmatprep.subr.mxu0 0.0
    %3930 = vmatpush2.msra.mxu0 0.0
    %3931 = vmatprep.subr.mxu0 0.0
    %3932 = vmatpush2.msra.mxu0 0.0
    %3933 = vmatprep.subr.mxu0 0.0
    %3934 = vmatpush2.msra.mxu0 0.0
    %3935 = vmatprep.subr.mxu0 0.0
    %3936 = vmatpush2.msra.mxu0 0.0
    %3937 = vmatprep.subr.mxu0 0.0
    %3938 = vmatpush2.msra.mxu0 0.0
    %3939 = vmatprep.subr.mxu0 0.0
    %3940 = vmatpush2.msra.mxu0 0.0
    %3941 = vmatprep.subr.mxu0 0.0
    %3942 = vmatpush2.msra.mxu0 0.0
    %3943 = vmatprep.subr.mxu0 0.0
    %3944 = vmatpush2.msra.mxu0 0.0
    %3945 = vmatprep.subr.mxu0 0.0
    %3946 = vmatpush2.msra.mxu0 0.0
    %3947 = vmatprep.subr.mxu0 0.0
    %3948 = vmatpush2.msra.mxu0 0.0
    %3949 = vmatprep.subr.mxu0 0.0
    %3950 = vmatpush2.msra.mxu0 0.0
    %3951 = vmatprep.subr.mxu0 0.0
    %3952 = vmatpush2.msra.mxu0 0.0
    %3953 = vmatprep.subr.mxu0 0.0
    %3954 = vmatpush2.msra.mxu0 0.0
    %3955 = vmatprep.subr.mxu0 0.0
    %3956 = vmatpush2.msra.mxu0 0.0
    %3957 = vmatprep.mubr.f32.mxu0 0.0
    %3958 = vmatmul.mubr.f32.gmra.mxu0 %v3891
    %v3959 = vpop.f32.mrf.mxu0
    %v3960 = vadd.f32 %v232, %v3959
    %v3961 = vpop.f32.mrf.mxu0
    %3962 = vdwg.mxu0
    %3963 = vmatprep.subr.mxu0 0.0
    %3964 = vmatpush1.msra.mxu0 0.0
    %3965 = vmatprep.subr.mxu0 0.0
    %3966 = vmatpush1.msra.mxu0 0.0
    %3967 = vmatprep.subr.mxu0 0.0
    %3968 = vmatpush1.msra.mxu0 0.0
    %3969 = vmatprep.subr.mxu0 0.0
    %3970 = vmatpush1.msra.mxu0 0.0
    %3971 = vmatprep.subr.mxu0 0.0
    %3972 = vmatpush1.msra.mxu0 0.0
    %3973 = vmatprep.subr.mxu0 0.0
    %3974 = vmatpush1.msra.mxu0 0.0
    %3975 = vmatprep.subr.mxu0 0.0
    %3976 = vmatpush1.msra.mxu0 0.0
    %3977 = vmatprep.subr.mxu0 0.0
    %3978 = vmatpush1.msra.mxu0 0.0
    %3979 = vmatprep.subr.mxu0 0.0
    %3980 = vmatpush1.msra.mxu0 0.0
    %3981 = vmatprep.subr.mxu0 0.0
    %3982 = vmatpush1.msra.mxu0 0.0
    %3983 = vmatprep.subr.mxu0 0.0
    %3984 = vmatpush1.msra.mxu0 0.0
    %3985 = vmatprep.subr.mxu0 0.0
    %3986 = vmatpush1.msra.mxu0 0.0
    %3987 = vmatprep.subr.mxu0 0.0
    %3988 = vmatpush1.msra.mxu0 %v168
    %3989 = vmatprep.subr.mxu0 0.0
    %3990 = vmatpush1.msra.mxu0 %v167
    %3991 = vmatprep.subr.mxu0 0.0
    %3992 = vmatpush1.msra.mxu0 %v166
    %3993 = vmatprep.subr.mxu0 0.0
    %3994 = vmatpush1.msra.mxu0 %v165
    %3995 = vmatprep.subr.mxu0 0.0
    %3996 = vmatpush2.msra.mxu0 0.0
    %3997 = vmatprep.subr.mxu0 0.0
    %3998 = vmatpush2.msra.mxu0 0.0
    %3999 = vmatprep.subr.mxu0 0.0
    %4000 = vmatpush2.msra.mxu0 0.0
    %4001 = vmatprep.subr.mxu0 0.0
    %4002 = vmatpush2.msra.mxu0 0.0
    %4003 = vmatprep.subr.mxu0 0.0
    %4004 = vmatpush2.msra.mxu0 0.0
    %4005 = vmatprep.subr.mxu0 0.0
    %4006 = vmatpush2.msra.mxu0 0.0
    %4007 = vmatprep.subr.mxu0 0.0
    %4008 = vmatpush2.msra.mxu0 0.0
    %4009 = vmatprep.subr.mxu0 0.0
    %4010 = vmatpush2.msra.mxu0 0.0
    %4011 = vmatprep.subr.mxu0 0.0
    %4012 = vmatpush2.msra.mxu0 0.0
    %4013 = vmatprep.subr.mxu0 0.0
    %4014 = vmatpush2.msra.mxu0 0.0
    %4015 = vmatprep.subr.mxu0 0.0
    %4016 = vmatpush2.msra.mxu0 0.0
    %4017 = vmatprep.subr.mxu0 0.0
    %4018 = vmatpush2.msra.mxu0 0.0
    %4019 = vmatprep.subr.mxu0 0.0
    %4020 = vmatpush2.msra.mxu0 0.0
    %4021 = vmatprep.subr.mxu0 0.0
    %4022 = vmatpush2.msra.mxu0 0.0
    %4023 = vmatprep.subr.mxu0 0.0
    %4024 = vmatpush2.msra.mxu0 0.0
    %4025 = vmatprep.subr.mxu0 0.0
    %4026 = vmatpush2.msra.mxu0 0.0
    %4027 = vmatprep.mubr.f32.mxu0 0.0
    %4028 = vmatmul.mubr.f32.gmra.mxu0 %v3440
    %v4029 = vpop.f32.mrf.mxu0
    %v4030 = vadd.f32 0.0, %v4029
    %v4031 = vpop.f32.mrf.mxu0
    %4032 = vdwg.mxu0
    %v4033 = vadd.f32 %v3960, %v4030
    %v4034 = vadd.f32 %v4033, %v387
    %v4035 = vxor.u32 %v4034, 2147483648
    %v4036 = vmul.f32 %v4035, 1.442695
    %v4037 = vpow.pop %v4036
    %v4038 = vadd.f32 %v4037, 1.0
    %v4039 = vrcp.pop %v4038
    %v4040 = vmul.f32 1.0, %v4039
    %4041 = vmatprep.subr.mxu0 0.0
    %4042 = vmatpush1.msra.mxu0 0.0
    %4043 = vmatprep.subr.mxu0 0.0
    %4044 = vmatpush1.msra.mxu0 0.0
    %4045 = vmatprep.subr.mxu0 0.0
    %4046 = vmatpush1.msra.mxu0 0.0
    %4047 = vmatprep.subr.mxu0 0.0
    %4048 = vmatpush1.msra.mxu0 0.0
    %4049 = vmatprep.subr.mxu0 0.0
    %4050 = vmatpush1.msra.mxu0 0.0
    %4051 = vmatprep.subr.mxu0 0.0
    %4052 = vmatpush1.msra.mxu0 0.0
    %4053 = vmatprep.subr.mxu0 0.0
    %4054 = vmatpush1.msra.mxu0 0.0
    %4055 = vmatprep.subr.mxu0 0.0
    %4056 = vmatpush1.msra.mxu0 0.0
    %4057 = vmatprep.subr.mxu0 0.0
    %4058 = vmatpush1.msra.mxu0 0.0
    %4059 = vmatprep.subr.mxu0 0.0
    %4060 = vmatpush1.msra.mxu0 0.0
    %4061 = vmatprep.subr.mxu0 0.0
    %4062 = vmatpush1.msra.mxu0 0.0
    %4063 = vmatprep.subr.mxu0 0.0
    %4064 = vmatpush1.msra.mxu0 0.0
    %4065 = vmatprep.subr.mxu0 0.0
    %4066 = vmatpush1.msra.mxu0 0.0
    %4067 = vmatprep.subr.mxu0 0.0
    %4068 = vmatpush1.msra.mxu0 0.0
    %4069 = vmatprep.subr.mxu0 0.0
    %4070 = vmatpush1.msra.mxu0 %v161
    %4071 = vmatprep.subr.mxu0 0.0
    %4072 = vmatpush1.msra.mxu0 %v160
    %4073 = vmatprep.subr.mxu0 0.0
    %4074 = vmatpush2.msra.mxu0 0.0
    %4075 = vmatprep.subr.mxu0 0.0
    %4076 = vmatpush2.msra.mxu0 0.0
    %4077 = vmatprep.subr.mxu0 0.0
    %4078 = vmatpush2.msra.mxu0 0.0
    %4079 = vmatprep.subr.mxu0 0.0
    %4080 = vmatpush2.msra.mxu0 0.0
    %4081 = vmatprep.subr.mxu0 0.0
    %4082 = vmatpush2.msra.mxu0 0.0
    %4083 = vmatprep.subr.mxu0 0.0
    %4084 = vmatpush2.msra.mxu0 0.0
    %4085 = vmatprep.subr.mxu0 0.0
    %4086 = vmatpush2.msra.mxu0 0.0
    %4087 = vmatprep.subr.mxu0 0.0
    %4088 = vmatpush2.msra.mxu0 0.0
    %4089 = vmatprep.subr.mxu0 0.0
    %4090 = vmatpush2.msra.mxu0 0.0
    %4091 = vmatprep.subr.mxu0 0.0
    %4092 = vmatpush2.msra.mxu0 0.0
    %4093 = vmatprep.subr.mxu0 0.0
    %4094 = vmatpush2.msra.mxu0 0.0
    %4095 = vmatprep.subr.mxu0 0.0
    %4096 = vmatpush2.msra.mxu0 0.0
    %4097 = vmatprep.subr.mxu0 0.0
    %4098 = vmatpush2.msra.mxu0 0.0
    %4099 = vmatprep.subr.mxu0 0.0
    %4100 = vmatpush2.msra.mxu0 0.0
    %4101 = vmatprep.subr.mxu0 0.0
    %4102 = vmatpush2.msra.mxu0 0.0
    %4103 = vmatprep.subr.mxu0 0.0
    %4104 = vmatpush2.msra.mxu0 0.0
    %4105 = vmatprep.mubr.f32.mxu0 0.0
    %4106 = vmatmul.mubr.f32.gmra.mxu0 %v3891
    %v4107 = vpop.f32.mrf.mxu0
    %v4108 = vadd.f32 %v400, %v4107
    %v4109 = vpop.f32.mrf.mxu0
    %4110 = vdwg.mxu0
    %4111 = vmatprep.subr.mxu0 0.0
    %4112 = vmatpush1.msra.mxu0 0.0
    %4113 = vmatprep.subr.mxu0 0.0
    %4114 = vmatpush1.msra.mxu0 0.0
    %4115 = vmatprep.subr.mxu0 0.0
    %4116 = vmatpush1.msra.mxu0 0.0
    %4117 = vmatprep.subr.mxu0 0.0
    %4118 = vmatpush1.msra.mxu0 0.0
    %4119 = vmatprep.subr.mxu0 0.0
    %4120 = vmatpush1.msra.mxu0 0.0
    %4121 = vmatprep.subr.mxu0 0.0
    %4122 = vmatpush1.msra.mxu0 0.0
    %4123 = vmatprep.subr.mxu0 0.0
    %4124 = vmatpush1.msra.mxu0 0.0
    %4125 = vmatprep.subr.mxu0 0.0
    %4126 = vmatpush1.msra.mxu0 0.0
    %4127 = vmatprep.subr.mxu0 0.0
    %4128 = vmatpush1.msra.mxu0 0.0
    %4129 = vmatprep.subr.mxu0 0.0
    %4130 = vmatpush1.msra.mxu0 0.0
    %4131 = vmatprep.subr.mxu0 0.0
    %4132 = vmatpush1.msra.mxu0 0.0
    %4133 = vmatprep.subr.mxu0 0.0
    %4134 = vmatpush1.msra.mxu0 0.0
    %4135 = vmatprep.subr.mxu0 0.0
    %4136 = vmatpush1.msra.mxu0 %v173
    %4137 = vmatprep.subr.mxu0 0.0
    %4138 = vmatpush1.msra.mxu0 %v172
    %4139 = vmatprep.subr.mxu0 0.0
    %4140 = vmatpush1.msra.mxu0 %v171
    %4141 = vmatprep.subr.mxu0 0.0
    %4142 = vmatpush1.msra.mxu0 %v170
    %4143 = vmatprep.subr.mxu0 0.0
    %4144 = vmatpush2.msra.mxu0 0.0
    %4145 = vmatprep.subr.mxu0 0.0
    %4146 = vmatpush2.msra.mxu0 0.0
    %4147 = vmatprep.subr.mxu0 0.0
    %4148 = vmatpush2.msra.mxu0 0.0
    %4149 = vmatprep.subr.mxu0 0.0
    %4150 = vmatpush2.msra.mxu0 0.0
    %4151 = vmatprep.subr.mxu0 0.0
    %4152 = vmatpush2.msra.mxu0 0.0
    %4153 = vmatprep.subr.mxu0 0.0
    %4154 = vmatpush2.msra.mxu0 0.0
    %4155 = vmatprep.subr.mxu0 0.0
    %4156 = vmatpush2.msra.mxu0 0.0
    %4157 = vmatprep.subr.mxu0 0.0
    %4158 = vmatpush2.msra.mxu0 0.0
    %4159 = vmatprep.subr.mxu0 0.0
    %4160 = vmatpush2.msra.mxu0 0.0
    %4161 = vmatprep.subr.mxu0 0.0
    %4162 = vmatpush2.msra.mxu0 0.0
    %4163 = vmatprep.subr.mxu0 0.0
    %4164 = vmatpush2.msra.mxu0 0.0
    %4165 = vmatprep.subr.mxu0 0.0
    %4166 = vmatpush2.msra.mxu0 0.0
    %4167 = vmatprep.subr.mxu0 0.0
    %4168 = vmatpush2.msra.mxu0 0.0
    %4169 = vmatprep.subr.mxu0 0.0
    %4170 = vmatpush2.msra.mxu0 0.0
    %4171 = vmatprep.subr.mxu0 0.0
    %4172 = vmatpush2.msra.mxu0 0.0
    %4173 = vmatprep.subr.mxu0 0.0
    %4174 = vmatpush2.msra.mxu0 0.0
    %4175 = vmatprep.mubr.f32.mxu0 0.0
    %4176 = vmatmul.mubr.f32.gmra.mxu0 %v3440
    %v4177 = vpop.f32.mrf.mxu0
    %v4178 = vadd.f32 0.0, %v4177
    %v4179 = vpop.f32.mrf.mxu0
    %4180 = vdwg.mxu0
    %v4181 = vadd.f32 %v4108, %v4178
    %v4182 = vadd.f32 %v4181, %v547
    %v4183 = vxor.u32 %v4182, 2147483648
    %v4184 = vmul.f32 %v4183, 1.442695
    %v4185 = vpow.pop %v4184
    %v4186 = vadd.f32 %v4185, 1.0
    %v4187 = vrcp.pop %v4186
    %v4188 = vmul.f32 1.0, %v4187
    %4189 = vmatprep.subr.mxu0 0.0
    %4190 = vmatpush1.msra.mxu0 0.0
    %4191 = vmatprep.subr.mxu0 0.0
    %4192 = vmatpush1.msra.mxu0 0.0
    %4193 = vmatprep.subr.mxu0 0.0
    %4194 = vmatpush1.msra.mxu0 0.0
    %4195 = vmatprep.subr.mxu0 0.0
    %4196 = vmatpush1.msra.mxu0 0.0
    %4197 = vmatprep.subr.mxu0 0.0
    %4198 = vmatpush1.msra.mxu0 0.0
    %4199 = vmatprep.subr.mxu0 0.0
    %4200 = vmatpush1.msra.mxu0 0.0
    %4201 = vmatprep.subr.mxu0 0.0
    %4202 = vmatpush1.msra.mxu0 0.0
    %4203 = vmatprep.subr.mxu0 0.0
    %4204 = vmatpush1.msra.mxu0 0.0
    %4205 = vmatprep.subr.mxu0 0.0
    %4206 = vmatpush1.msra.mxu0 0.0
    %4207 = vmatprep.subr.mxu0 0.0
    %4208 = vmatpush1.msra.mxu0 0.0
    %4209 = vmatprep.subr.mxu0 0.0
    %4210 = vmatpush1.msra.mxu0 0.0
    %4211 = vmatprep.subr.mxu0 0.0
    %4212 = vmatpush1.msra.mxu0 0.0
    %4213 = vmatprep.subr.mxu0 0.0
    %4214 = vmatpush1.msra.mxu0 0.0
    %4215 = vmatprep.subr.mxu0 0.0
    %4216 = vmatpush1.msra.mxu0 0.0
    %4217 = vmatprep.subr.mxu0 0.0
    %4218 = vmatpush1.msra.mxu0 %v164
    %4219 = vmatprep.subr.mxu0 0.0
    %4220 = vmatpush1.msra.mxu0 %v163
    %4221 = vmatprep.subr.mxu0 0.0
    %4222 = vmatpush2.msra.mxu0 0.0
    %4223 = vmatprep.subr.mxu0 0.0
    %4224 = vmatpush2.msra.mxu0 0.0
    %4225 = vmatprep.subr.mxu0 0.0
    %4226 = vmatpush2.msra.mxu0 0.0
    %4227 = vmatprep.subr.mxu0 0.0
    %4228 = vmatpush2.msra.mxu0 0.0
    %4229 = vmatprep.subr.mxu0 0.0
    %4230 = vmatpush2.msra.mxu0 0.0
    %4231 = vmatprep.subr.mxu0 0.0
    %4232 = vmatpush2.msra.mxu0 0.0
    %4233 = vmatprep.subr.mxu0 0.0
    %4234 = vmatpush2.msra.mxu0 0.0
    %4235 = vmatprep.subr.mxu0 0.0
    %4236 = vmatpush2.msra.mxu0 0.0
    %4237 = vmatprep.subr.mxu0 0.0
    %4238 = vmatpush2.msra.mxu0 0.0
    %4239 = vmatprep.subr.mxu0 0.0
    %4240 = vmatpush2.msra.mxu0 0.0
    %4241 = vmatprep.subr.mxu0 0.0
    %4242 = vmatpush2.msra.mxu0 0.0
    %4243 = vmatprep.subr.mxu0 0.0
    %4244 = vmatpush2.msra.mxu0 0.0
    %4245 = vmatprep.subr.mxu0 0.0
    %4246 = vmatpush2.msra.mxu0 0.0
    %4247 = vmatprep.subr.mxu0 0.0
    %4248 = vmatpush2.msra.mxu0 0.0
    %4249 = vmatprep.subr.mxu0 0.0
    %4250 = vmatpush2.msra.mxu0 0.0
    %4251 = vmatprep.subr.mxu0 0.0
    %4252 = vmatpush2.msra.mxu0 0.0
    %4253 = vmatprep.mubr.f32.mxu0 0.0
    %4254 = vmatmul.mubr.f32.gmra.mxu0 %v3891
    %v4255 = vpop.f32.mrf.mxu0
    %v4256 = vadd.f32 %v560, %v4255
    %v4257 = vpop.f32.mrf.mxu0
    %4258 = vdwg.mxu0
    %4259 = vmatprep.subr.mxu0 0.0
    %4260 = vmatpush1.msra.mxu0 0.0
    %4261 = vmatprep.subr.mxu0 0.0
    %4262 = vmatpush1.msra.mxu0 0.0
    %4263 = vmatprep.subr.mxu0 0.0
    %4264 = vmatpush1.msra.mxu0 0.0
    %4265 = vmatprep.subr.mxu0 0.0
    %4266 = vmatpush1.msra.mxu0 0.0
    %4267 = vmatprep.subr.mxu0 0.0
    %4268 = vmatpush1.msra.mxu0 0.0
    %4269 = vmatprep.subr.mxu0 0.0
    %4270 = vmatpush1.msra.mxu0 0.0
    %4271 = vmatprep.subr.mxu0 0.0
    %4272 = vmatpush1.msra.mxu0 0.0
    %4273 = vmatprep.subr.mxu0 0.0
    %4274 = vmatpush1.msra.mxu0 0.0
    %4275 = vmatprep.subr.mxu0 0.0
    %4276 = vmatpush1.msra.mxu0 0.0
    %4277 = vmatprep.subr.mxu0 0.0
    %4278 = vmatpush1.msra.mxu0 0.0
    %4279 = vmatprep.subr.mxu0 0.0
    %4280 = vmatpush1.msra.mxu0 0.0
    %4281 = vmatprep.subr.mxu0 0.0
    %4282 = vmatpush1.msra.mxu0 0.0
    %4283 = vmatprep.subr.mxu0 0.0
    %4284 = vmatpush1.msra.mxu0 %v178
    %4285 = vmatprep.subr.mxu0 0.0
    %4286 = vmatpush1.msra.mxu0 %v177
    %4287 = vmatprep.subr.mxu0 0.0
    %4288 = vmatpush1.msra.mxu0 %v176
    %4289 = vmatprep.subr.mxu0 0.0
    %4290 = vmatpush1.msra.mxu0 %v175
    %4291 = vmatprep.subr.mxu0 0.0
    %4292 = vmatpush2.msra.mxu0 0.0
    %4293 = vmatprep.subr.mxu0 0.0
    %4294 = vmatpush2.msra.mxu0 0.0
    %4295 = vmatprep.subr.mxu0 0.0
    %4296 = vmatpush2.msra.mxu0 0.0
    %4297 = vmatprep.subr.mxu0 0.0
    %4298 = vmatpush2.msra.mxu0 0.0
    %4299 = vmatprep.subr.mxu0 0.0
    %4300 = vmatpush2.msra.mxu0 0.0
    %4301 = vmatprep.subr.mxu0 0.0
    %4302 = vmatpush2.msra.mxu0 0.0
    %4303 = vmatprep.subr.mxu0 0.0
    %4304 = vmatpush2.msra.mxu0 0.0
    %4305 = vmatprep.subr.mxu0 0.0
    %4306 = vmatpush2.msra.mxu0 0.0
    %4307 = vmatprep.subr.mxu0 0.0
    %4308 = vmatpush2.msra.mxu0 0.0
    %4309 = vmatprep.subr.mxu0 0.0
    %4310 = vmatpush2.msra.mxu0 0.0
    %4311 = vmatprep.subr.mxu0 0.0
    %4312 = vmatpush2.msra.mxu0 0.0
    %4313 = vmatprep.subr.mxu0 0.0
    %4314 = vmatpush2.msra.mxu0 0.0
    %4315 = vmatprep.subr.mxu0 0.0
    %4316 = vmatpush2.msra.mxu0 0.0
    %4317 = vmatprep.subr.mxu0 0.0
    %4318 = vmatpush2.msra.mxu0 0.0
    %4319 = vmatprep.subr.mxu0 0.0
    %4320 = vmatpush2.msra.mxu0 0.0
    %4321 = vmatprep.subr.mxu0 0.0
    %4322 = vmatpush2.msra.mxu0 0.0
    %4323 = vmatprep.mubr.f32.mxu0 0.0
    %4324 = vmatmul.mubr.f32.gmra.mxu0 %v3440
    %v4325 = vpop.f32.mrf.mxu0
    %v4326 = vadd.f32 %v636, %v4325
    %v4327 = vpop.f32.mrf.mxu0
    %4328 = vdwg.mxu0
    %v4329 = vmul.f32 %v4040, %v4326
    %v4330 = vadd.f32 %v4256, %v4329
    %v4331 = vtanh.pop %v4330
    %v4332 = vsub.f32 1.0, %v4188
    %v4333 = vmul.f32 %v4332, %v4331
    %v4334 = vmul.f32 %v4188, %v3438
    %v4335 = vadd.f32 %v4333, %v4334
    %v4337 = vsel %vm308, %v4335, 0
    %4339 = vmatprep.subr.mxu0 0.0
    %4340 = vmatpush1.msra.mxu0 0.0
    %4341 = vmatprep.subr.mxu0 0.0
    %4342 = vmatpush1.msra.mxu0 0.0
    %4343 = vmatprep.subr.mxu0 0.0
    %4344 = vmatpush1.msra.mxu0 0.0
    %4345 = vmatprep.subr.mxu0 0.0
    %4346 = vmatpush1.msra.mxu0 0.0
    %4347 = vmatprep.subr.mxu0 0.0
    %4348 = vmatpush1.msra.mxu0 0.0
    %4349 = vmatprep.subr.mxu0 0.0
    %4350 = vmatpush1.msra.mxu0 0.0
    %4351 = vmatprep.subr.mxu0 0.0
    %4352 = vmatpush1.msra.mxu0 0.0
    %4353 = vmatprep.subr.mxu0 0.0
    %4354 = vmatpush1.msra.mxu0 0.0
    %4355 = vmatprep.subr.mxu0 0.0
    %4356 = vmatpush1.msra.mxu0 0.0
    %4357 = vmatprep.subr.mxu0 0.0
    %4358 = vmatpush1.msra.mxu0 0.0
    %4359 = vmatprep.subr.mxu0 0.0
    %4360 = vmatpush1.msra.mxu0 0.0
    %4361 = vmatprep.subr.mxu0 0.0
    %4362 = vmatpush1.msra.mxu0 0.0
    %4363 = vmatprep.subr.mxu0 0.0
    %4364 = vmatpush1.msra.mxu0 %v192
    %4365 = vmatprep.subr.mxu0 0.0
    %4366 = vmatpush1.msra.mxu0 %v191
    %4367 = vmatprep.subr.mxu0 0.0
    %4368 = vmatpush1.msra.mxu0 %v190
    %4369 = vmatprep.subr.mxu0 0.0
    %4370 = vmatpush1.msra.mxu0 %v189
    %4371 = vmatprep.subr.mxu0 0.0
    %4372 = vmatpush2.msra.mxu0 0.0
    %4373 = vmatprep.subr.mxu0 0.0
    %4374 = vmatpush2.msra.mxu0 0.0
    %4375 = vmatprep.subr.mxu0 0.0
    %4376 = vmatpush2.msra.mxu0 0.0
    %4377 = vmatprep.subr.mxu0 0.0
    %4378 = vmatpush2.msra.mxu0 0.0
    %4379 = vmatprep.subr.mxu0 0.0
    %4380 = vmatpush2.msra.mxu0 0.0
    %4381 = vmatprep.subr.mxu0 0.0
    %4382 = vmatpush2.msra.mxu0 0.0
    %4383 = vmatprep.subr.mxu0 0.0
    %4384 = vmatpush2.msra.mxu0 0.0
    %4385 = vmatprep.subr.mxu0 0.0
    %4386 = vmatpush2.msra.mxu0 0.0
    %4387 = vmatprep.subr.mxu0 0.0
    %4388 = vmatpush2.msra.mxu0 0.0
    %4389 = vmatprep.subr.mxu0 0.0
    %4390 = vmatpush2.msra.mxu0 0.0
    %4391 = vmatprep.subr.mxu0 0.0
    %4392 = vmatpush2.msra.mxu0 0.0
    %4393 = vmatprep.subr.mxu0 0.0
    %4394 = vmatpush2.msra.mxu0 0.0
    %4395 = vmatprep.subr.mxu0 0.0
    %4396 = vmatpush2.msra.mxu0 0.0
    %4397 = vmatprep.subr.mxu0 0.0
    %4398 = vmatpush2.msra.mxu0 0.0
    %4399 = vmatprep.subr.mxu0 0.0
    %4400 = vmatpush2.msra.mxu0 0.0
    %4401 = vmatprep.subr.mxu0 0.0
    %4402 = vmatpush2.msra.mxu0 0.0
    %4403 = vmatprep.mubr.f32.mxu0 0.0
    %4404 = vmatmul.mubr.f32.gmra.mxu0 %v4337
    %v4405 = vpop.f32.mrf.mxu0
    %v4406 = vadd.f32 %v719, %v4405
    %v4407 = vpop.f32.mrf.mxu0
    %4408 = vdwg.mxu0
    %v4410 = vsel %vm308, %v3887, 0
    %4412 = vmatprep.subr.mxu0 0.0
    %4413 = vmatpush1.msra.mxu0 0.0
    %4414 = vmatprep.subr.mxu0 0.0
    %4415 = vmatpush1.msra.mxu0 0.0
    %4416 = vmatprep.subr.mxu0 0.0
    %4417 = vmatpush1.msra.mxu0 0.0
    %4418 = vmatprep.subr.mxu0 0.0
    %4419 = vmatpush1.msra.mxu0 0.0
    %4420 = vmatprep.subr.mxu0 0.0
    %4421 = vmatpush1.msra.mxu0 0.0
    %4422 = vmatprep.subr.mxu0 0.0
    %4423 = vmatpush1.msra.mxu0 0.0
    %4424 = vmatprep.subr.mxu0 0.0
    %4425 = vmatpush1.msra.mxu0 0.0
    %4426 = vmatprep.subr.mxu0 0.0
    %4427 = vmatpush1.msra.mxu0 0.0
    %4428 = vmatprep.subr.mxu0 0.0
    %4429 = vmatpush1.msra.mxu0 0.0
    %4430 = vmatprep.subr.mxu0 0.0
    %4431 = vmatpush1.msra.mxu0 0.0
    %4432 = vmatprep.subr.mxu0 0.0
    %4433 = vmatpush1.msra.mxu0 0.0
    %4434 = vmatprep.subr.mxu0 0.0
    %4435 = vmatpush1.msra.mxu0 0.0
    %4436 = vmatprep.subr.mxu0 0.0
    %4437 = vmatpush1.msra.mxu0 %v206
    %4438 = vmatprep.subr.mxu0 0.0
    %4439 = vmatpush1.msra.mxu0 %v205
    %4440 = vmatprep.subr.mxu0 0.0
    %4441 = vmatpush1.msra.mxu0 %v204
    %4442 = vmatprep.subr.mxu0 0.0
    %4443 = vmatpush1.msra.mxu0 %v203
    %4444 = vmatprep.subr.mxu0 0.0
    %4445 = vmatpush2.msra.mxu0 0.0
    %4446 = vmatprep.subr.mxu0 0.0
    %4447 = vmatpush2.msra.mxu0 0.0
    %4448 = vmatprep.subr.mxu0 0.0
    %4449 = vmatpush2.msra.mxu0 0.0
    %4450 = vmatprep.subr.mxu0 0.0
    %4451 = vmatpush2.msra.mxu0 0.0
    %4452 = vmatprep.subr.mxu0 0.0
    %4453 = vmatpush2.msra.mxu0 0.0
    %4454 = vmatprep.subr.mxu0 0.0
    %4455 = vmatpush2.msra.mxu0 0.0
    %4456 = vmatprep.subr.mxu0 0.0
    %4457 = vmatpush2.msra.mxu0 0.0
    %4458 = vmatprep.subr.mxu0 0.0
    %4459 = vmatpush2.msra.mxu0 0.0
    %4460 = vmatprep.subr.mxu0 0.0
    %4461 = vmatpush2.msra.mxu0 0.0
    %4462 = vmatprep.subr.mxu0 0.0
    %4463 = vmatpush2.msra.mxu0 0.0
    %4464 = vmatprep.subr.mxu0 0.0
    %4465 = vmatpush2.msra.mxu0 0.0
    %4466 = vmatprep.subr.mxu0 0.0
    %4467 = vmatpush2.msra.mxu0 0.0
    %4468 = vmatprep.subr.mxu0 0.0
    %4469 = vmatpush2.msra.mxu0 0.0
    %4470 = vmatprep.subr.mxu0 0.0
    %4471 = vmatpush2.msra.mxu0 0.0
    %4472 = vmatprep.subr.mxu0 0.0
    %4473 = vmatpush2.msra.mxu0 0.0
    %4474 = vmatprep.subr.mxu0 0.0
    %4475 = vmatpush2.msra.mxu0 0.0
    %4476 = vmatprep.mubr.f32.mxu0 0.0
    %4477 = vmatmul.mubr.f32.gmra.mxu0 %v4410
    %v4478 = vpop.f32.mrf.mxu0
    %v4479 = vadd.f32 0.0, %v4478
    %v4480 = vpop.f32.mrf.mxu0
    %4481 = vdwg.mxu0
    %v4482 = vadd.f32 %v4406, %v4479
    %v4483 = vadd.f32 %v4482, %v869
    %v4484 = vxor.u32 %v4483, 2147483648
    %v4485 = vmul.f32 %v4484, 1.442695
    %v4486 = vpow.pop %v4485
    %v4487 = vadd.f32 %v4486, 1.0
    %v4488 = vrcp.pop %v4487
    %v4489 = vmul.f32 1.0, %v4488
    %4490 = vmatprep.subr.mxu0 0.0
    %4491 = vmatpush1.msra.mxu0 0.0
    %4492 = vmatprep.subr.mxu0 0.0
    %4493 = vmatpush1.msra.mxu0 0.0
    %4494 = vmatprep.subr.mxu0 0.0
    %4495 = vmatpush1.msra.mxu0 0.0
    %4496 = vmatprep.subr.mxu0 0.0
    %4497 = vmatpush1.msra.mxu0 0.0
    %4498 = vmatprep.subr.mxu0 0.0
    %4499 = vmatpush1.msra.mxu0 0.0
    %4500 = vmatprep.subr.mxu0 0.0
    %4501 = vmatpush1.msra.mxu0 0.0
    %4502 = vmatprep.subr.mxu0 0.0
    %4503 = vmatpush1.msra.mxu0 0.0
    %4504 = vmatprep.subr.mxu0 0.0
    %4505 = vmatpush1.msra.mxu0 0.0
    %4506 = vmatprep.subr.mxu0 0.0
    %4507 = vmatpush1.msra.mxu0 0.0
    %4508 = vmatprep.subr.mxu0 0.0
    %4509 = vmatpush1.msra.mxu0 0.0
    %4510 = vmatprep.subr.mxu0 0.0
    %4511 = vmatpush1.msra.mxu0 0.0
    %4512 = vmatprep.subr.mxu0 0.0
    %4513 = vmatpush1.msra.mxu0 0.0
    %4514 = vmatprep.subr.mxu0 0.0
    %4515 = vmatpush1.msra.mxu0 %v197
    %4516 = vmatprep.subr.mxu0 0.0
    %4517 = vmatpush1.msra.mxu0 %v196
    %4518 = vmatprep.subr.mxu0 0.0
    %4519 = vmatpush1.msra.mxu0 %v195
    %4520 = vmatprep.subr.mxu0 0.0
    %4521 = vmatpush1.msra.mxu0 %v194
    %4522 = vmatprep.subr.mxu0 0.0
    %4523 = vmatpush2.msra.mxu0 0.0
    %4524 = vmatprep.subr.mxu0 0.0
    %4525 = vmatpush2.msra.mxu0 0.0
    %4526 = vmatprep.subr.mxu0 0.0
    %4527 = vmatpush2.msra.mxu0 0.0
    %4528 = vmatprep.subr.mxu0 0.0
    %4529 = vmatpush2.msra.mxu0 0.0
    %4530 = vmatprep.subr.mxu0 0.0
    %4531 = vmatpush2.msra.mxu0 0.0
    %4532 = vmatprep.subr.mxu0 0.0
    %4533 = vmatpush2.msra.mxu0 0.0
    %4534 = vmatprep.subr.mxu0 0.0
    %4535 = vmatpush2.msra.mxu0 0.0
    %4536 = vmatprep.subr.mxu0 0.0
    %4537 = vmatpush2.msra.mxu0 0.0
    %4538 = vmatprep.subr.mxu0 0.0
    %4539 = vmatpush2.msra.mxu0 0.0
    %4540 = vmatprep.subr.mxu0 0.0
    %4541 = vmatpush2.msra.mxu0 0.0
    %4542 = vmatprep.subr.mxu0 0.0
    %4543 = vmatpush2.msra.mxu0 0.0
    %4544 = vmatprep.subr.mxu0 0.0
    %4545 = vmatpush2.msra.mxu0 0.0
    %4546 = vmatprep.subr.mxu0 0.0
    %4547 = vmatpush2.msra.mxu0 0.0
    %4548 = vmatprep.subr.mxu0 0.0
    %4549 = vmatpush2.msra.mxu0 0.0
    %4550 = vmatprep.subr.mxu0 0.0
    %4551 = vmatpush2.msra.mxu0 0.0
    %4552 = vmatprep.subr.mxu0 0.0
    %4553 = vmatpush2.msra.mxu0 0.0
    %4554 = vmatprep.mubr.f32.mxu0 0.0
    %4555 = vmatmul.mubr.f32.gmra.mxu0 %v4337
    %v4556 = vpop.f32.mrf.mxu0
    %v4557 = vadd.f32 %v882, %v4556
    %v4558 = vpop.f32.mrf.mxu0
    %4559 = vdwg.mxu0
    %4560 = vmatprep.subr.mxu0 0.0
    %4561 = vmatpush1.msra.mxu0 0.0
    %4562 = vmatprep.subr.mxu0 0.0
    %4563 = vmatpush1.msra.mxu0 0.0
    %4564 = vmatprep.subr.mxu0 0.0
    %4565 = vmatpush1.msra.mxu0 0.0
    %4566 = vmatprep.subr.mxu0 0.0
    %4567 = vmatpush1.msra.mxu0 0.0
    %4568 = vmatprep.subr.mxu0 0.0
    %4569 = vmatpush1.msra.mxu0 0.0
    %4570 = vmatprep.subr.mxu0 0.0
    %4571 = vmatpush1.msra.mxu0 0.0
    %4572 = vmatprep.subr.mxu0 0.0
    %4573 = vmatpush1.msra.mxu0 0.0
    %4574 = vmatprep.subr.mxu0 0.0
    %4575 = vmatpush1.msra.mxu0 0.0
    %4576 = vmatprep.subr.mxu0 0.0
    %4577 = vmatpush1.msra.mxu0 0.0
    %4578 = vmatprep.subr.mxu0 0.0
    %4579 = vmatpush1.msra.mxu0 0.0
    %4580 = vmatprep.subr.mxu0 0.0
    %4581 = vmatpush1.msra.mxu0 0.0
    %4582 = vmatprep.subr.mxu0 0.0
    %4583 = vmatpush1.msra.mxu0 0.0
    %4584 = vmatprep.subr.mxu0 0.0
    %4585 = vmatpush1.msra.mxu0 %v211
    %4586 = vmatprep.subr.mxu0 0.0
    %4587 = vmatpush1.msra.mxu0 %v210
    %4588 = vmatprep.subr.mxu0 0.0
    %4589 = vmatpush1.msra.mxu0 %v209
    %4590 = vmatprep.subr.mxu0 0.0
    %4591 = vmatpush1.msra.mxu0 %v208
    %4592 = vmatprep.subr.mxu0 0.0
    %4593 = vmatpush2.msra.mxu0 0.0
    %4594 = vmatprep.subr.mxu0 0.0
    %4595 = vmatpush2.msra.mxu0 0.0
    %4596 = vmatprep.subr.mxu0 0.0
    %4597 = vmatpush2.msra.mxu0 0.0
    %4598 = vmatprep.subr.mxu0 0.0
    %4599 = vmatpush2.msra.mxu0 0.0
    %4600 = vmatprep.subr.mxu0 0.0
    %4601 = vmatpush2.msra.mxu0 0.0
    %4602 = vmatprep.subr.mxu0 0.0
    %4603 = vmatpush2.msra.mxu0 0.0
    %4604 = vmatprep.subr.mxu0 0.0
    %4605 = vmatpush2.msra.mxu0 0.0
    %4606 = vmatprep.subr.mxu0 0.0
    %4607 = vmatpush2.msra.mxu0 0.0
    %4608 = vmatprep.subr.mxu0 0.0
    %4609 = vmatpush2.msra.mxu0 0.0
    %4610 = vmatprep.subr.mxu0 0.0
    %4611 = vmatpush2.msra.mxu0 0.0
    %4612 = vmatprep.subr.mxu0 0.0
    %4613 = vmatpush2.msra.mxu0 0.0
    %4614 = vmatprep.subr.mxu0 0.0
    %4615 = vmatpush2.msra.mxu0 0.0
    %4616 = vmatprep.subr.mxu0 0.0
    %4617 = vmatpush2.msra.mxu0 0.0
    %4618 = vmatprep.subr.mxu0 0.0
    %4619 = vmatpush2.msra.mxu0 0.0
    %4620 = vmatprep.subr.mxu0 0.0
    %4621 = vmatpush2.msra.mxu0 0.0
    %4622 = vmatprep.subr.mxu0 0.0
    %4623 = vmatpush2.msra.mxu0 0.0
    %4624 = vmatprep.mubr.f32.mxu0 0.0
    %4625 = vmatmul.mubr.f32.gmra.mxu0 %v4410
    %v4626 = vpop.f32.mrf.mxu0
    %v4627 = vadd.f32 0.0, %v4626
    %v4628 = vpop.f32.mrf.mxu0
    %4629 = vdwg.mxu0
    %v4630 = vadd.f32 %v4557, %v4627
    %v4631 = vadd.f32 %v4630, %v1029
    %v4632 = vxor.u32 %v4631, 2147483648
    %v4633 = vmul.f32 %v4632, 1.442695
    %v4634 = vpow.pop %v4633
    %v4635 = vadd.f32 %v4634, 1.0
    %v4636 = vrcp.pop %v4635
    %v4637 = vmul.f32 1.0, %v4636
    %4638 = vmatprep.subr.mxu0 0.0
    %4639 = vmatpush1.msra.mxu0 0.0
    %4640 = vmatprep.subr.mxu0 0.0
    %4641 = vmatpush1.msra.mxu0 0.0
    %4642 = vmatprep.subr.mxu0 0.0
    %4643 = vmatpush1.msra.mxu0 0.0
    %4644 = vmatprep.subr.mxu0 0.0
    %4645 = vmatpush1.msra.mxu0 0.0
    %4646 = vmatprep.subr.mxu0 0.0
    %4647 = vmatpush1.msra.mxu0 0.0
    %4648 = vmatprep.subr.mxu0 0.0
    %4649 = vmatpush1.msra.mxu0 0.0
    %4650 = vmatprep.subr.mxu0 0.0
    %4651 = vmatpush1.msra.mxu0 0.0
    %4652 = vmatprep.subr.mxu0 0.0
    %4653 = vmatpush1.msra.mxu0 0.0
    %4654 = vmatprep.subr.mxu0 0.0
    %4655 = vmatpush1.msra.mxu0 0.0
    %4656 = vmatprep.subr.mxu0 0.0
    %4657 = vmatpush1.msra.mxu0 0.0
    %4658 = vmatprep.subr.mxu0 0.0
    %4659 = vmatpush1.msra.mxu0 0.0
    %4660 = vmatprep.subr.mxu0 0.0
    %4661 = vmatpush1.msra.mxu0 0.0
    %4662 = vmatprep.subr.mxu0 0.0
    %4663 = vmatpush1.msra.mxu0 %v202
    %4664 = vmatprep.subr.mxu0 0.0
    %4665 = vmatpush1.msra.mxu0 %v201
    %4666 = vmatprep.subr.mxu0 0.0
    %4667 = vmatpush1.msra.mxu0 %v200
    %4668 = vmatprep.subr.mxu0 0.0
    %4669 = vmatpush1.msra.mxu0 %v199
    %4670 = vmatprep.subr.mxu0 0.0
    %4671 = vmatpush2.msra.mxu0 0.0
    %4672 = vmatprep.subr.mxu0 0.0
    %4673 = vmatpush2.msra.mxu0 0.0
    %4674 = vmatprep.subr.mxu0 0.0
    %4675 = vmatpush2.msra.mxu0 0.0
    %4676 = vmatprep.subr.mxu0 0.0
    %4677 = vmatpush2.msra.mxu0 0.0
    %4678 = vmatprep.subr.mxu0 0.0
    %4679 = vmatpush2.msra.mxu0 0.0
    %4680 = vmatprep.subr.mxu0 0.0
    %4681 = vmatpush2.msra.mxu0 0.0
    %4682 = vmatprep.subr.mxu0 0.0
    %4683 = vmatpush2.msra.mxu0 0.0
    %4684 = vmatprep.subr.mxu0 0.0
    %4685 = vmatpush2.msra.mxu0 0.0
    %4686 = vmatprep.subr.mxu0 0.0
    %4687 = vmatpush2.msra.mxu0 0.0
    %4688 = vmatprep.subr.mxu0 0.0
    %4689 = vmatpush2.msra.mxu0 0.0
    %4690 = vmatprep.subr.mxu0 0.0
    %4691 = vmatpush2.msra.mxu0 0.0
    %4692 = vmatprep.subr.mxu0 0.0
    %4693 = vmatpush2.msra.mxu0 0.0
    %4694 = vmatprep.subr.mxu0 0.0
    %4695 = vmatpush2.msra.mxu0 0.0
    %4696 = vmatprep.subr.mxu0 0.0
    %4697 = vmatpush2.msra.mxu0 0.0
    %4698 = vmatprep.subr.mxu0 0.0
    %4699 = vmatpush2.msra.mxu0 0.0
    %4700 = vmatprep.subr.mxu0 0.0
    %4701 = vmatpush2.msra.mxu0 0.0
    %4702 = vmatprep.mubr.f32.mxu0 0.0
    %4703 = vmatmul.mubr.f32.gmra.mxu0 %v4337
    %v4704 = vpop.f32.mrf.mxu0
    %v4705 = vadd.f32 %v1042, %v4704
    %v4706 = vpop.f32.mrf.mxu0
    %4707 = vdwg.mxu0
    %4708 = vmatprep.subr.mxu0 0.0
    %4709 = vmatpush1.msra.mxu0 0.0
    %4710 = vmatprep.subr.mxu0 0.0
    %4711 = vmatpush1.msra.mxu0 0.0
    %4712 = vmatprep.subr.mxu0 0.0
    %4713 = vmatpush1.msra.mxu0 0.0
    %4714 = vmatprep.subr.mxu0 0.0
    %4715 = vmatpush1.msra.mxu0 0.0
    %4716 = vmatprep.subr.mxu0 0.0
    %4717 = vmatpush1.msra.mxu0 0.0
    %4718 = vmatprep.subr.mxu0 0.0
    %4719 = vmatpush1.msra.mxu0 0.0
    %4720 = vmatprep.subr.mxu0 0.0
    %4721 = vmatpush1.msra.mxu0 0.0
    %4722 = vmatprep.subr.mxu0 0.0
    %4723 = vmatpush1.msra.mxu0 0.0
    %4724 = vmatprep.subr.mxu0 0.0
    %4725 = vmatpush1.msra.mxu0 0.0
    %4726 = vmatprep.subr.mxu0 0.0
    %4727 = vmatpush1.msra.mxu0 0.0
    %4728 = vmatprep.subr.mxu0 0.0
    %4729 = vmatpush1.msra.mxu0 0.0
    %4730 = vmatprep.subr.mxu0 0.0
    %4731 = vmatpush1.msra.mxu0 0.0
    %4732 = vmatprep.subr.mxu0 0.0
    %4733 = vmatpush1.msra.mxu0 %v216
    %4734 = vmatprep.subr.mxu0 0.0
    %4735 = vmatpush1.msra.mxu0 %v215
    %4736 = vmatprep.subr.mxu0 0.0
    %4737 = vmatpush1.msra.mxu0 %v214
    %4738 = vmatprep.subr.mxu0 0.0
    %4739 = vmatpush1.msra.mxu0 %v213
    %4740 = vmatprep.subr.mxu0 0.0
    %4741 = vmatpush2.msra.mxu0 0.0
    %4742 = vmatprep.subr.mxu0 0.0
    %4743 = vmatpush2.msra.mxu0 0.0
    %4744 = vmatprep.subr.mxu0 0.0
    %4745 = vmatpush2.msra.mxu0 0.0
    %4746 = vmatprep.subr.mxu0 0.0
    %4747 = vmatpush2.msra.mxu0 0.0
    %4748 = vmatprep.subr.mxu0 0.0
    %4749 = vmatpush2.msra.mxu0 0.0
    %4750 = vmatprep.subr.mxu0 0.0
    %4751 = vmatpush2.msra.mxu0 0.0
    %4752 = vmatprep.subr.mxu0 0.0
    %4753 = vmatpush2.msra.mxu0 0.0
    %4754 = vmatprep.subr.mxu0 0.0
    %4755 = vmatpush2.msra.mxu0 0.0
    %4756 = vmatprep.subr.mxu0 0.0
    %4757 = vmatpush2.msra.mxu0 0.0
    %4758 = vmatprep.subr.mxu0 0.0
    %4759 = vmatpush2.msra.mxu0 0.0
    %4760 = vmatprep.subr.mxu0 0.0
    %4761 = vmatpush2.msra.mxu0 0.0
    %4762 = vmatprep.subr.mxu0 0.0
    %4763 = vmatpush2.msra.mxu0 0.0
    %4764 = vmatprep.subr.mxu0 0.0
    %4765 = vmatpush2.msra.mxu0 0.0
    %4766 = vmatprep.subr.mxu0 0.0
    %4767 = vmatpush2.msra.mxu0 0.0
    %4768 = vmatprep.subr.mxu0 0.0
    %4769 = vmatpush2.msra.mxu0 0.0
    %4770 = vmatprep.subr.mxu0 0.0
    %4771 = vmatpush2.msra.mxu0 0.0
    %4772 = vmatprep.mubr.f32.mxu0 0.0
    %4773 = vmatmul.mubr.f32.gmra.mxu0 %v4410
    %v4774 = vpop.f32.mrf.mxu0
    %v4775 = vadd.f32 %v1118, %v4774
    %v4776 = vpop.f32.mrf.mxu0
    %4777 = vdwg.mxu0
    %v4778 = vmul.f32 %v4489, %v4775
    %v4779 = vadd.f32 %v4705, %v4778
    %v4780 = vtanh.pop %v4779
    %v4781 = vsub.f32 1.0, %v4637
    %v4782 = vmul.f32 %v4781, %v4780
    %v4783 = vmul.f32 %v4637, %v3887
    %v4784 = vadd.f32 %v4782, %v4783
    %s4785 = scalar_lea.vmem [#allocation2], 40
    %v4786 = vld [vmem:[%s4785] sm:$0xff]
    %v4788 = vsel %vm234, %v4786, 0
    %4790 = vmatprep.subr.mxu0 0.0
    %4791 = vmatpush1.msra.mxu0 0.0
    %4792 = vmatprep.subr.mxu0 0.0
    %4793 = vmatpush1.msra.mxu0 0.0
    %4794 = vmatprep.subr.mxu0 0.0
    %4795 = vmatpush1.msra.mxu0 0.0
    %4796 = vmatprep.subr.mxu0 0.0
    %4797 = vmatpush1.msra.mxu0 0.0
    %4798 = vmatprep.subr.mxu0 0.0
    %4799 = vmatpush1.msra.mxu0 0.0
    %4800 = vmatprep.subr.mxu0 0.0
    %4801 = vmatpush1.msra.mxu0 0.0
    %4802 = vmatprep.subr.mxu0 0.0
    %4803 = vmatpush1.msra.mxu0 0.0
    %4804 = vmatprep.subr.mxu0 0.0
    %4805 = vmatpush1.msra.mxu0 0.0
    %4806 = vmatprep.subr.mxu0 0.0
    %4807 = vmatpush1.msra.mxu0 0.0
    %4808 = vmatprep.subr.mxu0 0.0
    %4809 = vmatpush1.msra.mxu0 0.0
    %4810 = vmatprep.subr.mxu0 0.0
    %4811 = vmatpush1.msra.mxu0 0.0
    %4812 = vmatprep.subr.mxu0 0.0
    %4813 = vmatpush1.msra.mxu0 0.0
    %4814 = vmatprep.subr.mxu0 0.0
    %4815 = vmatpush1.msra.mxu0 0.0
    %4816 = vmatprep.subr.mxu0 0.0
    %4817 = vmatpush1.msra.mxu0 0.0
    %4818 = vmatprep.subr.mxu0 0.0
    %4819 = vmatpush1.msra.mxu0 %v158
    %4820 = vmatprep.subr.mxu0 0.0
    %4821 = vmatpush1.msra.mxu0 %v157
    %4822 = vmatprep.subr.mxu0 0.0
    %4823 = vmatpush2.msra.mxu0 0.0
    %4824 = vmatprep.subr.mxu0 0.0
    %4825 = vmatpush2.msra.mxu0 0.0
    %4826 = vmatprep.subr.mxu0 0.0
    %4827 = vmatpush2.msra.mxu0 0.0
    %4828 = vmatprep.subr.mxu0 0.0
    %4829 = vmatpush2.msra.mxu0 0.0
    %4830 = vmatprep.subr.mxu0 0.0
    %4831 = vmatpush2.msra.mxu0 0.0
    %4832 = vmatprep.subr.mxu0 0.0
    %4833 = vmatpush2.msra.mxu0 0.0
    %4834 = vmatprep.subr.mxu0 0.0
    %4835 = vmatpush2.msra.mxu0 0.0
    %4836 = vmatprep.subr.mxu0 0.0
    %4837 = vmatpush2.msra.mxu0 0.0
    %4838 = vmatprep.subr.mxu0 0.0
    %4839 = vmatpush2.msra.mxu0 0.0
    %4840 = vmatprep.subr.mxu0 0.0
    %4841 = vmatpush2.msra.mxu0 0.0
    %4842 = vmatprep.subr.mxu0 0.0
    %4843 = vmatpush2.msra.mxu0 0.0
    %4844 = vmatprep.subr.mxu0 0.0
    %4845 = vmatpush2.msra.mxu0 0.0
    %4846 = vmatprep.subr.mxu0 0.0
    %4847 = vmatpush2.msra.mxu0 0.0
    %4848 = vmatprep.subr.mxu0 0.0
    %4849 = vmatpush2.msra.mxu0 0.0
    %4850 = vmatprep.subr.mxu0 0.0
    %4851 = vmatpush2.msra.mxu0 0.0
    %4852 = vmatprep.subr.mxu0 0.0
    %4853 = vmatpush2.msra.mxu0 0.0
    %4854 = vmatprep.mubr.f32.mxu0 0.0
    %4855 = vmatmul.mubr.f32.gmra.mxu0 %v4788
    %v4856 = vpop.f32.mrf.mxu0
    %v4857 = vadd.f32 %v232, %v4856
    %v4858 = vpop.f32.mrf.mxu0
    %4859 = vdwg.mxu0
    %4860 = vmatprep.subr.mxu0 0.0
    %4861 = vmatpush1.msra.mxu0 0.0
    %4862 = vmatprep.subr.mxu0 0.0
    %4863 = vmatpush1.msra.mxu0 0.0
    %4864 = vmatprep.subr.mxu0 0.0
    %4865 = vmatpush1.msra.mxu0 0.0
    %4866 = vmatprep.subr.mxu0 0.0
    %4867 = vmatpush1.msra.mxu0 0.0
    %4868 = vmatprep.subr.mxu0 0.0
    %4869 = vmatpush1.msra.mxu0 0.0
    %4870 = vmatprep.subr.mxu0 0.0
    %4871 = vmatpush1.msra.mxu0 0.0
    %4872 = vmatprep.subr.mxu0 0.0
    %4873 = vmatpush1.msra.mxu0 0.0
    %4874 = vmatprep.subr.mxu0 0.0
    %4875 = vmatpush1.msra.mxu0 0.0
    %4876 = vmatprep.subr.mxu0 0.0
    %4877 = vmatpush1.msra.mxu0 0.0
    %4878 = vmatprep.subr.mxu0 0.0
    %4879 = vmatpush1.msra.mxu0 0.0
    %4880 = vmatprep.subr.mxu0 0.0
    %4881 = vmatpush1.msra.mxu0 0.0
    %4882 = vmatprep.subr.mxu0 0.0
    %4883 = vmatpush1.msra.mxu0 0.0
    %4884 = vmatprep.subr.mxu0 0.0
    %4885 = vmatpush1.msra.mxu0 %v168
    %4886 = vmatprep.subr.mxu0 0.0
    %4887 = vmatpush1.msra.mxu0 %v167
    %4888 = vmatprep.subr.mxu0 0.0
    %4889 = vmatpush1.msra.mxu0 %v166
    %4890 = vmatprep.subr.mxu0 0.0
    %4891 = vmatpush1.msra.mxu0 %v165
    %4892 = vmatprep.subr.mxu0 0.0
    %4893 = vmatpush2.msra.mxu0 0.0
    %4894 = vmatprep.subr.mxu0 0.0
    %4895 = vmatpush2.msra.mxu0 0.0
    %4896 = vmatprep.subr.mxu0 0.0
    %4897 = vmatpush2.msra.mxu0 0.0
    %4898 = vmatprep.subr.mxu0 0.0
    %4899 = vmatpush2.msra.mxu0 0.0
    %4900 = vmatprep.subr.mxu0 0.0
    %4901 = vmatpush2.msra.mxu0 0.0
    %4902 = vmatprep.subr.mxu0 0.0
    %4903 = vmatpush2.msra.mxu0 0.0
    %4904 = vmatprep.subr.mxu0 0.0
    %4905 = vmatpush2.msra.mxu0 0.0
    %4906 = vmatprep.subr.mxu0 0.0
    %4907 = vmatpush2.msra.mxu0 0.0
    %4908 = vmatprep.subr.mxu0 0.0
    %4909 = vmatpush2.msra.mxu0 0.0
    %4910 = vmatprep.subr.mxu0 0.0
    %4911 = vmatpush2.msra.mxu0 0.0
    %4912 = vmatprep.subr.mxu0 0.0
    %4913 = vmatpush2.msra.mxu0 0.0
    %4914 = vmatprep.subr.mxu0 0.0
    %4915 = vmatpush2.msra.mxu0 0.0
    %4916 = vmatprep.subr.mxu0 0.0
    %4917 = vmatpush2.msra.mxu0 0.0
    %4918 = vmatprep.subr.mxu0 0.0
    %4919 = vmatpush2.msra.mxu0 0.0
    %4920 = vmatprep.subr.mxu0 0.0
    %4921 = vmatpush2.msra.mxu0 0.0
    %4922 = vmatprep.subr.mxu0 0.0
    %4923 = vmatpush2.msra.mxu0 0.0
    %4924 = vmatprep.mubr.f32.mxu0 0.0
    %4925 = vmatmul.mubr.f32.gmra.mxu0 %v4337
    %v4926 = vpop.f32.mrf.mxu0
    %v4927 = vadd.f32 0.0, %v4926
    %v4928 = vpop.f32.mrf.mxu0
    %4929 = vdwg.mxu0
    %v4930 = vadd.f32 %v4857, %v4927
    %v4931 = vadd.f32 %v4930, %v387
    %v4932 = vxor.u32 %v4931, 2147483648
    %v4933 = vmul.f32 %v4932, 1.442695
    %v4934 = vpow.pop %v4933
    %v4935 = vadd.f32 %v4934, 1.0
    %v4936 = vrcp.pop %v4935
    %v4937 = vmul.f32 1.0, %v4936
    %4938 = vmatprep.subr.mxu0 0.0
    %4939 = vmatpush1.msra.mxu0 0.0
    %4940 = vmatprep.subr.mxu0 0.0
    %4941 = vmatpush1.msra.mxu0 0.0
    %4942 = vmatprep.subr.mxu0 0.0
    %4943 = vmatpush1.msra.mxu0 0.0
    %4944 = vmatprep.subr.mxu0 0.0
    %4945 = vmatpush1.msra.mxu0 0.0
    %4946 = vmatprep.subr.mxu0 0.0
    %4947 = vmatpush1.msra.mxu0 0.0
    %4948 = vmatprep.subr.mxu0 0.0
    %4949 = vmatpush1.msra.mxu0 0.0
    %4950 = vmatprep.subr.mxu0 0.0
    %4951 = vmatpush1.msra.mxu0 0.0
    %4952 = vmatprep.subr.mxu0 0.0
    %4953 = vmatpush1.msra.mxu0 0.0
    %4954 = vmatprep.subr.mxu0 0.0
    %4955 = vmatpush1.msra.mxu0 0.0
    %4956 = vmatprep.subr.mxu0 0.0
    %4957 = vmatpush1.msra.mxu0 0.0
    %4958 = vmatprep.subr.mxu0 0.0
    %4959 = vmatpush1.msra.mxu0 0.0
    %4960 = vmatprep.subr.mxu0 0.0
    %4961 = vmatpush1.msra.mxu0 0.0
    %4962 = vmatprep.subr.mxu0 0.0
    %4963 = vmatpush1.msra.mxu0 0.0
    %4964 = vmatprep.subr.mxu0 0.0
    %4965 = vmatpush1.msra.mxu0 0.0
    %4966 = vmatprep.subr.mxu0 0.0
    %4967 = vmatpush1.msra.mxu0 %v161
    %4968 = vmatprep.subr.mxu0 0.0
    %4969 = vmatpush1.msra.mxu0 %v160
    %4970 = vmatprep.subr.mxu0 0.0
    %4971 = vmatpush2.msra.mxu0 0.0
    %4972 = vmatprep.subr.mxu0 0.0
    %4973 = vmatpush2.msra.mxu0 0.0
    %4974 = vmatprep.subr.mxu0 0.0
    %4975 = vmatpush2.msra.mxu0 0.0
    %4976 = vmatprep.subr.mxu0 0.0
    %4977 = vmatpush2.msra.mxu0 0.0
    %4978 = vmatprep.subr.mxu0 0.0
    %4979 = vmatpush2.msra.mxu0 0.0
    %4980 = vmatprep.subr.mxu0 0.0
    %4981 = vmatpush2.msra.mxu0 0.0
    %4982 = vmatprep.subr.mxu0 0.0
    %4983 = vmatpush2.msra.mxu0 0.0
    %4984 = vmatprep.subr.mxu0 0.0
    %4985 = vmatpush2.msra.mxu0 0.0
    %4986 = vmatprep.subr.mxu0 0.0
    %4987 = vmatpush2.msra.mxu0 0.0
    %4988 = vmatprep.subr.mxu0 0.0
    %4989 = vmatpush2.msra.mxu0 0.0
    %4990 = vmatprep.subr.mxu0 0.0
    %4991 = vmatpush2.msra.mxu0 0.0
    %4992 = vmatprep.subr.mxu0 0.0
    %4993 = vmatpush2.msra.mxu0 0.0
    %4994 = vmatprep.subr.mxu0 0.0
    %4995 = vmatpush2.msra.mxu0 0.0
    %4996 = vmatprep.subr.mxu0 0.0
    %4997 = vmatpush2.msra.mxu0 0.0
    %4998 = vmatprep.subr.mxu0 0.0
    %4999 = vmatpush2.msra.mxu0 0.0
    %5000 = vmatprep.subr.mxu0 0.0
    %5001 = vmatpush2.msra.mxu0 0.0
    %5002 = vmatprep.mubr.f32.mxu0 0.0
    %5003 = vmatmul.mubr.f32.gmra.mxu0 %v4788
    %v5004 = vpop.f32.mrf.mxu0
    %v5005 = vadd.f32 %v400, %v5004
    %v5006 = vpop.f32.mrf.mxu0
    %5007 = vdwg.mxu0
    %5008 = vmatprep.subr.mxu0 0.0
    %5009 = vmatpush1.msra.mxu0 0.0
    %5010 = vmatprep.subr.mxu0 0.0
    %5011 = vmatpush1.msra.mxu0 0.0
    %5012 = vmatprep.subr.mxu0 0.0
    %5013 = vmatpush1.msra.mxu0 0.0
    %5014 = vmatprep.subr.mxu0 0.0
    %5015 = vmatpush1.msra.mxu0 0.0
    %5016 = vmatprep.subr.mxu0 0.0
    %5017 = vmatpush1.msra.mxu0 0.0
    %5018 = vmatprep.subr.mxu0 0.0
    %5019 = vmatpush1.msra.mxu0 0.0
    %5020 = vmatprep.subr.mxu0 0.0
    %5021 = vmatpush1.msra.mxu0 0.0
    %5022 = vmatprep.subr.mxu0 0.0
    %5023 = vmatpush1.msra.mxu0 0.0
    %5024 = vmatprep.subr.mxu0 0.0
    %5025 = vmatpush1.msra.mxu0 0.0
    %5026 = vmatprep.subr.mxu0 0.0
    %5027 = vmatpush1.msra.mxu0 0.0
    %5028 = vmatprep.subr.mxu0 0.0
    %5029 = vmatpush1.msra.mxu0 0.0
    %5030 = vmatprep.subr.mxu0 0.0
    %5031 = vmatpush1.msra.mxu0 0.0
    %5032 = vmatprep.subr.mxu0 0.0
    %5033 = vmatpush1.msra.mxu0 %v173
    %5034 = vmatprep.subr.mxu0 0.0
    %5035 = vmatpush1.msra.mxu0 %v172
    %5036 = vmatprep.subr.mxu0 0.0
    %5037 = vmatpush1.msra.mxu0 %v171
    %5038 = vmatprep.subr.mxu0 0.0
    %5039 = vmatpush1.msra.mxu0 %v170
    %5040 = vmatprep.subr.mxu0 0.0
    %5041 = vmatpush2.msra.mxu0 0.0
    %5042 = vmatprep.subr.mxu0 0.0
    %5043 = vmatpush2.msra.mxu0 0.0
    %5044 = vmatprep.subr.mxu0 0.0
    %5045 = vmatpush2.msra.mxu0 0.0
    %5046 = vmatprep.subr.mxu0 0.0
    %5047 = vmatpush2.msra.mxu0 0.0
    %5048 = vmatprep.subr.mxu0 0.0
    %5049 = vmatpush2.msra.mxu0 0.0
    %5050 = vmatprep.subr.mxu0 0.0
    %5051 = vmatpush2.msra.mxu0 0.0
    %5052 = vmatprep.subr.mxu0 0.0
    %5053 = vmatpush2.msra.mxu0 0.0
    %5054 = vmatprep.subr.mxu0 0.0
    %5055 = vmatpush2.msra.mxu0 0.0
    %5056 = vmatprep.subr.mxu0 0.0
    %5057 = vmatpush2.msra.mxu0 0.0
    %5058 = vmatprep.subr.mxu0 0.0
    %5059 = vmatpush2.msra.mxu0 0.0
    %5060 = vmatprep.subr.mxu0 0.0
    %5061 = vmatpush2.msra.mxu0 0.0
    %5062 = vmatprep.subr.mxu0 0.0
    %5063 = vmatpush2.msra.mxu0 0.0
    %5064 = vmatprep.subr.mxu0 0.0
    %5065 = vmatpush2.msra.mxu0 0.0
    %5066 = vmatprep.subr.mxu0 0.0
    %5067 = vmatpush2.msra.mxu0 0.0
    %5068 = vmatprep.subr.mxu0 0.0
    %5069 = vmatpush2.msra.mxu0 0.0
    %5070 = vmatprep.subr.mxu0 0.0
    %5071 = vmatpush2.msra.mxu0 0.0
    %5072 = vmatprep.mubr.f32.mxu0 0.0
    %5073 = vmatmul.mubr.f32.gmra.mxu0 %v4337
    %v5074 = vpop.f32.mrf.mxu0
    %v5075 = vadd.f32 0.0, %v5074
    %v5076 = vpop.f32.mrf.mxu0
    %5077 = vdwg.mxu0
    %v5078 = vadd.f32 %v5005, %v5075
    %v5079 = vadd.f32 %v5078, %v547
    %v5080 = vxor.u32 %v5079, 2147483648
    %v5081 = vmul.f32 %v5080, 1.442695
    %v5082 = vpow.pop %v5081
    %v5083 = vadd.f32 %v5082, 1.0
    %v5084 = vrcp.pop %v5083
    %v5085 = vmul.f32 1.0, %v5084
    %5086 = vmatprep.subr.mxu0 0.0
    %5087 = vmatpush1.msra.mxu0 0.0
    %5088 = vmatprep.subr.mxu0 0.0
    %5089 = vmatpush1.msra.mxu0 0.0
    %5090 = vmatprep.subr.mxu0 0.0
    %5091 = vmatpush1.msra.mxu0 0.0
    %5092 = vmatprep.subr.mxu0 0.0
    %5093 = vmatpush1.msra.mxu0 0.0
    %5094 = vmatprep.subr.mxu0 0.0
    %5095 = vmatpush1.msra.mxu0 0.0
    %5096 = vmatprep.subr.mxu0 0.0
    %5097 = vmatpush1.msra.mxu0 0.0
    %5098 = vmatprep.subr.mxu0 0.0
    %5099 = vmatpush1.msra.mxu0 0.0
    %5100 = vmatprep.subr.mxu0 0.0
    %5101 = vmatpush1.msra.mxu0 0.0
    %5102 = vmatprep.subr.mxu0 0.0
    %5103 = vmatpush1.msra.mxu0 0.0
    %5104 = vmatprep.subr.mxu0 0.0
    %5105 = vmatpush1.msra.mxu0 0.0
    %5106 = vmatprep.subr.mxu0 0.0
    %5107 = vmatpush1.msra.mxu0 0.0
    %5108 = vmatprep.subr.mxu0 0.0
    %5109 = vmatpush1.msra.mxu0 0.0
    %5110 = vmatprep.subr.mxu0 0.0
    %5111 = vmatpush1.msra.mxu0 0.0
    %5112 = vmatprep.subr.mxu0 0.0
    %5113 = vmatpush1.msra.mxu0 0.0
    %5114 = vmatprep.subr.mxu0 0.0
    %5115 = vmatpush1.msra.mxu0 %v164
    %5116 = vmatprep.subr.mxu0 0.0
    %5117 = vmatpush1.msra.mxu0 %v163
    %5118 = vmatprep.subr.mxu0 0.0
    %5119 = vmatpush2.msra.mxu0 0.0
    %5120 = vmatprep.subr.mxu0 0.0
    %5121 = vmatpush2.msra.mxu0 0.0
    %5122 = vmatprep.subr.mxu0 0.0
    %5123 = vmatpush2.msra.mxu0 0.0
    %5124 = vmatprep.subr.mxu0 0.0
    %5125 = vmatpush2.msra.mxu0 0.0
    %5126 = vmatprep.subr.mxu0 0.0
    %5127 = vmatpush2.msra.mxu0 0.0
    %5128 = vmatprep.subr.mxu0 0.0
    %5129 = vmatpush2.msra.mxu0 0.0
    %5130 = vmatprep.subr.mxu0 0.0
    %5131 = vmatpush2.msra.mxu0 0.0
    %5132 = vmatprep.subr.mxu0 0.0
    %5133 = vmatpush2.msra.mxu0 0.0
    %5134 = vmatprep.subr.mxu0 0.0
    %5135 = vmatpush2.msra.mxu0 0.0
    %5136 = vmatprep.subr.mxu0 0.0
    %5137 = vmatpush2.msra.mxu0 0.0
    %5138 = vmatprep.subr.mxu0 0.0
    %5139 = vmatpush2.msra.mxu0 0.0
    %5140 = vmatprep.subr.mxu0 0.0
    %5141 = vmatpush2.msra.mxu0 0.0
    %5142 = vmatprep.subr.mxu0 0.0
    %5143 = vmatpush2.msra.mxu0 0.0
    %5144 = vmatprep.subr.mxu0 0.0
    %5145 = vmatpush2.msra.mxu0 0.0
    %5146 = vmatprep.subr.mxu0 0.0
    %5147 = vmatpush2.msra.mxu0 0.0
    %5148 = vmatprep.subr.mxu0 0.0
    %5149 = vmatpush2.msra.mxu0 0.0
    %5150 = vmatprep.mubr.f32.mxu0 0.0
    %5151 = vmatmul.mubr.f32.gmra.mxu0 %v4788
    %v5152 = vpop.f32.mrf.mxu0
    %v5153 = vadd.f32 %v560, %v5152
    %v5154 = vpop.f32.mrf.mxu0
    %5155 = vdwg.mxu0
    %5156 = vmatprep.subr.mxu0 0.0
    %5157 = vmatpush1.msra.mxu0 0.0
    %5158 = vmatprep.subr.mxu0 0.0
    %5159 = vmatpush1.msra.mxu0 0.0
    %5160 = vmatprep.subr.mxu0 0.0
    %5161 = vmatpush1.msra.mxu0 0.0
    %5162 = vmatprep.subr.mxu0 0.0
    %5163 = vmatpush1.msra.mxu0 0.0
    %5164 = vmatprep.subr.mxu0 0.0
    %5165 = vmatpush1.msra.mxu0 0.0
    %5166 = vmatprep.subr.mxu0 0.0
    %5167 = vmatpush1.msra.mxu0 0.0
    %5168 = vmatprep.subr.mxu0 0.0
    %5169 = vmatpush1.msra.mxu0 0.0
    %5170 = vmatprep.subr.mxu0 0.0
    %5171 = vmatpush1.msra.mxu0 0.0
    %5172 = vmatprep.subr.mxu0 0.0
    %5173 = vmatpush1.msra.mxu0 0.0
    %5174 = vmatprep.subr.mxu0 0.0
    %5175 = vmatpush1.msra.mxu0 0.0
    %5176 = vmatprep.subr.mxu0 0.0
    %5177 = vmatpush1.msra.mxu0 0.0
    %5178 = vmatprep.subr.mxu0 0.0
    %5179 = vmatpush1.msra.mxu0 0.0
    %5180 = vmatprep.subr.mxu0 0.0
    %5181 = vmatpush1.msra.mxu0 %v178
    %5182 = vmatprep.subr.mxu0 0.0
    %5183 = vmatpush1.msra.mxu0 %v177
    %5184 = vmatprep.subr.mxu0 0.0
    %5185 = vmatpush1.msra.mxu0 %v176
    %5186 = vmatprep.subr.mxu0 0.0
    %5187 = vmatpush1.msra.mxu0 %v175
    %5188 = vmatprep.subr.mxu0 0.0
    %5189 = vmatpush2.msra.mxu0 0.0
    %5190 = vmatprep.subr.mxu0 0.0
    %5191 = vmatpush2.msra.mxu0 0.0
    %5192 = vmatprep.subr.mxu0 0.0
    %5193 = vmatpush2.msra.mxu0 0.0
    %5194 = vmatprep.subr.mxu0 0.0
    %5195 = vmatpush2.msra.mxu0 0.0
    %5196 = vmatprep.subr.mxu0 0.0
    %5197 = vmatpush2.msra.mxu0 0.0
    %5198 = vmatprep.subr.mxu0 0.0
    %5199 = vmatpush2.msra.mxu0 0.0
    %5200 = vmatprep.subr.mxu0 0.0
    %5201 = vmatpush2.msra.mxu0 0.0
    %5202 = vmatprep.subr.mxu0 0.0
    %5203 = vmatpush2.msra.mxu0 0.0
    %5204 = vmatprep.subr.mxu0 0.0
    %5205 = vmatpush2.msra.mxu0 0.0
    %5206 = vmatprep.subr.mxu0 0.0
    %5207 = vmatpush2.msra.mxu0 0.0
    %5208 = vmatprep.subr.mxu0 0.0
    %5209 = vmatpush2.msra.mxu0 0.0
    %5210 = vmatprep.subr.mxu0 0.0
    %5211 = vmatpush2.msra.mxu0 0.0
    %5212 = vmatprep.subr.mxu0 0.0
    %5213 = vmatpush2.msra.mxu0 0.0
    %5214 = vmatprep.subr.mxu0 0.0
    %5215 = vmatpush2.msra.mxu0 0.0
    %5216 = vmatprep.subr.mxu0 0.0
    %5217 = vmatpush2.msra.mxu0 0.0
    %5218 = vmatprep.subr.mxu0 0.0
    %5219 = vmatpush2.msra.mxu0 0.0
    %5220 = vmatprep.mubr.f32.mxu0 0.0
    %5221 = vmatmul.mubr.f32.gmra.mxu0 %v4337
    %v5222 = vpop.f32.mrf.mxu0
    %v5223 = vadd.f32 %v636, %v5222
    %v5224 = vpop.f32.mrf.mxu0
    %5225 = vdwg.mxu0
    %v5226 = vmul.f32 %v4937, %v5223
    %v5227 = vadd.f32 %v5153, %v5226
    %v5228 = vtanh.pop %v5227
    %v5229 = vsub.f32 1.0, %v5085
    %v5230 = vmul.f32 %v5229, %v5228
    %v5231 = vmul.f32 %v5085, %v4335
    %v5232 = vadd.f32 %v5230, %v5231
    %v5234 = vsel %vm308, %v5232, 0
    %5236 = vmatprep.subr.mxu0 0.0
    %5237 = vmatpush1.msra.mxu0 0.0
    %5238 = vmatprep.subr.mxu0 0.0
    %5239 = vmatpush1.msra.mxu0 0.0
    %5240 = vmatprep.subr.mxu0 0.0
    %5241 = vmatpush1.msra.mxu0 0.0
    %5242 = vmatprep.subr.mxu0 0.0
    %5243 = vmatpush1.msra.mxu0 0.0
    %5244 = vmatprep.subr.mxu0 0.0
    %5245 = vmatpush1.msra.mxu0 0.0
    %5246 = vmatprep.subr.mxu0 0.0
    %5247 = vmatpush1.msra.mxu0 0.0
    %5248 = vmatprep.subr.mxu0 0.0
    %5249 = vmatpush1.msra.mxu0 0.0
    %5250 = vmatprep.subr.mxu0 0.0
    %5251 = vmatpush1.msra.mxu0 0.0
    %5252 = vmatprep.subr.mxu0 0.0
    %5253 = vmatpush1.msra.mxu0 0.0
    %5254 = vmatprep.subr.mxu0 0.0
    %5255 = vmatpush1.msra.mxu0 0.0
    %5256 = vmatprep.subr.mxu0 0.0
    %5257 = vmatpush1.msra.mxu0 0.0
    %5258 = vmatprep.subr.mxu0 0.0
    %5259 = vmatpush1.msra.mxu0 0.0
    %5260 = vmatprep.subr.mxu0 0.0
    %5261 = vmatpush1.msra.mxu0 %v192
    %5262 = vmatprep.subr.mxu0 0.0
    %5263 = vmatpush1.msra.mxu0 %v191
    %5264 = vmatprep.subr.mxu0 0.0
    %5265 = vmatpush1.msra.mxu0 %v190
    %5266 = vmatprep.subr.mxu0 0.0
    %5267 = vmatpush1.msra.mxu0 %v189
    %5268 = vmatprep.subr.mxu0 0.0
    %5269 = vmatpush2.msra.mxu0 0.0
    %5270 = vmatprep.subr.mxu0 0.0
    %5271 = vmatpush2.msra.mxu0 0.0
    %5272 = vmatprep.subr.mxu0 0.0
    %5273 = vmatpush2.msra.mxu0 0.0
    %5274 = vmatprep.subr.mxu0 0.0
    %5275 = vmatpush2.msra.mxu0 0.0
    %5276 = vmatprep.subr.mxu0 0.0
    %5277 = vmatpush2.msra.mxu0 0.0
    %5278 = vmatprep.subr.mxu0 0.0
    %5279 = vmatpush2.msra.mxu0 0.0
    %5280 = vmatprep.subr.mxu0 0.0
    %5281 = vmatpush2.msra.mxu0 0.0
    %5282 = vmatprep.subr.mxu0 0.0
    %5283 = vmatpush2.msra.mxu0 0.0
    %5284 = vmatprep.subr.mxu0 0.0
    %5285 = vmatpush2.msra.mxu0 0.0
    %5286 = vmatprep.subr.mxu0 0.0
    %5287 = vmatpush2.msra.mxu0 0.0
    %5288 = vmatprep.subr.mxu0 0.0
    %5289 = vmatpush2.msra.mxu0 0.0
    %5290 = vmatprep.subr.mxu0 0.0
    %5291 = vmatpush2.msra.mxu0 0.0
    %5292 = vmatprep.subr.mxu0 0.0
    %5293 = vmatpush2.msra.mxu0 0.0
    %5294 = vmatprep.subr.mxu0 0.0
    %5295 = vmatpush2.msra.mxu0 0.0
    %5296 = vmatprep.subr.mxu0 0.0
    %5297 = vmatpush2.msra.mxu0 0.0
    %5298 = vmatprep.subr.mxu0 0.0
    %5299 = vmatpush2.msra.mxu0 0.0
    %5300 = vmatprep.mubr.f32.mxu0 0.0
    %5301 = vmatmul.mubr.f32.gmra.mxu0 %v5234
    %v5302 = vpop.f32.mrf.mxu0
    %v5303 = vadd.f32 %v719, %v5302
    %v5304 = vpop.f32.mrf.mxu0
    %5305 = vdwg.mxu0
    %v5307 = vsel %vm308, %v4784, 0
    %5309 = vmatprep.subr.mxu0 0.0
    %5310 = vmatpush1.msra.mxu0 0.0
    %5311 = vmatprep.subr.mxu0 0.0
    %5312 = vmatpush1.msra.mxu0 0.0
    %5313 = vmatprep.subr.mxu0 0.0
    %5314 = vmatpush1.msra.mxu0 0.0
    %5315 = vmatprep.subr.mxu0 0.0
    %5316 = vmatpush1.msra.mxu0 0.0
    %5317 = vmatprep.subr.mxu0 0.0
    %5318 = vmatpush1.msra.mxu0 0.0
    %5319 = vmatprep.subr.mxu0 0.0
    %5320 = vmatpush1.msra.mxu0 0.0
    %5321 = vmatprep.subr.mxu0 0.0
    %5322 = vmatpush1.msra.mxu0 0.0
    %5323 = vmatprep.subr.mxu0 0.0
    %5324 = vmatpush1.msra.mxu0 0.0
    %5325 = vmatprep.subr.mxu0 0.0
    %5326 = vmatpush1.msra.mxu0 0.0
    %5327 = vmatprep.subr.mxu0 0.0
    %5328 = vmatpush1.msra.mxu0 0.0
    %5329 = vmatprep.subr.mxu0 0.0
    %5330 = vmatpush1.msra.mxu0 0.0
    %5331 = vmatprep.subr.mxu0 0.0
    %5332 = vmatpush1.msra.mxu0 0.0
    %5333 = vmatprep.subr.mxu0 0.0
    %5334 = vmatpush1.msra.mxu0 %v206
    %5335 = vmatprep.subr.mxu0 0.0
    %5336 = vmatpush1.msra.mxu0 %v205
    %5337 = vmatprep.subr.mxu0 0.0
    %5338 = vmatpush1.msra.mxu0 %v204
    %5339 = vmatprep.subr.mxu0 0.0
    %5340 = vmatpush1.msra.mxu0 %v203
    %5341 = vmatprep.subr.mxu0 0.0
    %5342 = vmatpush2.msra.mxu0 0.0
    %5343 = vmatprep.subr.mxu0 0.0
    %5344 = vmatpush2.msra.mxu0 0.0
    %5345 = vmatprep.subr.mxu0 0.0
    %5346 = vmatpush2.msra.mxu0 0.0
    %5347 = vmatprep.subr.mxu0 0.0
    %5348 = vmatpush2.msra.mxu0 0.0
    %5349 = vmatprep.subr.mxu0 0.0
    %5350 = vmatpush2.msra.mxu0 0.0
    %5351 = vmatprep.subr.mxu0 0.0
    %5352 = vmatpush2.msra.mxu0 0.0
    %5353 = vmatprep.subr.mxu0 0.0
    %5354 = vmatpush2.msra.mxu0 0.0
    %5355 = vmatprep.subr.mxu0 0.0
    %5356 = vmatpush2.msra.mxu0 0.0
    %5357 = vmatprep.subr.mxu0 0.0
    %5358 = vmatpush2.msra.mxu0 0.0
    %5359 = vmatprep.subr.mxu0 0.0
    %5360 = vmatpush2.msra.mxu0 0.0
    %5361 = vmatprep.subr.mxu0 0.0
    %5362 = vmatpush2.msra.mxu0 0.0
    %5363 = vmatprep.subr.mxu0 0.0
    %5364 = vmatpush2.msra.mxu0 0.0
    %5365 = vmatprep.subr.mxu0 0.0
    %5366 = vmatpush2.msra.mxu0 0.0
    %5367 = vmatprep.subr.mxu0 0.0
    %5368 = vmatpush2.msra.mxu0 0.0
    %5369 = vmatprep.subr.mxu0 0.0
    %5370 = vmatpush2.msra.mxu0 0.0
    %5371 = vmatprep.subr.mxu0 0.0
    %5372 = vmatpush2.msra.mxu0 0.0
    %5373 = vmatprep.mubr.f32.mxu0 0.0
    %5374 = vmatmul.mubr.f32.gmra.mxu0 %v5307
    %v5375 = vpop.f32.mrf.mxu0
    %v5376 = vadd.f32 0.0, %v5375
    %v5377 = vpop.f32.mrf.mxu0
    %5378 = vdwg.mxu0
    %v5379 = vadd.f32 %v5303, %v5376
    %v5380 = vadd.f32 %v5379, %v869
    %v5381 = vxor.u32 %v5380, 2147483648
    %v5382 = vmul.f32 %v5381, 1.442695
    %v5383 = vpow.pop %v5382
    %v5384 = vadd.f32 %v5383, 1.0
    %v5385 = vrcp.pop %v5384
    %v5386 = vmul.f32 1.0, %v5385
    %5387 = vmatprep.subr.mxu0 0.0
    %5388 = vmatpush1.msra.mxu0 0.0
    %5389 = vmatprep.subr.mxu0 0.0
    %5390 = vmatpush1.msra.mxu0 0.0
    %5391 = vmatprep.subr.mxu0 0.0
    %5392 = vmatpush1.msra.mxu0 0.0
    %5393 = vmatprep.subr.mxu0 0.0
    %5394 = vmatpush1.msra.mxu0 0.0
    %5395 = vmatprep.subr.mxu0 0.0
    %5396 = vmatpush1.msra.mxu0 0.0
    %5397 = vmatprep.subr.mxu0 0.0
    %5398 = vmatpush1.msra.mxu0 0.0
    %5399 = vmatprep.subr.mxu0 0.0
    %5400 = vmatpush1.msra.mxu0 0.0
    %5401 = vmatprep.subr.mxu0 0.0
    %5402 = vmatpush1.msra.mxu0 0.0
    %5403 = vmatprep.subr.mxu0 0.0
    %5404 = vmatpush1.msra.mxu0 0.0
    %5405 = vmatprep.subr.mxu0 0.0
    %5406 = vmatpush1.msra.mxu0 0.0
    %5407 = vmatprep.subr.mxu0 0.0
    %5408 = vmatpush1.msra.mxu0 0.0
    %5409 = vmatprep.subr.mxu0 0.0
    %5410 = vmatpush1.msra.mxu0 0.0
    %5411 = vmatprep.subr.mxu0 0.0
    %5412 = vmatpush1.msra.mxu0 %v197
    %5413 = vmatprep.subr.mxu0 0.0
    %5414 = vmatpush1.msra.mxu0 %v196
    %5415 = vmatprep.subr.mxu0 0.0
    %5416 = vmatpush1.msra.mxu0 %v195
    %5417 = vmatprep.subr.mxu0 0.0
    %5418 = vmatpush1.msra.mxu0 %v194
    %5419 = vmatprep.subr.mxu0 0.0
    %5420 = vmatpush2.msra.mxu0 0.0
    %5421 = vmatprep.subr.mxu0 0.0
    %5422 = vmatpush2.msra.mxu0 0.0
    %5423 = vmatprep.subr.mxu0 0.0
    %5424 = vmatpush2.msra.mxu0 0.0
    %5425 = vmatprep.subr.mxu0 0.0
    %5426 = vmatpush2.msra.mxu0 0.0
    %5427 = vmatprep.subr.mxu0 0.0
    %5428 = vmatpush2.msra.mxu0 0.0
    %5429 = vmatprep.subr.mxu0 0.0
    %5430 = vmatpush2.msra.mxu0 0.0
    %5431 = vmatprep.subr.mxu0 0.0
    %5432 = vmatpush2.msra.mxu0 0.0
    %5433 = vmatprep.subr.mxu0 0.0
    %5434 = vmatpush2.msra.mxu0 0.0
    %5435 = vmatprep.subr.mxu0 0.0
    %5436 = vmatpush2.msra.mxu0 0.0
    %5437 = vmatprep.subr.mxu0 0.0
    %5438 = vmatpush2.msra.mxu0 0.0
    %5439 = vmatprep.subr.mxu0 0.0
    %5440 = vmatpush2.msra.mxu0 0.0
    %5441 = vmatprep.subr.mxu0 0.0
    %5442 = vmatpush2.msra.mxu0 0.0
    %5443 = vmatprep.subr.mxu0 0.0
    %5444 = vmatpush2.msra.mxu0 0.0
    %5445 = vmatprep.subr.mxu0 0.0
    %5446 = vmatpush2.msra.mxu0 0.0
    %5447 = vmatprep.subr.mxu0 0.0
    %5448 = vmatpush2.msra.mxu0 0.0
    %5449 = vmatprep.subr.mxu0 0.0
    %5450 = vmatpush2.msra.mxu0 0.0
    %5451 = vmatprep.mubr.f32.mxu0 0.0
    %5452 = vmatmul.mubr.f32.gmra.mxu0 %v5234
    %v5453 = vpop.f32.mrf.mxu0
    %v5454 = vadd.f32 %v882, %v5453
    %v5455 = vpop.f32.mrf.mxu0
    %5456 = vdwg.mxu0
    %5457 = vmatprep.subr.mxu0 0.0
    %5458 = vmatpush1.msra.mxu0 0.0
    %5459 = vmatprep.subr.mxu0 0.0
    %5460 = vmatpush1.msra.mxu0 0.0
    %5461 = vmatprep.subr.mxu0 0.0
    %5462 = vmatpush1.msra.mxu0 0.0
    %5463 = vmatprep.subr.mxu0 0.0
    %5464 = vmatpush1.msra.mxu0 0.0
    %5465 = vmatprep.subr.mxu0 0.0
    %5466 = vmatpush1.msra.mxu0 0.0
    %5467 = vmatprep.subr.mxu0 0.0
    %5468 = vmatpush1.msra.mxu0 0.0
    %5469 = vmatprep.subr.mxu0 0.0
    %5470 = vmatpush1.msra.mxu0 0.0
    %5471 = vmatprep.subr.mxu0 0.0
    %5472 = vmatpush1.msra.mxu0 0.0
    %5473 = vmatprep.subr.mxu0 0.0
    %5474 = vmatpush1.msra.mxu0 0.0
    %5475 = vmatprep.subr.mxu0 0.0
    %5476 = vmatpush1.msra.mxu0 0.0
    %5477 = vmatprep.subr.mxu0 0.0
    %5478 = vmatpush1.msra.mxu0 0.0
    %5479 = vmatprep.subr.mxu0 0.0
    %5480 = vmatpush1.msra.mxu0 0.0
    %5481 = vmatprep.subr.mxu0 0.0
    %5482 = vmatpush1.msra.mxu0 %v211
    %5483 = vmatprep.subr.mxu0 0.0
    %5484 = vmatpush1.msra.mxu0 %v210
    %5485 = vmatprep.subr.mxu0 0.0
    %5486 = vmatpush1.msra.mxu0 %v209
    %5487 = vmatprep.subr.mxu0 0.0
    %5488 = vmatpush1.msra.mxu0 %v208
    %5489 = vmatprep.subr.mxu0 0.0
    %5490 = vmatpush2.msra.mxu0 0.0
    %5491 = vmatprep.subr.mxu0 0.0
    %5492 = vmatpush2.msra.mxu0 0.0
    %5493 = vmatprep.subr.mxu0 0.0
    %5494 = vmatpush2.msra.mxu0 0.0
    %5495 = vmatprep.subr.mxu0 0.0
    %5496 = vmatpush2.msra.mxu0 0.0
    %5497 = vmatprep.subr.mxu0 0.0
    %5498 = vmatpush2.msra.mxu0 0.0
    %5499 = vmatprep.subr.mxu0 0.0
    %5500 = vmatpush2.msra.mxu0 0.0
    %5501 = vmatprep.subr.mxu0 0.0
    %5502 = vmatpush2.msra.mxu0 0.0
    %5503 = vmatprep.subr.mxu0 0.0
    %5504 = vmatpush2.msra.mxu0 0.0
    %5505 = vmatprep.subr.mxu0 0.0
    %5506 = vmatpush2.msra.mxu0 0.0
    %5507 = vmatprep.subr.mxu0 0.0
    %5508 = vmatpush2.msra.mxu0 0.0
    %5509 = vmatprep.subr.mxu0 0.0
    %5510 = vmatpush2.msra.mxu0 0.0
    %5511 = vmatprep.subr.mxu0 0.0
    %5512 = vmatpush2.msra.mxu0 0.0
    %5513 = vmatprep.subr.mxu0 0.0
    %5514 = vmatpush2.msra.mxu0 0.0
    %5515 = vmatprep.subr.mxu0 0.0
    %5516 = vmatpush2.msra.mxu0 0.0
    %5517 = vmatprep.subr.mxu0 0.0
    %5518 = vmatpush2.msra.mxu0 0.0
    %5519 = vmatprep.subr.mxu0 0.0
    %5520 = vmatpush2.msra.mxu0 0.0
    %5521 = vmatprep.mubr.f32.mxu0 0.0
    %5522 = vmatmul.mubr.f32.gmra.mxu0 %v5307
    %v5523 = vpop.f32.mrf.mxu0
    %v5524 = vadd.f32 0.0, %v5523
    %v5525 = vpop.f32.mrf.mxu0
    %5526 = vdwg.mxu0
    %v5527 = vadd.f32 %v5454, %v5524
    %v5528 = vadd.f32 %v5527, %v1029
    %v5529 = vxor.u32 %v5528, 2147483648
    %v5530 = vmul.f32 %v5529, 1.442695
    %v5531 = vpow.pop %v5530
    %v5532 = vadd.f32 %v5531, 1.0
    %v5533 = vrcp.pop %v5532
    %v5534 = vmul.f32 1.0, %v5533
    %5535 = vmatprep.subr.mxu0 0.0
    %5536 = vmatpush1.msra.mxu0 0.0
    %5537 = vmatprep.subr.mxu0 0.0
    %5538 = vmatpush1.msra.mxu0 0.0
    %5539 = vmatprep.subr.mxu0 0.0
    %5540 = vmatpush1.msra.mxu0 0.0
    %5541 = vmatprep.subr.mxu0 0.0
    %5542 = vmatpush1.msra.mxu0 0.0
    %5543 = vmatprep.subr.mxu0 0.0
    %5544 = vmatpush1.msra.mxu0 0.0
    %5545 = vmatprep.subr.mxu0 0.0
    %5546 = vmatpush1.msra.mxu0 0.0
    %5547 = vmatprep.subr.mxu0 0.0
    %5548 = vmatpush1.msra.mxu0 0.0
    %5549 = vmatprep.subr.mxu0 0.0
    %5550 = vmatpush1.msra.mxu0 0.0
    %5551 = vmatprep.subr.mxu0 0.0
    %5552 = vmatpush1.msra.mxu0 0.0
    %5553 = vmatprep.subr.mxu0 0.0
    %5554 = vmatpush1.msra.mxu0 0.0
    %5555 = vmatprep.subr.mxu0 0.0
    %5556 = vmatpush1.msra.mxu0 0.0
    %5557 = vmatprep.subr.mxu0 0.0
    %5558 = vmatpush1.msra.mxu0 0.0
    %5559 = vmatprep.subr.mxu0 0.0
    %5560 = vmatpush1.msra.mxu0 %v202
    %5561 = vmatprep.subr.mxu0 0.0
    %5562 = vmatpush1.msra.mxu0 %v201
    %5563 = vmatprep.subr.mxu0 0.0
    %5564 = vmatpush1.msra.mxu0 %v200
    %5565 = vmatprep.subr.mxu0 0.0
    %5566 = vmatpush1.msra.mxu0 %v199
    %5567 = vmatprep.subr.mxu0 0.0
    %5568 = vmatpush2.msra.mxu0 0.0
    %5569 = vmatprep.subr.mxu0 0.0
    %5570 = vmatpush2.msra.mxu0 0.0
    %5571 = vmatprep.subr.mxu0 0.0
    %5572 = vmatpush2.msra.mxu0 0.0
    %5573 = vmatprep.subr.mxu0 0.0
    %5574 = vmatpush2.msra.mxu0 0.0
    %5575 = vmatprep.subr.mxu0 0.0
    %5576 = vmatpush2.msra.mxu0 0.0
    %5577 = vmatprep.subr.mxu0 0.0
    %5578 = vmatpush2.msra.mxu0 0.0
    %5579 = vmatprep.subr.mxu0 0.0
    %5580 = vmatpush2.msra.mxu0 0.0
    %5581 = vmatprep.subr.mxu0 0.0
    %5582 = vmatpush2.msra.mxu0 0.0
    %5583 = vmatprep.subr.mxu0 0.0
    %5584 = vmatpush2.msra.mxu0 0.0
    %5585 = vmatprep.subr.mxu0 0.0
    %5586 = vmatpush2.msra.mxu0 0.0
    %5587 = vmatprep.subr.mxu0 0.0
    %5588 = vmatpush2.msra.mxu0 0.0
    %5589 = vmatprep.subr.mxu0 0.0
    %5590 = vmatpush2.msra.mxu0 0.0
    %5591 = vmatprep.subr.mxu0 0.0
    %5592 = vmatpush2.msra.mxu0 0.0
    %5593 = vmatprep.subr.mxu0 0.0
    %5594 = vmatpush2.msra.mxu0 0.0
    %5595 = vmatprep.subr.mxu0 0.0
    %5596 = vmatpush2.msra.mxu0 0.0
    %5597 = vmatprep.subr.mxu0 0.0
    %5598 = vmatpush2.msra.mxu0 0.0
    %5599 = vmatprep.mubr.f32.mxu0 0.0
    %5600 = vmatmul.mubr.f32.gmra.mxu0 %v5234
    %v5601 = vpop.f32.mrf.mxu0
    %v5602 = vadd.f32 %v1042, %v5601
    %v5603 = vpop.f32.mrf.mxu0
    %5604 = vdwg.mxu0
    %5605 = vmatprep.subr.mxu0 0.0
    %5606 = vmatpush1.msra.mxu0 0.0
    %5607 = vmatprep.subr.mxu0 0.0
    %5608 = vmatpush1.msra.mxu0 0.0
    %5609 = vmatprep.subr.mxu0 0.0
    %5610 = vmatpush1.msra.mxu0 0.0
    %5611 = vmatprep.subr.mxu0 0.0
    %5612 = vmatpush1.msra.mxu0 0.0
    %5613 = vmatprep.subr.mxu0 0.0
    %5614 = vmatpush1.msra.mxu0 0.0
    %5615 = vmatprep.subr.mxu0 0.0
    %5616 = vmatpush1.msra.mxu0 0.0
    %5617 = vmatprep.subr.mxu0 0.0
    %5618 = vmatpush1.msra.mxu0 0.0
    %5619 = vmatprep.subr.mxu0 0.0
    %5620 = vmatpush1.msra.mxu0 0.0
    %5621 = vmatprep.subr.mxu0 0.0
    %5622 = vmatpush1.msra.mxu0 0.0
    %5623 = vmatprep.subr.mxu0 0.0
    %5624 = vmatpush1.msra.mxu0 0.0
    %5625 = vmatprep.subr.mxu0 0.0
    %5626 = vmatpush1.msra.mxu0 0.0
    %5627 = vmatprep.subr.mxu0 0.0
    %5628 = vmatpush1.msra.mxu0 0.0
    %5629 = vmatprep.subr.mxu0 0.0
    %5630 = vmatpush1.msra.mxu0 %v216
    %5631 = vmatprep.subr.mxu0 0.0
    %5632 = vmatpush1.msra.mxu0 %v215
    %5633 = vmatprep.subr.mxu0 0.0
    %5634 = vmatpush1.msra.mxu0 %v214
    %5635 = vmatprep.subr.mxu0 0.0
    %5636 = vmatpush1.msra.mxu0 %v213
    %5637 = vmatprep.subr.mxu0 0.0
    %5638 = vmatpush2.msra.mxu0 0.0
    %5639 = vmatprep.subr.mxu0 0.0
    %5640 = vmatpush2.msra.mxu0 0.0
    %5641 = vmatprep.subr.mxu0 0.0
    %5642 = vmatpush2.msra.mxu0 0.0
    %5643 = vmatprep.subr.mxu0 0.0
    %5644 = vmatpush2.msra.mxu0 0.0
    %5645 = vmatprep.subr.mxu0 0.0
    %5646 = vmatpush2.msra.mxu0 0.0
    %5647 = vmatprep.subr.mxu0 0.0
    %5648 = vmatpush2.msra.mxu0 0.0
    %5649 = vmatprep.subr.mxu0 0.0
    %5650 = vmatpush2.msra.mxu0 0.0
    %5651 = vmatprep.subr.mxu0 0.0
    %5652 = vmatpush2.msra.mxu0 0.0
    %5653 = vmatprep.subr.mxu0 0.0
    %5654 = vmatpush2.msra.mxu0 0.0
    %5655 = vmatprep.subr.mxu0 0.0
    %5656 = vmatpush2.msra.mxu0 0.0
    %5657 = vmatprep.subr.mxu0 0.0
    %5658 = vmatpush2.msra.mxu0 0.0
    %5659 = vmatprep.subr.mxu0 0.0
    %5660 = vmatpush2.msra.mxu0 0.0
    %5661 = vmatprep.subr.mxu0 0.0
    %5662 = vmatpush2.msra.mxu0 0.0
    %5663 = vmatprep.subr.mxu0 0.0
    %5664 = vmatpush2.msra.mxu0 0.0
    %5665 = vmatprep.subr.mxu0 0.0
    %5666 = vmatpush2.msra.mxu0 0.0
    %5667 = vmatprep.subr.mxu0 0.0
    %5668 = vmatpush2.msra.mxu0 0.0
    %5669 = vmatprep.mubr.f32.mxu0 0.0
    %5670 = vmatmul.mubr.f32.gmra.mxu0 %v5307
    %v5671 = vpop.f32.mrf.mxu0
    %v5672 = vadd.f32 %v1118, %v5671
    %v5673 = vpop.f32.mrf.mxu0
    %5674 = vdwg.mxu0
    %v5675 = vmul.f32 %v5386, %v5672
    %v5676 = vadd.f32 %v5602, %v5675
    %v5677 = vtanh.pop %v5676
    %v5678 = vsub.f32 1.0, %v5534
    %v5679 = vmul.f32 %v5678, %v5677
    %v5680 = vmul.f32 %v5534, %v4784
    %v5681 = vadd.f32 %v5679, %v5680
    %s5682 = scalar_lea.vmem [#allocation2], 48
    %v5683 = vld [vmem:[%s5682] sm:$0xff]
    %v5685 = vsel %vm234, %v5683, 0
    %5687 = vmatprep.subr.mxu0 0.0
    %5688 = vmatpush1.msra.mxu0 0.0
    %5689 = vmatprep.subr.mxu0 0.0
    %5690 = vmatpush1.msra.mxu0 0.0
    %5691 = vmatprep.subr.mxu0 0.0
    %5692 = vmatpush1.msra.mxu0 0.0
    %5693 = vmatprep.subr.mxu0 0.0
    %5694 = vmatpush1.msra.mxu0 0.0
    %5695 = vmatprep.subr.mxu0 0.0
    %5696 = vmatpush1.msra.mxu0 0.0
    %5697 = vmatprep.subr.mxu0 0.0
    %5698 = vmatpush1.msra.mxu0 0.0
    %5699 = vmatprep.subr.mxu0 0.0
    %5700 = vmatpush1.msra.mxu0 0.0
    %5701 = vmatprep.subr.mxu0 0.0
    %5702 = vmatpush1.msra.mxu0 0.0
    %5703 = vmatprep.subr.mxu0 0.0
    %5704 = vmatpush1.msra.mxu0 0.0
    %5705 = vmatprep.subr.mxu0 0.0
    %5706 = vmatpush1.msra.mxu0 0.0
    %5707 = vmatprep.subr.mxu0 0.0
    %5708 = vmatpush1.msra.mxu0 0.0
    %5709 = vmatprep.subr.mxu0 0.0
    %5710 = vmatpush1.msra.mxu0 0.0
    %5711 = vmatprep.subr.mxu0 0.0
    %5712 = vmatpush1.msra.mxu0 0.0
    %5713 = vmatprep.subr.mxu0 0.0
    %5714 = vmatpush1.msra.mxu0 0.0
    %5715 = vmatprep.subr.mxu0 0.0
    %5716 = vmatpush1.msra.mxu0 %v158
    %5717 = vmatprep.subr.mxu0 0.0
    %5718 = vmatpush1.msra.mxu0 %v157
    %5719 = vmatprep.subr.mxu0 0.0
    %5720 = vmatpush2.msra.mxu0 0.0
    %5721 = vmatprep.subr.mxu0 0.0
    %5722 = vmatpush2.msra.mxu0 0.0
    %5723 = vmatprep.subr.mxu0 0.0
    %5724 = vmatpush2.msra.mxu0 0.0
    %5725 = vmatprep.subr.mxu0 0.0
    %5726 = vmatpush2.msra.mxu0 0.0
    %5727 = vmatprep.subr.mxu0 0.0
    %5728 = vmatpush2.msra.mxu0 0.0
    %5729 = vmatprep.subr.mxu0 0.0
    %5730 = vmatpush2.msra.mxu0 0.0
    %5731 = vmatprep.subr.mxu0 0.0
    %5732 = vmatpush2.msra.mxu0 0.0
    %5733 = vmatprep.subr.mxu0 0.0
    %5734 = vmatpush2.msra.mxu0 0.0
    %5735 = vmatprep.subr.mxu0 0.0
    %5736 = vmatpush2.msra.mxu0 0.0
    %5737 = vmatprep.subr.mxu0 0.0
    %5738 = vmatpush2.msra.mxu0 0.0
    %5739 = vmatprep.subr.mxu0 0.0
    %5740 = vmatpush2.msra.mxu0 0.0
    %5741 = vmatprep.subr.mxu0 0.0
    %5742 = vmatpush2.msra.mxu0 0.0
    %5743 = vmatprep.subr.mxu0 0.0
    %5744 = vmatpush2.msra.mxu0 0.0
    %5745 = vmatprep.subr.mxu0 0.0
    %5746 = vmatpush2.msra.mxu0 0.0
    %5747 = vmatprep.subr.mxu0 0.0
    %5748 = vmatpush2.msra.mxu0 0.0
    %5749 = vmatprep.subr.mxu0 0.0
    %5750 = vmatpush2.msra.mxu0 0.0
    %5751 = vmatprep.mubr.f32.mxu0 0.0
    %5752 = vmatmul.mubr.f32.gmra.mxu0 %v5685
    %v5753 = vpop.f32.mrf.mxu0
    %v5754 = vadd.f32 %v232, %v5753
    %v5755 = vpop.f32.mrf.mxu0
    %5756 = vdwg.mxu0
    %5757 = vmatprep.subr.mxu0 0.0
    %5758 = vmatpush1.msra.mxu0 0.0
    %5759 = vmatprep.subr.mxu0 0.0
    %5760 = vmatpush1.msra.mxu0 0.0
    %5761 = vmatprep.subr.mxu0 0.0
    %5762 = vmatpush1.msra.mxu0 0.0
    %5763 = vmatprep.subr.mxu0 0.0
    %5764 = vmatpush1.msra.mxu0 0.0
    %5765 = vmatprep.subr.mxu0 0.0
    %5766 = vmatpush1.msra.mxu0 0.0
    %5767 = vmatprep.subr.mxu0 0.0
    %5768 = vmatpush1.msra.mxu0 0.0
    %5769 = vmatprep.subr.mxu0 0.0
    %5770 = vmatpush1.msra.mxu0 0.0
    %5771 = vmatprep.subr.mxu0 0.0
    %5772 = vmatpush1.msra.mxu0 0.0
    %5773 = vmatprep.subr.mxu0 0.0
    %5774 = vmatpush1.msra.mxu0 0.0
    %5775 = vmatprep.subr.mxu0 0.0
    %5776 = vmatpush1.msra.mxu0 0.0
    %5777 = vmatprep.subr.mxu0 0.0
    %5778 = vmatpush1.msra.mxu0 0.0
    %5779 = vmatprep.subr.mxu0 0.0
    %5780 = vmatpush1.msra.mxu0 0.0
    %5781 = vmatprep.subr.mxu0 0.0
    %5782 = vmatpush1.msra.mxu0 %v168
    %5783 = vmatprep.subr.mxu0 0.0
    %5784 = vmatpush1.msra.mxu0 %v167
    %5785 = vmatprep.subr.mxu0 0.0
    %5786 = vmatpush1.msra.mxu0 %v166
    %5787 = vmatprep.subr.mxu0 0.0
    %5788 = vmatpush1.msra.mxu0 %v165
    %5789 = vmatprep.subr.mxu0 0.0
    %5790 = vmatpush2.msra.mxu0 0.0
    %5791 = vmatprep.subr.mxu0 0.0
    %5792 = vmatpush2.msra.mxu0 0.0
    %5793 = vmatprep.subr.mxu0 0.0
    %5794 = vmatpush2.msra.mxu0 0.0
    %5795 = vmatprep.subr.mxu0 0.0
    %5796 = vmatpush2.msra.mxu0 0.0
    %5797 = vmatprep.subr.mxu0 0.0
    %5798 = vmatpush2.msra.mxu0 0.0
    %5799 = vmatprep.subr.mxu0 0.0
    %5800 = vmatpush2.msra.mxu0 0.0
    %5801 = vmatprep.subr.mxu0 0.0
    %5802 = vmatpush2.msra.mxu0 0.0
    %5803 = vmatprep.subr.mxu0 0.0
    %5804 = vmatpush2.msra.mxu0 0.0
    %5805 = vmatprep.subr.mxu0 0.0
    %5806 = vmatpush2.msra.mxu0 0.0
    %5807 = vmatprep.subr.mxu0 0.0
    %5808 = vmatpush2.msra.mxu0 0.0
    %5809 = vmatprep.subr.mxu0 0.0
    %5810 = vmatpush2.msra.mxu0 0.0
    %5811 = vmatprep.subr.mxu0 0.0
    %5812 = vmatpush2.msra.mxu0 0.0
    %5813 = vmatprep.subr.mxu0 0.0
    %5814 = vmatpush2.msra.mxu0 0.0
    %5815 = vmatprep.subr.mxu0 0.0
    %5816 = vmatpush2.msra.mxu0 0.0
    %5817 = vmatprep.subr.mxu0 0.0
    %5818 = vmatpush2.msra.mxu0 0.0
    %5819 = vmatprep.subr.mxu0 0.0
    %5820 = vmatpush2.msra.mxu0 0.0
    %5821 = vmatprep.mubr.f32.mxu0 0.0
    %5822 = vmatmul.mubr.f32.gmra.mxu0 %v5234
    %v5823 = vpop.f32.mrf.mxu0
    %v5824 = vadd.f32 0.0, %v5823
    %v5825 = vpop.f32.mrf.mxu0
    %5826 = vdwg.mxu0
    %v5827 = vadd.f32 %v5754, %v5824
    %v5828 = vadd.f32 %v5827, %v387
    %v5829 = vxor.u32 %v5828, 2147483648
    %v5830 = vmul.f32 %v5829, 1.442695
    %v5831 = vpow.pop %v5830
    %v5832 = vadd.f32 %v5831, 1.0
    %v5833 = vrcp.pop %v5832
    %v5834 = vmul.f32 1.0, %v5833
    %5835 = vmatprep.subr.mxu0 0.0
    %5836 = vmatpush1.msra.mxu0 0.0
    %5837 = vmatprep.subr.mxu0 0.0
    %5838 = vmatpush1.msra.mxu0 0.0
    %5839 = vmatprep.subr.mxu0 0.0
    %5840 = vmatpush1.msra.mxu0 0.0
    %5841 = vmatprep.subr.mxu0 0.0
    %5842 = vmatpush1.msra.mxu0 0.0
    %5843 = vmatprep.subr.mxu0 0.0
    %5844 = vmatpush1.msra.mxu0 0.0
    %5845 = vmatprep.subr.mxu0 0.0
    %5846 = vmatpush1.msra.mxu0 0.0
    %5847 = vmatprep.subr.mxu0 0.0
    %5848 = vmatpush1.msra.mxu0 0.0
    %5849 = vmatprep.subr.mxu0 0.0
    %5850 = vmatpush1.msra.mxu0 0.0
    %5851 = vmatprep.subr.mxu0 0.0
    %5852 = vmatpush1.msra.mxu0 0.0
    %5853 = vmatprep.subr.mxu0 0.0
    %5854 = vmatpush1.msra.mxu0 0.0
    %5855 = vmatprep.subr.mxu0 0.0
    %5856 = vmatpush1.msra.mxu0 0.0
    %5857 = vmatprep.subr.mxu0 0.0
    %5858 = vmatpush1.msra.mxu0 0.0
    %5859 = vmatprep.subr.mxu0 0.0
    %5860 = vmatpush1.msra.mxu0 0.0
    %5861 = vmatprep.subr.mxu0 0.0
    %5862 = vmatpush1.msra.mxu0 0.0
    %5863 = vmatprep.subr.mxu0 0.0
    %5864 = vmatpush1.msra.mxu0 %v161
    %5865 = vmatprep.subr.mxu0 0.0
    %5866 = vmatpush1.msra.mxu0 %v160
    %5867 = vmatprep.subr.mxu0 0.0
    %5868 = vmatpush2.msra.mxu0 0.0
    %5869 = vmatprep.subr.mxu0 0.0
    %5870 = vmatpush2.msra.mxu0 0.0
    %5871 = vmatprep.subr.mxu0 0.0
    %5872 = vmatpush2.msra.mxu0 0.0
    %5873 = vmatprep.subr.mxu0 0.0
    %5874 = vmatpush2.msra.mxu0 0.0
    %5875 = vmatprep.subr.mxu0 0.0
    %5876 = vmatpush2.msra.mxu0 0.0
    %5877 = vmatprep.subr.mxu0 0.0
    %5878 = vmatpush2.msra.mxu0 0.0
    %5879 = vmatprep.subr.mxu0 0.0
    %5880 = vmatpush2.msra.mxu0 0.0
    %5881 = vmatprep.subr.mxu0 0.0
    %5882 = vmatpush2.msra.mxu0 0.0
    %5883 = vmatprep.subr.mxu0 0.0
    %5884 = vmatpush2.msra.mxu0 0.0
    %5885 = vmatprep.subr.mxu0 0.0
    %5886 = vmatpush2.msra.mxu0 0.0
    %5887 = vmatprep.subr.mxu0 0.0
    %5888 = vmatpush2.msra.mxu0 0.0
    %5889 = vmatprep.subr.mxu0 0.0
    %5890 = vmatpush2.msra.mxu0 0.0
    %5891 = vmatprep.subr.mxu0 0.0
    %5892 = vmatpush2.msra.mxu0 0.0
    %5893 = vmatprep.subr.mxu0 0.0
    %5894 = vmatpush2.msra.mxu0 0.0
    %5895 = vmatprep.subr.mxu0 0.0
    %5896 = vmatpush2.msra.mxu0 0.0
    %5897 = vmatprep.subr.mxu0 0.0
    %5898 = vmatpush2.msra.mxu0 0.0
    %5899 = vmatprep.mubr.f32.mxu0 0.0
    %5900 = vmatmul.mubr.f32.gmra.mxu0 %v5685
    %v5901 = vpop.f32.mrf.mxu0
    %v5902 = vadd.f32 %v400, %v5901
    %v5903 = vpop.f32.mrf.mxu0
    %5904 = vdwg.mxu0
    %5905 = vmatprep.subr.mxu0 0.0
    %5906 = vmatpush1.msra.mxu0 0.0
    %5907 = vmatprep.subr.mxu0 0.0
    %5908 = vmatpush1.msra.mxu0 0.0
    %5909 = vmatprep.subr.mxu0 0.0
    %5910 = vmatpush1.msra.mxu0 0.0
    %5911 = vmatprep.subr.mxu0 0.0
    %5912 = vmatpush1.msra.mxu0 0.0
    %5913 = vmatprep.subr.mxu0 0.0
    %5914 = vmatpush1.msra.mxu0 0.0
    %5915 = vmatprep.subr.mxu0 0.0
    %5916 = vmatpush1.msra.mxu0 0.0
    %5917 = vmatprep.subr.mxu0 0.0
    %5918 = vmatpush1.msra.mxu0 0.0
    %5919 = vmatprep.subr.mxu0 0.0
    %5920 = vmatpush1.msra.mxu0 0.0
    %5921 = vmatprep.subr.mxu0 0.0
    %5922 = vmatpush1.msra.mxu0 0.0
    %5923 = vmatprep.subr.mxu0 0.0
    %5924 = vmatpush1.msra.mxu0 0.0
    %5925 = vmatprep.subr.mxu0 0.0
    %5926 = vmatpush1.msra.mxu0 0.0
    %5927 = vmatprep.subr.mxu0 0.0
    %5928 = vmatpush1.msra.mxu0 0.0
    %5929 = vmatprep.subr.mxu0 0.0
    %5930 = vmatpush1.msra.mxu0 %v173
    %5931 = vmatprep.subr.mxu0 0.0
    %5932 = vmatpush1.msra.mxu0 %v172
    %5933 = vmatprep.subr.mxu0 0.0
    %5934 = vmatpush1.msra.mxu0 %v171
    %5935 = vmatprep.subr.mxu0 0.0
    %5936 = vmatpush1.msra.mxu0 %v170
    %5937 = vmatprep.subr.mxu0 0.0
    %5938 = vmatpush2.msra.mxu0 0.0
    %5939 = vmatprep.subr.mxu0 0.0
    %5940 = vmatpush2.msra.mxu0 0.0
    %5941 = vmatprep.subr.mxu0 0.0
    %5942 = vmatpush2.msra.mxu0 0.0
    %5943 = vmatprep.subr.mxu0 0.0
    %5944 = vmatpush2.msra.mxu0 0.0
    %5945 = vmatprep.subr.mxu0 0.0
    %5946 = vmatpush2.msra.mxu0 0.0
    %5947 = vmatprep.subr.mxu0 0.0
    %5948 = vmatpush2.msra.mxu0 0.0
    %5949 = vmatprep.subr.mxu0 0.0
    %5950 = vmatpush2.msra.mxu0 0.0
    %5951 = vmatprep.subr.mxu0 0.0
    %5952 = vmatpush2.msra.mxu0 0.0
    %5953 = vmatprep.subr.mxu0 0.0
    %5954 = vmatpush2.msra.mxu0 0.0
    %5955 = vmatprep.subr.mxu0 0.0
    %5956 = vmatpush2.msra.mxu0 0.0
    %5957 = vmatprep.subr.mxu0 0.0
    %5958 = vmatpush2.msra.mxu0 0.0
    %5959 = vmatprep.subr.mxu0 0.0
    %5960 = vmatpush2.msra.mxu0 0.0
    %5961 = vmatprep.subr.mxu0 0.0
    %5962 = vmatpush2.msra.mxu0 0.0
    %5963 = vmatprep.subr.mxu0 0.0
    %5964 = vmatpush2.msra.mxu0 0.0
    %5965 = vmatprep.subr.mxu0 0.0
    %5966 = vmatpush2.msra.mxu0 0.0
    %5967 = vmatprep.subr.mxu0 0.0
    %5968 = vmatpush2.msra.mxu0 0.0
    %5969 = vmatprep.mubr.f32.mxu0 0.0
    %5970 = vmatmul.mubr.f32.gmra.mxu0 %v5234
    %v5971 = vpop.f32.mrf.mxu0
    %v5972 = vadd.f32 0.0, %v5971
    %v5973 = vpop.f32.mrf.mxu0
    %5974 = vdwg.mxu0
    %v5975 = vadd.f32 %v5902, %v5972
    %v5976 = vadd.f32 %v5975, %v547
    %v5977 = vxor.u32 %v5976, 2147483648
    %v5978 = vmul.f32 %v5977, 1.442695
    %v5979 = vpow.pop %v5978
    %v5980 = vadd.f32 %v5979, 1.0
    %v5981 = vrcp.pop %v5980
    %v5982 = vmul.f32 1.0, %v5981
    %5983 = vmatprep.subr.mxu0 0.0
    %5984 = vmatpush1.msra.mxu0 0.0
    %5985 = vmatprep.subr.mxu0 0.0
    %5986 = vmatpush1.msra.mxu0 0.0
    %5987 = vmatprep.subr.mxu0 0.0
    %5988 = vmatpush1.msra.mxu0 0.0
    %5989 = vmatprep.subr.mxu0 0.0
    %5990 = vmatpush1.msra.mxu0 0.0
    %5991 = vmatprep.subr.mxu0 0.0
    %5992 = vmatpush1.msra.mxu0 0.0
    %5993 = vmatprep.subr.mxu0 0.0
    %5994 = vmatpush1.msra.mxu0 0.0
    %5995 = vmatprep.subr.mxu0 0.0
    %5996 = vmatpush1.msra.mxu0 0.0
    %5997 = vmatprep.subr.mxu0 0.0
    %5998 = vmatpush1.msra.mxu0 0.0
    %5999 = vmatprep.subr.mxu0 0.0
    %6000 = vmatpush1.msra.mxu0 0.0
    %6001 = vmatprep.subr.mxu0 0.0
    %6002 = vmatpush1.msra.mxu0 0.0
    %6003 = vmatprep.subr.mxu0 0.0
    %6004 = vmatpush1.msra.mxu0 0.0
    %6005 = vmatprep.subr.mxu0 0.0
    %6006 = vmatpush1.msra.mxu0 0.0
    %6007 = vmatprep.subr.mxu0 0.0
    %6008 = vmatpush1.msra.mxu0 0.0
    %6009 = vmatprep.subr.mxu0 0.0
    %6010 = vmatpush1.msra.mxu0 0.0
    %6011 = vmatprep.subr.mxu0 0.0
    %6012 = vmatpush1.msra.mxu0 %v164
    %6013 = vmatprep.subr.mxu0 0.0
    %6014 = vmatpush1.msra.mxu0 %v163
    %6015 = vmatprep.subr.mxu0 0.0
    %6016 = vmatpush2.msra.mxu0 0.0
    %6017 = vmatprep.subr.mxu0 0.0
    %6018 = vmatpush2.msra.mxu0 0.0
    %6019 = vmatprep.subr.mxu0 0.0
    %6020 = vmatpush2.msra.mxu0 0.0
    %6021 = vmatprep.subr.mxu0 0.0
    %6022 = vmatpush2.msra.mxu0 0.0
    %6023 = vmatprep.subr.mxu0 0.0
    %6024 = vmatpush2.msra.mxu0 0.0
    %6025 = vmatprep.subr.mxu0 0.0
    %6026 = vmatpush2.msra.mxu0 0.0
    %6027 = vmatprep.subr.mxu0 0.0
    %6028 = vmatpush2.msra.mxu0 0.0
    %6029 = vmatprep.subr.mxu0 0.0
    %6030 = vmatpush2.msra.mxu0 0.0
    %6031 = vmatprep.subr.mxu0 0.0
    %6032 = vmatpush2.msra.mxu0 0.0
    %6033 = vmatprep.subr.mxu0 0.0
    %6034 = vmatpush2.msra.mxu0 0.0
    %6035 = vmatprep.subr.mxu0 0.0
    %6036 = vmatpush2.msra.mxu0 0.0
    %6037 = vmatprep.subr.mxu0 0.0
    %6038 = vmatpush2.msra.mxu0 0.0
    %6039 = vmatprep.subr.mxu0 0.0
    %6040 = vmatpush2.msra.mxu0 0.0
    %6041 = vmatprep.subr.mxu0 0.0
    %6042 = vmatpush2.msra.mxu0 0.0
    %6043 = vmatprep.subr.mxu0 0.0
    %6044 = vmatpush2.msra.mxu0 0.0
    %6045 = vmatprep.subr.mxu0 0.0
    %6046 = vmatpush2.msra.mxu0 0.0
    %6047 = vmatprep.mubr.f32.mxu0 0.0
    %6048 = vmatmul.mubr.f32.gmra.mxu0 %v5685
    %v6049 = vpop.f32.mrf.mxu0
    %v6050 = vadd.f32 %v560, %v6049
    %v6051 = vpop.f32.mrf.mxu0
    %6052 = vdwg.mxu0
    %6053 = vmatprep.subr.mxu0 0.0
    %6054 = vmatpush1.msra.mxu0 0.0
    %6055 = vmatprep.subr.mxu0 0.0
    %6056 = vmatpush1.msra.mxu0 0.0
    %6057 = vmatprep.subr.mxu0 0.0
    %6058 = vmatpush1.msra.mxu0 0.0
    %6059 = vmatprep.subr.mxu0 0.0
    %6060 = vmatpush1.msra.mxu0 0.0
    %6061 = vmatprep.subr.mxu0 0.0
    %6062 = vmatpush1.msra.mxu0 0.0
    %6063 = vmatprep.subr.mxu0 0.0
    %6064 = vmatpush1.msra.mxu0 0.0
    %6065 = vmatprep.subr.mxu0 0.0
    %6066 = vmatpush1.msra.mxu0 0.0
    %6067 = vmatprep.subr.mxu0 0.0
    %6068 = vmatpush1.msra.mxu0 0.0
    %6069 = vmatprep.subr.mxu0 0.0
    %6070 = vmatpush1.msra.mxu0 0.0
    %6071 = vmatprep.subr.mxu0 0.0
    %6072 = vmatpush1.msra.mxu0 0.0
    %6073 = vmatprep.subr.mxu0 0.0
    %6074 = vmatpush1.msra.mxu0 0.0
    %6075 = vmatprep.subr.mxu0 0.0
    %6076 = vmatpush1.msra.mxu0 0.0
    %6077 = vmatprep.subr.mxu0 0.0
    %6078 = vmatpush1.msra.mxu0 %v178
    %6079 = vmatprep.subr.mxu0 0.0
    %6080 = vmatpush1.msra.mxu0 %v177
    %6081 = vmatprep.subr.mxu0 0.0
    %6082 = vmatpush1.msra.mxu0 %v176
    %6083 = vmatprep.subr.mxu0 0.0
    %6084 = vmatpush1.msra.mxu0 %v175
    %6085 = vmatprep.subr.mxu0 0.0
    %6086 = vmatpush2.msra.mxu0 0.0
    %6087 = vmatprep.subr.mxu0 0.0
    %6088 = vmatpush2.msra.mxu0 0.0
    %6089 = vmatprep.subr.mxu0 0.0
    %6090 = vmatpush2.msra.mxu0 0.0
    %6091 = vmatprep.subr.mxu0 0.0
    %6092 = vmatpush2.msra.mxu0 0.0
    %6093 = vmatprep.subr.mxu0 0.0
    %6094 = vmatpush2.msra.mxu0 0.0
    %6095 = vmatprep.subr.mxu0 0.0
    %6096 = vmatpush2.msra.mxu0 0.0
    %6097 = vmatprep.subr.mxu0 0.0
    %6098 = vmatpush2.msra.mxu0 0.0
    %6099 = vmatprep.subr.mxu0 0.0
    %6100 = vmatpush2.msra.mxu0 0.0
    %6101 = vmatprep.subr.mxu0 0.0
    %6102 = vmatpush2.msra.mxu0 0.0
    %6103 = vmatprep.subr.mxu0 0.0
    %6104 = vmatpush2.msra.mxu0 0.0
    %6105 = vmatprep.subr.mxu0 0.0
    %6106 = vmatpush2.msra.mxu0 0.0
    %6107 = vmatprep.subr.mxu0 0.0
    %6108 = vmatpush2.msra.mxu0 0.0
    %6109 = vmatprep.subr.mxu0 0.0
    %6110 = vmatpush2.msra.mxu0 0.0
    %6111 = vmatprep.subr.mxu0 0.0
    %6112 = vmatpush2.msra.mxu0 0.0
    %6113 = vmatprep.subr.mxu0 0.0
    %6114 = vmatpush2.msra.mxu0 0.0
    %6115 = vmatprep.subr.mxu0 0.0
    %6116 = vmatpush2.msra.mxu0 0.0
    %6117 = vmatprep.mubr.f32.mxu0 0.0
    %6118 = vmatmul.mubr.f32.gmra.mxu0 %v5234
    %v6119 = vpop.f32.mrf.mxu0
    %v6120 = vadd.f32 %v636, %v6119
    %v6121 = vpop.f32.mrf.mxu0
    %6122 = vdwg.mxu0
    %v6123 = vmul.f32 %v5834, %v6120
    %v6124 = vadd.f32 %v6050, %v6123
    %v6125 = vtanh.pop %v6124
    %v6126 = vsub.f32 1.0, %v5982
    %v6127 = vmul.f32 %v6126, %v6125
    %v6128 = vmul.f32 %v5982, %v5232
    %v6129 = vadd.f32 %v6127, %v6128
    %v6131 = vsel %vm308, %v6129, 0
    %6133 = vmatprep.subr.mxu0 0.0
    %6134 = vmatpush1.msra.mxu0 0.0
    %6135 = vmatprep.subr.mxu0 0.0
    %6136 = vmatpush1.msra.mxu0 0.0
    %6137 = vmatprep.subr.mxu0 0.0
    %6138 = vmatpush1.msra.mxu0 0.0
    %6139 = vmatprep.subr.mxu0 0.0
    %6140 = vmatpush1.msra.mxu0 0.0
    %6141 = vmatprep.subr.mxu0 0.0
    %6142 = vmatpush1.msra.mxu0 0.0
    %6143 = vmatprep.subr.mxu0 0.0
    %6144 = vmatpush1.msra.mxu0 0.0
    %6145 = vmatprep.subr.mxu0 0.0
    %6146 = vmatpush1.msra.mxu0 0.0
    %6147 = vmatprep.subr.mxu0 0.0
    %6148 = vmatpush1.msra.mxu0 0.0
    %6149 = vmatprep.subr.mxu0 0.0
    %6150 = vmatpush1.msra.mxu0 0.0
    %6151 = vmatprep.subr.mxu0 0.0
    %6152 = vmatpush1.msra.mxu0 0.0
    %6153 = vmatprep.subr.mxu0 0.0
    %6154 = vmatpush1.msra.mxu0 0.0
    %6155 = vmatprep.subr.mxu0 0.0
    %6156 = vmatpush1.msra.mxu0 0.0
    %6157 = vmatprep.subr.mxu0 0.0
    %6158 = vmatpush1.msra.mxu0 %v192
    %6159 = vmatprep.subr.mxu0 0.0
    %6160 = vmatpush1.msra.mxu0 %v191
    %6161 = vmatprep.subr.mxu0 0.0
    %6162 = vmatpush1.msra.mxu0 %v190
    %6163 = vmatprep.subr.mxu0 0.0
    %6164 = vmatpush1.msra.mxu0 %v189
    %6165 = vmatprep.subr.mxu0 0.0
    %6166 = vmatpush2.msra.mxu0 0.0
    %6167 = vmatprep.subr.mxu0 0.0
    %6168 = vmatpush2.msra.mxu0 0.0
    %6169 = vmatprep.subr.mxu0 0.0
    %6170 = vmatpush2.msra.mxu0 0.0
    %6171 = vmatprep.subr.mxu0 0.0
    %6172 = vmatpush2.msra.mxu0 0.0
    %6173 = vmatprep.subr.mxu0 0.0
    %6174 = vmatpush2.msra.mxu0 0.0
    %6175 = vmatprep.subr.mxu0 0.0
    %6176 = vmatpush2.msra.mxu0 0.0
    %6177 = vmatprep.subr.mxu0 0.0
    %6178 = vmatpush2.msra.mxu0 0.0
    %6179 = vmatprep.subr.mxu0 0.0
    %6180 = vmatpush2.msra.mxu0 0.0
    %6181 = vmatprep.subr.mxu0 0.0
    %6182 = vmatpush2.msra.mxu0 0.0
    %6183 = vmatprep.subr.mxu0 0.0
    %6184 = vmatpush2.msra.mxu0 0.0
    %6185 = vmatprep.subr.mxu0 0.0
    %6186 = vmatpush2.msra.mxu0 0.0
    %6187 = vmatprep.subr.mxu0 0.0
    %6188 = vmatpush2.msra.mxu0 0.0
    %6189 = vmatprep.subr.mxu0 0.0
    %6190 = vmatpush2.msra.mxu0 0.0
    %6191 = vmatprep.subr.mxu0 0.0
    %6192 = vmatpush2.msra.mxu0 0.0
    %6193 = vmatprep.subr.mxu0 0.0
    %6194 = vmatpush2.msra.mxu0 0.0
    %6195 = vmatprep.subr.mxu0 0.0
    %6196 = vmatpush2.msra.mxu0 0.0
    %6197 = vmatprep.mubr.f32.mxu0 0.0
    %6198 = vmatmul.mubr.f32.gmra.mxu0 %v6131
    %v6199 = vpop.f32.mrf.mxu0
    %v6200 = vadd.f32 %v719, %v6199
    %v6201 = vpop.f32.mrf.mxu0
    %6202 = vdwg.mxu0
    %v6204 = vsel %vm308, %v5681, 0
    %6206 = vmatprep.subr.mxu0 0.0
    %6207 = vmatpush1.msra.mxu0 0.0
    %6208 = vmatprep.subr.mxu0 0.0
    %6209 = vmatpush1.msra.mxu0 0.0
    %6210 = vmatprep.subr.mxu0 0.0
    %6211 = vmatpush1.msra.mxu0 0.0
    %6212 = vmatprep.subr.mxu0 0.0
    %6213 = vmatpush1.msra.mxu0 0.0
    %6214 = vmatprep.subr.mxu0 0.0
    %6215 = vmatpush1.msra.mxu0 0.0
    %6216 = vmatprep.subr.mxu0 0.0
    %6217 = vmatpush1.msra.mxu0 0.0
    %6218 = vmatprep.subr.mxu0 0.0
    %6219 = vmatpush1.msra.mxu0 0.0
    %6220 = vmatprep.subr.mxu0 0.0
    %6221 = vmatpush1.msra.mxu0 0.0
    %6222 = vmatprep.subr.mxu0 0.0
    %6223 = vmatpush1.msra.mxu0 0.0
    %6224 = vmatprep.subr.mxu0 0.0
    %6225 = vmatpush1.msra.mxu0 0.0
    %6226 = vmatprep.subr.mxu0 0.0
    %6227 = vmatpush1.msra.mxu0 0.0
    %6228 = vmatprep.subr.mxu0 0.0
    %6229 = vmatpush1.msra.mxu0 0.0
    %6230 = vmatprep.subr.mxu0 0.0
    %6231 = vmatpush1.msra.mxu0 %v206
    %6232 = vmatprep.subr.mxu0 0.0
    %6233 = vmatpush1.msra.mxu0 %v205
    %6234 = vmatprep.subr.mxu0 0.0
    %6235 = vmatpush1.msra.mxu0 %v204
    %6236 = vmatprep.subr.mxu0 0.0
    %6237 = vmatpush1.msra.mxu0 %v203
    %6238 = vmatprep.subr.mxu0 0.0
    %6239 = vmatpush2.msra.mxu0 0.0
    %6240 = vmatprep.subr.mxu0 0.0
    %6241 = vmatpush2.msra.mxu0 0.0
    %6242 = vmatprep.subr.mxu0 0.0
    %6243 = vmatpush2.msra.mxu0 0.0
    %6244 = vmatprep.subr.mxu0 0.0
    %6245 = vmatpush2.msra.mxu0 0.0
    %6246 = vmatprep.subr.mxu0 0.0
    %6247 = vmatpush2.msra.mxu0 0.0
    %6248 = vmatprep.subr.mxu0 0.0
    %6249 = vmatpush2.msra.mxu0 0.0
    %6250 = vmatprep.subr.mxu0 0.0
    %6251 = vmatpush2.msra.mxu0 0.0
    %6252 = vmatprep.subr.mxu0 0.0
    %6253 = vmatpush2.msra.mxu0 0.0
    %6254 = vmatprep.subr.mxu0 0.0
    %6255 = vmatpush2.msra.mxu0 0.0
    %6256 = vmatprep.subr.mxu0 0.0
    %6257 = vmatpush2.msra.mxu0 0.0
    %6258 = vmatprep.subr.mxu0 0.0
    %6259 = vmatpush2.msra.mxu0 0.0
    %6260 = vmatprep.subr.mxu0 0.0
    %6261 = vmatpush2.msra.mxu0 0.0
    %6262 = vmatprep.subr.mxu0 0.0
    %6263 = vmatpush2.msra.mxu0 0.0
    %6264 = vmatprep.subr.mxu0 0.0
    %6265 = vmatpush2.msra.mxu0 0.0
    %6266 = vmatprep.subr.mxu0 0.0
    %6267 = vmatpush2.msra.mxu0 0.0
    %6268 = vmatprep.subr.mxu0 0.0
    %6269 = vmatpush2.msra.mxu0 0.0
    %6270 = vmatprep.mubr.f32.mxu0 0.0
    %6271 = vmatmul.mubr.f32.gmra.mxu0 %v6204
    %v6272 = vpop.f32.mrf.mxu0
    %v6273 = vadd.f32 0.0, %v6272
    %v6274 = vpop.f32.mrf.mxu0
    %6275 = vdwg.mxu0
    %v6276 = vadd.f32 %v6200, %v6273
    %v6277 = vadd.f32 %v6276, %v869
    %v6278 = vxor.u32 %v6277, 2147483648
    %v6279 = vmul.f32 %v6278, 1.442695
    %v6280 = vpow.pop %v6279
    %v6281 = vadd.f32 %v6280, 1.0
    %v6282 = vrcp.pop %v6281
    %v6283 = vmul.f32 1.0, %v6282
    %6284 = vmatprep.subr.mxu0 0.0
    %6285 = vmatpush1.msra.mxu0 0.0
    %6286 = vmatprep.subr.mxu0 0.0
    %6287 = vmatpush1.msra.mxu0 0.0
    %6288 = vmatprep.subr.mxu0 0.0
    %6289 = vmatpush1.msra.mxu0 0.0
    %6290 = vmatprep.subr.mxu0 0.0
    %6291 = vmatpush1.msra.mxu0 0.0
    %6292 = vmatprep.subr.mxu0 0.0
    %6293 = vmatpush1.msra.mxu0 0.0
    %6294 = vmatprep.subr.mxu0 0.0
    %6295 = vmatpush1.msra.mxu0 0.0
    %6296 = vmatprep.subr.mxu0 0.0
    %6297 = vmatpush1.msra.mxu0 0.0
    %6298 = vmatprep.subr.mxu0 0.0
    %6299 = vmatpush1.msra.mxu0 0.0
    %6300 = vmatprep.subr.mxu0 0.0
    %6301 = vmatpush1.msra.mxu0 0.0
    %6302 = vmatprep.subr.mxu0 0.0
    %6303 = vmatpush1.msra.mxu0 0.0
    %6304 = vmatprep.subr.mxu0 0.0
    %6305 = vmatpush1.msra.mxu0 0.0
    %6306 = vmatprep.subr.mxu0 0.0
    %6307 = vmatpush1.msra.mxu0 0.0
    %6308 = vmatprep.subr.mxu0 0.0
    %6309 = vmatpush1.msra.mxu0 %v197
    %6310 = vmatprep.subr.mxu0 0.0
    %6311 = vmatpush1.msra.mxu0 %v196
    %6312 = vmatprep.subr.mxu0 0.0
    %6313 = vmatpush1.msra.mxu0 %v195
    %6314 = vmatprep.subr.mxu0 0.0
    %6315 = vmatpush1.msra.mxu0 %v194
    %6316 = vmatprep.subr.mxu0 0.0
    %6317 = vmatpush2.msra.mxu0 0.0
    %6318 = vmatprep.subr.mxu0 0.0
    %6319 = vmatpush2.msra.mxu0 0.0
    %6320 = vmatprep.subr.mxu0 0.0
    %6321 = vmatpush2.msra.mxu0 0.0
    %6322 = vmatprep.subr.mxu0 0.0
    %6323 = vmatpush2.msra.mxu0 0.0
    %6324 = vmatprep.subr.mxu0 0.0
    %6325 = vmatpush2.msra.mxu0 0.0
    %6326 = vmatprep.subr.mxu0 0.0
    %6327 = vmatpush2.msra.mxu0 0.0
    %6328 = vmatprep.subr.mxu0 0.0
    %6329 = vmatpush2.msra.mxu0 0.0
    %6330 = vmatprep.subr.mxu0 0.0
    %6331 = vmatpush2.msra.mxu0 0.0
    %6332 = vmatprep.subr.mxu0 0.0
    %6333 = vmatpush2.msra.mxu0 0.0
    %6334 = vmatprep.subr.mxu0 0.0
    %6335 = vmatpush2.msra.mxu0 0.0
    %6336 = vmatprep.subr.mxu0 0.0
    %6337 = vmatpush2.msra.mxu0 0.0
    %6338 = vmatprep.subr.mxu0 0.0
    %6339 = vmatpush2.msra.mxu0 0.0
    %6340 = vmatprep.subr.mxu0 0.0
    %6341 = vmatpush2.msra.mxu0 0.0
    %6342 = vmatprep.subr.mxu0 0.0
    %6343 = vmatpush2.msra.mxu0 0.0
    %6344 = vmatprep.subr.mxu0 0.0
    %6345 = vmatpush2.msra.mxu0 0.0
    %6346 = vmatprep.subr.mxu0 0.0
    %6347 = vmatpush2.msra.mxu0 0.0
    %6348 = vmatprep.mubr.f32.mxu0 0.0
    %6349 = vmatmul.mubr.f32.gmra.mxu0 %v6131
    %v6350 = vpop.f32.mrf.mxu0
    %v6351 = vadd.f32 %v882, %v6350
    %v6352 = vpop.f32.mrf.mxu0
    %6353 = vdwg.mxu0
    %6354 = vmatprep.subr.mxu0 0.0
    %6355 = vmatpush1.msra.mxu0 0.0
    %6356 = vmatprep.subr.mxu0 0.0
    %6357 = vmatpush1.msra.mxu0 0.0
    %6358 = vmatprep.subr.mxu0 0.0
    %6359 = vmatpush1.msra.mxu0 0.0
    %6360 = vmatprep.subr.mxu0 0.0
    %6361 = vmatpush1.msra.mxu0 0.0
    %6362 = vmatprep.subr.mxu0 0.0
    %6363 = vmatpush1.msra.mxu0 0.0
    %6364 = vmatprep.subr.mxu0 0.0
    %6365 = vmatpush1.msra.mxu0 0.0
    %6366 = vmatprep.subr.mxu0 0.0
    %6367 = vmatpush1.msra.mxu0 0.0
    %6368 = vmatprep.subr.mxu0 0.0
    %6369 = vmatpush1.msra.mxu0 0.0
    %6370 = vmatprep.subr.mxu0 0.0
    %6371 = vmatpush1.msra.mxu0 0.0
    %6372 = vmatprep.subr.mxu0 0.0
    %6373 = vmatpush1.msra.mxu0 0.0
    %6374 = vmatprep.subr.mxu0 0.0
    %6375 = vmatpush1.msra.mxu0 0.0
    %6376 = vmatprep.subr.mxu0 0.0
    %6377 = vmatpush1.msra.mxu0 0.0
    %6378 = vmatprep.subr.mxu0 0.0
    %6379 = vmatpush1.msra.mxu0 %v211
    %6380 = vmatprep.subr.mxu0 0.0
    %6381 = vmatpush1.msra.mxu0 %v210
    %6382 = vmatprep.subr.mxu0 0.0
    %6383 = vmatpush1.msra.mxu0 %v209
    %6384 = vmatprep.subr.mxu0 0.0
    %6385 = vmatpush1.msra.mxu0 %v208
    %6386 = vmatprep.subr.mxu0 0.0
    %6387 = vmatpush2.msra.mxu0 0.0
    %6388 = vmatprep.subr.mxu0 0.0
    %6389 = vmatpush2.msra.mxu0 0.0
    %6390 = vmatprep.subr.mxu0 0.0
    %6391 = vmatpush2.msra.mxu0 0.0
    %6392 = vmatprep.subr.mxu0 0.0
    %6393 = vmatpush2.msra.mxu0 0.0
    %6394 = vmatprep.subr.mxu0 0.0
    %6395 = vmatpush2.msra.mxu0 0.0
    %6396 = vmatprep.subr.mxu0 0.0
    %6397 = vmatpush2.msra.mxu0 0.0
    %6398 = vmatprep.subr.mxu0 0.0
    %6399 = vmatpush2.msra.mxu0 0.0
    %6400 = vmatprep.subr.mxu0 0.0
    %6401 = vmatpush2.msra.mxu0 0.0
    %6402 = vmatprep.subr.mxu0 0.0
    %6403 = vmatpush2.msra.mxu0 0.0
    %6404 = vmatprep.subr.mxu0 0.0
    %6405 = vmatpush2.msra.mxu0 0.0
    %6406 = vmatprep.subr.mxu0 0.0
    %6407 = vmatpush2.msra.mxu0 0.0
    %6408 = vmatprep.subr.mxu0 0.0
    %6409 = vmatpush2.msra.mxu0 0.0
    %6410 = vmatprep.subr.mxu0 0.0
    %6411 = vmatpush2.msra.mxu0 0.0
    %6412 = vmatprep.subr.mxu0 0.0
    %6413 = vmatpush2.msra.mxu0 0.0
    %6414 = vmatprep.subr.mxu0 0.0
    %6415 = vmatpush2.msra.mxu0 0.0
    %6416 = vmatprep.subr.mxu0 0.0
    %6417 = vmatpush2.msra.mxu0 0.0
    %6418 = vmatprep.mubr.f32.mxu0 0.0
    %6419 = vmatmul.mubr.f32.gmra.mxu0 %v6204
    %v6420 = vpop.f32.mrf.mxu0
    %v6421 = vadd.f32 0.0, %v6420
    %v6422 = vpop.f32.mrf.mxu0
    %6423 = vdwg.mxu0
    %v6424 = vadd.f32 %v6351, %v6421
    %v6425 = vadd.f32 %v6424, %v1029
    %v6426 = vxor.u32 %v6425, 2147483648
    %v6427 = vmul.f32 %v6426, 1.442695
    %v6428 = vpow.pop %v6427
    %v6429 = vadd.f32 %v6428, 1.0
    %v6430 = vrcp.pop %v6429
    %v6431 = vmul.f32 1.0, %v6430
    %6432 = vmatprep.subr.mxu0 0.0
    %6433 = vmatpush1.msra.mxu0 0.0
    %6434 = vmatprep.subr.mxu0 0.0
    %6435 = vmatpush1.msra.mxu0 0.0
    %6436 = vmatprep.subr.mxu0 0.0
    %6437 = vmatpush1.msra.mxu0 0.0
    %6438 = vmatprep.subr.mxu0 0.0
    %6439 = vmatpush1.msra.mxu0 0.0
    %6440 = vmatprep.subr.mxu0 0.0
    %6441 = vmatpush1.msra.mxu0 0.0
    %6442 = vmatprep.subr.mxu0 0.0
    %6443 = vmatpush1.msra.mxu0 0.0
    %6444 = vmatprep.subr.mxu0 0.0
    %6445 = vmatpush1.msra.mxu0 0.0
    %6446 = vmatprep.subr.mxu0 0.0
    %6447 = vmatpush1.msra.mxu0 0.0
    %6448 = vmatprep.subr.mxu0 0.0
    %6449 = vmatpush1.msra.mxu0 0.0
    %6450 = vmatprep.subr.mxu0 0.0
    %6451 = vmatpush1.msra.mxu0 0.0
    %6452 = vmatprep.subr.mxu0 0.0
    %6453 = vmatpush1.msra.mxu0 0.0
    %6454 = vmatprep.subr.mxu0 0.0
    %6455 = vmatpush1.msra.mxu0 0.0
    %6456 = vmatprep.subr.mxu0 0.0
    %6457 = vmatpush1.msra.mxu0 %v202
    %6458 = vmatprep.subr.mxu0 0.0
    %6459 = vmatpush1.msra.mxu0 %v201
    %6460 = vmatprep.subr.mxu0 0.0
    %6461 = vmatpush1.msra.mxu0 %v200
    %6462 = vmatprep.subr.mxu0 0.0
    %6463 = vmatpush1.msra.mxu0 %v199
    %6464 = vmatprep.subr.mxu0 0.0
    %6465 = vmatpush2.msra.mxu0 0.0
    %6466 = vmatprep.subr.mxu0 0.0
    %6467 = vmatpush2.msra.mxu0 0.0
    %6468 = vmatprep.subr.mxu0 0.0
    %6469 = vmatpush2.msra.mxu0 0.0
    %6470 = vmatprep.subr.mxu0 0.0
    %6471 = vmatpush2.msra.mxu0 0.0
    %6472 = vmatprep.subr.mxu0 0.0
    %6473 = vmatpush2.msra.mxu0 0.0
    %6474 = vmatprep.subr.mxu0 0.0
    %6475 = vmatpush2.msra.mxu0 0.0
    %6476 = vmatprep.subr.mxu0 0.0
    %6477 = vmatpush2.msra.mxu0 0.0
    %6478 = vmatprep.subr.mxu0 0.0
    %6479 = vmatpush2.msra.mxu0 0.0
    %6480 = vmatprep.subr.mxu0 0.0
    %6481 = vmatpush2.msra.mxu0 0.0
    %6482 = vmatprep.subr.mxu0 0.0
    %6483 = vmatpush2.msra.mxu0 0.0
    %6484 = vmatprep.subr.mxu0 0.0
    %6485 = vmatpush2.msra.mxu0 0.0
    %6486 = vmatprep.subr.mxu0 0.0
    %6487 = vmatpush2.msra.mxu0 0.0
    %6488 = vmatprep.subr.mxu0 0.0
    %6489 = vmatpush2.msra.mxu0 0.0
    %6490 = vmatprep.subr.mxu0 0.0
    %6491 = vmatpush2.msra.mxu0 0.0
    %6492 = vmatprep.subr.mxu0 0.0
    %6493 = vmatpush2.msra.mxu0 0.0
    %6494 = vmatprep.subr.mxu0 0.0
    %6495 = vmatpush2.msra.mxu0 0.0
    %6496 = vmatprep.mubr.f32.mxu0 0.0
    %6497 = vmatmul.mubr.f32.gmra.mxu0 %v6131
    %v6498 = vpop.f32.mrf.mxu0
    %v6499 = vadd.f32 %v1042, %v6498
    %v6500 = vpop.f32.mrf.mxu0
    %6501 = vdwg.mxu0
    %6502 = vmatprep.subr.mxu0 0.0
    %6503 = vmatpush1.msra.mxu0 0.0
    %6504 = vmatprep.subr.mxu0 0.0
    %6505 = vmatpush1.msra.mxu0 0.0
    %6506 = vmatprep.subr.mxu0 0.0
    %6507 = vmatpush1.msra.mxu0 0.0
    %6508 = vmatprep.subr.mxu0 0.0
    %6509 = vmatpush1.msra.mxu0 0.0
    %6510 = vmatprep.subr.mxu0 0.0
    %6511 = vmatpush1.msra.mxu0 0.0
    %6512 = vmatprep.subr.mxu0 0.0
    %6513 = vmatpush1.msra.mxu0 0.0
    %6514 = vmatprep.subr.mxu0 0.0
    %6515 = vmatpush1.msra.mxu0 0.0
    %6516 = vmatprep.subr.mxu0 0.0
    %6517 = vmatpush1.msra.mxu0 0.0
    %6518 = vmatprep.subr.mxu0 0.0
    %6519 = vmatpush1.msra.mxu0 0.0
    %6520 = vmatprep.subr.mxu0 0.0
    %6521 = vmatpush1.msra.mxu0 0.0
    %6522 = vmatprep.subr.mxu0 0.0
    %6523 = vmatpush1.msra.mxu0 0.0
    %6524 = vmatprep.subr.mxu0 0.0
    %6525 = vmatpush1.msra.mxu0 0.0
    %6526 = vmatprep.subr.mxu0 0.0
    %6527 = vmatpush1.msra.mxu0 %v216
    %6528 = vmatprep.subr.mxu0 0.0
    %6529 = vmatpush1.msra.mxu0 %v215
    %6530 = vmatprep.subr.mxu0 0.0
    %6531 = vmatpush1.msra.mxu0 %v214
    %6532 = vmatprep.subr.mxu0 0.0
    %6533 = vmatpush1.msra.mxu0 %v213
    %6534 = vmatprep.subr.mxu0 0.0
    %6535 = vmatpush2.msra.mxu0 0.0
    %6536 = vmatprep.subr.mxu0 0.0
    %6537 = vmatpush2.msra.mxu0 0.0
    %6538 = vmatprep.subr.mxu0 0.0
    %6539 = vmatpush2.msra.mxu0 0.0
    %6540 = vmatprep.subr.mxu0 0.0
    %6541 = vmatpush2.msra.mxu0 0.0
    %6542 = vmatprep.subr.mxu0 0.0
    %6543 = vmatpush2.msra.mxu0 0.0
    %6544 = vmatprep.subr.mxu0 0.0
    %6545 = vmatpush2.msra.mxu0 0.0
    %6546 = vmatprep.subr.mxu0 0.0
    %6547 = vmatpush2.msra.mxu0 0.0
    %6548 = vmatprep.subr.mxu0 0.0
    %6549 = vmatpush2.msra.mxu0 0.0
    %6550 = vmatprep.subr.mxu0 0.0
    %6551 = vmatpush2.msra.mxu0 0.0
    %6552 = vmatprep.subr.mxu0 0.0
    %6553 = vmatpush2.msra.mxu0 0.0
    %6554 = vmatprep.subr.mxu0 0.0
    %6555 = vmatpush2.msra.mxu0 0.0
    %6556 = vmatprep.subr.mxu0 0.0
    %6557 = vmatpush2.msra.mxu0 0.0
    %6558 = vmatprep.subr.mxu0 0.0
    %6559 = vmatpush2.msra.mxu0 0.0
    %6560 = vmatprep.subr.mxu0 0.0
    %6561 = vmatpush2.msra.mxu0 0.0
    %6562 = vmatprep.subr.mxu0 0.0
    %6563 = vmatpush2.msra.mxu0 0.0
    %6564 = vmatprep.subr.mxu0 0.0
    %6565 = vmatpush2.msra.mxu0 0.0
    %6566 = vmatprep.mubr.f32.mxu0 0.0
    %6567 = vmatmul.mubr.f32.gmra.mxu0 %v6204
    %v6568 = vpop.f32.mrf.mxu0
    %v6569 = vadd.f32 %v1118, %v6568
    %v6570 = vpop.f32.mrf.mxu0
    %6571 = vdwg.mxu0
    %v6572 = vmul.f32 %v6283, %v6569
    %v6573 = vadd.f32 %v6499, %v6572
    %v6574 = vtanh.pop %v6573
    %v6575 = vsub.f32 1.0, %v6431
    %v6576 = vmul.f32 %v6575, %v6574
    %v6577 = vmul.f32 %v6431, %v5681
    %v6578 = vadd.f32 %v6576, %v6577
    %s6579 = scalar_lea.vmem [#allocation2], 56
    %v6580 = vld [vmem:[%s6579] sm:$0xff]
    %v6582 = vsel %vm234, %v6580, 0
    %6584 = vmatprep.subr.mxu0 0.0
    %6585 = vmatpush1.msra.mxu0 0.0
    %6586 = vmatprep.subr.mxu0 0.0
    %6587 = vmatpush1.msra.mxu0 0.0
    %6588 = vmatprep.subr.mxu0 0.0
    %6589 = vmatpush1.msra.mxu0 0.0
    %6590 = vmatprep.subr.mxu0 0.0
    %6591 = vmatpush1.msra.mxu0 0.0
    %6592 = vmatprep.subr.mxu0 0.0
    %6593 = vmatpush1.msra.mxu0 0.0
    %6594 = vmatprep.subr.mxu0 0.0
    %6595 = vmatpush1.msra.mxu0 0.0
    %6596 = vmatprep.subr.mxu0 0.0
    %6597 = vmatpush1.msra.mxu0 0.0
    %6598 = vmatprep.subr.mxu0 0.0
    %6599 = vmatpush1.msra.mxu0 0.0
    %6600 = vmatprep.subr.mxu0 0.0
    %6601 = vmatpush1.msra.mxu0 0.0
    %6602 = vmatprep.subr.mxu0 0.0
    %6603 = vmatpush1.msra.mxu0 0.0
    %6604 = vmatprep.subr.mxu0 0.0
    %6605 = vmatpush1.msra.mxu0 0.0
    %6606 = vmatprep.subr.mxu0 0.0
    %6607 = vmatpush1.msra.mxu0 0.0
    %6608 = vmatprep.subr.mxu0 0.0
    %6609 = vmatpush1.msra.mxu0 0.0
    %6610 = vmatprep.subr.mxu0 0.0
    %6611 = vmatpush1.msra.mxu0 0.0
    %6612 = vmatprep.subr.mxu0 0.0
    %6613 = vmatpush1.msra.mxu0 %v158
    %6614 = vmatprep.subr.mxu0 0.0
    %6615 = vmatpush1.msra.mxu0 %v157
    %6616 = vmatprep.subr.mxu0 0.0
    %6617 = vmatpush2.msra.mxu0 0.0
    %6618 = vmatprep.subr.mxu0 0.0
    %6619 = vmatpush2.msra.mxu0 0.0
    %6620 = vmatprep.subr.mxu0 0.0
    %6621 = vmatpush2.msra.mxu0 0.0
    %6622 = vmatprep.subr.mxu0 0.0
    %6623 = vmatpush2.msra.mxu0 0.0
    %6624 = vmatprep.subr.mxu0 0.0
    %6625 = vmatpush2.msra.mxu0 0.0
    %6626 = vmatprep.subr.mxu0 0.0
    %6627 = vmatpush2.msra.mxu0 0.0
    %6628 = vmatprep.subr.mxu0 0.0
    %6629 = vmatpush2.msra.mxu0 0.0
    %6630 = vmatprep.subr.mxu0 0.0
    %6631 = vmatpush2.msra.mxu0 0.0
    %6632 = vmatprep.subr.mxu0 0.0
    %6633 = vmatpush2.msra.mxu0 0.0
    %6634 = vmatprep.subr.mxu0 0.0
    %6635 = vmatpush2.msra.mxu0 0.0
    %6636 = vmatprep.subr.mxu0 0.0
    %6637 = vmatpush2.msra.mxu0 0.0
    %6638 = vmatprep.subr.mxu0 0.0
    %6639 = vmatpush2.msra.mxu0 0.0
    %6640 = vmatprep.subr.mxu0 0.0
    %6641 = vmatpush2.msra.mxu0 0.0
    %6642 = vmatprep.subr.mxu0 0.0
    %6643 = vmatpush2.msra.mxu0 0.0
    %6644 = vmatprep.subr.mxu0 0.0
    %6645 = vmatpush2.msra.mxu0 0.0
    %6646 = vmatprep.subr.mxu0 0.0
    %6647 = vmatpush2.msra.mxu0 0.0
    %6648 = vmatprep.mubr.f32.mxu0 0.0
    %6649 = vmatmul.mubr.f32.gmra.mxu0 %v6582
    %v6650 = vpop.f32.mrf.mxu0
    %v6651 = vadd.f32 %v232, %v6650
    %v6652 = vpop.f32.mrf.mxu0
    %6653 = vdwg.mxu0
    %6654 = vmatprep.subr.mxu0 0.0
    %6655 = vmatpush1.msra.mxu0 0.0
    %6656 = vmatprep.subr.mxu0 0.0
    %6657 = vmatpush1.msra.mxu0 0.0
    %6658 = vmatprep.subr.mxu0 0.0
    %6659 = vmatpush1.msra.mxu0 0.0
    %6660 = vmatprep.subr.mxu0 0.0
    %6661 = vmatpush1.msra.mxu0 0.0
    %6662 = vmatprep.subr.mxu0 0.0
    %6663 = vmatpush1.msra.mxu0 0.0
    %6664 = vmatprep.subr.mxu0 0.0
    %6665 = vmatpush1.msra.mxu0 0.0
    %6666 = vmatprep.subr.mxu0 0.0
    %6667 = vmatpush1.msra.mxu0 0.0
    %6668 = vmatprep.subr.mxu0 0.0
    %6669 = vmatpush1.msra.mxu0 0.0
    %6670 = vmatprep.subr.mxu0 0.0
    %6671 = vmatpush1.msra.mxu0 0.0
    %6672 = vmatprep.subr.mxu0 0.0
    %6673 = vmatpush1.msra.mxu0 0.0
    %6674 = vmatprep.subr.mxu0 0.0
    %6675 = vmatpush1.msra.mxu0 0.0
    %6676 = vmatprep.subr.mxu0 0.0
    %6677 = vmatpush1.msra.mxu0 0.0
    %6678 = vmatprep.subr.mxu0 0.0
    %6679 = vmatpush1.msra.mxu0 %v168
    %6680 = vmatprep.subr.mxu0 0.0
    %6681 = vmatpush1.msra.mxu0 %v167
    %6682 = vmatprep.subr.mxu0 0.0
    %6683 = vmatpush1.msra.mxu0 %v166
    %6684 = vmatprep.subr.mxu0 0.0
    %6685 = vmatpush1.msra.mxu0 %v165
    %6686 = vmatprep.subr.mxu0 0.0
    %6687 = vmatpush2.msra.mxu0 0.0
    %6688 = vmatprep.subr.mxu0 0.0
    %6689 = vmatpush2.msra.mxu0 0.0
    %6690 = vmatprep.subr.mxu0 0.0
    %6691 = vmatpush2.msra.mxu0 0.0
    %6692 = vmatprep.subr.mxu0 0.0
    %6693 = vmatpush2.msra.mxu0 0.0
    %6694 = vmatprep.subr.mxu0 0.0
    %6695 = vmatpush2.msra.mxu0 0.0
    %6696 = vmatprep.subr.mxu0 0.0
    %6697 = vmatpush2.msra.mxu0 0.0
    %6698 = vmatprep.subr.mxu0 0.0
    %6699 = vmatpush2.msra.mxu0 0.0
    %6700 = vmatprep.subr.mxu0 0.0
    %6701 = vmatpush2.msra.mxu0 0.0
    %6702 = vmatprep.subr.mxu0 0.0
    %6703 = vmatpush2.msra.mxu0 0.0
    %6704 = vmatprep.subr.mxu0 0.0
    %6705 = vmatpush2.msra.mxu0 0.0
    %6706 = vmatprep.subr.mxu0 0.0
    %6707 = vmatpush2.msra.mxu0 0.0
    %6708 = vmatprep.subr.mxu0 0.0
    %6709 = vmatpush2.msra.mxu0 0.0
    %6710 = vmatprep.subr.mxu0 0.0
    %6711 = vmatpush2.msra.mxu0 0.0
    %6712 = vmatprep.subr.mxu0 0.0
    %6713 = vmatpush2.msra.mxu0 0.0
    %6714 = vmatprep.subr.mxu0 0.0
    %6715 = vmatpush2.msra.mxu0 0.0
    %6716 = vmatprep.subr.mxu0 0.0
    %6717 = vmatpush2.msra.mxu0 0.0
    %6718 = vmatprep.mubr.f32.mxu0 0.0
    %6719 = vmatmul.mubr.f32.gmra.mxu0 %v6131
    %v6720 = vpop.f32.mrf.mxu0
    %v6721 = vadd.f32 0.0, %v6720
    %v6722 = vpop.f32.mrf.mxu0
    %6723 = vdwg.mxu0
    %v6724 = vadd.f32 %v6651, %v6721
    %v6725 = vadd.f32 %v6724, %v387
    %v6726 = vxor.u32 %v6725, 2147483648
    %v6727 = vmul.f32 %v6726, 1.442695
    %v6728 = vpow.pop %v6727
    %v6729 = vadd.f32 %v6728, 1.0
    %v6730 = vrcp.pop %v6729
    %v6731 = vmul.f32 1.0, %v6730
    %6732 = vmatprep.subr.mxu0 0.0
    %6733 = vmatpush1.msra.mxu0 0.0
    %6734 = vmatprep.subr.mxu0 0.0
    %6735 = vmatpush1.msra.mxu0 0.0
    %6736 = vmatprep.subr.mxu0 0.0
    %6737 = vmatpush1.msra.mxu0 0.0
    %6738 = vmatprep.subr.mxu0 0.0
    %6739 = vmatpush1.msra.mxu0 0.0
    %6740 = vmatprep.subr.mxu0 0.0
    %6741 = vmatpush1.msra.mxu0 0.0
    %6742 = vmatprep.subr.mxu0 0.0
    %6743 = vmatpush1.msra.mxu0 0.0
    %6744 = vmatprep.subr.mxu0 0.0
    %6745 = vmatpush1.msra.mxu0 0.0
    %6746 = vmatprep.subr.mxu0 0.0
    %6747 = vmatpush1.msra.mxu0 0.0
    %6748 = vmatprep.subr.mxu0 0.0
    %6749 = vmatpush1.msra.mxu0 0.0
    %6750 = vmatprep.subr.mxu0 0.0
    %6751 = vmatpush1.msra.mxu0 0.0
    %6752 = vmatprep.subr.mxu0 0.0
    %6753 = vmatpush1.msra.mxu0 0.0
    %6754 = vmatprep.subr.mxu0 0.0
    %6755 = vmatpush1.msra.mxu0 0.0
    %6756 = vmatprep.subr.mxu0 0.0
    %6757 = vmatpush1.msra.mxu0 0.0
    %6758 = vmatprep.subr.mxu0 0.0
    %6759 = vmatpush1.msra.mxu0 0.0
    %6760 = vmatprep.subr.mxu0 0.0
    %6761 = vmatpush1.msra.mxu0 %v161
    %6762 = vmatprep.subr.mxu0 0.0
    %6763 = vmatpush1.msra.mxu0 %v160
    %6764 = vmatprep.subr.mxu0 0.0
    %6765 = vmatpush2.msra.mxu0 0.0
    %6766 = vmatprep.subr.mxu0 0.0
    %6767 = vmatpush2.msra.mxu0 0.0
    %6768 = vmatprep.subr.mxu0 0.0
    %6769 = vmatpush2.msra.mxu0 0.0
    %6770 = vmatprep.subr.mxu0 0.0
    %6771 = vmatpush2.msra.mxu0 0.0
    %6772 = vmatprep.subr.mxu0 0.0
    %6773 = vmatpush2.msra.mxu0 0.0
    %6774 = vmatprep.subr.mxu0 0.0
    %6775 = vmatpush2.msra.mxu0 0.0
    %6776 = vmatprep.subr.mxu0 0.0
    %6777 = vmatpush2.msra.mxu0 0.0
    %6778 = vmatprep.subr.mxu0 0.0
    %6779 = vmatpush2.msra.mxu0 0.0
    %6780 = vmatprep.subr.mxu0 0.0
    %6781 = vmatpush2.msra.mxu0 0.0
    %6782 = vmatprep.subr.mxu0 0.0
    %6783 = vmatpush2.msra.mxu0 0.0
    %6784 = vmatprep.subr.mxu0 0.0
    %6785 = vmatpush2.msra.mxu0 0.0
    %6786 = vmatprep.subr.mxu0 0.0
    %6787 = vmatpush2.msra.mxu0 0.0
    %6788 = vmatprep.subr.mxu0 0.0
    %6789 = vmatpush2.msra.mxu0 0.0
    %6790 = vmatprep.subr.mxu0 0.0
    %6791 = vmatpush2.msra.mxu0 0.0
    %6792 = vmatprep.subr.mxu0 0.0
    %6793 = vmatpush2.msra.mxu0 0.0
    %6794 = vmatprep.subr.mxu0 0.0
    %6795 = vmatpush2.msra.mxu0 0.0
    %6796 = vmatprep.mubr.f32.mxu0 0.0
    %6797 = vmatmul.mubr.f32.gmra.mxu0 %v6582
    %v6798 = vpop.f32.mrf.mxu0
    %v6799 = vadd.f32 %v400, %v6798
    %v6800 = vpop.f32.mrf.mxu0
    %6801 = vdwg.mxu0
    %6802 = vmatprep.subr.mxu0 0.0
    %6803 = vmatpush1.msra.mxu0 0.0
    %6804 = vmatprep.subr.mxu0 0.0
    %6805 = vmatpush1.msra.mxu0 0.0
    %6806 = vmatprep.subr.mxu0 0.0
    %6807 = vmatpush1.msra.mxu0 0.0
    %6808 = vmatprep.subr.mxu0 0.0
    %6809 = vmatpush1.msra.mxu0 0.0
    %6810 = vmatprep.subr.mxu0 0.0
    %6811 = vmatpush1.msra.mxu0 0.0
    %6812 = vmatprep.subr.mxu0 0.0
    %6813 = vmatpush1.msra.mxu0 0.0
    %6814 = vmatprep.subr.mxu0 0.0
    %6815 = vmatpush1.msra.mxu0 0.0
    %6816 = vmatprep.subr.mxu0 0.0
    %6817 = vmatpush1.msra.mxu0 0.0
    %6818 = vmatprep.subr.mxu0 0.0
    %6819 = vmatpush1.msra.mxu0 0.0
    %6820 = vmatprep.subr.mxu0 0.0
    %6821 = vmatpush1.msra.mxu0 0.0
    %6822 = vmatprep.subr.mxu0 0.0
    %6823 = vmatpush1.msra.mxu0 0.0
    %6824 = vmatprep.subr.mxu0 0.0
    %6825 = vmatpush1.msra.mxu0 0.0
    %6826 = vmatprep.subr.mxu0 0.0
    %6827 = vmatpush1.msra.mxu0 %v173
    %6828 = vmatprep.subr.mxu0 0.0
    %6829 = vmatpush1.msra.mxu0 %v172
    %6830 = vmatprep.subr.mxu0 0.0
    %6831 = vmatpush1.msra.mxu0 %v171
    %6832 = vmatprep.subr.mxu0 0.0
    %6833 = vmatpush1.msra.mxu0 %v170
    %6834 = vmatprep.subr.mxu0 0.0
    %6835 = vmatpush2.msra.mxu0 0.0
    %6836 = vmatprep.subr.mxu0 0.0
    %6837 = vmatpush2.msra.mxu0 0.0
    %6838 = vmatprep.subr.mxu0 0.0
    %6839 = vmatpush2.msra.mxu0 0.0
    %6840 = vmatprep.subr.mxu0 0.0
    %6841 = vmatpush2.msra.mxu0 0.0
    %6842 = vmatprep.subr.mxu0 0.0
    %6843 = vmatpush2.msra.mxu0 0.0
    %6844 = vmatprep.subr.mxu0 0.0
    %6845 = vmatpush2.msra.mxu0 0.0
    %6846 = vmatprep.subr.mxu0 0.0
    %6847 = vmatpush2.msra.mxu0 0.0
    %6848 = vmatprep.subr.mxu0 0.0
    %6849 = vmatpush2.msra.mxu0 0.0
    %6850 = vmatprep.subr.mxu0 0.0
    %6851 = vmatpush2.msra.mxu0 0.0
    %6852 = vmatprep.subr.mxu0 0.0
    %6853 = vmatpush2.msra.mxu0 0.0
    %6854 = vmatprep.subr.mxu0 0.0
    %6855 = vmatpush2.msra.mxu0 0.0
    %6856 = vmatprep.subr.mxu0 0.0
    %6857 = vmatpush2.msra.mxu0 0.0
    %6858 = vmatprep.subr.mxu0 0.0
    %6859 = vmatpush2.msra.mxu0 0.0
    %6860 = vmatprep.subr.mxu0 0.0
    %6861 = vmatpush2.msra.mxu0 0.0
    %6862 = vmatprep.subr.mxu0 0.0
    %6863 = vmatpush2.msra.mxu0 0.0
    %6864 = vmatprep.subr.mxu0 0.0
    %6865 = vmatpush2.msra.mxu0 0.0
    %6866 = vmatprep.mubr.f32.mxu0 0.0
    %6867 = vmatmul.mubr.f32.gmra.mxu0 %v6131
    %v6868 = vpop.f32.mrf.mxu0
    %v6869 = vadd.f32 0.0, %v6868
    %v6870 = vpop.f32.mrf.mxu0
    %6871 = vdwg.mxu0
    %v6872 = vadd.f32 %v6799, %v6869
    %v6873 = vadd.f32 %v6872, %v547
    %v6874 = vxor.u32 %v6873, 2147483648
    %v6875 = vmul.f32 %v6874, 1.442695
    %v6876 = vpow.pop %v6875
    %v6877 = vadd.f32 %v6876, 1.0
    %v6878 = vrcp.pop %v6877
    %v6879 = vmul.f32 1.0, %v6878
    %6880 = vmatprep.subr.mxu0 0.0
    %6881 = vmatpush1.msra.mxu0 0.0
    %6882 = vmatprep.subr.mxu0 0.0
    %6883 = vmatpush1.msra.mxu0 0.0
    %6884 = vmatprep.subr.mxu0 0.0
    %6885 = vmatpush1.msra.mxu0 0.0
    %6886 = vmatprep.subr.mxu0 0.0
    %6887 = vmatpush1.msra.mxu0 0.0
    %6888 = vmatprep.subr.mxu0 0.0
    %6889 = vmatpush1.msra.mxu0 0.0
    %6890 = vmatprep.subr.mxu0 0.0
    %6891 = vmatpush1.msra.mxu0 0.0
    %6892 = vmatprep.subr.mxu0 0.0
    %6893 = vmatpush1.msra.mxu0 0.0
    %6894 = vmatprep.subr.mxu0 0.0
    %6895 = vmatpush1.msra.mxu0 0.0
    %6896 = vmatprep.subr.mxu0 0.0
    %6897 = vmatpush1.msra.mxu0 0.0
    %6898 = vmatprep.subr.mxu0 0.0
    %6899 = vmatpush1.msra.mxu0 0.0
    %6900 = vmatprep.subr.mxu0 0.0
    %6901 = vmatpush1.msra.mxu0 0.0
    %6902 = vmatprep.subr.mxu0 0.0
    %6903 = vmatpush1.msra.mxu0 0.0
    %6904 = vmatprep.subr.mxu0 0.0
    %6905 = vmatpush1.msra.mxu0 0.0
    %6906 = vmatprep.subr.mxu0 0.0
    %6907 = vmatpush1.msra.mxu0 0.0
    %6908 = vmatprep.subr.mxu0 0.0
    %6909 = vmatpush1.msra.mxu0 %v164
    %6910 = vmatprep.subr.mxu0 0.0
    %6911 = vmatpush1.msra.mxu0 %v163
    %6912 = vmatprep.subr.mxu0 0.0
    %6913 = vmatpush2.msra.mxu0 0.0
    %6914 = vmatprep.subr.mxu0 0.0
    %6915 = vmatpush2.msra.mxu0 0.0
    %6916 = vmatprep.subr.mxu0 0.0
    %6917 = vmatpush2.msra.mxu0 0.0
    %6918 = vmatprep.subr.mxu0 0.0
    %6919 = vmatpush2.msra.mxu0 0.0
    %6920 = vmatprep.subr.mxu0 0.0
    %6921 = vmatpush2.msra.mxu0 0.0
    %6922 = vmatprep.subr.mxu0 0.0
    %6923 = vmatpush2.msra.mxu0 0.0
    %6924 = vmatprep.subr.mxu0 0.0
    %6925 = vmatpush2.msra.mxu0 0.0
    %6926 = vmatprep.subr.mxu0 0.0
    %6927 = vmatpush2.msra.mxu0 0.0
    %6928 = vmatprep.subr.mxu0 0.0
    %6929 = vmatpush2.msra.mxu0 0.0
    %6930 = vmatprep.subr.mxu0 0.0
    %6931 = vmatpush2.msra.mxu0 0.0
    %6932 = vmatprep.subr.mxu0 0.0
    %6933 = vmatpush2.msra.mxu0 0.0
    %6934 = vmatprep.subr.mxu0 0.0
    %6935 = vmatpush2.msra.mxu0 0.0
    %6936 = vmatprep.subr.mxu0 0.0
    %6937 = vmatpush2.msra.mxu0 0.0
    %6938 = vmatprep.subr.mxu0 0.0
    %6939 = vmatpush2.msra.mxu0 0.0
    %6940 = vmatprep.subr.mxu0 0.0
    %6941 = vmatpush2.msra.mxu0 0.0
    %6942 = vmatprep.subr.mxu0 0.0
    %6943 = vmatpush2.msra.mxu0 0.0
    %6944 = vmatprep.mubr.f32.mxu0 0.0
    %6945 = vmatmul.mubr.f32.gmra.mxu0 %v6582
    %v6946 = vpop.f32.mrf.mxu0
    %v6947 = vadd.f32 %v560, %v6946
    %v6948 = vpop.f32.mrf.mxu0
    %6949 = vdwg.mxu0
    %6950 = vmatprep.subr.mxu0 0.0
    %6951 = vmatpush1.msra.mxu0 0.0
    %6952 = vmatprep.subr.mxu0 0.0
    %6953 = vmatpush1.msra.mxu0 0.0
    %6954 = vmatprep.subr.mxu0 0.0
    %6955 = vmatpush1.msra.mxu0 0.0
    %6956 = vmatprep.subr.mxu0 0.0
    %6957 = vmatpush1.msra.mxu0 0.0
    %6958 = vmatprep.subr.mxu0 0.0
    %6959 = vmatpush1.msra.mxu0 0.0
    %6960 = vmatprep.subr.mxu0 0.0
    %6961 = vmatpush1.msra.mxu0 0.0
    %6962 = vmatprep.subr.mxu0 0.0
    %6963 = vmatpush1.msra.mxu0 0.0
    %6964 = vmatprep.subr.mxu0 0.0
    %6965 = vmatpush1.msra.mxu0 0.0
    %6966 = vmatprep.subr.mxu0 0.0
    %6967 = vmatpush1.msra.mxu0 0.0
    %6968 = vmatprep.subr.mxu0 0.0
    %6969 = vmatpush1.msra.mxu0 0.0
    %6970 = vmatprep.subr.mxu0 0.0
    %6971 = vmatpush1.msra.mxu0 0.0
    %6972 = vmatprep.subr.mxu0 0.0
    %6973 = vmatpush1.msra.mxu0 0.0
    %6974 = vmatprep.subr.mxu0 0.0
    %6975 = vmatpush1.msra.mxu0 %v178
    %6976 = vmatprep.subr.mxu0 0.0
    %6977 = vmatpush1.msra.mxu0 %v177
    %6978 = vmatprep.subr.mxu0 0.0
    %6979 = vmatpush1.msra.mxu0 %v176
    %6980 = vmatprep.subr.mxu0 0.0
    %6981 = vmatpush1.msra.mxu0 %v175
    %6982 = vmatprep.subr.mxu0 0.0
    %6983 = vmatpush2.msra.mxu0 0.0
    %6984 = vmatprep.subr.mxu0 0.0
    %6985 = vmatpush2.msra.mxu0 0.0
    %6986 = vmatprep.subr.mxu0 0.0
    %6987 = vmatpush2.msra.mxu0 0.0
    %6988 = vmatprep.subr.mxu0 0.0
    %6989 = vmatpush2.msra.mxu0 0.0
    %6990 = vmatprep.subr.mxu0 0.0
    %6991 = vmatpush2.msra.mxu0 0.0
    %6992 = vmatprep.subr.mxu0 0.0
    %6993 = vmatpush2.msra.mxu0 0.0
    %6994 = vmatprep.subr.mxu0 0.0
    %6995 = vmatpush2.msra.mxu0 0.0
    %6996 = vmatprep.subr.mxu0 0.0
    %6997 = vmatpush2.msra.mxu0 0.0
    %6998 = vmatprep.subr.mxu0 0.0
    %6999 = vmatpush2.msra.mxu0 0.0
    %7000 = vmatprep.subr.mxu0 0.0
    %7001 = vmatpush2.msra.mxu0 0.0
    %7002 = vmatprep.subr.mxu0 0.0
    %7003 = vmatpush2.msra.mxu0 0.0
    %7004 = vmatprep.subr.mxu0 0.0
    %7005 = vmatpush2.msra.mxu0 0.0
    %7006 = vmatprep.subr.mxu0 0.0
    %7007 = vmatpush2.msra.mxu0 0.0
    %7008 = vmatprep.subr.mxu0 0.0
    %7009 = vmatpush2.msra.mxu0 0.0
    %7010 = vmatprep.subr.mxu0 0.0
    %7011 = vmatpush2.msra.mxu0 0.0
    %7012 = vmatprep.subr.mxu0 0.0
    %7013 = vmatpush2.msra.mxu0 0.0
    %7014 = vmatprep.mubr.f32.mxu0 0.0
    %7015 = vmatmul.mubr.f32.gmra.mxu0 %v6131
    %v7016 = vpop.f32.mrf.mxu0
    %v7017 = vadd.f32 %v636, %v7016
    %v7018 = vpop.f32.mrf.mxu0
    %7019 = vdwg.mxu0
    %v7020 = vmul.f32 %v6731, %v7017
    %v7021 = vadd.f32 %v6947, %v7020
    %v7022 = vtanh.pop %v7021
    %v7023 = vsub.f32 1.0, %v6879
    %v7024 = vmul.f32 %v7023, %v7022
    %v7025 = vmul.f32 %v6879, %v6129
    %v7026 = vadd.f32 %v7024, %v7025
    %v7028 = vsel %vm308, %v7026, 0
    %7030 = vmatprep.subr.mxu0 0.0
    %7031 = vmatpush1.msra.mxu0 0.0
    %7032 = vmatprep.subr.mxu0 0.0
    %7033 = vmatpush1.msra.mxu0 0.0
    %7034 = vmatprep.subr.mxu0 0.0
    %7035 = vmatpush1.msra.mxu0 0.0
    %7036 = vmatprep.subr.mxu0 0.0
    %7037 = vmatpush1.msra.mxu0 0.0
    %7038 = vmatprep.subr.mxu0 0.0
    %7039 = vmatpush1.msra.mxu0 0.0
    %7040 = vmatprep.subr.mxu0 0.0
    %7041 = vmatpush1.msra.mxu0 0.0
    %7042 = vmatprep.subr.mxu0 0.0
    %7043 = vmatpush1.msra.mxu0 0.0
    %7044 = vmatprep.subr.mxu0 0.0
    %7045 = vmatpush1.msra.mxu0 0.0
    %7046 = vmatprep.subr.mxu0 0.0
    %7047 = vmatpush1.msra.mxu0 0.0
    %7048 = vmatprep.subr.mxu0 0.0
    %7049 = vmatpush1.msra.mxu0 0.0
    %7050 = vmatprep.subr.mxu0 0.0
    %7051 = vmatpush1.msra.mxu0 0.0
    %7052 = vmatprep.subr.mxu0 0.0
    %7053 = vmatpush1.msra.mxu0 0.0
    %7054 = vmatprep.subr.mxu0 0.0
    %7055 = vmatpush1.msra.mxu0 %v192
    %7056 = vmatprep.subr.mxu0 0.0
    %7057 = vmatpush1.msra.mxu0 %v191
    %7058 = vmatprep.subr.mxu0 0.0
    %7059 = vmatpush1.msra.mxu0 %v190
    %7060 = vmatprep.subr.mxu0 0.0
    %7061 = vmatpush1.msra.mxu0 %v189
    %7062 = vmatprep.subr.mxu0 0.0
    %7063 = vmatpush2.msra.mxu0 0.0
    %7064 = vmatprep.subr.mxu0 0.0
    %7065 = vmatpush2.msra.mxu0 0.0
    %7066 = vmatprep.subr.mxu0 0.0
    %7067 = vmatpush2.msra.mxu0 0.0
    %7068 = vmatprep.subr.mxu0 0.0
    %7069 = vmatpush2.msra.mxu0 0.0
    %7070 = vmatprep.subr.mxu0 0.0
    %7071 = vmatpush2.msra.mxu0 0.0
    %7072 = vmatprep.subr.mxu0 0.0
    %7073 = vmatpush2.msra.mxu0 0.0
    %7074 = vmatprep.subr.mxu0 0.0
    %7075 = vmatpush2.msra.mxu0 0.0
    %7076 = vmatprep.subr.mxu0 0.0
    %7077 = vmatpush2.msra.mxu0 0.0
    %7078 = vmatprep.subr.mxu0 0.0
    %7079 = vmatpush2.msra.mxu0 0.0
    %7080 = vmatprep.subr.mxu0 0.0
    %7081 = vmatpush2.msra.mxu0 0.0
    %7082 = vmatprep.subr.mxu0 0.0
    %7083 = vmatpush2.msra.mxu0 0.0
    %7084 = vmatprep.subr.mxu0 0.0
    %7085 = vmatpush2.msra.mxu0 0.0
    %7086 = vmatprep.subr.mxu0 0.0
    %7087 = vmatpush2.msra.mxu0 0.0
    %7088 = vmatprep.subr.mxu0 0.0
    %7089 = vmatpush2.msra.mxu0 0.0
    %7090 = vmatprep.subr.mxu0 0.0
    %7091 = vmatpush2.msra.mxu0 0.0
    %7092 = vmatprep.subr.mxu0 0.0
    %7093 = vmatpush2.msra.mxu0 0.0
    %7094 = vmatprep.mubr.f32.mxu0 0.0
    %7095 = vmatmul.mubr.f32.gmra.mxu0 %v7028
    %v7096 = vpop.f32.mrf.mxu0
    %v7097 = vadd.f32 %v719, %v7096
    %v7098 = vpop.f32.mrf.mxu0
    %7099 = vdwg.mxu0
    %v7101 = vsel %vm308, %v6578, 0
    %7103 = vmatprep.subr.mxu0 0.0
    %7104 = vmatpush1.msra.mxu0 0.0
    %7105 = vmatprep.subr.mxu0 0.0
    %7106 = vmatpush1.msra.mxu0 0.0
    %7107 = vmatprep.subr.mxu0 0.0
    %7108 = vmatpush1.msra.mxu0 0.0
    %7109 = vmatprep.subr.mxu0 0.0
    %7110 = vmatpush1.msra.mxu0 0.0
    %7111 = vmatprep.subr.mxu0 0.0
    %7112 = vmatpush1.msra.mxu0 0.0
    %7113 = vmatprep.subr.mxu0 0.0
    %7114 = vmatpush1.msra.mxu0 0.0
    %7115 = vmatprep.subr.mxu0 0.0
    %7116 = vmatpush1.msra.mxu0 0.0
    %7117 = vmatprep.subr.mxu0 0.0
    %7118 = vmatpush1.msra.mxu0 0.0
    %7119 = vmatprep.subr.mxu0 0.0
    %7120 = vmatpush1.msra.mxu0 0.0
    %7121 = vmatprep.subr.mxu0 0.0
    %7122 = vmatpush1.msra.mxu0 0.0
    %7123 = vmatprep.subr.mxu0 0.0
    %7124 = vmatpush1.msra.mxu0 0.0
    %7125 = vmatprep.subr.mxu0 0.0
    %7126 = vmatpush1.msra.mxu0 0.0
    %7127 = vmatprep.subr.mxu0 0.0
    %7128 = vmatpush1.msra.mxu0 %v206
    %7129 = vmatprep.subr.mxu0 0.0
    %7130 = vmatpush1.msra.mxu0 %v205
    %7131 = vmatprep.subr.mxu0 0.0
    %7132 = vmatpush1.msra.mxu0 %v204
    %7133 = vmatprep.subr.mxu0 0.0
    %7134 = vmatpush1.msra.mxu0 %v203
    %7135 = vmatprep.subr.mxu0 0.0
    %7136 = vmatpush2.msra.mxu0 0.0
    %7137 = vmatprep.subr.mxu0 0.0
    %7138 = vmatpush2.msra.mxu0 0.0
    %7139 = vmatprep.subr.mxu0 0.0
    %7140 = vmatpush2.msra.mxu0 0.0
    %7141 = vmatprep.subr.mxu0 0.0
    %7142 = vmatpush2.msra.mxu0 0.0
    %7143 = vmatprep.subr.mxu0 0.0
    %7144 = vmatpush2.msra.mxu0 0.0
    %7145 = vmatprep.subr.mxu0 0.0
    %7146 = vmatpush2.msra.mxu0 0.0
    %7147 = vmatprep.subr.mxu0 0.0
    %7148 = vmatpush2.msra.mxu0 0.0
    %7149 = vmatprep.subr.mxu0 0.0
    %7150 = vmatpush2.msra.mxu0 0.0
    %7151 = vmatprep.subr.mxu0 0.0
    %7152 = vmatpush2.msra.mxu0 0.0
    %7153 = vmatprep.subr.mxu0 0.0
    %7154 = vmatpush2.msra.mxu0 0.0
    %7155 = vmatprep.subr.mxu0 0.0
    %7156 = vmatpush2.msra.mxu0 0.0
    %7157 = vmatprep.subr.mxu0 0.0
    %7158 = vmatpush2.msra.mxu0 0.0
    %7159 = vmatprep.subr.mxu0 0.0
    %7160 = vmatpush2.msra.mxu0 0.0
    %7161 = vmatprep.subr.mxu0 0.0
    %7162 = vmatpush2.msra.mxu0 0.0
    %7163 = vmatprep.subr.mxu0 0.0
    %7164 = vmatpush2.msra.mxu0 0.0
    %7165 = vmatprep.subr.mxu0 0.0
    %7166 = vmatpush2.msra.mxu0 0.0
    %7167 = vmatprep.mubr.f32.mxu0 0.0
    %7168 = vmatmul.mubr.f32.gmra.mxu0 %v7101
    %v7169 = vpop.f32.mrf.mxu0
    %v7170 = vadd.f32 0.0, %v7169
    %v7171 = vpop.f32.mrf.mxu0
    %7172 = vdwg.mxu0
    %v7173 = vadd.f32 %v7097, %v7170
    %v7174 = vadd.f32 %v7173, %v869
    %v7175 = vxor.u32 %v7174, 2147483648
    %v7176 = vmul.f32 %v7175, 1.442695
    %v7177 = vpow.pop %v7176
    %v7178 = vadd.f32 %v7177, 1.0
    %v7179 = vrcp.pop %v7178
    %v7180 = vmul.f32 1.0, %v7179
    %7181 = vmatprep.subr.mxu0 0.0
    %7182 = vmatpush1.msra.mxu0 0.0
    %7183 = vmatprep.subr.mxu0 0.0
    %7184 = vmatpush1.msra.mxu0 0.0
    %7185 = vmatprep.subr.mxu0 0.0
    %7186 = vmatpush1.msra.mxu0 0.0
    %7187 = vmatprep.subr.mxu0 0.0
    %7188 = vmatpush1.msra.mxu0 0.0
    %7189 = vmatprep.subr.mxu0 0.0
    %7190 = vmatpush1.msra.mxu0 0.0
    %7191 = vmatprep.subr.mxu0 0.0
    %7192 = vmatpush1.msra.mxu0 0.0
    %7193 = vmatprep.subr.mxu0 0.0
    %7194 = vmatpush1.msra.mxu0 0.0
    %7195 = vmatprep.subr.mxu0 0.0
    %7196 = vmatpush1.msra.mxu0 0.0
    %7197 = vmatprep.subr.mxu0 0.0
    %7198 = vmatpush1.msra.mxu0 0.0
    %7199 = vmatprep.subr.mxu0 0.0
    %7200 = vmatpush1.msra.mxu0 0.0
    %7201 = vmatprep.subr.mxu0 0.0
    %7202 = vmatpush1.msra.mxu0 0.0
    %7203 = vmatprep.subr.mxu0 0.0
    %7204 = vmatpush1.msra.mxu0 0.0
    %7205 = vmatprep.subr.mxu0 0.0
    %7206 = vmatpush1.msra.mxu0 %v197
    %7207 = vmatprep.subr.mxu0 0.0
    %7208 = vmatpush1.msra.mxu0 %v196
    %7209 = vmatprep.subr.mxu0 0.0
    %7210 = vmatpush1.msra.mxu0 %v195
    %7211 = vmatprep.subr.mxu0 0.0
    %7212 = vmatpush1.msra.mxu0 %v194
    %7213 = vmatprep.subr.mxu0 0.0
    %7214 = vmatpush2.msra.mxu0 0.0
    %7215 = vmatprep.subr.mxu0 0.0
    %7216 = vmatpush2.msra.mxu0 0.0
    %7217 = vmatprep.subr.mxu0 0.0
    %7218 = vmatpush2.msra.mxu0 0.0
    %7219 = vmatprep.subr.mxu0 0.0
    %7220 = vmatpush2.msra.mxu0 0.0
    %7221 = vmatprep.subr.mxu0 0.0
    %7222 = vmatpush2.msra.mxu0 0.0
    %7223 = vmatprep.subr.mxu0 0.0
    %7224 = vmatpush2.msra.mxu0 0.0
    %7225 = vmatprep.subr.mxu0 0.0
    %7226 = vmatpush2.msra.mxu0 0.0
    %7227 = vmatprep.subr.mxu0 0.0
    %7228 = vmatpush2.msra.mxu0 0.0
    %7229 = vmatprep.subr.mxu0 0.0
    %7230 = vmatpush2.msra.mxu0 0.0
    %7231 = vmatprep.subr.mxu0 0.0
    %7232 = vmatpush2.msra.mxu0 0.0
    %7233 = vmatprep.subr.mxu0 0.0
    %7234 = vmatpush2.msra.mxu0 0.0
    %7235 = vmatprep.subr.mxu0 0.0
    %7236 = vmatpush2.msra.mxu0 0.0
    %7237 = vmatprep.subr.mxu0 0.0
    %7238 = vmatpush2.msra.mxu0 0.0
    %7239 = vmatprep.subr.mxu0 0.0
    %7240 = vmatpush2.msra.mxu0 0.0
    %7241 = vmatprep.subr.mxu0 0.0
    %7242 = vmatpush2.msra.mxu0 0.0
    %7243 = vmatprep.subr.mxu0 0.0
    %7244 = vmatpush2.msra.mxu0 0.0
    %7245 = vmatprep.mubr.f32.mxu0 0.0
    %7246 = vmatmul.mubr.f32.gmra.mxu0 %v7028
    %v7247 = vpop.f32.mrf.mxu0
    %v7248 = vadd.f32 %v882, %v7247
    %v7249 = vpop.f32.mrf.mxu0
    %7250 = vdwg.mxu0
    %7251 = vmatprep.subr.mxu0 0.0
    %7252 = vmatpush1.msra.mxu0 0.0
    %7253 = vmatprep.subr.mxu0 0.0
    %7254 = vmatpush1.msra.mxu0 0.0
    %7255 = vmatprep.subr.mxu0 0.0
    %7256 = vmatpush1.msra.mxu0 0.0
    %7257 = vmatprep.subr.mxu0 0.0
    %7258 = vmatpush1.msra.mxu0 0.0
    %7259 = vmatprep.subr.mxu0 0.0
    %7260 = vmatpush1.msra.mxu0 0.0
    %7261 = vmatprep.subr.mxu0 0.0
    %7262 = vmatpush1.msra.mxu0 0.0
    %7263 = vmatprep.subr.mxu0 0.0
    %7264 = vmatpush1.msra.mxu0 0.0
    %7265 = vmatprep.subr.mxu0 0.0
    %7266 = vmatpush1.msra.mxu0 0.0
    %7267 = vmatprep.subr.mxu0 0.0
    %7268 = vmatpush1.msra.mxu0 0.0
    %7269 = vmatprep.subr.mxu0 0.0
    %7270 = vmatpush1.msra.mxu0 0.0
    %7271 = vmatprep.subr.mxu0 0.0
    %7272 = vmatpush1.msra.mxu0 0.0
    %7273 = vmatprep.subr.mxu0 0.0
    %7274 = vmatpush1.msra.mxu0 0.0
    %7275 = vmatprep.subr.mxu0 0.0
    %7276 = vmatpush1.msra.mxu0 %v211
    %7277 = vmatprep.subr.mxu0 0.0
    %7278 = vmatpush1.msra.mxu0 %v210
    %7279 = vmatprep.subr.mxu0 0.0
    %7280 = vmatpush1.msra.mxu0 %v209
    %7281 = vmatprep.subr.mxu0 0.0
    %7282 = vmatpush1.msra.mxu0 %v208
    %7283 = vmatprep.subr.mxu0 0.0
    %7284 = vmatpush2.msra.mxu0 0.0
    %7285 = vmatprep.subr.mxu0 0.0
    %7286 = vmatpush2.msra.mxu0 0.0
    %7287 = vmatprep.subr.mxu0 0.0
    %7288 = vmatpush2.msra.mxu0 0.0
    %7289 = vmatprep.subr.mxu0 0.0
    %7290 = vmatpush2.msra.mxu0 0.0
    %7291 = vmatprep.subr.mxu0 0.0
    %7292 = vmatpush2.msra.mxu0 0.0
    %7293 = vmatprep.subr.mxu0 0.0
    %7294 = vmatpush2.msra.mxu0 0.0
    %7295 = vmatprep.subr.mxu0 0.0
    %7296 = vmatpush2.msra.mxu0 0.0
    %7297 = vmatprep.subr.mxu0 0.0
    %7298 = vmatpush2.msra.mxu0 0.0
    %7299 = vmatprep.subr.mxu0 0.0
    %7300 = vmatpush2.msra.mxu0 0.0
    %7301 = vmatprep.subr.mxu0 0.0
    %7302 = vmatpush2.msra.mxu0 0.0
    %7303 = vmatprep.subr.mxu0 0.0
    %7304 = vmatpush2.msra.mxu0 0.0
    %7305 = vmatprep.subr.mxu0 0.0
    %7306 = vmatpush2.msra.mxu0 0.0
    %7307 = vmatprep.subr.mxu0 0.0
    %7308 = vmatpush2.msra.mxu0 0.0
    %7309 = vmatprep.subr.mxu0 0.0
    %7310 = vmatpush2.msra.mxu0 0.0
    %7311 = vmatprep.subr.mxu0 0.0
    %7312 = vmatpush2.msra.mxu0 0.0
    %7313 = vmatprep.subr.mxu0 0.0
    %7314 = vmatpush2.msra.mxu0 0.0
    %7315 = vmatprep.mubr.f32.mxu0 0.0
    %7316 = vmatmul.mubr.f32.gmra.mxu0 %v7101
    %v7317 = vpop.f32.mrf.mxu0
    %v7318 = vadd.f32 0.0, %v7317
    %v7319 = vpop.f32.mrf.mxu0
    %7320 = vdwg.mxu0
    %v7321 = vadd.f32 %v7248, %v7318
    %v7322 = vadd.f32 %v7321, %v1029
    %v7323 = vxor.u32 %v7322, 2147483648
    %v7324 = vmul.f32 %v7323, 1.442695
    %v7325 = vpow.pop %v7324
    %v7326 = vadd.f32 %v7325, 1.0
    %v7327 = vrcp.pop %v7326
    %v7328 = vmul.f32 1.0, %v7327
    %7329 = vmatprep.subr.mxu0 0.0
    %7330 = vmatpush1.msra.mxu0 0.0
    %7331 = vmatprep.subr.mxu0 0.0
    %7332 = vmatpush1.msra.mxu0 0.0
    %7333 = vmatprep.subr.mxu0 0.0
    %7334 = vmatpush1.msra.mxu0 0.0
    %7335 = vmatprep.subr.mxu0 0.0
    %7336 = vmatpush1.msra.mxu0 0.0
    %7337 = vmatprep.subr.mxu0 0.0
    %7338 = vmatpush1.msra.mxu0 0.0
    %7339 = vmatprep.subr.mxu0 0.0
    %7340 = vmatpush1.msra.mxu0 0.0
    %7341 = vmatprep.subr.mxu0 0.0
    %7342 = vmatpush1.msra.mxu0 0.0
    %7343 = vmatprep.subr.mxu0 0.0
    %7344 = vmatpush1.msra.mxu0 0.0
    %7345 = vmatprep.subr.mxu0 0.0
    %7346 = vmatpush1.msra.mxu0 0.0
    %7347 = vmatprep.subr.mxu0 0.0
    %7348 = vmatpush1.msra.mxu0 0.0
    %7349 = vmatprep.subr.mxu0 0.0
    %7350 = vmatpush1.msra.mxu0 0.0
    %7351 = vmatprep.subr.mxu0 0.0
    %7352 = vmatpush1.msra.mxu0 0.0
    %7353 = vmatprep.subr.mxu0 0.0
    %7354 = vmatpush1.msra.mxu0 %v202
    %7355 = vmatprep.subr.mxu0 0.0
    %7356 = vmatpush1.msra.mxu0 %v201
    %7357 = vmatprep.subr.mxu0 0.0
    %7358 = vmatpush1.msra.mxu0 %v200
    %7359 = vmatprep.subr.mxu0 0.0
    %7360 = vmatpush1.msra.mxu0 %v199
    %7361 = vmatprep.subr.mxu0 0.0
    %7362 = vmatpush2.msra.mxu0 0.0
    %7363 = vmatprep.subr.mxu0 0.0
    %7364 = vmatpush2.msra.mxu0 0.0
    %7365 = vmatprep.subr.mxu0 0.0
    %7366 = vmatpush2.msra.mxu0 0.0
    %7367 = vmatprep.subr.mxu0 0.0
    %7368 = vmatpush2.msra.mxu0 0.0
    %7369 = vmatprep.subr.mxu0 0.0
    %7370 = vmatpush2.msra.mxu0 0.0
    %7371 = vmatprep.subr.mxu0 0.0
    %7372 = vmatpush2.msra.mxu0 0.0
    %7373 = vmatprep.subr.mxu0 0.0
    %7374 = vmatpush2.msra.mxu0 0.0
    %7375 = vmatprep.subr.mxu0 0.0
    %7376 = vmatpush2.msra.mxu0 0.0
    %7377 = vmatprep.subr.mxu0 0.0
    %7378 = vmatpush2.msra.mxu0 0.0
    %7379 = vmatprep.subr.mxu0 0.0
    %7380 = vmatpush2.msra.mxu0 0.0
    %7381 = vmatprep.subr.mxu0 0.0
    %7382 = vmatpush2.msra.mxu0 0.0
    %7383 = vmatprep.subr.mxu0 0.0
    %7384 = vmatpush2.msra.mxu0 0.0
    %7385 = vmatprep.subr.mxu0 0.0
    %7386 = vmatpush2.msra.mxu0 0.0
    %7387 = vmatprep.subr.mxu0 0.0
    %7388 = vmatpush2.msra.mxu0 0.0
    %7389 = vmatprep.subr.mxu0 0.0
    %7390 = vmatpush2.msra.mxu0 0.0
    %7391 = vmatprep.subr.mxu0 0.0
    %7392 = vmatpush2.msra.mxu0 0.0
    %7393 = vmatprep.mubr.f32.mxu0 0.0
    %7394 = vmatmul.mubr.f32.gmra.mxu0 %v7028
    %v7395 = vpop.f32.mrf.mxu0
    %v7396 = vadd.f32 %v1042, %v7395
    %v7397 = vpop.f32.mrf.mxu0
    %7398 = vdwg.mxu0
    %7399 = vmatprep.subr.mxu0 0.0
    %7400 = vmatpush1.msra.mxu0 0.0
    %7401 = vmatprep.subr.mxu0 0.0
    %7402 = vmatpush1.msra.mxu0 0.0
    %7403 = vmatprep.subr.mxu0 0.0
    %7404 = vmatpush1.msra.mxu0 0.0
    %7405 = vmatprep.subr.mxu0 0.0
    %7406 = vmatpush1.msra.mxu0 0.0
    %7407 = vmatprep.subr.mxu0 0.0
    %7408 = vmatpush1.msra.mxu0 0.0
    %7409 = vmatprep.subr.mxu0 0.0
    %7410 = vmatpush1.msra.mxu0 0.0
    %7411 = vmatprep.subr.mxu0 0.0
    %7412 = vmatpush1.msra.mxu0 0.0
    %7413 = vmatprep.subr.mxu0 0.0
    %7414 = vmatpush1.msra.mxu0 0.0
    %7415 = vmatprep.subr.mxu0 0.0
    %7416 = vmatpush1.msra.mxu0 0.0
    %7417 = vmatprep.subr.mxu0 0.0
    %7418 = vmatpush1.msra.mxu0 0.0
    %7419 = vmatprep.subr.mxu0 0.0
    %7420 = vmatpush1.msra.mxu0 0.0
    %7421 = vmatprep.subr.mxu0 0.0
    %7422 = vmatpush1.msra.mxu0 0.0
    %7423 = vmatprep.subr.mxu0 0.0
    %7424 = vmatpush1.msra.mxu0 %v216
    %7425 = vmatprep.subr.mxu0 0.0
    %7426 = vmatpush1.msra.mxu0 %v215
    %7427 = vmatprep.subr.mxu0 0.0
    %7428 = vmatpush1.msra.mxu0 %v214
    %7429 = vmatprep.subr.mxu0 0.0
    %7430 = vmatpush1.msra.mxu0 %v213
    %7431 = vmatprep.subr.mxu0 0.0
    %7432 = vmatpush2.msra.mxu0 0.0
    %7433 = vmatprep.subr.mxu0 0.0
    %7434 = vmatpush2.msra.mxu0 0.0
    %7435 = vmatprep.subr.mxu0 0.0
    %7436 = vmatpush2.msra.mxu0 0.0
    %7437 = vmatprep.subr.mxu0 0.0
    %7438 = vmatpush2.msra.mxu0 0.0
    %7439 = vmatprep.subr.mxu0 0.0
    %7440 = vmatpush2.msra.mxu0 0.0
    %7441 = vmatprep.subr.mxu0 0.0
    %7442 = vmatpush2.msra.mxu0 0.0
    %7443 = vmatprep.subr.mxu0 0.0
    %7444 = vmatpush2.msra.mxu0 0.0
    %7445 = vmatprep.subr.mxu0 0.0
    %7446 = vmatpush2.msra.mxu0 0.0
    %7447 = vmatprep.subr.mxu0 0.0
    %7448 = vmatpush2.msra.mxu0 0.0
    %7449 = vmatprep.subr.mxu0 0.0
    %7450 = vmatpush2.msra.mxu0 0.0
    %7451 = vmatprep.subr.mxu0 0.0
    %7452 = vmatpush2.msra.mxu0 0.0
    %7453 = vmatprep.subr.mxu0 0.0
    %7454 = vmatpush2.msra.mxu0 0.0
    %7455 = vmatprep.subr.mxu0 0.0
    %7456 = vmatpush2.msra.mxu0 0.0
    %7457 = vmatprep.subr.mxu0 0.0
    %7458 = vmatpush2.msra.mxu0 0.0
    %7459 = vmatprep.subr.mxu0 0.0
    %7460 = vmatpush2.msra.mxu0 0.0
    %7461 = vmatprep.subr.mxu0 0.0
    %7462 = vmatpush2.msra.mxu0 0.0
    %7463 = vmatprep.mubr.f32.mxu0 0.0
    %7464 = vmatmul.mubr.f32.gmra.mxu0 %v7101
    %v7465 = vpop.f32.mrf.mxu0
    %v7466 = vadd.f32 %v1118, %v7465
    %v7467 = vpop.f32.mrf.mxu0
    %7468 = vdwg.mxu0
    %v7469 = vmul.f32 %v7180, %v7466
    %v7470 = vadd.f32 %v7396, %v7469
    %v7471 = vtanh.pop %v7470
    %v7472 = vsub.f32 1.0, %v7328
    %v7473 = vmul.f32 %v7472, %v7471
    %v7474 = vmul.f32 %v7328, %v6578
    %v7475 = vadd.f32 %v7473, %v7474
    %v7476 = vld [vmem:[#allocation10] sm:$0xff]
    %v7477 = vld [vmem:[#allocation10 + $0x8] sm:$0xff]
    %v7478 = vld [vmem:[#allocation10 + $0x10] sm:$0xff]
    %v7479 = vld [vmem:[#allocation10 + $0x18] sm:$0xff]
    %v7480 = vld [vmem:[%s10] sm:$0x1]
    %v7482 = vlaneseq
    %v7483 = vshrl.u32 %v7482, 7
    %v7484 = vsub.s32 0, %v7483
    %v7485 = vrot.slane %v7480, %v7484
    %v7488 = vsel %vm308, %v7475, 0
    %7490 = vmatprep.subr.mxu0 0.0
    %7491 = vmatpush1.msra.mxu0 0.0
    %7492 = vmatprep.subr.mxu0 0.0
    %7493 = vmatpush1.msra.mxu0 0.0
    %7494 = vmatprep.subr.mxu0 0.0
    %7495 = vmatpush1.msra.mxu0 0.0
    %7496 = vmatprep.subr.mxu0 0.0
    %7497 = vmatpush1.msra.mxu0 0.0
    %7498 = vmatprep.subr.mxu0 0.0
    %7499 = vmatpush1.msra.mxu0 0.0
    %7500 = vmatprep.subr.mxu0 0.0
    %7501 = vmatpush1.msra.mxu0 0.0
    %7502 = vmatprep.subr.mxu0 0.0
    %7503 = vmatpush1.msra.mxu0 0.0
    %7504 = vmatprep.subr.mxu0 0.0
    %7505 = vmatpush1.msra.mxu0 0.0
    %7506 = vmatprep.subr.mxu0 0.0
    %7507 = vmatpush1.msra.mxu0 0.0
    %7508 = vmatprep.subr.mxu0 0.0
    %7509 = vmatpush1.msra.mxu0 0.0
    %7510 = vmatprep.subr.mxu0 0.0
    %7511 = vmatpush1.msra.mxu0 0.0
    %7512 = vmatprep.subr.mxu0 0.0
    %7513 = vmatpush1.msra.mxu0 0.0
    %7514 = vmatprep.subr.mxu0 0.0
    %7515 = vmatpush1.msra.mxu0 %v7479
    %7516 = vmatprep.subr.mxu0 0.0
    %7517 = vmatpush1.msra.mxu0 %v7478
    %7518 = vmatprep.subr.mxu0 0.0
    %7519 = vmatpush1.msra.mxu0 %v7477
    %7520 = vmatprep.subr.mxu0 0.0
    %7521 = vmatpush1.msra.mxu0 %v7476
    %7522 = vmatprep.subr.mxu0 0.0
    %7523 = vmatpush2.msra.mxu0 0.0
    %7524 = vmatprep.subr.mxu0 0.0
    %7525 = vmatpush2.msra.mxu0 0.0
    %7526 = vmatprep.subr.mxu0 0.0
    %7527 = vmatpush2.msra.mxu0 0.0
    %7528 = vmatprep.subr.mxu0 0.0
    %7529 = vmatpush2.msra.mxu0 0.0
    %7530 = vmatprep.subr.mxu0 0.0
    %7531 = vmatpush2.msra.mxu0 0.0
    %7532 = vmatprep.subr.mxu0 0.0
    %7533 = vmatpush2.msra.mxu0 0.0
    %7534 = vmatprep.subr.mxu0 0.0
    %7535 = vmatpush2.msra.mxu0 0.0
    %7536 = vmatprep.subr.mxu0 0.0
    %7537 = vmatpush2.msra.mxu0 0.0
    %7538 = vmatprep.subr.mxu0 0.0
    %7539 = vmatpush2.msra.mxu0 0.0
    %7540 = vmatprep.subr.mxu0 0.0
    %7541 = vmatpush2.msra.mxu0 0.0
    %7542 = vmatprep.subr.mxu0 0.0
    %7543 = vmatpush2.msra.mxu0 0.0
    %7544 = vmatprep.subr.mxu0 0.0
    %7545 = vmatpush2.msra.mxu0 0.0
    %7546 = vmatprep.subr.mxu0 0.0
    %7547 = vmatpush2.msra.mxu0 0.0
    %7548 = vmatprep.subr.mxu0 0.0
    %7549 = vmatpush2.msra.mxu0 0.0
    %7550 = vmatprep.subr.mxu0 0.0
    %7551 = vmatpush2.msra.mxu0 0.0
    %7552 = vmatprep.subr.mxu0 0.0
    %7553 = vmatpush2.msra.mxu0 0.0
    %7554 = vmatprep.mubr.f32.mxu0 0.0
    %7555 = vmatmul.mubr.f32.gmra.mxu0 %v7488
    %v7556 = vpop.f32.mrf.mxu0
    %v7557 = vadd.f32 %v7485, %v7556
    %v7558 = vpop.f32.mrf.mxu0
    %7559 = vdwg.mxu0
    %vm7560 = vcmp.gt.f32.partialorder %v7557, 0.0
    %v7561 = vmul.f32 %v7557, 0.01
    %v7562 = vsel %vm7560, %v7557, %v7561
    %v7563 = vld [vmem:[#allocation11] sm:$0xff]
    %v7564 = vld [vmem:[#allocation11 + $0x8] sm:$0xff]
    %v7565 = vld [vmem:[#allocation11 + $0x10] sm:$0xff]
    %v7566 = vld [vmem:[#allocation11 + $0x18] sm:$0xff]
    %v7567 = vld [vmem:[#allocation11 + $0x20] sm:$0xff]
    %v7568 = vld [vmem:[#allocation11 + $0x28] sm:$0xff]
    %v7569 = vld [vmem:[#allocation11 + $0x30] sm:$0xff]
    %v7570 = vld [vmem:[#allocation11 + $0x38] sm:$0xff]
    %v7571 = vld [vmem:[#allocation11 + $0x40] sm:$0xff]
    %v7572 = vld [vmem:[#allocation11 + $0x48] sm:$0xff]
    %v7573 = vld [vmem:[#allocation11 + $0x50] sm:$0xff]
    %v7574 = vld [vmem:[#allocation11 + $0x58] sm:$0xff]
    %v7575 = vld [vmem:[%s12] sm:$0x1]
    %v7577 = vlaneseq
    %v7578 = vshrl.u32 %v7577, 7
    %v7579 = vsub.s32 0, %v7578
    %v7580 = vrot.slane %v7575, %v7579
    %vm7582 = vcmask 785408
    %v7584 = vsel %vm7582, %v7562, 0
    %7586 = vmatprep.subr.mxu0 0.0
    %7587 = vmatpush1.msra.mxu0 0.0
    %7588 = vmatprep.subr.mxu0 0.0
    %7589 = vmatpush1.msra.mxu0 0.0
    %7590 = vmatprep.subr.mxu0 0.0
    %7591 = vmatpush1.msra.mxu0 0.0
    %7592 = vmatprep.subr.mxu0 0.0
    %7593 = vmatpush1.msra.mxu0 0.0
    %7594 = vmatprep.subr.mxu0 0.0
    %7595 = vmatpush1.msra.mxu0 %v7574
    %7596 = vmatprep.subr.mxu0 0.0
    %7597 = vmatpush1.msra.mxu0 %v7573
    %7598 = vmatprep.subr.mxu0 0.0
    %7599 = vmatpush1.msra.mxu0 %v7572
    %7600 = vmatprep.subr.mxu0 0.0
    %7601 = vmatpush1.msra.mxu0 %v7571
    %7602 = vmatprep.subr.mxu0 0.0
    %7603 = vmatpush1.msra.mxu0 %v7570
    %7604 = vmatprep.subr.mxu0 0.0
    %7605 = vmatpush1.msra.mxu0 %v7569
    %7606 = vmatprep.subr.mxu0 0.0
    %7607 = vmatpush1.msra.mxu0 %v7568
    %7608 = vmatprep.subr.mxu0 0.0
    %7609 = vmatpush1.msra.mxu0 %v7567
    %7610 = vmatprep.subr.mxu0 0.0
    %7611 = vmatpush1.msra.mxu0 %v7566
    %7612 = vmatprep.subr.mxu0 0.0
    %7613 = vmatpush1.msra.mxu0 %v7565
    %7614 = vmatprep.subr.mxu0 0.0
    %7615 = vmatpush1.msra.mxu0 %v7564
    %7616 = vmatprep.subr.mxu0 0.0
    %7617 = vmatpush1.msra.mxu0 %v7563
    %7618 = vmatprep.subr.mxu0 0.0
    %7619 = vmatpush2.msra.mxu0 0.0
    %7620 = vmatprep.subr.mxu0 0.0
    %7621 = vmatpush2.msra.mxu0 0.0
    %7622 = vmatprep.subr.mxu0 0.0
    %7623 = vmatpush2.msra.mxu0 0.0
    %7624 = vmatprep.subr.mxu0 0.0
    %7625 = vmatpush2.msra.mxu0 0.0
    %7626 = vmatprep.subr.mxu0 0.0
    %7627 = vmatpush2.msra.mxu0 0.0
    %7628 = vmatprep.subr.mxu0 0.0
    %7629 = vmatpush2.msra.mxu0 0.0
    %7630 = vmatprep.subr.mxu0 0.0
    %7631 = vmatpush2.msra.mxu0 0.0
    %7632 = vmatprep.subr.mxu0 0.0
    %7633 = vmatpush2.msra.mxu0 0.0
    %7634 = vmatprep.subr.mxu0 0.0
    %7635 = vmatpush2.msra.mxu0 0.0
    %7636 = vmatprep.subr.mxu0 0.0
    %7637 = vmatpush2.msra.mxu0 0.0
    %7638 = vmatprep.subr.mxu0 0.0
    %7639 = vmatpush2.msra.mxu0 0.0
    %7640 = vmatprep.subr.mxu0 0.0
    %7641 = vmatpush2.msra.mxu0 0.0
    %7642 = vmatprep.subr.mxu0 0.0
    %7643 = vmatpush2.msra.mxu0 0.0
    %7644 = vmatprep.subr.mxu0 0.0
    %7645 = vmatpush2.msra.mxu0 0.0
    %7646 = vmatprep.subr.mxu0 0.0
    %7647 = vmatpush2.msra.mxu0 0.0
    %7648 = vmatprep.subr.mxu0 0.0
    %7649 = vmatpush2.msra.mxu0 0.0
    %7650 = vmatprep.mubr.f32.mxu0 0.0
    %7651 = vmatmul.mubr.f32.gmra.mxu0 %v7584
    %v7652 = vpop.f32.mrf.mxu0
    %v7653 = vadd.f32 %v7580, %v7652
    %v7654 = vpop.f32.mrf.mxu0
    %7655 = vdwg.mxu0
    %vm7656 = vcmp.gt.f32.partialorder %v7653, 0.0
    %v7657 = vmul.f32 %v7653, 0.01
    %v7658 = vsel %vm7656, %v7653, %v7657
    %v7659 = vld [vmem:[#allocation13] sm:$0xff]
    %v7660 = vld [vmem:[#allocation13 + $0x8] sm:$0xff]
    %v7661 = vld [vmem:[#allocation13 + $0x10] sm:$0xff]
    %v7662 = vld [vmem:[#allocation13 + $0x18] sm:$0xff]
    %v7663 = vld [vmem:[#allocation13 + $0x20] sm:$0xff]
    %v7664 = vld [vmem:[#allocation13 + $0x28] sm:$0xff]
    %v7665 = vld [vmem:[#allocation13 + $0x30] sm:$0xff]
    %v7666 = vld [vmem:[#allocation13 + $0x38] sm:$0xff]
    %v7667 = vld [vmem:[#allocation13 + $0x40] sm:$0xff]
    %v7668 = vld [vmem:[#allocation13 + $0x48] sm:$0xff]
    %v7669 = vld [vmem:[#allocation13 + $0x50] sm:$0xff]
    %v7670 = vld [vmem:[#allocation13 + $0x58] sm:$0xff]
    %v7671 = vld [vmem:[%s14] sm:$0x1]
    %v7673 = vlaneseq
    %v7674 = vshrl.u32 %v7673, 7
    %v7675 = vsub.s32 0, %v7674
    %v7676 = vrot.slane %v7671, %v7675
    %v7679 = vsel %vm7582, %v7658, 0
    %7681 = vmatprep.subr.mxu0 0.0
    %7682 = vmatpush1.msra.mxu0 0.0
    %7683 = vmatprep.subr.mxu0 0.0
    %7684 = vmatpush1.msra.mxu0 0.0
    %7685 = vmatprep.subr.mxu0 0.0
    %7686 = vmatpush1.msra.mxu0 0.0
    %7687 = vmatprep.subr.mxu0 0.0
    %7688 = vmatpush1.msra.mxu0 0.0
    %7689 = vmatprep.subr.mxu0 0.0
    %7690 = vmatpush1.msra.mxu0 %v7670
    %7691 = vmatprep.subr.mxu0 0.0
    %7692 = vmatpush1.msra.mxu0 %v7669
    %7693 = vmatprep.subr.mxu0 0.0
    %7694 = vmatpush1.msra.mxu0 %v7668
    %7695 = vmatprep.subr.mxu0 0.0
    %7696 = vmatpush1.msra.mxu0 %v7667
    %7697 = vmatprep.subr.mxu0 0.0
    %7698 = vmatpush1.msra.mxu0 %v7666
    %7699 = vmatprep.subr.mxu0 0.0
    %7700 = vmatpush1.msra.mxu0 %v7665
    %7701 = vmatprep.subr.mxu0 0.0
    %7702 = vmatpush1.msra.mxu0 %v7664
    %7703 = vmatprep.subr.mxu0 0.0
    %7704 = vmatpush1.msra.mxu0 %v7663
    %7705 = vmatprep.subr.mxu0 0.0
    %7706 = vmatpush1.msra.mxu0 %v7662
    %7707 = vmatprep.subr.mxu0 0.0
    %7708 = vmatpush1.msra.mxu0 %v7661
    %7709 = vmatprep.subr.mxu0 0.0
    %7710 = vmatpush1.msra.mxu0 %v7660
    %7711 = vmatprep.subr.mxu0 0.0
    %7712 = vmatpush1.msra.mxu0 %v7659
    %7713 = vmatprep.subr.mxu0 0.0
    %7714 = vmatpush2.msra.mxu0 0.0
    %7715 = vmatprep.subr.mxu0 0.0
    %7716 = vmatpush2.msra.mxu0 0.0
    %7717 = vmatprep.subr.mxu0 0.0
    %7718 = vmatpush2.msra.mxu0 0.0
    %7719 = vmatprep.subr.mxu0 0.0
    %7720 = vmatpush2.msra.mxu0 0.0
    %7721 = vmatprep.subr.mxu0 0.0
    %7722 = vmatpush2.msra.mxu0 0.0
    %7723 = vmatprep.subr.mxu0 0.0
    %7724 = vmatpush2.msra.mxu0 0.0
    %7725 = vmatprep.subr.mxu0 0.0
    %7726 = vmatpush2.msra.mxu0 0.0
    %7727 = vmatprep.subr.mxu0 0.0
    %7728 = vmatpush2.msra.mxu0 0.0
    %7729 = vmatprep.subr.mxu0 0.0
    %7730 = vmatpush2.msra.mxu0 0.0
    %7731 = vmatprep.subr.mxu0 0.0
    %7732 = vmatpush2.msra.mxu0 0.0
    %7733 = vmatprep.subr.mxu0 0.0
    %7734 = vmatpush2.msra.mxu0 0.0
    %7735 = vmatprep.subr.mxu0 0.0
    %7736 = vmatpush2.msra.mxu0 0.0
    %7737 = vmatprep.subr.mxu0 0.0
    %7738 = vmatpush2.msra.mxu0 0.0
    %7739 = vmatprep.subr.mxu0 0.0
    %7740 = vmatpush2.msra.mxu0 0.0
    %7741 = vmatprep.subr.mxu0 0.0
    %7742 = vmatpush2.msra.mxu0 0.0
    %7743 = vmatprep.subr.mxu0 0.0
    %7744 = vmatpush2.msra.mxu0 0.0
    %7745 = vmatprep.mubr.f32.mxu0 0.0
    %7746 = vmatmul.mubr.f32.gmra.mxu0 %v7679
    %v7747 = vpop.f32.mrf.mxu0
    %v7748 = vadd.f32 %v7676, %v7747
    %v7749 = vpop.f32.mrf.mxu0
    %7750 = vdwg.mxu0
    %7751 = vst.msk [vmem:[#allocation14] sm:$0xff] %vm308, %v7748
    %v7752 = vld [vmem:[%s15] sm:$0xff]
    %v7753 = vld [vmem:[%s15 + $0x8] sm:$0xff]
    %v7754 = vld [vmem:[%s15 + $0x10] sm:$0xff]
    %v7755 = vld [vmem:[%s15 + $0x18] sm:$0xff]
    %v7756 = vld [vmem:[%s15 + $0x20] sm:$0xff]
    %v7757 = vld [vmem:[%s15 + $0x28] sm:$0xff]
    %v7758 = vld [vmem:[%s15 + $0x30] sm:$0xff]
    %v7759 = vld [vmem:[%s15 + $0x38] sm:$0xff]
    %v7760 = vld [vmem:[%s15 + $0x40] sm:$0xff]
    %v7761 = vld [vmem:[%s15 + $0x48] sm:$0xff]
    %v7762 = vld [vmem:[%s15 + $0x50] sm:$0xff]
    %v7763 = vld [vmem:[%s15 + $0x58] sm:$0xff]
    %v7765 = vsel %vm7582, %v7748, 0
    %7767 = vmatprep.subr.mxu0 0.0
    %7768 = vmatpush1.msra.mxu0 0.0
    %7769 = vmatprep.subr.mxu0 0.0
    %7770 = vmatpush1.msra.mxu0 0.0
    %7771 = vmatprep.subr.mxu0 0.0
    %7772 = vmatpush1.msra.mxu0 0.0
    %7773 = vmatprep.subr.mxu0 0.0
    %7774 = vmatpush1.msra.mxu0 0.0
    %7775 = vmatprep.subr.mxu0 0.0
    %7776 = vmatpush1.msra.mxu0 %v7763
    %7777 = vmatprep.subr.mxu0 0.0
    %7778 = vmatpush1.msra.mxu0 %v7762
    %7779 = vmatprep.subr.mxu0 0.0
    %7780 = vmatpush1.msra.mxu0 %v7761
    %7781 = vmatprep.subr.mxu0 0.0
    %7782 = vmatpush1.msra.mxu0 %v7760
    %7783 = vmatprep.subr.mxu0 0.0
    %7784 = vmatpush1.msra.mxu0 %v7759
    %7785 = vmatprep.subr.mxu0 0.0
    %7786 = vmatpush1.msra.mxu0 %v7758
    %7787 = vmatprep.subr.mxu0 0.0
    %7788 = vmatpush1.msra.mxu0 %v7757
    %7789 = vmatprep.subr.mxu0 0.0
    %7790 = vmatpush1.msra.mxu0 %v7756
    %7791 = vmatprep.subr.mxu0 0.0
    %7792 = vmatpush1.msra.mxu0 %v7755
    %7793 = vmatprep.subr.mxu0 0.0
    %7794 = vmatpush1.msra.mxu0 %v7754
    %7795 = vmatprep.subr.mxu0 0.0
    %7796 = vmatpush1.msra.mxu0 %v7753
    %7797 = vmatprep.subr.mxu0 0.0
    %7798 = vmatpush1.msra.mxu0 %v7752
    %7799 = vmatprep.subr.mxu0 0.0
    %7800 = vmatpush2.msra.mxu0 0.0
    %7801 = vmatprep.subr.mxu0 0.0
    %7802 = vmatpush2.msra.mxu0 0.0
    %7803 = vmatprep.subr.mxu0 0.0
    %7804 = vmatpush2.msra.mxu0 0.0
    %7805 = vmatprep.subr.mxu0 0.0
    %7806 = vmatpush2.msra.mxu0 0.0
    %7807 = vmatprep.subr.mxu0 0.0
    %7808 = vmatpush2.msra.mxu0 0.0
    %7809 = vmatprep.subr.mxu0 0.0
    %7810 = vmatpush2.msra.mxu0 0.0
    %7811 = vmatprep.subr.mxu0 0.0
    %7812 = vmatpush2.msra.mxu0 0.0
    %7813 = vmatprep.subr.mxu0 0.0
    %7814 = vmatpush2.msra.mxu0 0.0
    %7815 = vmatprep.subr.mxu0 0.0
    %7816 = vmatpush2.msra.mxu0 0.0
    %7817 = vmatprep.subr.mxu0 0.0
    %7818 = vmatpush2.msra.mxu0 0.0
    %7819 = vmatprep.subr.mxu0 0.0
    %7820 = vmatpush2.msra.mxu0 0.0
    %7821 = vmatprep.subr.mxu0 0.0
    %7822 = vmatpush2.msra.mxu0 0.0
    %7823 = vmatprep.subr.mxu0 0.0
    %7824 = vmatpush2.msra.mxu0 0.0
    %7825 = vmatprep.subr.mxu0 0.0
    %7826 = vmatpush2.msra.mxu0 0.0
    %7827 = vmatprep.subr.mxu0 0.0
    %7828 = vmatpush2.msra.mxu0 0.0
    %7829 = vmatprep.subr.mxu0 0.0
    %7830 = vmatpush2.msra.mxu0 0.0
    %7831 = vmatprep.mubr.f32.mxu0 0.0
    %7832 = vmatmul.mubr.f32.gmra.mxu0 %v7765
    %v7833 = vpop.f32.mrf.mxu0
    %v7834 = vadd.f32 0.0, %v7833
    %v7835 = vpop.f32.mrf.mxu0
    %7836 = vdwg.mxu0
    %v7837 = vld [vmem:[%s16] sm:$0x1]
    %v7839 = vlaneseq
    %v7840 = vshrl.u32 %v7839, 7
    %v7841 = vsub.s32 0, %v7840
    %v7842 = vrot.slane %v7837, %v7841
    %v7844 = vmul.f32 %v7834, %v7842
    %v7845 = vld [vmem:[%s17] sm:$0x1]
    %v7847 = vlaneseq
    %v7848 = vshrl.u32 %v7847, 7
    %v7849 = vsub.s32 0, %v7848
    %v7850 = vrot.slane %v7845, %v7849
    %v7852 = vadd.f32 %v7844, %v7850
    %vm7853 = vcmask 23552
    %7854 = vst.msk [vmem:[%s18] sm:$0xff] %vm7853, %v7852
    // Predicated region
    $region102: #{tpu_custom_call.1} parent=1 // pred_check
      _
    $region103: #{tpu_custom_call.1} parent=1 // pred_check_branch
      %7856 = sbr.rel (0) target = $region105
    $region104: #{tpu_custom_call.1} parent=1 // pred_region
      _
    $region105: #{tpu_custom_call.1} parent=1 // pred_fallthru
      _
    // Predicated region
    $region106: #{tpu_custom_call.1} parent=1 // pred_check
      _
    $region107: #{tpu_custom_call.1} parent=1 // pred_check_branch
      %7858 = sbr.rel (0) target = $region109
    $region108: #{tpu_custom_call.1} parent=1 // pred_region
      %s7860 = ssub.s32 128, 128
      %7861 = vsyncadd [#allocation4], %s7860
      %s7863 = sshll.u32 [#allocation14], 4
      %s7864 = int_to_ptr.vmem [resolvable:$true] %s7863
      %7866 = dma.vmem_to_hbm [thread:$0]  %s7864, 128, %s19, [#allocation4]
    $region109: #{tpu_custom_call.1} parent=1 // pred_fallthru
      _
    // Predicated region
    $region110: #{tpu_custom_call.1} parent=1 // pred_check
      _
    $region111: #{tpu_custom_call.1} parent=1 // pred_check_branch
      %7868 = sbr.rel (0) target = $region113
    $region112: #{tpu_custom_call.1} parent=1 // pred_region
      _
    $region113: #{tpu_custom_call.1} parent=1 // pred_fallthru
      _
    // Predicated region
    $region114: #{tpu_custom_call.1} parent=1 // pred_check
      _
    $region115: #{tpu_custom_call.1} parent=1 // pred_check_branch
      %7870 = sbr.rel (0) target = $region117
    $region116: #{tpu_custom_call.1} parent=1 // pred_region
      %7871 = dma.done [#allocation4], 128
    $region117: #{tpu_custom_call.1} parent=1 // pred_fallthru
      _
    %7872 = vsyncpa [#allocation3], 1
    %7873 = vsyncpa [#allocation6], 1
    %7874 = vsyncpa [#allocation9], 1
    %7875 = vsyncpa [#allocation12], 1
    %7876 = vsyncpa [#allocation4], 1

</llo_original>
